<compile_context>
chip_gen: v6e
topology: v6e:2x2x1
jax: 0.10.0
libtpu: 0.0.40
codegen_flags: <defaults>
</compile_context>

<pallas_src>
import jax
import jax.numpy as jnp
from jax import lax
from jax.experimental import pallas as pl
from jax.experimental.pallas import tpu as pltpu


# ----------------------------------------------------------------------------
# Fused conv(3x3, valid) + bias + ReLU + BN-affine + maxpool(2,2) stage kernel
# ----------------------------------------------------------------------------
def _conv_stage_kernel(x_ref, w_ref, b_ref, sc_ref, sh_ref, se_ref, o_ref):
    # x_ref : (h_in*c_in, w_in)        bf16 full image, rows-major, channels folded
    # w_ref : (3, c_out, 3*c_in)       bf16 weights, (kh, c_in) folded into K, one slab per kw
    # b/sc/sh: (c_out, 1)              f32 conv bias / BN scale / BN shift
    # se_ref: (w_out, w_pool)          bf16 0/1 even-column selection matrix
    # o_ref : (th_pool, c_out, w_pool) bf16 pooled output rows for this tile
    c_in = w_ref.shape[2] // 3
    w_out = se_ref.shape[0]
    th_pool = o_ref.shape[0]
    r_tile = pl.program_id(1)

    # Hoist loop-invariant loads out of the row loop.
    w0 = w_ref[0]
    w1 = w_ref[1]
    w2 = w_ref[2]
    bias = b_ref[...]
    scale = sc_ref[...]
    shift = sh_ref[...]
    se = se_ref[...]

    def conv_row(row):
        # One full conv output row: 3 MXU dots with K = 3*c_in (kh folded into K).
        start = pl.multiple_of(row * c_in, 8)
        win = x_ref[pl.ds(start, 3 * c_in), :]                      # (3*c_in, w_in)
        acc = jnp.dot(w0, win[:, 0:w_out], preferred_element_type=jnp.float32)
        acc += jnp.dot(w1, win[:, 1:1 + w_out], preferred_element_type=jnp.float32)
        acc += jnp.dot(w2, win[:, 2:2 + w_out], preferred_element_type=jnp.float32)
        y = jnp.maximum(acc + bias, 0.0)                            # conv bias + ReLU
        return y * scale + shift                                    # BatchNorm (eval)

    def body(p, carry):
        base = 2 * (r_tile * th_pool + p)                           # conv row pair
        y = jnp.maximum(conv_row(base), conv_row(base + 1))         # H pooling
        ysh = jnp.concatenate([y[:, 1:], y[:, :1]], axis=1)         # ysh[:, i] = y[:, i+1]
        m = jnp.maximum(y, ysh).astype(jnp.bfloat16)                # pairwise column max
        pooled = jnp.dot(m, se, preferred_element_type=jnp.float32)  # take even columns
        o_ref[p] = pooled.astype(o_ref.dtype)
        return carry

    lax.fori_loop(0, th_pool, body, 0)


def conv_stage(x_flat, w_fold, b, scale, shift, *, th_pool):
    """x_flat: (N, H*C_in, W) bf16; w_fold: (3, C_out, 3*C_in) bf16.
    Returns pooled activations (N, H_pool, C_out, W_pool) bf16."""
    n = x_flat.shape[0]
    w_in = x_flat.shape[2]
    c_out = w_fold.shape[1]
    c_in = w_fold.shape[2] // 3
    h_in = x_flat.shape[1] // c_in
    h_out, w_out = h_in - 2, w_in - 2
    h_pool, w_pool = h_out // 2, w_out // 2
    assert h_pool % th_pool == 0
    n_tiles = h_pool // th_pool

    cols = jnp.arange(w_pool)
    se = jnp.zeros((w_out, w_pool), jnp.bfloat16).at[2 * cols, cols].set(1)

    return pl.pallas_call(
        _conv_stage_kernel,
        out_shape=jax.ShapeDtypeStruct((n, h_pool, c_out, w_pool), jnp.bfloat16),
        grid=(n, n_tiles),
        in_specs=[
            pl.BlockSpec((None, h_in * c_in, w_in), lambda ni, ri: (ni, 0, 0)),
            pl.BlockSpec((3, c_out, 3 * c_in), lambda ni, ri: (0, 0, 0)),
            pl.BlockSpec((c_out, 1), lambda ni, ri: (0, 0)),
            pl.BlockSpec((c_out, 1), lambda ni, ri: (0, 0)),
            pl.BlockSpec((c_out, 1), lambda ni, ri: (0, 0)),
            pl.BlockSpec((w_out, w_pool), lambda ni, ri: (0, 0)),
        ],
        out_specs=pl.BlockSpec((None, th_pool, c_out, w_pool),
                               lambda ni, ri: (ni, ri, 0, 0)),
        compiler_params=pltpu.CompilerParams(
            dimension_semantics=("parallel", "parallel")),
    )(x_flat, w_fold, b.reshape(c_out, 1), scale.reshape(c_out, 1),
      shift.reshape(c_out, 1), se)


# ----------------------------------------------------------------------------
# fc1: K-tiled matmul (bf16 weights) with VMEM accumulator, ReLU epilogue,
#      2-way parallel split of the output columns (v7x megacore).
# ----------------------------------------------------------------------------
def _fc1_kernel(x_ref, w_ref, b_ref, o_ref, acc_ref):
    k = pl.program_id(1)
    tk = w_ref.shape[0]

    @pl.when(k == 0)
    def _():
        acc_ref[...] = jnp.zeros_like(acc_ref)

    start = pl.multiple_of(k * tk, 128)
    acc_ref[...] += jnp.dot(x_ref[:, pl.ds(start, tk)], w_ref[...],
                            preferred_element_type=jnp.float32)

    @pl.when(k == pl.num_programs(1) - 1)
    def _():
        o_ref[...] = jnp.maximum(acc_ref[...] + b_ref[...], 0.0).astype(o_ref.dtype)


def fc1_relu(x, w, b, *, tn=256, tk=6656):
    m, kdim = x.shape
    nout = w.shape[1]
    assert kdim % tk == 0 and nout % tn == 0
    return pl.pallas_call(
        _fc1_kernel,
        out_shape=jax.ShapeDtypeStruct((m, nout), jnp.bfloat16),
        grid=(nout // tn, kdim // tk),
        in_specs=[
            pl.BlockSpec((m, kdim), lambda j, k: (0, 0)),   # activations stay resident
            pl.BlockSpec((tk, tn), lambda j, k: (k, j)),
            pl.BlockSpec((1, tn), lambda j, k: (0, j)),
        ],
        out_specs=pl.BlockSpec((m, tn), lambda j, k: (0, j)),
        scratch_shapes=[pltpu.VMEM((m, tn), jnp.float32)],
        compiler_params=pltpu.CompilerParams(
            dimension_semantics=("parallel", "arbitrary")),
    )(x, w, b.reshape(1, nout))


# ----------------------------------------------------------------------------
# fc2 (ReLU) + fc3 (sigmoid) fused in one tiny kernel
# ----------------------------------------------------------------------------
def _fc23_kernel(x_ref, w2_ref, b2_ref, w3_ref, b3_ref, o_ref):
    h = jnp.dot(x_ref[...], w2_ref[...], preferred_element_type=jnp.float32)
    h = jnp.maximum(h + b2_ref[...], 0.0)
    z = jnp.dot(h.astype(jnp.bfloat16), w3_ref[...],
                preferred_element_type=jnp.float32) + b3_ref[...]
    o_ref[...] = jax.nn.sigmoid(z)


def fc2_fc3(x, w2, b2, w3, b3):
    m, d = x.shape
    h = w2.shape[1]
    return pl.pallas_call(
        _fc23_kernel,
        out_shape=jax.ShapeDtypeStruct((m, 1), jnp.float32),
        grid=(1,),
        in_specs=[
            pl.BlockSpec((m, d), lambda i: (0, 0)),
            pl.BlockSpec((d, h), lambda i: (0, 0)),
            pl.BlockSpec((1, h), lambda i: (0, 0)),
            pl.BlockSpec((h, 1), lambda i: (0, 0)),
            pl.BlockSpec((1, 1), lambda i: (0, 0)),
        ],
        out_specs=pl.BlockSpec((m, 1), lambda i: (0, 0)),
    )(x, w2, b2.reshape(1, h), w3, b3.reshape(1, 1))


# ----------------------------------------------------------------------------
# Full network forward (Pallas) and pure-JAX reference
# ----------------------------------------------------------------------------
def net_forward(x_nchw, p):
    n = x_nchw.shape[0]
    # NCHW -> (N, H, C, W); pad channels 3->8 so K-folding stays sublane-aligned.
    x = jnp.transpose(x_nchw, (0, 2, 1, 3))
    x = jnp.pad(x, ((0, 0), (0, 0), (0, 5), (0, 0)))
    x = x.astype(jnp.bfloat16).reshape(n, 224 * 8, 224)

    x = conv_stage(x, p["w1_fold"], p["conv1_b"], p["bn1_scale"], p["bn1_shift"],
                   th_pool=37)                          # (N, 111, 32, 111)
    x = x.reshape(n, 111 * 32, 111)
    x = conv_stage(x, p["w2_fold"], p["conv2_b"], p["bn2_scale"], p["bn2_shift"],
                   th_pool=27)                          # (N, 54, 64, 54)
    x = x.reshape(n, 54 * 64, 54)
    x = conv_stage(x, p["w3_fold"], p["conv3_b"], p["bn3_scale"], p["bn3_shift"],
                   th_pool=13)                          # (N, 26, 128, 26)

    # Flatten in (H, C, W) order (synthetic fc1 weights are defined in this
    # order; same 26*26*128 feature count as torch's (C, H, W) flatten).
    x = x.reshape(n, 26 * 128 * 26)                     # bf16
    x = fc1_relu(x, p["fc1_w"], p["fc1_b"])             # (N, 512) bf16
    x = fc2_fc3(x, p["fc2_w"], p["fc2_b"], p["fc3_w"], p["fc3_b"])   # (N, 1) f32
    return x


def ref_forward(x_nchw, p):
    y = x_nchw
    for i in (1, 2, 3):
        w = p[f"conv{i}_w"]                             # (O, I, 3, 3) f32 (bf16-rounded)
        y = lax.conv_general_dilated(y, w, (1, 1), "VALID",
                                     dimension_numbers=("NCHW", "OIHW", "NCHW"))
        y = jnp.maximum(y + p[f"conv{i}_b"][None, :, None, None], 0.0)
        y = y * p[f"bn{i}_scale"][None, :, None, None] + p[f"bn{i}_shift"][None, :, None, None]
        y = lax.reduce_window(y, -jnp.inf, lax.max, (1, 1, 2, 2), (1, 1, 2, 2), "VALID")
    y = jnp.transpose(y, (0, 2, 1, 3)).reshape(y.shape[0], -1)   # (H, C, W) flatten order
    y = jnp.maximum(y @ p["fc1_w"].astype(jnp.float32) + p["fc1_b"], 0.0)
    y = jnp.maximum(y @ p["fc2_w"].astype(jnp.float32) + p["fc2_b"], 0.0)
    return jax.nn.sigmoid(y @ p["fc3_w"].astype(jnp.float32) + p["fc3_b"])


def make_params(key):
    p = {}
    keys = iter(jax.random.split(key, 32))

    def nrm(shape, std):
        return (std * jax.random.normal(next(keys), shape)).astype(jnp.float32)

    def bf16_round(w):          # weights are quantized to bf16 for the kernels;
        return w.astype(jnp.bfloat16).astype(jnp.float32)   # ref sees same values

    conv_dims = [(3, 32), (32, 64), (64, 128)]
    for i, (ci, co) in enumerate(conv_dims, start=1):
        w = bf16_round(nrm((co, ci, 3, 3), 0.05))            # torch OIHW layout
        p[f"conv{i}_w"] = w
        ci_pad = 8 if ci < 8 else ci
        wp = jnp.pad(w, ((0, 0), (0, ci_pad - ci), (0, 0), (0, 0)))
        # fold: w_fold[kw, o, kh*c_in + ci] = W[o, ci, kh, kw]
        p[f"w{i}_fold"] = jnp.transpose(wp, (3, 0, 2, 1)).reshape(
            3, co, 3 * ci_pad).astype(jnp.bfloat16)
        p[f"conv{i}_b"] = nrm((co,), 0.05)
        gamma = 1.0 + nrm((co,), 0.1)
        beta = nrm((co,), 0.1)
        mean = nrm((co,), 0.1)
        var = jnp.abs(nrm((co,), 0.3)) + 0.5
        inv = gamma / jnp.sqrt(var + 1e-5)                   # BN(eval) folded
        p[f"bn{i}_scale"] = inv
        p[f"bn{i}_shift"] = beta - mean * inv

    p["fc1_w"] = nrm((26 * 26 * 128, 512), 0.01).astype(jnp.bfloat16)
    p["fc1_b"] = nrm((512,), 0.01)
    p["fc2_w"] = nrm((512, 64), 0.05).astype(jnp.bfloat16)
    p["fc2_b"] = nrm((64,), 0.05)
    p["fc3_w"] = nrm((64, 1), 0.05).astype(jnp.bfloat16)
    p["fc3_b"] = nrm((1,), 0.05)
    return p


if __name__ == "__main__":
    key = jax.random.PRNGKey(0)
    pkey, xkey = jax.random.split(key)
    params = make_params(pkey)
    # fc1 expects 26*26*128 features => input spatial size 224 (what the forward implies).
    x = jax.random.normal(xkey, (2, 3, 224, 224), dtype=jnp.float32)

    out = jax.block_until_ready(jax.jit(net_forward)(x, params))
    assert out.shape == (2, 1) and out.dtype == jnp.float32
    assert bool(jnp.all(jnp.isfinite(out)))

    ref = jax.block_until_ready(ref_forward(x, params))
    assert bool(jnp.allclose(out, ref, atol=3e-2, rtol=3e-2)), (out, ref)

    print("KERNEL_OK")
</pallas_src>

<mosaic_0001>
module attributes {stable_mosaic.version = 11 : i64} {
  func.func @_conv_stage_kernel(%arg0: i32, %arg1: i32, %arg2: memref<1x1792x224xbf16, #tpu.memory_space<vmem>>, %arg3: memref<3x32x24xbf16, #tpu.memory_space<vmem>>, %arg4: memref<32x1xf32, #tpu.memory_space<vmem>>, %arg5: memref<32x1xf32, #tpu.memory_space<vmem>>, %arg6: memref<32x1xf32, #tpu.memory_space<vmem>>, %arg7: memref<222x111xbf16, #tpu.memory_space<vmem>>, %arg8: memref<1x37x32x111xbf16, #tpu.memory_space<vmem>>) attributes {dimension_semantics = [#tpu.dimension_semantics<parallel>, #tpu.dimension_semantics<parallel>], iteration_bounds = array<i64: 2, 3>, scalar_prefetch = 0 : i64, scratch_operands = 0 : i64, tpu.core_type = #tpu.core_type<tc>, window_params = [{transform_indices = @transform_0, window_bounds = array<i64: 1, 1792, 224>}, {pipeline_mode = #tpu.pipeline_mode<synchronous>, transform_indices = @transform_1, window_bounds = array<i64: 3, 32, 24>}, {pipeline_mode = #tpu.pipeline_mode<synchronous>, transform_indices = @transform_2, window_bounds = array<i64: 32, 1>}, {pipeline_mode = #tpu.pipeline_mode<synchronous>, transform_indices = @transform_3, window_bounds = array<i64: 32, 1>}, {pipeline_mode = #tpu.pipeline_mode<synchronous>, transform_indices = @transform_4, window_bounds = array<i64: 32, 1>}, {pipeline_mode = #tpu.pipeline_mode<synchronous>, transform_indices = @transform_5, window_bounds = array<i64: 222, 111>}, {transform_indices = @transform_6, window_bounds = array<i64: 1, 37, 32, 111>}]} {
    %c0 = arith.constant 0 : index
    %c0_0 = arith.constant 0 : index
    %c0_1 = arith.constant 0 : index
    %0 = vector.load %arg3[%c0, %c0_0, %c0_1] : memref<3x32x24xbf16, #tpu.memory_space<vmem>>, vector<1x32x24xbf16>
    %1 = vector.shape_cast %0 : vector<1x32x24xbf16> to vector<32x24xbf16>
    %c1 = arith.constant 1 : index
    %c0_2 = arith.constant 0 : index
    %c0_3 = arith.constant 0 : index
    %2 = vector.load %arg3[%c1, %c0_2, %c0_3] : memref<3x32x24xbf16, #tpu.memory_space<vmem>>, vector<1x32x24xbf16>
    %3 = vector.shape_cast %2 : vector<1x32x24xbf16> to vector<32x24xbf16>
    %c2 = arith.constant 2 : index
    %c0_4 = arith.constant 0 : index
    %c0_5 = arith.constant 0 : index
    %4 = vector.load %arg3[%c2, %c0_4, %c0_5] : memref<3x32x24xbf16, #tpu.memory_space<vmem>>, vector<1x32x24xbf16>
    %5 = vector.shape_cast %4 : vector<1x32x24xbf16> to vector<32x24xbf16>
    %c0_6 = arith.constant 0 : index
    %c0_7 = arith.constant 0 : index
    %6 = vector.load %arg4[%c0_6, %c0_7] : memref<32x1xf32, #tpu.memory_space<vmem>>, vector<32x1xf32>
    %c0_8 = arith.constant 0 : index
    %c0_9 = arith.constant 0 : index
    %7 = vector.load %arg5[%c0_8, %c0_9] : memref<32x1xf32, #tpu.memory_space<vmem>>, vector<32x1xf32>
    %c0_10 = arith.constant 0 : index
    %c0_11 = arith.constant 0 : index
    %8 = vector.load %arg6[%c0_10, %c0_11] : memref<32x1xf32, #tpu.memory_space<vmem>>, vector<32x1xf32>
    %c0_12 = arith.constant 0 : index
    %c0_13 = arith.constant 0 : index
    %9 = vector.load %arg7[%c0_12, %c0_13] : memref<222x111xbf16, #tpu.memory_space<vmem>>, vector<222x111xbf16>
    %c0_i32 = arith.constant 0 : i32
    %c37_i32 = arith.constant 37 : i32
    %10 = arith.addi %c0_i32, %c37_i32 : i32
    %c1_i32 = arith.constant 1 : i32
    scf.for %arg9 = %c0_i32 to %10 step %c1_i32  : i32 {
      %c37_i32_15 = arith.constant 37 : i32
      %11 = arith.muli %arg1, %c37_i32_15 : i32
      %12 = arith.addi %11, %arg9 : i32
      %c2_i32 = arith.constant 2 : i32
      %13 = arith.muli %c2_i32, %12 : i32
      %c8_i32 = arith.constant 8 : i32
      %14 = arith.muli %13, %c8_i32 : i32
      %15 = tpu.assume_multiple %14, 8 : i32
      %c0_16 = arith.constant 0 : index
      %16 = arith.index_cast %15 : i32 to index
      %c0_17 = arith.constant 0 : index
      %17 = vector.load %arg2[%c0_16, %16, %c0_17] : memref<1x1792x224xbf16, #tpu.memory_space<vmem>>, vector<1x24x224xbf16>
      %18 = vector.shape_cast %17 : vector<1x24x224xbf16> to vector<24x224xbf16>
      %19 = vector.extract_strided_slice %18 {offsets = [0, 0], sizes = [24, 222], strides = [1, 1]} : vector<24x224xbf16> to vector<24x222xbf16>
      %cst = arith.constant dense<0.000000e+00> : vector<32x222xf32>
      %20 = tpu.matmul %1, %19, %cst {dimension_numbers = #tpu.dot_dimension_numbers<[1], [0], [0], [1], [0, 0, 1, 1], [], []>} : vector<32x24xbf16>, vector<24x222xbf16>, vector<32x222xf32> -> vector<32x222xf32>
      %21 = vector.extract_strided_slice %18 {offsets = [0, 1], sizes = [24, 222], strides = [1, 1]} : vector<24x224xbf16> to vector<24x222xbf16>
      %cst_18 = arith.constant dense<0.000000e+00> : vector<32x222xf32>
      %22 = tpu.matmul %3, %21, %cst_18 {dimension_numbers = #tpu.dot_dimension_numbers<[1], [0], [0], [1], [0, 0, 1, 1], [], []>} : vector<32x24xbf16>, vector<24x222xbf16>, vector<32x222xf32> -> vector<32x222xf32>
      %23 = arith.addf %20, %22 : vector<32x222xf32>
      %24 = vector.extract_strided_slice %18 {offsets = [0, 2], sizes = [24, 222], strides = [1, 1]} : vector<24x224xbf16> to vector<24x222xbf16>
      %cst_19 = arith.constant dense<0.000000e+00> : vector<32x222xf32>
      %25 = tpu.matmul %5, %24, %cst_19 {dimension_numbers = #tpu.dot_dimension_numbers<[1], [0], [0], [1], [0, 0, 1, 1], [], []>} : vector<32x24xbf16>, vector<24x222xbf16>, vector<32x222xf32> -> vector<32x222xf32>
      %26 = arith.addf %23, %25 : vector<32x222xf32>
      %27 = vector.broadcast %6 : vector<32x1xf32> to vector<32x222xf32>
      %28 = arith.addf %26, %27 : vector<32x222xf32>
      %cst_20 = arith.constant 0.000000e+00 : f32
      %29 = vector.broadcast %cst_20 : f32 to vector<32x222xf32>
      %30 = arith.maximumf %28, %29 : vector<32x222xf32>
      %31 = vector.broadcast %7 : vector<32x1xf32> to vector<32x222xf32>
      %32 = arith.mulf %30, %31 : vector<32x222xf32>
      %33 = vector.broadcast %8 : vector<32x1xf32> to vector<32x222xf32>
      %34 = arith.addf %32, %33 : vector<32x222xf32>
      %c1_i32_21 = arith.constant 1 : i32
      %35 = arith.addi %13, %c1_i32_21 : i32
      %c8_i32_22 = arith.constant 8 : i32
      %36 = arith.muli %35, %c8_i32_22 : i32
      %37 = tpu.assume_multiple %36, 8 : i32
      %c0_23 = arith.constant 0 : index
      %38 = arith.index_cast %37 : i32 to index
      %c0_24 = arith.constant 0 : index
      %39 = vector.load %arg2[%c0_23, %38, %c0_24] : memref<1x1792x224xbf16, #tpu.memory_space<vmem>>, vector<1x24x224xbf16>
      %40 = vector.shape_cast %39 : vector<1x24x224xbf16> to vector<24x224xbf16>
      %41 = vector.extract_strided_slice %40 {offsets = [0, 0], sizes = [24, 222], strides = [1, 1]} : vector<24x224xbf16> to vector<24x222xbf16>
      %cst_25 = arith.constant dense<0.000000e+00> : vector<32x222xf32>
      %42 = tpu.matmul %1, %41, %cst_25 {dimension_numbers = #tpu.dot_dimension_numbers<[1], [0], [0], [1], [0, 0, 1, 1], [], []>} : vector<32x24xbf16>, vector<24x222xbf16>, vector<32x222xf32> -> vector<32x222xf32>
      %43 = vector.extract_strided_slice %40 {offsets = [0, 1], sizes = [24, 222], strides = [1, 1]} : vector<24x224xbf16> to vector<24x222xbf16>
      %cst_26 = arith.constant dense<0.000000e+00> : vector<32x222xf32>
      %44 = tpu.matmul %3, %43, %cst_26 {dimension_numbers = #tpu.dot_dimension_numbers<[1], [0], [0], [1], [0, 0, 1, 1], [], []>} : vector<32x24xbf16>, vector<24x222xbf16>, vector<32x222xf32> -> vector<32x222xf32>
      %45 = arith.addf %42, %44 : vector<32x222xf32>
      %46 = vector.extract_strided_slice %40 {offsets = [0, 2], sizes = [24, 222], strides = [1, 1]} : vector<24x224xbf16> to vector<24x222xbf16>
      %cst_27 = arith.constant dense<0.000000e+00> : vector<32x222xf32>
      %47 = tpu.matmul %5, %46, %cst_27 {dimension_numbers = #tpu.dot_dimension_numbers<[1], [0], [0], [1], [0, 0, 1, 1], [], []>} : vector<32x24xbf16>, vector<24x222xbf16>, vector<32x222xf32> -> vector<32x222xf32>
      %48 = arith.addf %45, %47 : vector<32x222xf32>
      %49 = vector.broadcast %6 : vector<32x1xf32> to vector<32x222xf32>
      %50 = arith.addf %48, %49 : vector<32x222xf32>
      %cst_28 = arith.constant 0.000000e+00 : f32
      %51 = vector.broadcast %cst_28 : f32 to vector<32x222xf32>
      %52 = arith.maximumf %50, %51 : vector<32x222xf32>
      %53 = vector.broadcast %7 : vector<32x1xf32> to vector<32x222xf32>
      %54 = arith.mulf %52, %53 : vector<32x222xf32>
      %55 = vector.broadcast %8 : vector<32x1xf32> to vector<32x222xf32>
      %56 = arith.addf %54, %55 : vector<32x222xf32>
      %57 = arith.maximumf %34, %56 : vector<32x222xf32>
      %58 = vector.extract_strided_slice %57 {offsets = [0, 1], sizes = [32, 221], strides = [1, 1]} : vector<32x222xf32> to vector<32x221xf32>
      %59 = vector.extract_strided_slice %57 {offsets = [0, 0], sizes = [32, 1], strides = [1, 1]} : vector<32x222xf32> to vector<32x1xf32>
      %60 = tpu.concatenate %58, %59 in 1 : vector<32x221xf32>, vector<32x1xf32> -> vector<32x222xf32>
      %61 = arith.maximumf %57, %60 : vector<32x222xf32>
      %62 = arith.truncf %61 : vector<32x222xf32> to vector<32x222xbf16>
      %cst_29 = arith.constant dense<0.000000e+00> : vector<32x111xf32>
      %63 = tpu.matmul %62, %9, %cst_29 {dimension_numbers = #tpu.dot_dimension_numbers<[1], [0], [0], [1], [0, 0, 1, 1], [], []>} : vector<32x222xbf16>, vector<222x111xbf16>, vector<32x111xf32> -> vector<32x111xf32>
      %64 = arith.truncf %63 : vector<32x111xf32> to vector<32x111xbf16>
      %c0_30 = arith.constant 0 : index
      %65 = arith.index_cast %arg9 : i32 to index
      %c0_31 = arith.constant 0 : index
      %c0_32 = arith.constant 0 : index
      %66 = vector.load %arg8[%c0_30, %65, %c0_31, %c0_32] : memref<1x37x32x111xbf16, #tpu.memory_space<vmem>>, vector<1x1x32x111xbf16>
      %67 = vector.shape_cast %66 : vector<1x1x32x111xbf16> to vector<32x111xbf16>
      %68 = vector.shape_cast %64 : vector<32x111xbf16> to vector<1x1x32x111xbf16>
      tpu.vector_store %arg8[%c0_30, %65, %c0_31, %c0_32], %68 {strides = array<i32>} : memref<1x37x32x111xbf16, #tpu.memory_space<vmem>>, vector<1x1x32x111xbf16>,
    }
    %c37_i32_14 = arith.constant 37 : i32
    return
  }
  func.func @transform_0(%arg0: i32, %arg1: i32) -> (i32, i32, i32) {
    %c0_i32 = arith.constant 0 : i32
    %c0_i32_0 = arith.constant 0 : i32
    %c0_i32_1 = arith.constant 0 : i32
    return %arg0, %c0_i32, %c0_i32_0 : i32, i32, i32
  }
  func.func @transform_1(%arg0: i32, %arg1: i32) -> (i32, i32, i32) {
    %c0_i32 = arith.constant 0 : i32
    %c0_i32_0 = arith.constant 0 : i32
    %c0_i32_1 = arith.constant 0 : i32
    %c0_i32_2 = arith.constant 0 : i32
    return %c0_i32, %c0_i32_0, %c0_i32_1 : i32, i32, i32
  }
  func.func @transform_2(%arg0: i32, %arg1: i32) -> (i32, i32) {
    %c0_i32 = arith.constant 0 : i32
    %c0_i32_0 = arith.constant 0 : i32
    %c0_i32_1 = arith.constant 0 : i32
    return %c0_i32, %c0_i32_0 : i32, i32
  }
  func.func @transform_3(%arg0: i32, %arg1: i32) -> (i32, i32) {
    %c0_i32 = arith.constant 0 : i32
    %c0_i32_0 = arith.constant 0 : i32
    %c0_i32_1 = arith.constant 0 : i32
    return %c0_i32, %c0_i32_0 : i32, i32
  }
  func.func @transform_4(%arg0: i32, %arg1: i32) -> (i32, i32) {
    %c0_i32 = arith.constant 0 : i32
    %c0_i32_0 = arith.constant 0 : i32
    %c0_i32_1 = arith.constant 0 : i32
    return %c0_i32, %c0_i32_0 : i32, i32
  }
  func.func @transform_5(%arg0: i32, %arg1: i32) -> (i32, i32) {
    %c0_i32 = arith.constant 0 : i32
    %c0_i32_0 = arith.constant 0 : i32
    %c0_i32_1 = arith.constant 0 : i32
    return %c0_i32, %c0_i32_0 : i32, i32
  }
  func.func @transform_6(%arg0: i32, %arg1: i32) -> (i32, i32, i32, i32) {
    %c0_i32 = arith.constant 0 : i32
    %c0_i32_0 = arith.constant 0 : i32
    %c0_i32_1 = arith.constant 0 : i32
    return %arg0, %arg1, %c0_i32, %c0_i32_0 : i32, i32, i32, i32
  }
}

module attributes {stable_mosaic.version = 11 : i64} {
  func.func @_conv_stage_kernel(%arg0: i32, %arg1: i32, %arg2: memref<1x3552x111xbf16, #tpu.memory_space<vmem>>, %arg3: memref<3x64x96xbf16, #tpu.memory_space<vmem>>, %arg4: memref<64x1xf32, #tpu.memory_space<vmem>>, %arg5: memref<64x1xf32, #tpu.memory_space<vmem>>, %arg6: memref<64x1xf32, #tpu.memory_space<vmem>>, %arg7: memref<109x54xbf16, #tpu.memory_space<vmem>>, %arg8: memref<1x27x64x54xbf16, #tpu.memory_space<vmem>>) attributes {dimension_semantics = [#tpu.dimension_semantics<parallel>, #tpu.dimension_semantics<parallel>], iteration_bounds = array<i64: 2, 2>, scalar_prefetch = 0 : i64, scratch_operands = 0 : i64, tpu.core_type = #tpu.core_type<tc>, window_params = [{transform_indices = @transform_0, window_bounds = array<i64: 1, 3552, 111>}, {pipeline_mode = #tpu.pipeline_mode<synchronous>, transform_indices = @transform_1, window_bounds = array<i64: 3, 64, 96>}, {pipeline_mode = #tpu.pipeline_mode<synchronous>, transform_indices = @transform_2, window_bounds = array<i64: 64, 1>}, {pipeline_mode = #tpu.pipeline_mode<synchronous>, transform_indices = @transform_3, window_bounds = array<i64: 64, 1>}, {pipeline_mode = #tpu.pipeline_mode<synchronous>, transform_indices = @transform_4, window_bounds = array<i64: 64, 1>}, {pipeline_mode = #tpu.pipeline_mode<synchronous>, transform_indices = @transform_5, window_bounds = array<i64: 109, 54>}, {transform_indices = @transform_6, window_bounds = array<i64: 1, 27, 64, 54>}]} {
    %c0 = arith.constant 0 : index
    %c0_0 = arith.constant 0 : index
    %c0_1 = arith.constant 0 : index
    %0 = vector.load %arg3[%c0, %c0_0, %c0_1] : memref<3x64x96xbf16, #tpu.memory_space<vmem>>, vector<1x64x96xbf16>
    %1 = vector.shape_cast %0 : vector<1x64x96xbf16> to vector<64x96xbf16>
    %c1 = arith.constant 1 : index
    %c0_2 = arith.constant 0 : index
    %c0_3 = arith.constant 0 : index
    %2 = vector.load %arg3[%c1, %c0_2, %c0_3] : memref<3x64x96xbf16, #tpu.memory_space<vmem>>, vector<1x64x96xbf16>
    %3 = vector.shape_cast %2 : vector<1x64x96xbf16> to vector<64x96xbf16>
    %c2 = arith.constant 2 : index
    %c0_4 = arith.constant 0 : index
    %c0_5 = arith.constant 0 : index
    %4 = vector.load %arg3[%c2, %c0_4, %c0_5] : memref<3x64x96xbf16, #tpu.memory_space<vmem>>, vector<1x64x96xbf16>
    %5 = vector.shape_cast %4 : vector<1x64x96xbf16> to vector<64x96xbf16>
    %c0_6 = arith.constant 0 : index
    %c0_7 = arith.constant 0 : index
    %6 = vector.load %arg4[%c0_6, %c0_7] : memref<64x1xf32, #tpu.memory_space<vmem>>, vector<64x1xf32>
    %c0_8 = arith.constant 0 : index
    %c0_9 = arith.constant 0 : index
    %7 = vector.load %arg5[%c0_8, %c0_9] : memref<64x1xf32, #tpu.memory_space<vmem>>, vector<64x1xf32>
    %c0_10 = arith.constant 0 : index
    %c0_11 = arith.constant 0 : index
    %8 = vector.load %arg6[%c0_10, %c0_11] : memref<64x1xf32, #tpu.memory_space<vmem>>, vector<64x1xf32>
    %c0_12 = arith.constant 0 : index
    %c0_13 = arith.constant 0 : index
    %9 = vector.load %arg7[%c0_12, %c0_13] : memref<109x54xbf16, #tpu.memory_space<vmem>>, vector<109x54xbf16>
    %c0_i32 = arith.constant 0 : i32
    %c27_i32 = arith.constant 27 : i32
    %10 = arith.addi %c0_i32, %c27_i32 : i32
    %c1_i32 = arith.constant 1 : i32
    scf.for %arg9 = %c0_i32 to %10 step %c1_i32  : i32 {
      %c27_i32_15 = arith.constant 27 : i32
      %11 = arith.muli %arg1, %c27_i32_15 : i32
      %12 = arith.addi %11, %arg9 : i32
      %c2_i32 = arith.constant 2 : i32
      %13 = arith.muli %c2_i32, %12 : i32
      %c32_i32 = arith.constant 32 : i32
      %14 = arith.muli %13, %c32_i32 : i32
      %15 = tpu.assume_multiple %14, 8 : i32
      %c0_16 = arith.constant 0 : index
      %16 = arith.index_cast %15 : i32 to index
      %c0_17 = arith.constant 0 : index
      %17 = vector.load %arg2[%c0_16, %16, %c0_17] : memref<1x3552x111xbf16, #tpu.memory_space<vmem>>, vector<1x96x111xbf16>
      %18 = vector.shape_cast %17 : vector<1x96x111xbf16> to vector<96x111xbf16>
      %19 = vector.extract_strided_slice %18 {offsets = [0, 0], sizes = [96, 109], strides = [1, 1]} : vector<96x111xbf16> to vector<96x109xbf16>
      %cst = arith.constant dense<0.000000e+00> : vector<64x109xf32>
      %20 = tpu.matmul %1, %19, %cst {dimension_numbers = #tpu.dot_dimension_numbers<[1], [0], [0], [1], [0, 0, 1, 1], [], []>} : vector<64x96xbf16>, vector<96x109xbf16>, vector<64x109xf32> -> vector<64x109xf32>
      %21 = vector.extract_strided_slice %18 {offsets = [0, 1], sizes = [96, 109], strides = [1, 1]} : vector<96x111xbf16> to vector<96x109xbf16>
      %cst_18 = arith.constant dense<0.000000e+00> : vector<64x109xf32>
      %22 = tpu.matmul %3, %21, %cst_18 {dimension_numbers = #tpu.dot_dimension_numbers<[1], [0], [0], [1], [0, 0, 1, 1], [], []>} : vector<64x96xbf16>, vector<96x109xbf16>, vector<64x109xf32> -> vector<64x109xf32>
      %23 = arith.addf %20, %22 : vector<64x109xf32>
      %24 = vector.extract_strided_slice %18 {offsets = [0, 2], sizes = [96, 109], strides = [1, 1]} : vector<96x111xbf16> to vector<96x109xbf16>
      %cst_19 = arith.constant dense<0.000000e+00> : vector<64x109xf32>
      %25 = tpu.matmul %5, %24, %cst_19 {dimension_numbers = #tpu.dot_dimension_numbers<[1], [0], [0], [1], [0, 0, 1, 1], [], []>} : vector<64x96xbf16>, vector<96x109xbf16>, vector<64x109xf32> -> vector<64x109xf32>
      %26 = arith.addf %23, %25 : vector<64x109xf32>
      %27 = vector.broadcast %6 : vector<64x1xf32> to vector<64x109xf32>
      %28 = arith.addf %26, %27 : vector<64x109xf32>
      %cst_20 = arith.constant 0.000000e+00 : f32
      %29 = vector.broadcast %cst_20 : f32 to vector<64x109xf32>
      %30 = arith.maximumf %28, %29 : vector<64x109xf32>
      %31 = vector.broadcast %7 : vector<64x1xf32> to vector<64x109xf32>
      %32 = arith.mulf %30, %31 : vector<64x109xf32>
      %33 = vector.broadcast %8 : vector<64x1xf32> to vector<64x109xf32>
      %34 = arith.addf %32, %33 : vector<64x109xf32>
      %c1_i32_21 = arith.constant 1 : i32
      %35 = arith.addi %13, %c1_i32_21 : i32
      %c32_i32_22 = arith.constant 32 : i32
      %36 = arith.muli %35, %c32_i32_22 : i32
      %37 = tpu.assume_multiple %36, 8 : i32
      %c0_23 = arith.constant 0 : index
      %38 = arith.index_cast %37 : i32 to index
      %c0_24 = arith.constant 0 : index
      %39 = vector.load %arg2[%c0_23, %38, %c0_24] : memref<1x3552x111xbf16, #tpu.memory_space<vmem>>, vector<1x96x111xbf16>
      %40 = vector.shape_cast %39 : vector<1x96x111xbf16> to vector<96x111xbf16>
      %41 = vector.extract_strided_slice %40 {offsets = [0, 0], sizes = [96, 109], strides = [1, 1]} : vector<96x111xbf16> to vector<96x109xbf16>
      %cst_25 = arith.constant dense<0.000000e+00> : vector<64x109xf32>
      %42 = tpu.matmul %1, %41, %cst_25 {dimension_numbers = #tpu.dot_dimension_numbers<[1], [0], [0], [1], [0, 0, 1, 1], [], []>} : vector<64x96xbf16>, vector<96x109xbf16>, vector<64x109xf32> -> vector<64x109xf32>
      %43 = vector.extract_strided_slice %40 {offsets = [0, 1], sizes = [96, 109], strides = [1, 1]} : vector<96x111xbf16> to vector<96x109xbf16>
      %cst_26 = arith.constant dense<0.000000e+00> : vector<64x109xf32>
      %44 = tpu.matmul %3, %43, %cst_26 {dimension_numbers = #tpu.dot_dimension_numbers<[1], [0], [0], [1], [0, 0, 1, 1], [], []>} : vector<64x96xbf16>, vector<96x109xbf16>, vector<64x109xf32> -> vector<64x109xf32>
      %45 = arith.addf %42, %44 : vector<64x109xf32>
      %46 = vector.extract_strided_slice %40 {offsets = [0, 2], sizes = [96, 109], strides = [1, 1]} : vector<96x111xbf16> to vector<96x109xbf16>
      %cst_27 = arith.constant dense<0.000000e+00> : vector<64x109xf32>
      %47 = tpu.matmul %5, %46, %cst_27 {dimension_numbers = #tpu.dot_dimension_numbers<[1], [0], [0], [1], [0, 0, 1, 1], [], []>} : vector<64x96xbf16>, vector<96x109xbf16>, vector<64x109xf32> -> vector<64x109xf32>
      %48 = arith.addf %45, %47 : vector<64x109xf32>
      %49 = vector.broadcast %6 : vector<64x1xf32> to vector<64x109xf32>
      %50 = arith.addf %48, %49 : vector<64x109xf32>
      %cst_28 = arith.constant 0.000000e+00 : f32
      %51 = vector.broadcast %cst_28 : f32 to vector<64x109xf32>
      %52 = arith.maximumf %50, %51 : vector<64x109xf32>
      %53 = vector.broadcast %7 : vector<64x1xf32> to vector<64x109xf32>
      %54 = arith.mulf %52, %53 : vector<64x109xf32>
      %55 = vector.broadcast %8 : vector<64x1xf32> to vector<64x109xf32>
      %56 = arith.addf %54, %55 : vector<64x109xf32>
      %57 = arith.maximumf %34, %56 : vector<64x109xf32>
      %58 = vector.extract_strided_slice %57 {offsets = [0, 1], sizes = [64, 108], strides = [1, 1]} : vector<64x109xf32> to vector<64x108xf32>
      %59 = vector.extract_strided_slice %57 {offsets = [0, 0], sizes = [64, 1], strides = [1, 1]} : vector<64x109xf32> to vector<64x1xf32>
      %60 = tpu.concatenate %58, %59 in 1 : vector<64x108xf32>, vector<64x1xf32> -> vector<64x109xf32>
      %61 = arith.maximumf %57, %60 : vector<64x109xf32>
      %62 = arith.truncf %61 : vector<64x109xf32> to vector<64x109xbf16>
      %cst_29 = arith.constant dense<0.000000e+00> : vector<64x54xf32>
      %63 = tpu.matmul %62, %9, %cst_29 {dimension_numbers = #tpu.dot_dimension_numbers<[1], [0], [0], [1], [0, 0, 1, 1], [], []>} : vector<64x109xbf16>, vector<109x54xbf16>, vector<64x54xf32> -> vector<64x54xf32>
      %64 = arith.truncf %63 : vector<64x54xf32> to vector<64x54xbf16>
      %c0_30 = arith.constant 0 : index
      %65 = arith.index_cast %arg9 : i32 to index
      %c0_31 = arith.constant 0 : index
      %c0_32 = arith.constant 0 : index
      %66 = vector.load %arg8[%c0_30, %65, %c0_31, %c0_32] : memref<1x27x64x54xbf16, #tpu.memory_space<vmem>>, vector<1x1x64x54xbf16>
      %67 = vector.shape_cast %66 : vector<1x1x64x54xbf16> to vector<64x54xbf16>
      %68 = vector.shape_cast %64 : vector<64x54xbf16> to vector<1x1x64x54xbf16>
      tpu.vector_store %arg8[%c0_30, %65, %c0_31, %c0_32], %68 {strides = array<i32>} : memref<1x27x64x54xbf16, #tpu.memory_space<vmem>>, vector<1x1x64x54xbf16>,
    }
    %c27_i32_14 = arith.constant 27 : i32
    return
  }
  func.func @transform_0(%arg0: i32, %arg1: i32) -> (i32, i32, i32) {
    %c0_i32 = arith.constant 0 : i32
    %c0_i32_0 = arith.constant 0 : i32
    %c0_i32_1 = arith.constant 0 : i32
    return %arg0, %c0_i32, %c0_i32_0 : i32, i32, i32
  }
  func.func @transform_1(%arg0: i32, %arg1: i32) -> (i32, i32, i32) {
    %c0_i32 = arith.constant 0 : i32
    %c0_i32_0 = arith.constant 0 : i32
    %c0_i32_1 = arith.constant 0 : i32
    %c0_i32_2 = arith.constant 0 : i32
    return %c0_i32, %c0_i32_0, %c0_i32_1 : i32, i32, i32
  }
  func.func @transform_2(%arg0: i32, %arg1: i32) -> (i32, i32) {
    %c0_i32 = arith.constant 0 : i32
    %c0_i32_0 = arith.constant 0 : i32
    %c0_i32_1 = arith.constant 0 : i32
    return %c0_i32, %c0_i32_0 : i32, i32
  }
  func.func @transform_3(%arg0: i32, %arg1: i32) -> (i32, i32) {
    %c0_i32 = arith.constant 0 : i32
    %c0_i32_0 = arith.constant 0 : i32
    %c0_i32_1 = arith.constant 0 : i32
    return %c0_i32, %c0_i32_0 : i32, i32
  }
  func.func @transform_4(%arg0: i32, %arg1: i32) -> (i32, i32) {
    %c0_i32 = arith.constant 0 : i32
    %c0_i32_0 = arith.constant 0 : i32
    %c0_i32_1 = arith.constant 0 : i32
    return %c0_i32, %c0_i32_0 : i32, i32
  }
  func.func @transform_5(%arg0: i32, %arg1: i32) -> (i32, i32) {
    %c0_i32 = arith.constant 0 : i32
    %c0_i32_0 = arith.constant 0 : i32
    %c0_i32_1 = arith.constant 0 : i32
    return %c0_i32, %c0_i32_0 : i32, i32
  }
  func.func @transform_6(%arg0: i32, %arg1: i32) -> (i32, i32, i32, i32) {
    %c0_i32 = arith.constant 0 : i32
    %c0_i32_0 = arith.constant 0 : i32
    %c0_i32_1 = arith.constant 0 : i32
    return %arg0, %arg1, %c0_i32, %c0_i32_0 : i32, i32, i32, i32
  }
}

module attributes {stable_mosaic.version = 11 : i64} {
  func.func @_conv_stage_kernel(%arg0: i32, %arg1: i32, %arg2: memref<1x3456x54xbf16, #tpu.memory_space<vmem>>, %arg3: memref<3x128x192xbf16, #tpu.memory_space<vmem>>, %arg4: memref<128x1xf32, #tpu.memory_space<vmem>>, %arg5: memref<128x1xf32, #tpu.memory_space<vmem>>, %arg6: memref<128x1xf32, #tpu.memory_space<vmem>>, %arg7: memref<52x26xbf16, #tpu.memory_space<vmem>>, %arg8: memref<1x13x128x26xbf16, #tpu.memory_space<vmem>>) attributes {dimension_semantics = [#tpu.dimension_semantics<parallel>, #tpu.dimension_semantics<parallel>], iteration_bounds = array<i64: 2, 2>, scalar_prefetch = 0 : i64, scratch_operands = 0 : i64, tpu.core_type = #tpu.core_type<tc>, window_params = [{transform_indices = @transform_0, window_bounds = array<i64: 1, 3456, 54>}, {pipeline_mode = #tpu.pipeline_mode<synchronous>, transform_indices = @transform_1, window_bounds = array<i64: 3, 128, 192>}, {pipeline_mode = #tpu.pipeline_mode<synchronous>, transform_indices = @transform_2, window_bounds = array<i64: 128, 1>}, {pipeline_mode = #tpu.pipeline_mode<synchronous>, transform_indices = @transform_3, window_bounds = array<i64: 128, 1>}, {pipeline_mode = #tpu.pipeline_mode<synchronous>, transform_indices = @transform_4, window_bounds = array<i64: 128, 1>}, {pipeline_mode = #tpu.pipeline_mode<synchronous>, transform_indices = @transform_5, window_bounds = array<i64: 52, 26>}, {transform_indices = @transform_6, window_bounds = array<i64: 1, 13, 128, 26>}]} {
    %c0 = arith.constant 0 : index
    %c0_0 = arith.constant 0 : index
    %c0_1 = arith.constant 0 : index
    %0 = vector.load %arg3[%c0, %c0_0, %c0_1] : memref<3x128x192xbf16, #tpu.memory_space<vmem>>, vector<1x128x192xbf16>
    %1 = vector.shape_cast %0 : vector<1x128x192xbf16> to vector<128x192xbf16>
    %c1 = arith.constant 1 : index
    %c0_2 = arith.constant 0 : index
    %c0_3 = arith.constant 0 : index
    %2 = vector.load %arg3[%c1, %c0_2, %c0_3] : memref<3x128x192xbf16, #tpu.memory_space<vmem>>, vector<1x128x192xbf16>
    %3 = vector.shape_cast %2 : vector<1x128x192xbf16> to vector<128x192xbf16>
    %c2 = arith.constant 2 : index
    %c0_4 = arith.constant 0 : index
    %c0_5 = arith.constant 0 : index
    %4 = vector.load %arg3[%c2, %c0_4, %c0_5] : memref<3x128x192xbf16, #tpu.memory_space<vmem>>, vector<1x128x192xbf16>
    %5 = vector.shape_cast %4 : vector<1x128x192xbf16> to vector<128x192xbf16>
    %c0_6 = arith.constant 0 : index
    %c0_7 = arith.constant 0 : index
    %6 = vector.load %arg4[%c0_6, %c0_7] : memref<128x1xf32, #tpu.memory_space<vmem>>, vector<128x1xf32>
    %c0_8 = arith.constant 0 : index
    %c0_9 = arith.constant 0 : index
    %7 = vector.load %arg5[%c0_8, %c0_9] : memref<128x1xf32, #tpu.memory_space<vmem>>, vector<128x1xf32>
    %c0_10 = arith.constant 0 : index
    %c0_11 = arith.constant 0 : index
    %8 = vector.load %arg6[%c0_10, %c0_11] : memref<128x1xf32, #tpu.memory_space<vmem>>, vector<128x1xf32>
    %c0_12 = arith.constant 0 : index
    %c0_13 = arith.constant 0 : index
    %9 = vector.load %arg7[%c0_12, %c0_13] : memref<52x26xbf16, #tpu.memory_space<vmem>>, vector<52x26xbf16>
    %c0_i32 = arith.constant 0 : i32
    %c13_i32 = arith.constant 13 : i32
    %10 = arith.addi %c0_i32, %c13_i32 : i32
    %c1_i32 = arith.constant 1 : i32
    scf.for %arg9 = %c0_i32 to %10 step %c1_i32  : i32 {
      %c13_i32_15 = arith.constant 13 : i32
      %11 = arith.muli %arg1, %c13_i32_15 : i32
      %12 = arith.addi %11, %arg9 : i32
      %c2_i32 = arith.constant 2 : i32
      %13 = arith.muli %c2_i32, %12 : i32
      %c64_i32 = arith.constant 64 : i32
      %14 = arith.muli %13, %c64_i32 : i32
      %15 = tpu.assume_multiple %14, 8 : i32
      %c0_16 = arith.constant 0 : index
      %16 = arith.index_cast %15 : i32 to index
      %c0_17 = arith.constant 0 : index
      %17 = vector.load %arg2[%c0_16, %16, %c0_17] : memref<1x3456x54xbf16, #tpu.memory_space<vmem>>, vector<1x192x54xbf16>
      %18 = vector.shape_cast %17 : vector<1x192x54xbf16> to vector<192x54xbf16>
      %19 = vector.extract_strided_slice %18 {offsets = [0, 0], sizes = [192, 52], strides = [1, 1]} : vector<192x54xbf16> to vector<192x52xbf16>
      %cst = arith.constant dense<0.000000e+00> : vector<128x52xf32>
      %20 = tpu.matmul %1, %19, %cst {dimension_numbers = #tpu.dot_dimension_numbers<[1], [0], [0], [1], [0, 0, 1, 1], [], []>} : vector<128x192xbf16>, vector<192x52xbf16>, vector<128x52xf32> -> vector<128x52xf32>
      %21 = vector.extract_strided_slice %18 {offsets = [0, 1], sizes = [192, 52], strides = [1, 1]} : vector<192x54xbf16> to vector<192x52xbf16>
      %cst_18 = arith.constant dense<0.000000e+00> : vector<128x52xf32>
      %22 = tpu.matmul %3, %21, %cst_18 {dimension_numbers = #tpu.dot_dimension_numbers<[1], [0], [0], [1], [0, 0, 1, 1], [], []>} : vector<128x192xbf16>, vector<192x52xbf16>, vector<128x52xf32> -> vector<128x52xf32>
      %23 = arith.addf %20, %22 : vector<128x52xf32>
      %24 = vector.extract_strided_slice %18 {offsets = [0, 2], sizes = [192, 52], strides = [1, 1]} : vector<192x54xbf16> to vector<192x52xbf16>
      %cst_19 = arith.constant dense<0.000000e+00> : vector<128x52xf32>
      %25 = tpu.matmul %5, %24, %cst_19 {dimension_numbers = #tpu.dot_dimension_numbers<[1], [0], [0], [1], [0, 0, 1, 1], [], []>} : vector<128x192xbf16>, vector<192x52xbf16>, vector<128x52xf32> -> vector<128x52xf32>
      %26 = arith.addf %23, %25 : vector<128x52xf32>
      %27 = vector.broadcast %6 : vector<128x1xf32> to vector<128x52xf32>
      %28 = arith.addf %26, %27 : vector<128x52xf32>
      %cst_20 = arith.constant 0.000000e+00 : f32
      %29 = vector.broadcast %cst_20 : f32 to vector<128x52xf32>
      %30 = arith.maximumf %28, %29 : vector<128x52xf32>
      %31 = vector.broadcast %7 : vector<128x1xf32> to vector<128x52xf32>
      %32 = arith.mulf %30, %31 : vector<128x52xf32>
      %33 = vector.broadcast %8 : vector<128x1xf32> to vector<128x52xf32>
      %34 = arith.addf %32, %33 : vector<128x52xf32>
      %c1_i32_21 = arith.constant 1 : i32
      %35 = arith.addi %13, %c1_i32_21 : i32
      %c64_i32_22 = arith.constant 64 : i32
      %36 = arith.muli %35, %c64_i32_22 : i32
      %37 = tpu.assume_multiple %36, 8 : i32
      %c0_23 = arith.constant 0 : index
      %38 = arith.index_cast %37 : i32 to index
      %c0_24 = arith.constant 0 : index
      %39 = vector.load %arg2[%c0_23, %38, %c0_24] : memref<1x3456x54xbf16, #tpu.memory_space<vmem>>, vector<1x192x54xbf16>
      %40 = vector.shape_cast %39 : vector<1x192x54xbf16> to vector<192x54xbf16>
      %41 = vector.extract_strided_slice %40 {offsets = [0, 0], sizes = [192, 52], strides = [1, 1]} : vector<192x54xbf16> to vector<192x52xbf16>
      %cst_25 = arith.constant dense<0.000000e+00> : vector<128x52xf32>
      %42 = tpu.matmul %1, %41, %cst_25 {dimension_numbers = #tpu.dot_dimension_numbers<[1], [0], [0], [1], [0, 0, 1, 1], [], []>} : vector<128x192xbf16>, vector<192x52xbf16>, vector<128x52xf32> -> vector<128x52xf32>
      %43 = vector.extract_strided_slice %40 {offsets = [0, 1], sizes = [192, 52], strides = [1, 1]} : vector<192x54xbf16> to vector<192x52xbf16>
      %cst_26 = arith.constant dense<0.000000e+00> : vector<128x52xf32>
      %44 = tpu.matmul %3, %43, %cst_26 {dimension_numbers = #tpu.dot_dimension_numbers<[1], [0], [0], [1], [0, 0, 1, 1], [], []>} : vector<128x192xbf16>, vector<192x52xbf16>, vector<128x52xf32> -> vector<128x52xf32>
      %45 = arith.addf %42, %44 : vector<128x52xf32>
      %46 = vector.extract_strided_slice %40 {offsets = [0, 2], sizes = [192, 52], strides = [1, 1]} : vector<192x54xbf16> to vector<192x52xbf16>
      %cst_27 = arith.constant dense<0.000000e+00> : vector<128x52xf32>
      %47 = tpu.matmul %5, %46, %cst_27 {dimension_numbers = #tpu.dot_dimension_numbers<[1], [0], [0], [1], [0, 0, 1, 1], [], []>} : vector<128x192xbf16>, vector<192x52xbf16>, vector<128x52xf32> -> vector<128x52xf32>
      %48 = arith.addf %45, %47 : vector<128x52xf32>
      %49 = vector.broadcast %6 : vector<128x1xf32> to vector<128x52xf32>
      %50 = arith.addf %48, %49 : vector<128x52xf32>
      %cst_28 = arith.constant 0.000000e+00 : f32
      %51 = vector.broadcast %cst_28 : f32 to vector<128x52xf32>
      %52 = arith.maximumf %50, %51 : vector<128x52xf32>
      %53 = vector.broadcast %7 : vector<128x1xf32> to vector<128x52xf32>
      %54 = arith.mulf %52, %53 : vector<128x52xf32>
      %55 = vector.broadcast %8 : vector<128x1xf32> to vector<128x52xf32>
      %56 = arith.addf %54, %55 : vector<128x52xf32>
      %57 = arith.maximumf %34, %56 : vector<128x52xf32>
      %58 = vector.extract_strided_slice %57 {offsets = [0, 1], sizes = [128, 51], strides = [1, 1]} : vector<128x52xf32> to vector<128x51xf32>
      %59 = vector.extract_strided_slice %57 {offsets = [0, 0], sizes = [128, 1], strides = [1, 1]} : vector<128x52xf32> to vector<128x1xf32>
      %60 = tpu.concatenate %58, %59 in 1 : vector<128x51xf32>, vector<128x1xf32> -> vector<128x52xf32>
      %61 = arith.maximumf %57, %60 : vector<128x52xf32>
      %62 = arith.truncf %61 : vector<128x52xf32> to vector<128x52xbf16>
      %cst_29 = arith.constant dense<0.000000e+00> : vector<128x26xf32>
      %63 = tpu.matmul %62, %9, %cst_29 {dimension_numbers = #tpu.dot_dimension_numbers<[1], [0], [0], [1], [0, 0, 1, 1], [], []>} : vector<128x52xbf16>, vector<52x26xbf16>, vector<128x26xf32> -> vector<128x26xf32>
      %64 = arith.truncf %63 : vector<128x26xf32> to vector<128x26xbf16>
      %c0_30 = arith.constant 0 : index
      %65 = arith.index_cast %arg9 : i32 to index
      %c0_31 = arith.constant 0 : index
      %c0_32 = arith.constant 0 : index
      %66 = vector.load %arg8[%c0_30, %65, %c0_31, %c0_32] : memref<1x13x128x26xbf16, #tpu.memory_space<vmem>>, vector<1x1x128x26xbf16>
      %67 = vector.shape_cast %66 : vector<1x1x128x26xbf16> to vector<128x26xbf16>
      %68 = vector.shape_cast %64 : vector<128x26xbf16> to vector<1x1x128x26xbf16>
      tpu.vector_store %arg8[%c0_30, %65, %c0_31, %c0_32], %68 {strides = array<i32>} : memref<1x13x128x26xbf16, #tpu.memory_space<vmem>>, vector<1x1x128x26xbf16>,
    }
    %c13_i32_14 = arith.constant 13 : i32
    return
  }
  func.func @transform_0(%arg0: i32, %arg1: i32) -> (i32, i32, i32) {
    %c0_i32 = arith.constant 0 : i32
    %c0_i32_0 = arith.constant 0 : i32
    %c0_i32_1 = arith.constant 0 : i32
    return %arg0, %c0_i32, %c0_i32_0 : i32, i32, i32
  }
  func.func @transform_1(%arg0: i32, %arg1: i32) -> (i32, i32, i32) {
    %c0_i32 = arith.constant 0 : i32
    %c0_i32_0 = arith.constant 0 : i32
    %c0_i32_1 = arith.constant 0 : i32
    %c0_i32_2 = arith.constant 0 : i32
    return %c0_i32, %c0_i32_0, %c0_i32_1 : i32, i32, i32
  }
  func.func @transform_2(%arg0: i32, %arg1: i32) -> (i32, i32) {
    %c0_i32 = arith.constant 0 : i32
    %c0_i32_0 = arith.constant 0 : i32
    %c0_i32_1 = arith.constant 0 : i32
    return %c0_i32, %c0_i32_0 : i32, i32
  }
  func.func @transform_3(%arg0: i32, %arg1: i32) -> (i32, i32) {
    %c0_i32 = arith.constant 0 : i32
    %c0_i32_0 = arith.constant 0 : i32
    %c0_i32_1 = arith.constant 0 : i32
    return %c0_i32, %c0_i32_0 : i32, i32
  }
  func.func @transform_4(%arg0: i32, %arg1: i32) -> (i32, i32) {
    %c0_i32 = arith.constant 0 : i32
    %c0_i32_0 = arith.constant 0 : i32
    %c0_i32_1 = arith.constant 0 : i32
    return %c0_i32, %c0_i32_0 : i32, i32
  }
  func.func @transform_5(%arg0: i32, %arg1: i32) -> (i32, i32) {
    %c0_i32 = arith.constant 0 : i32
    %c0_i32_0 = arith.constant 0 : i32
    %c0_i32_1 = arith.constant 0 : i32
    return %c0_i32, %c0_i32_0 : i32, i32
  }
  func.func @transform_6(%arg0: i32, %arg1: i32) -> (i32, i32, i32, i32) {
    %c0_i32 = arith.constant 0 : i32
    %c0_i32_0 = arith.constant 0 : i32
    %c0_i32_1 = arith.constant 0 : i32
    return %arg0, %arg1, %c0_i32, %c0_i32_0 : i32, i32, i32, i32
  }
}

module attributes {stable_mosaic.version = 11 : i64} {
  func.func @_fc1_kernel(%arg0: i32, %arg1: i32, %arg2: memref<2x86528xbf16, #tpu.memory_space<vmem>>, %arg3: memref<6656x256xbf16, #tpu.memory_space<vmem>>, %arg4: memref<1x256xf32, #tpu.memory_space<vmem>>, %arg5: memref<2x256xbf16, #tpu.memory_space<vmem>>, %arg6: memref<2x256xf32, #tpu.memory_space<vmem>>) attributes {dimension_semantics = [#tpu.dimension_semantics<parallel>, #tpu.dimension_semantics<arbitrary>], iteration_bounds = array<i64: 2, 13>, scalar_prefetch = 0 : i64, scratch_operands = 1 : i64, tpu.core_type = #tpu.core_type<tc>, window_params = [{pipeline_mode = #tpu.pipeline_mode<synchronous>, transform_indices = @transform_0, window_bounds = array<i64: 2, 86528>}, {transform_indices = @transform_1, window_bounds = array<i64: 6656, 256>}, {transform_indices = @transform_2, window_bounds = array<i64: 1, 256>}, {transform_indices = @transform_3, window_bounds = array<i64: 2, 256>}]} {
    %c0_i32 = arith.constant 0 : i32
    %0 = arith.cmpi eq, %arg1, %c0_i32 : i32
    %1 = arith.extui %0 : i1 to i32
    %c0_i32_0 = arith.constant 0 : i32
    %2 = arith.cmpi ne, %1, %c0_i32_0 : i32
    scf.if %2 {
      %cst_8 = arith.constant 0.000000e+00 : f32
      %15 = vector.broadcast %cst_8 : f32 to vector<2x256xf32>
      %c0_9 = arith.constant 0 : index
      %c0_10 = arith.constant 0 : index
      %16 = vector.load %arg6[%c0_9, %c0_10] : memref<2x256xf32, #tpu.memory_space<vmem>>, vector<2x256xf32>
      tpu.vector_store %arg6[%c0_9, %c0_10], %15 {strides = array<i32>} : memref<2x256xf32, #tpu.memory_space<vmem>>, vector<2x256xf32>,
    } else {
    }
    %c6656_i32 = arith.constant 6656 : i32
    %3 = arith.muli %arg1, %c6656_i32 : i32
    %4 = tpu.assume_multiple %3, 128 : i32
    %c0 = arith.constant 0 : index
    %c0_1 = arith.constant 0 : index
    %5 = vector.load %arg6[%c0, %c0_1] : memref<2x256xf32, #tpu.memory_space<vmem>>, vector<2x256xf32>
    %c0_2 = arith.constant 0 : index
    %6 = arith.index_cast %4 : i32 to index
    %7 = vector.load %arg2[%c0_2, %6] : memref<2x86528xbf16, #tpu.memory_space<vmem>>, vector<2x6656xbf16>
    %c0_3 = arith.constant 0 : index
    %c0_4 = arith.constant 0 : index
    %8 = vector.load %arg3[%c0_3, %c0_4] : memref<6656x256xbf16, #tpu.memory_space<vmem>>, vector<6656x256xbf16>
    %cst = arith.constant dense<0.000000e+00> : vector<2x256xf32>
    %9 = tpu.matmul %7, %8, %cst {dimension_numbers = #tpu.dot_dimension_numbers<[1], [0], [0], [1], [0, 0, 1, 1], [], []>} : vector<2x6656xbf16>, vector<6656x256xbf16>, vector<2x256xf32> -> vector<2x256xf32>
    %10 = arith.addf %5, %9 : vector<2x256xf32>
    %c0_5 = arith.constant 0 : index
    %c0_6 = arith.constant 0 : index
    %11 = vector.load %arg6[%c0_5, %c0_6] : memref<2x256xf32, #tpu.memory_space<vmem>>, vector<2x256xf32>
    tpu.vector_store %arg6[%c0_5, %c0_6], %10 {strides = array<i32>} : memref<2x256xf32, #tpu.memory_space<vmem>>, vector<2x256xf32>,
    %c12_i32 = arith.constant 12 : i32
    %12 = arith.cmpi eq, %arg1, %c12_i32 : i32
    %13 = arith.extui %12 : i1 to i32
    %c0_i32_7 = arith.constant 0 : i32
    %14 = arith.cmpi ne, %13, %c0_i32_7 : i32
    scf.if %14 {
      %c0_8 = arith.constant 0 : index
      %c0_9 = arith.constant 0 : index
      %15 = vector.load %arg6[%c0_8, %c0_9] : memref<2x256xf32, #tpu.memory_space<vmem>>, vector<2x256xf32>
      %c0_10 = arith.constant 0 : index
      %c0_11 = arith.constant 0 : index
      %16 = vector.load %arg4[%c0_10, %c0_11] : memref<1x256xf32, #tpu.memory_space<vmem>>, vector<1x256xf32>
      %17 = vector.broadcast %16 : vector<1x256xf32> to vector<2x256xf32>
      %18 = arith.addf %15, %17 : vector<2x256xf32>
      %cst_12 = arith.constant 0.000000e+00 : f32
      %19 = vector.broadcast %cst_12 : f32 to vector<2x256xf32>
      %20 = arith.maximumf %18, %19 : vector<2x256xf32>
      %21 = arith.truncf %20 : vector<2x256xf32> to vector<2x256xbf16>
      %c0_13 = arith.constant 0 : index
      %c0_14 = arith.constant 0 : index
      %22 = vector.load %arg5[%c0_13, %c0_14] : memref<2x256xbf16, #tpu.memory_space<vmem>>, vector<2x256xbf16>
      tpu.vector_store %arg5[%c0_13, %c0_14], %21 {strides = array<i32>} : memref<2x256xbf16, #tpu.memory_space<vmem>>, vector<2x256xbf16>,
    } else {
    }
    return
  }
  func.func @transform_0(%arg0: i32, %arg1: i32) -> (i32, i32) {
    %c0_i32 = arith.constant 0 : i32
    %c0_i32_0 = arith.constant 0 : i32
    %c0_i32_1 = arith.constant 0 : i32
    return %c0_i32, %c0_i32_0 : i32, i32
  }
  func.func @transform_1(%arg0: i32, %arg1: i32) -> (i32, i32) {
    %c0_i32 = arith.constant 0 : i32
    return %arg1, %arg0 : i32, i32
  }
  func.func @transform_2(%arg0: i32, %arg1: i32) -> (i32, i32) {
    %c0_i32 = arith.constant 0 : i32
    %c0_i32_0 = arith.constant 0 : i32
    return %c0_i32, %arg0 : i32, i32
  }
  func.func @transform_3(%arg0: i32, %arg1: i32) -> (i32, i32) {
    %c0_i32 = arith.constant 0 : i32
    %c0_i32_0 = arith.constant 0 : i32
    return %c0_i32, %arg0 : i32, i32
  }
}

module attributes {stable_mosaic.version = 11 : i64} {
  func.func @_fc23_kernel(%arg0: i32, %arg1: memref<2x512xbf16, #tpu.memory_space<vmem>>, %arg2: memref<512x64xbf16, #tpu.memory_space<vmem>>, %arg3: memref<1x64xf32, #tpu.memory_space<vmem>>, %arg4: memref<64x1xbf16, #tpu.memory_space<vmem>>, %arg5: memref<1x1xf32, #tpu.memory_space<vmem>>, %arg6: memref<2x1xf32, #tpu.memory_space<vmem>>) attributes {dimension_semantics = [#tpu.dimension_semantics<arbitrary>], iteration_bounds = array<i64: 1>, scalar_prefetch = 0 : i64, scratch_operands = 0 : i64, tpu.core_type = #tpu.core_type<tc>, window_params = [{pipeline_mode = #tpu.pipeline_mode<synchronous>, transform_indices = @transform_0, window_bounds = array<i64: 2, 512>}, {pipeline_mode = #tpu.pipeline_mode<synchronous>, transform_indices = @transform_1, window_bounds = array<i64: 512, 64>}, {pipeline_mode = #tpu.pipeline_mode<synchronous>, transform_indices = @transform_2, window_bounds = array<i64: 1, 64>}, {pipeline_mode = #tpu.pipeline_mode<synchronous>, transform_indices = @transform_3, window_bounds = array<i64: 64, 1>}, {pipeline_mode = #tpu.pipeline_mode<synchronous>, transform_indices = @transform_4, window_bounds = array<i64: 1, 1>}, {pipeline_mode = #tpu.pipeline_mode<synchronous>, transform_indices = @transform_5, window_bounds = array<i64: 2, 1>}]} {
    %c0 = arith.constant 0 : index
    %c0_0 = arith.constant 0 : index
    %0 = vector.load %arg1[%c0, %c0_0] : memref<2x512xbf16, #tpu.memory_space<vmem>>, vector<2x512xbf16>
    %c0_1 = arith.constant 0 : index
    %c0_2 = arith.constant 0 : index
    %1 = vector.load %arg2[%c0_1, %c0_2] : memref<512x64xbf16, #tpu.memory_space<vmem>>, vector<512x64xbf16>
    %cst = arith.constant dense<0.000000e+00> : vector<2x64xf32>
    %2 = tpu.matmul %0, %1, %cst {dimension_numbers = #tpu.dot_dimension_numbers<[1], [0], [0], [1], [0, 0, 1, 1], [], []>} : vector<2x512xbf16>, vector<512x64xbf16>, vector<2x64xf32> -> vector<2x64xf32>
    %c0_3 = arith.constant 0 : index
    %c0_4 = arith.constant 0 : index
    %3 = vector.load %arg3[%c0_3, %c0_4] : memref<1x64xf32, #tpu.memory_space<vmem>>, vector<1x64xf32>
    %4 = vector.broadcast %3 : vector<1x64xf32> to vector<2x64xf32>
    %5 = arith.addf %2, %4 : vector<2x64xf32>
    %cst_5 = arith.constant 0.000000e+00 : f32
    %6 = vector.broadcast %cst_5 : f32 to vector<2x64xf32>
    %7 = arith.maximumf %5, %6 : vector<2x64xf32>
    %8 = arith.truncf %7 : vector<2x64xf32> to vector<2x64xbf16>
    %c0_6 = arith.constant 0 : index
    %c0_7 = arith.constant 0 : index
    %9 = vector.load %arg4[%c0_6, %c0_7] : memref<64x1xbf16, #tpu.memory_space<vmem>>, vector<64x1xbf16>
    %cst_8 = arith.constant dense<0.000000e+00> : vector<2x1xf32>
    %10 = tpu.matmul %8, %9, %cst_8 {dimension_numbers = #tpu.dot_dimension_numbers<[1], [0], [0], [1], [0, 0, 1, 1], [], []>} : vector<2x64xbf16>, vector<64x1xbf16>, vector<2x1xf32> -> vector<2x1xf32>
    %c0_9 = arith.constant 0 : index
    %c0_10 = arith.constant 0 : index
    %11 = vector.load %arg5[%c0_9, %c0_10] : memref<1x1xf32, #tpu.memory_space<vmem>>, vector<1x1xf32>
    %12 = vector.broadcast %11 : vector<1x1xf32> to vector<2x1xf32>
    %13 = arith.addf %10, %12 : vector<2x1xf32>
    %14 = arith.negf %13 : vector<2x1xf32>
    %15 = math.exp %14 : vector<2x1xf32>
    %cst_11 = arith.constant 1.000000e+00 : f32
    %16 = vector.broadcast %cst_11 : f32 to vector<2x1xf32>
    %17 = arith.addf %16, %15 : vector<2x1xf32>
    %18 = arith.divf %16, %17 : vector<2x1xf32>
    %c0_12 = arith.constant 0 : index
    %c0_13 = arith.constant 0 : index
    %19 = vector.load %arg6[%c0_12, %c0_13] : memref<2x1xf32, #tpu.memory_space<vmem>>, vector<2x1xf32>
    tpu.vector_store %arg6[%c0_12, %c0_13], %18 {strides = array<i32>} : memref<2x1xf32, #tpu.memory_space<vmem>>, vector<2x1xf32>,
    return
  }
  func.func @transform_0(%arg0: i32) -> (i32, i32) {
    %c0_i32 = arith.constant 0 : i32
    %c0_i32_0 = arith.constant 0 : i32
    %c0_i32_1 = arith.constant 0 : i32
    return %c0_i32, %c0_i32_0 : i32, i32
  }
  func.func @transform_1(%arg0: i32) -> (i32, i32) {
    %c0_i32 = arith.constant 0 : i32
    %c0_i32_0 = arith.constant 0 : i32
    %c0_i32_1 = arith.constant 0 : i32
    return %c0_i32, %c0_i32_0 : i32, i32
  }
  func.func @transform_2(%arg0: i32) -> (i32, i32) {
    %c0_i32 = arith.constant 0 : i32
    %c0_i32_0 = arith.constant 0 : i32
    %c0_i32_1 = arith.constant 0 : i32
    return %c0_i32, %c0_i32_0 : i32, i32
  }
  func.func @transform_3(%arg0: i32) -> (i32, i32) {
    %c0_i32 = arith.constant 0 : i32
    %c0_i32_0 = arith.constant 0 : i32
    %c0_i32_1 = arith.constant 0 : i32
    return %c0_i32, %c0_i32_0 : i32, i32
  }
  func.func @transform_4(%arg0: i32) -> (i32, i32) {
    %c0_i32 = arith.constant 0 : i32
    %c0_i32_0 = arith.constant 0 : i32
    %c0_i32_1 = arith.constant 0 : i32
    return %c0_i32, %c0_i32_0 : i32, i32
  }
  func.func @transform_5(%arg0: i32) -> (i32, i32) {
    %c0_i32 = arith.constant 0 : i32
    %c0_i32_0 = arith.constant 0 : i32
    %c0_i32_1 = arith.constant 0 : i32
    return %c0_i32, %c0_i32_0 : i32, i32
  }
}

</mosaic_0001>

<llo_original>
// kernel: net_forward.5
$region0: #{net_forward.5}
  #allocation0 [shape = 'u32[]', space=smem, size = 0x4, offset = 0x4, fixed_abs, tag = 'smem constant byte address 0x4 - core index']
  #allocation1 [shape = 'u32[144,128]{1,0:T(1,128)}', space=vmem, size = 0x12000, scoped, tag = 'internal scratch']
  %s0 = inlined_call_operand.vmem [shape: bf16[2,1792,224], index: 0, kind: input, shape index: {}]
  %s1 = inlined_call_operand.vmem [shape: bf16[3,32,24], index: 1, kind: input, shape index: {}]
  %s2 = inlined_call_operand.vmem [shape: f32[32,1], index: 2, kind: input, shape index: {}]
  %s3 = inlined_call_operand.vmem [shape: f32[32,1], index: 3, kind: input, shape index: {}]
  %s4 = inlined_call_operand.vmem [shape: f32[32,1], index: 4, kind: input, shape index: {}]
  %s5 = inlined_call_operand.vmem [shape: bf16[222,111], index: 5, kind: input, shape index: {}]
  %s6 = inlined_call_operand.vmem [shape: bf16[2,111,32,111], index: 6, kind: output, shape index: {}]
  %s7 = sld [smem:[#allocation0]]
  $region64: #{net_forward.5} parent=0
    _
  %s9 = ssub.s32 1, %s7
  %s10 = scalar_select 0, %s9, %s7
  loop: start=0, step=1, limit=8
  $region2: #{net_forward.5} parent=0 // loop_pre_header
    _
  $region3: #{net_forward.5} parent=0 // loop_header
    %s12 = sphi 0, %s16
    %p13 = scmp.ge.s32.totalorder %s12, 8
    %s19 = sphi 0, %s31
    %s20 = sphi 0, %s27
    %s21 = sphi 0, %s19
    %s22 = sphi 0, %s20
    %s23 = sphi 0, %s21
    %s24 = sphi 0, %s22
    %s34 = sphi 0, %s36
    %s37 = sphi 0, %s34
    %s38 = sphi 0, %s37
    %s54 = sphi 0, %s38
    %s58 = sphi 0, %s58
    %s60 = sphi 0, %s58
    %s61 = sphi 0, %s60
    %s75 = sphi 0, %s61
    %s79 = sphi 0, %s79
    %s81 = sphi 0, %s79
    %s82 = sphi 0, %s81
    %s96 = sphi 0, %s82
    %s100 = sphi 0, %s100
    %s102 = sphi 0, %s100
    %s103 = sphi 0, %s102
    %s117 = sphi 0, %s103
    %s121 = sphi 0, %s121
    %s123 = sphi 0, %s121
    %s124 = sphi 0, %s123
    %s138 = sphi 0, %s124
    %s142 = sphi 0, %s142
    %s144 = sphi 0, %s142
    %s145 = sphi 0, %s144
    %s159 = sphi 0, %s145
    %s167 = sphi 0, %s169
    %s170 = sphi 0, %s167
    %s171 = sphi 0, %s170
    %s187 = sphi 0, %s171
  $region4: #{net_forward.5} parent=0 // loop_header_branch
    %15 = sbr.rel (%p13) target = $region8
  $region5: #{net_forward.5} parent=0 // loop_body
    %s17 = ssub.s32 %s12, 1
    %s18 = ssub.s32 %s12, 2
    %s25 = sadd.s32 1, %s20
    %p26 = scmp.ge.s32.totalorder %s25, 3
    %s27 = scalar_select %p26, 0, %s25
    %s28 = sadd.s32 1, %s19
    %s29 = scalar_select %p26, %s28, %s19
    %p30 = scmp.ge.s32.totalorder %s29, 2
    %s31 = scalar_select %p30, 0, %s29
    %s32 = ssub.s32 %s19, %s31
    %p33 = scmp.eq.s32.totalorder %s32, 0
    %s35 = sadd.s32 %s34, 1
    %s36 = scalar_select %p33, %s34, %s35
    %p39 = pneg %p33
    %p40 = scmp.eq.s32.totalorder %s12, 5
    %p41 = por %p39, %p40
    %p42 = scmp.ne.s32.totalorder %s34, %s37
    %p43 = scmp.eq.s32.totalorder %s12, 0
    %p44 = por %p42, %p43
    %p45 = scmp.ne.s32.totalorder %s34, %s37
    %p46 = scmp.eq.s32.totalorder %s17, 5
    %p47 = por %p45, %p46
    %p48 = scmp.ne.s32.totalorder %s37, %s38
    %p49 = scmp.eq.s32.totalorder %s17, 0
    %p50 = por %p48, %p49
    %p51 = scmp.ne.s32.totalorder %s37, %s38
    %p52 = scmp.eq.s32.totalorder %s18, 5
    %p53 = por %p51, %p52
    %p55 = scmp.ne.s32.totalorder %s38, %s54
    %p56 = scmp.eq.s32.totalorder %s18, 0
    %p57 = por %p55, %p56
    %s59 = sadd.s32 %s58, 1
    %p62 = scmp.eq.s32.totalorder %s12, 5
    %p63 = scmp.ne.s32.totalorder %s58, %s60
    %p64 = scmp.eq.s32.totalorder %s12, 0
    %p65 = por %p63, %p64
    %p66 = scmp.ne.s32.totalorder %s58, %s60
    %p67 = scmp.eq.s32.totalorder %s17, 5
    %p68 = por %p66, %p67
    %p69 = scmp.ne.s32.totalorder %s60, %s61
    %p70 = scmp.eq.s32.totalorder %s17, 0
    %p71 = por %p69, %p70
    %p72 = scmp.ne.s32.totalorder %s60, %s61
    %p73 = scmp.eq.s32.totalorder %s18, 5
    %p74 = por %p72, %p73
    %p76 = scmp.ne.s32.totalorder %s61, %s75
    %p77 = scmp.eq.s32.totalorder %s18, 0
    %p78 = por %p76, %p77
    %s80 = sadd.s32 %s79, 1
    %p83 = scmp.eq.s32.totalorder %s12, 5
    %p84 = scmp.ne.s32.totalorder %s79, %s81
    %p85 = scmp.eq.s32.totalorder %s12, 0
    %p86 = por %p84, %p85
    %p87 = scmp.ne.s32.totalorder %s79, %s81
    %p88 = scmp.eq.s32.totalorder %s17, 5
    %p89 = por %p87, %p88
    %p90 = scmp.ne.s32.totalorder %s81, %s82
    %p91 = scmp.eq.s32.totalorder %s17, 0
    %p92 = por %p90, %p91
    %p93 = scmp.ne.s32.totalorder %s81, %s82
    %p94 = scmp.eq.s32.totalorder %s18, 5
    %p95 = por %p93, %p94
    %p97 = scmp.ne.s32.totalorder %s82, %s96
    %p98 = scmp.eq.s32.totalorder %s18, 0
    %p99 = por %p97, %p98
    %s101 = sadd.s32 %s100, 1
    %p104 = scmp.eq.s32.totalorder %s12, 5
    %p105 = scmp.ne.s32.totalorder %s100, %s102
    %p106 = scmp.eq.s32.totalorder %s12, 0
    %p107 = por %p105, %p106
    %p108 = scmp.ne.s32.totalorder %s100, %s102
    %p109 = scmp.eq.s32.totalorder %s17, 5
    %p110 = por %p108, %p109
    %p111 = scmp.ne.s32.totalorder %s102, %s103
    %p112 = scmp.eq.s32.totalorder %s17, 0
    %p113 = por %p111, %p112
    %p114 = scmp.ne.s32.totalorder %s102, %s103
    %p115 = scmp.eq.s32.totalorder %s18, 5
    %p116 = por %p114, %p115
    %p118 = scmp.ne.s32.totalorder %s103, %s117
    %p119 = scmp.eq.s32.totalorder %s18, 0
    %p120 = por %p118, %p119
    %s122 = sadd.s32 %s121, 1
    %p125 = scmp.eq.s32.totalorder %s12, 5
    %p126 = scmp.ne.s32.totalorder %s121, %s123
    %p127 = scmp.eq.s32.totalorder %s12, 0
    %p128 = por %p126, %p127
    %p129 = scmp.ne.s32.totalorder %s121, %s123
    %p130 = scmp.eq.s32.totalorder %s17, 5
    %p131 = por %p129, %p130
    %p132 = scmp.ne.s32.totalorder %s123, %s124
    %p133 = scmp.eq.s32.totalorder %s17, 0
    %p134 = por %p132, %p133
    %p135 = scmp.ne.s32.totalorder %s123, %s124
    %p136 = scmp.eq.s32.totalorder %s18, 5
    %p137 = por %p135, %p136
    %p139 = scmp.ne.s32.totalorder %s124, %s138
    %p140 = scmp.eq.s32.totalorder %s18, 0
    %p141 = por %p139, %p140
    %s143 = sadd.s32 %s142, 1
    %p146 = scmp.eq.s32.totalorder %s12, 5
    %p147 = scmp.ne.s32.totalorder %s142, %s144
    %p148 = scmp.eq.s32.totalorder %s12, 0
    %p149 = por %p147, %p148
    %p150 = scmp.ne.s32.totalorder %s142, %s144
    %p151 = scmp.eq.s32.totalorder %s17, 5
    %p152 = por %p150, %p151
    %p153 = scmp.ne.s32.totalorder %s144, %s145
    %p154 = scmp.eq.s32.totalorder %s17, 0
    %p155 = por %p153, %p154
    %p156 = scmp.ne.s32.totalorder %s144, %s145
    %p157 = scmp.eq.s32.totalorder %s18, 5
    %p158 = por %p156, %p157
    %p160 = scmp.ne.s32.totalorder %s145, %s159
    %p161 = scmp.eq.s32.totalorder %s18, 0
    %p162 = por %p160, %p161
    %s163 = ssub.s32 %s19, %s31
    %s164 = ssub.s32 %s20, %s27
    %s165 = sor.u32 %s163, %s164
    %p166 = scmp.eq.s32.totalorder %s165, 0
    %s168 = sadd.s32 %s167, 1
    %s169 = scalar_select %p166, %s167, %s168
    %p172 = pneg %p166
    %p173 = scmp.eq.s32.totalorder %s12, 5
    %p174 = por %p172, %p173
    %p175 = scmp.ne.s32.totalorder %s167, %s170
    %p176 = scmp.eq.s32.totalorder %s12, 0
    %p177 = por %p175, %p176
    %p178 = scmp.ne.s32.totalorder %s167, %s170
    %p179 = scmp.eq.s32.totalorder %s17, 5
    %p180 = por %p178, %p179
    %p181 = scmp.ne.s32.totalorder %s170, %s171
    %p182 = scmp.eq.s32.totalorder %s17, 0
    %p183 = por %p181, %p182
    %p184 = scmp.ne.s32.totalorder %s170, %s171
    %p185 = scmp.eq.s32.totalorder %s18, 5
    %p186 = por %p184, %p185
    %p188 = scmp.ne.s32.totalorder %s171, %s187
    %p189 = scmp.eq.s32.totalorder %s18, 0
    %p190 = por %p188, %p189
    %p191 = scmp.le.s32.totalorder 1, %s12
    %p192 = scmp.lt.s32.totalorder %s12, 7
    %p193 = pnand %p191, %p192
    %p194 = pneg %p193
    // Predicated region
    $region9: #{net_forward.5} parent=5 // pred_check
      _
    $region10: #{net_forward.5} parent=5 // pred_check_branch
      %196 = sbr.rel (%p193) target = $region12
    $region11: #{net_forward.5} parent=5 // pred_region
      %s197 = ssub.s32 %s12, 1
      // Predicated region
      $region13: #{net_forward.5} parent=11 // pred_check
        %p198 = pneg %p71
      $region14: #{net_forward.5} parent=11 // pred_check_branch
        %200 = sbr.rel (%p198) target = $region16
      $region15: #{net_forward.5} parent=11 // pred_region
        _
      $region16: #{net_forward.5} parent=11 // pred_fallthru
        _
      // Predicated region
      $region17: #{net_forward.5} parent=11 // pred_check
        %p201 = pneg %p92
      $region18: #{net_forward.5} parent=11 // pred_check_branch
        %203 = sbr.rel (%p201) target = $region20
      $region19: #{net_forward.5} parent=11 // pred_region
        _
      $region20: #{net_forward.5} parent=11 // pred_fallthru
        _
      // Predicated region
      $region21: #{net_forward.5} parent=11 // pred_check
        %p204 = pneg %p113
      $region22: #{net_forward.5} parent=11 // pred_check_branch
        %206 = sbr.rel (%p204) target = $region24
      $region23: #{net_forward.5} parent=11 // pred_region
        _
      $region24: #{net_forward.5} parent=11 // pred_fallthru
        _
      // Predicated region
      $region25: #{net_forward.5} parent=11 // pred_check
        %p207 = pneg %p134
      $region26: #{net_forward.5} parent=11 // pred_check_branch
        %209 = sbr.rel (%p207) target = $region28
      $region27: #{net_forward.5} parent=11 // pred_region
        _
      $region28: #{net_forward.5} parent=11 // pred_fallthru
        _
      // Predicated region
      $region29: #{net_forward.5} parent=11 // pred_check
        %p210 = pneg %p155
      $region30: #{net_forward.5} parent=11 // pred_check_branch
        %212 = sbr.rel (%p210) target = $region32
      $region31: #{net_forward.5} parent=11 // pred_region
        _
      $region32: #{net_forward.5} parent=11 // pred_fallthru
        _
    $region12: #{net_forward.5} parent=5 // pred_fallthru
      _
    %p213 = scmp.lt.s32.totalorder %s12, 6
    // Predicated region
    $region33: #{net_forward.5} parent=5 // pred_check
      %p214 = pneg %p213
    $region34: #{net_forward.5} parent=5 // pred_check_branch
      %216 = sbr.rel (%p214) target = $region36
    $region35: #{net_forward.5} parent=5 // pred_region
      // Predicated region
      $region37: #{net_forward.5} parent=35 // pred_check
        %p217 = pneg %p44
      $region38: #{net_forward.5} parent=35 // pred_check_branch
        %219 = sbr.rel (%p217) target = $region40
      $region39: #{net_forward.5} parent=35 // pred_region
        %p220 = scmp.lt.s32.totalorder %s19, 1
        %s221 = scalar_select %p220, %s19, 1
        %s222 = smul.addr %s221, 448
        %s223 = smul.addr %s222, 4
        %s224 = scalar_lea.vmem %s0, %s223
      $region40: #{net_forward.5} parent=35 // pred_fallthru
        _
    $region36: #{net_forward.5} parent=5 // pred_fallthru
      _
    %p225 = scmp.le.s32.totalorder 1, %s12
    %p226 = scmp.lt.s32.totalorder %s12, 7
    %p227 = pnand %p225, %p226
    %p228 = pneg %p227
    // Predicated region
    $region41: #{net_forward.5} parent=5 // pred_check
      _
    $region42: #{net_forward.5} parent=5 // pred_check_branch
      %230 = sbr.rel (%p227) target = $region44
    $region43: #{net_forward.5} parent=5 // pred_region
      %s231 = ssub.s32 %s12, 1
      %p232 = scmp.lt.s32.totalorder %s21, 1
      %s233 = scalar_select %p232, %s21, 1
      %s234 = smul.addr %s233, 448
      %s235 = smul.addr %s234, 4
      %s236 = scalar_lea.vmem %s0, %s235
      %p237 = pneg %p50
      %p238 = pneg %p47
      %p239 = pneg %p71
      %p240 = pneg %p68
      %p241 = pneg %p92
      %p242 = pneg %p89
      %p243 = pneg %p113
      %p244 = pneg %p110
      %p245 = pneg %p134
      %p246 = pneg %p131
      %p247 = pneg %p155
      %p248 = pneg %p152
      %p249 = pneg %p183
      %p250 = pneg %p180
      %s251 = smul.u32 37, %s22
      %p252 = scmp.lt.s32.totalorder %s21, 1
      %s253 = scalar_select %p252, %s21, 1
      %p254 = scmp.lt.s32.totalorder %s251, 110
      %s255 = scalar_select %p254, %s251, 110
      %s256 = smul.addr %s255, 4
      %s257 = smul.addr %s253, 444
      %s258 = sadd.s32 %s256, %s257
      %s259 = smul.addr %s258, 4
      %s260 = scalar_lea.vmem %s6, %s259
      %p261 = scmp.lt.s32.totalorder %s21, 1
      %s262 = scalar_select %p261, %s21, 1
      %s263 = smul.addr %s262, 448
      %s264 = smul.addr %s263, 4
      %s265 = scalar_lea.vmem %s0, %s264
      %s266 = smul.u32 37, %s22
      %p267 = scmp.lt.s32.totalorder %s21, 1
      %s268 = scalar_select %p267, %s21, 1
      %p269 = scmp.lt.s32.totalorder %s266, 110
      %s270 = scalar_select %p269, %s266, 110
      %s271 = smul.addr %s270, 4
      %s272 = smul.addr %s268, 444
      %s273 = sadd.s32 %s271, %s272
      %s274 = smul.addr %s273, 4
      %s275 = scalar_lea.vmem %s6, %s274
      %s276 = smul.u32 37, %s22
      %v278 = vld [vmem:[%s1] sm:$0xf]
      %v279 = vld [vmem:[%s1 + $0x4] sm:$0xf]
      %v280 = vld [vmem:[%s1 + $0x8] sm:$0xf]
      %v281 = vld [vmem:[%s1 + $0xc] sm:$0xf]
      %s282 = scalar_lea.vmem %s1, 16
      %v283 = vld [vmem:[%s282] sm:$0xf]
      %v284 = vld [vmem:[%s282 + $0x4] sm:$0xf]
      %v285 = vld [vmem:[%s282 + $0x8] sm:$0xf]
      %v286 = vld [vmem:[%s282 + $0xc] sm:$0xf]
      %s287 = scalar_lea.vmem %s1, 32
      %v288 = vld [vmem:[%s287] sm:$0xf]
      %v289 = vld [vmem:[%s287 + $0x4] sm:$0xf]
      %v290 = vld [vmem:[%s287 + $0x8] sm:$0xf]
      %v291 = vld [vmem:[%s287 + $0xc] sm:$0xf]
      %v292 = vld [vmem:[%s2] sm:$0xff]
      %v293 = vld [vmem:[%s2 + $0x8] sm:$0xff]
      %v294 = vld [vmem:[%s2 + $0x10] sm:$0xff]
      %v295 = vld [vmem:[%s2 + $0x18] sm:$0xff]
      %v296 = vld [vmem:[%s3] sm:$0xff]
      %v297 = vld [vmem:[%s3 + $0x8] sm:$0xff]
      %v298 = vld [vmem:[%s3 + $0x10] sm:$0xff]
      %v299 = vld [vmem:[%s3 + $0x18] sm:$0xff]
      %v300 = vld [vmem:[%s4] sm:$0xff]
      %v301 = vld [vmem:[%s4 + $0x8] sm:$0xff]
      %v302 = vld [vmem:[%s4 + $0x10] sm:$0xff]
      %v303 = vld [vmem:[%s4 + $0x18] sm:$0xff]
      %v304 = vld [vmem:[%s5] sm:$0xf]
      %v305 = vld [vmem:[%s5 + $0x4] sm:$0xf]
      %v306 = vld [vmem:[%s5 + $0x8] sm:$0xf]
      %v307 = vld [vmem:[%s5 + $0xc] sm:$0xf]
      %v308 = vld [vmem:[%s5 + $0x10] sm:$0xf]
      %v309 = vld [vmem:[%s5 + $0x14] sm:$0xf]
      %v310 = vld [vmem:[%s5 + $0x18] sm:$0xf]
      %v311 = vld [vmem:[%s5 + $0x1c] sm:$0xf]
      %v312 = vld [vmem:[%s5 + $0x20] sm:$0xf]
      %v313 = vld [vmem:[%s5 + $0x24] sm:$0xf]
      %v314 = vld [vmem:[%s5 + $0x28] sm:$0xf]
      %v315 = vld [vmem:[%s5 + $0x2c] sm:$0xf]
      %v316 = vld [vmem:[%s5 + $0x30] sm:$0xf]
      %v317 = vld [vmem:[%s5 + $0x34] sm:$0xf]
      %v318 = vld [vmem:[%s5 + $0x38] sm:$0xf]
      %v319 = vld [vmem:[%s5 + $0x3c] sm:$0xf]
      %v320 = vld [vmem:[%s5 + $0x40] sm:$0xf]
      %v321 = vld [vmem:[%s5 + $0x44] sm:$0xf]
      %v322 = vld [vmem:[%s5 + $0x48] sm:$0xf]
      %v323 = vld [vmem:[%s5 + $0x4c] sm:$0xf]
      %v324 = vld [vmem:[%s5 + $0x50] sm:$0xf]
      %v325 = vld [vmem:[%s5 + $0x54] sm:$0xf]
      %v326 = vld [vmem:[%s5 + $0x58] sm:$0xf]
      %v327 = vld [vmem:[%s5 + $0x5c] sm:$0xf]
      %v328 = vld [vmem:[%s5 + $0x60] sm:$0xf]
      %v329 = vld [vmem:[%s5 + $0x64] sm:$0xf]
      %v330 = vld [vmem:[%s5 + $0x68] sm:$0xf]
      %v331 = vld [vmem:[%s5 + $0x6c] sm:$0x7]
      loop: start=0, step=1, limit=37
      $region45: #{net_forward.5} parent=43 // loop_pre_header
        _
      $region46: #{net_forward.5} parent=43 // loop_header
        %s333 = sphi 0, %s337
        %p334 = scmp.ge.s32.totalorder %s333, 37
      $region47: #{net_forward.5} parent=43 // loop_header_branch
        %336 = sbr.rel (%p334) target = $region51
      $region48: #{net_forward.5} parent=43 // loop_body
        %s338 = smul.u32 %s22, 37
        %s339 = sadd.s32 %s338, %s333
        %s340 = smul.u32 %s339, 2
        %s341 = smul.u32 %s339, 16
        %s342 = sshra.s32 %s341, 3
        %s343 = sand.u32 %s341, 7
        %s344 = smul.u32 %s342, 2
        %s345 = smul.addr %s344, 4
        %s346 = scalar_lea.vmem %s265, %s345
        %v347 = vld [vmem:[%s346] sm:$0xff]
        %v348 = vld [vmem:[%s346 + $0x8] sm:$0xff]
        %v349 = vld [vmem:[%s346 + $0x10] sm:$0xff]
        %v354 = vunpack.c.l.b16 %v283
        %v355 = vunpack.c.l.b16 %v284
        %v356 = vunpack.c.l.b16 %v285
        %v357 = vunpack.c.l.b16 %v286
        %v358 = vpack.c.b16 %v355, %v354
        %v359 = vpack.c.b16 %v357, %v356
        %v363 = vunpack.c.l.b16 %v347
        %v364 = vunpack.c.h.b16 %v347
        %v365 = vunpack.c.l.b16 %v348
        %v366 = vunpack.c.h.b16 %v348
        %v367 = vunpack.c.l.b16 %v349
        %v368 = vunpack.c.h.b16 %v349
        %v369 = vpack.c.b16 %v365, %v363
        %v370 = vpack.c.b16 %v366, %v364
        %v371 = vpack.c.b16 %v367, %v367
        %v372 = vpack.c.b16 %v368, %v368
        %373 = vrot.lane.b32.xlu0 %v369, 127
        %v374 = vpop.permute.xlu0 %373
        %375 = vrot.lane.b32.xlu0 %v370, 127
        %v376 = vpop.permute.xlu0 %375
        %377 = vrot.lane.b32.xlu0 %v371, 127
        %v378 = vpop.permute.xlu0 %377
        %379 = vrot.lane.b32.xlu0 %v372, 127
        %v380 = vpop.permute.xlu0 %379
        %vm381 = vcmask 1039360
        %v382 = vsel %vm381, %v374, %v376
        %v383 = vsel %vm381, %v378, %v380
        %vm386 = vcmask 195584
        %v388 = vsel %vm386, %v358, 0
        %v391 = vsel %vm386, %v359, 0
        %vm393 = vcmask 1043456
        %v395 = vsel %vm393, %v383, 0
        %v398 = vsel %vm393, %v380, 0
        %400 = vmatprep.subr.bf16.mxu0 0
        %401 = vmatpush1.bf16.msra.mxu0 0
        %402 = vmatprep.subr.bf16.mxu0 0
        %403 = vmatpush1.bf16.msra.mxu0 0
        %404 = vmatprep.subr.bf16.mxu0 0
        %405 = vmatpush1.bf16.msra.mxu0 0
        %406 = vmatprep.subr.bf16.mxu0 0
        %407 = vmatpush1.bf16.msra.mxu0 0
        %408 = vmatprep.subr.bf16.mxu0 0
        %409 = vmatpush1.bf16.msra.mxu0 0
        %410 = vmatprep.subr.bf16.mxu0 0
        %411 = vmatpush1.bf16.msra.mxu0 0
        %412 = vmatprep.subr.bf16.mxu0 %v398
        %413 = vmatpush1.bf16.msra.mxu0 %v395
        %414 = vmatprep.subr.bf16.mxu0 %v376
        %415 = vmatpush1.bf16.msra.mxu0 %v382
        %416 = vmatprep.subr.bf16.mxu0 0
        %417 = vmatpush2.bf16.msra.mxu0 0
        %418 = vmatprep.subr.bf16.mxu0 0
        %419 = vmatpush2.bf16.msra.mxu0 0
        %420 = vmatprep.subr.bf16.mxu0 0
        %421 = vmatpush2.bf16.msra.mxu0 0
        %422 = vmatprep.subr.bf16.mxu0 0
        %423 = vmatpush2.bf16.msra.mxu0 0
        %424 = vmatprep.subr.bf16.mxu0 0
        %425 = vmatpush2.bf16.msra.mxu0 0
        %426 = vmatprep.subr.bf16.mxu0 0
        %427 = vmatpush2.bf16.msra.mxu0 0
        %428 = vmatprep.subr.bf16.mxu0 0
        %429 = vmatpush2.bf16.msra.mxu0 0
        %430 = vmatprep.subr.bf16.mxu0 0
        %431 = vmatpush2.bf16.msra.mxu0 0
        %432 = vmatprep.mubr.bf16.mxu0 0
        %433 = vmatmul.mubr.bf16.gmra.mxu0 %v388
        %v434 = vpop.f32.mrf.mxu0
        %v435 = vadd.f32 0.0, %v434
        %v436 = vpop.f32.mrf.mxu0
        %v437 = vadd.f32 0.0, %v436
        %v438 = vpop.f32.mrf.mxu0
        %v439 = vadd.f32 0.0, %v438
        %v440 = vpop.f32.mrf.mxu0
        %v441 = vadd.f32 0.0, %v440
        %442 = vmatprep.mubr.bf16.mxu0 0
        %443 = vmatmul.mubr.bf16.gmra.mxu0 %v391
        %v444 = vpop.f32.mrf.mxu0
        %v445 = vadd.f32 0.0, %v444
        %v446 = vpop.f32.mrf.mxu0
        %v447 = vadd.f32 0.0, %v446
        %v448 = vpop.f32.mrf.mxu0
        %v449 = vadd.f32 0.0, %v448
        %v450 = vpop.f32.mrf.mxu0
        %v451 = vadd.f32 0.0, %v450
        %452 = vdwg.mxu0
        %v457 = vunpack.c.l.b16 %v278
        %v458 = vunpack.c.l.b16 %v279
        %v459 = vunpack.c.l.b16 %v280
        %v460 = vunpack.c.l.b16 %v281
        %v461 = vpack.c.b16 %v458, %v457
        %v462 = vpack.c.b16 %v460, %v459
        %v466 = vsel %vm386, %v461, 0
        %v469 = vsel %vm386, %v462, 0
        %v472 = vsel %vm393, %v371, 0
        %v475 = vsel %vm393, %v372, 0
        %477 = vmatprep.subr.bf16.mxu0 0
        %478 = vmatpush1.bf16.msra.mxu0 0
        %479 = vmatprep.subr.bf16.mxu0 0
        %480 = vmatpush1.bf16.msra.mxu0 0
        %481 = vmatprep.subr.bf16.mxu0 0
        %482 = vmatpush1.bf16.msra.mxu0 0
        %483 = vmatprep.subr.bf16.mxu0 0
        %484 = vmatpush1.bf16.msra.mxu0 0
        %485 = vmatprep.subr.bf16.mxu0 0
        %486 = vmatpush1.bf16.msra.mxu0 0
        %487 = vmatprep.subr.bf16.mxu0 0
        %488 = vmatpush1.bf16.msra.mxu0 0
        %489 = vmatprep.subr.bf16.mxu0 %v475
        %490 = vmatpush1.bf16.msra.mxu0 %v472
        %491 = vmatprep.subr.bf16.mxu0 %v370
        %492 = vmatpush1.bf16.msra.mxu0 %v369
        %493 = vmatprep.subr.bf16.mxu0 0
        %494 = vmatpush2.bf16.msra.mxu0 0
        %495 = vmatprep.subr.bf16.mxu0 0
        %496 = vmatpush2.bf16.msra.mxu0 0
        %497 = vmatprep.subr.bf16.mxu0 0
        %498 = vmatpush2.bf16.msra.mxu0 0
        %499 = vmatprep.subr.bf16.mxu0 0
        %500 = vmatpush2.bf16.msra.mxu0 0
        %501 = vmatprep.subr.bf16.mxu0 0
        %502 = vmatpush2.bf16.msra.mxu0 0
        %503 = vmatprep.subr.bf16.mxu0 0
        %504 = vmatpush2.bf16.msra.mxu0 0
        %505 = vmatprep.subr.bf16.mxu0 0
        %506 = vmatpush2.bf16.msra.mxu0 0
        %507 = vmatprep.subr.bf16.mxu0 0
        %508 = vmatpush2.bf16.msra.mxu0 0
        %509 = vmatprep.mubr.bf16.mxu0 0
        %510 = vmatmul.mubr.bf16.gmra.mxu0 %v466
        %v511 = vpop.f32.mrf.mxu0
        %v512 = vadd.f32 %v435, %v511
        %v513 = vpop.f32.mrf.mxu0
        %v514 = vadd.f32 %v437, %v513
        %v515 = vpop.f32.mrf.mxu0
        %v516 = vadd.f32 %v439, %v515
        %v517 = vpop.f32.mrf.mxu0
        %v518 = vadd.f32 %v441, %v517
        %519 = vmatprep.mubr.bf16.mxu0 0
        %520 = vmatmul.mubr.bf16.gmra.mxu0 %v469
        %v521 = vpop.f32.mrf.mxu0
        %v522 = vadd.f32 %v445, %v521
        %v523 = vpop.f32.mrf.mxu0
        %v524 = vadd.f32 %v447, %v523
        %v525 = vpop.f32.mrf.mxu0
        %v526 = vadd.f32 %v449, %v525
        %v527 = vpop.f32.mrf.mxu0
        %v528 = vadd.f32 %v451, %v527
        %529 = vdwg.mxu0
        %v534 = vunpack.c.l.b16 %v288
        %v535 = vunpack.c.l.b16 %v289
        %v536 = vunpack.c.l.b16 %v290
        %v537 = vunpack.c.l.b16 %v291
        %v538 = vpack.c.b16 %v535, %v534
        %v539 = vpack.c.b16 %v537, %v536
        %540 = vrot.lane.b32.xlu0 %v369, 126
        %v541 = vpop.permute.xlu0 %540
        %542 = vrot.lane.b32.xlu0 %v370, 126
        %v543 = vpop.permute.xlu0 %542
        %544 = vrot.lane.b32.xlu0 %v371, 126
        %v545 = vpop.permute.xlu0 %544
        %546 = vrot.lane.b32.xlu0 %v372, 126
        %v547 = vpop.permute.xlu0 %546
        %vm548 = vcmask 1031168
        %v549 = vsel %vm548, %v541, %v543
        %v550 = vsel %vm548, %v545, %v547
        %v554 = vsel %vm386, %v538, 0
        %v557 = vsel %vm386, %v539, 0
        %v560 = vsel %vm393, %v550, 0
        %v563 = vsel %vm393, %v547, 0
        %565 = vmatprep.subr.bf16.mxu0 0
        %566 = vmatpush1.bf16.msra.mxu0 0
        %567 = vmatprep.subr.bf16.mxu0 0
        %568 = vmatpush1.bf16.msra.mxu0 0
        %569 = vmatprep.subr.bf16.mxu0 0
        %570 = vmatpush1.bf16.msra.mxu0 0
        %571 = vmatprep.subr.bf16.mxu0 0
        %572 = vmatpush1.bf16.msra.mxu0 0
        %573 = vmatprep.subr.bf16.mxu0 0
        %574 = vmatpush1.bf16.msra.mxu0 0
        %575 = vmatprep.subr.bf16.mxu0 0
        %576 = vmatpush1.bf16.msra.mxu0 0
        %577 = vmatprep.subr.bf16.mxu0 %v563
        %578 = vmatpush1.bf16.msra.mxu0 %v560
        %579 = vmatprep.subr.bf16.mxu0 %v543
        %580 = vmatpush1.bf16.msra.mxu0 %v549
        %581 = vmatprep.subr.bf16.mxu0 0
        %582 = vmatpush2.bf16.msra.mxu0 0
        %583 = vmatprep.subr.bf16.mxu0 0
        %584 = vmatpush2.bf16.msra.mxu0 0
        %585 = vmatprep.subr.bf16.mxu0 0
        %586 = vmatpush2.bf16.msra.mxu0 0
        %587 = vmatprep.subr.bf16.mxu0 0
        %588 = vmatpush2.bf16.msra.mxu0 0
        %589 = vmatprep.subr.bf16.mxu0 0
        %590 = vmatpush2.bf16.msra.mxu0 0
        %591 = vmatprep.subr.bf16.mxu0 0
        %592 = vmatpush2.bf16.msra.mxu0 0
        %593 = vmatprep.subr.bf16.mxu0 0
        %594 = vmatpush2.bf16.msra.mxu0 0
        %595 = vmatprep.subr.bf16.mxu0 0
        %596 = vmatpush2.bf16.msra.mxu0 0
        %597 = vmatprep.mubr.bf16.mxu0 0
        %598 = vmatmul.mubr.bf16.gmra.mxu0 %v554
        %v599 = vpop.f32.mrf.mxu0
        %v600 = vadd.f32 0.0, %v599
        %v601 = vpop.f32.mrf.mxu0
        %v602 = vadd.f32 0.0, %v601
        %v603 = vpop.f32.mrf.mxu0
        %v604 = vadd.f32 0.0, %v603
        %v605 = vpop.f32.mrf.mxu0
        %v606 = vadd.f32 0.0, %v605
        %607 = vmatprep.mubr.bf16.mxu0 0
        %608 = vmatmul.mubr.bf16.gmra.mxu0 %v557
        %v609 = vpop.f32.mrf.mxu0
        %v610 = vadd.f32 0.0, %v609
        %v611 = vpop.f32.mrf.mxu0
        %v612 = vadd.f32 0.0, %v611
        %v613 = vpop.f32.mrf.mxu0
        %v614 = vadd.f32 0.0, %v613
        %v615 = vpop.f32.mrf.mxu0
        %v616 = vadd.f32 0.0, %v615
        %617 = vdwg.mxu0
        %v618 = vadd.f32 %v512, %v600
        %v619 = vadd.f32 %v514, %v602
        %v620 = vadd.f32 %v516, %v604
        %v621 = vadd.f32 %v518, %v606
        %v622 = vadd.f32 %v522, %v610
        %v623 = vadd.f32 %v524, %v612
        %v624 = vadd.f32 %v526, %v614
        %v625 = vadd.f32 %v528, %v616
        %627 = vset.pattern.permute.xlu0 0
        %628 = vperm.xlu0 %627, %v292
        %v629 = vpop.permute.xlu0 %628
        %632 = vset.pattern.permute.xlu0 0
        %633 = vperm.xlu0 %632, %v293
        %v634 = vpop.permute.xlu0 %633
        %637 = vset.pattern.permute.xlu0 0
        %638 = vperm.xlu0 %637, %v294
        %v639 = vpop.permute.xlu0 %638
        %642 = vset.pattern.permute.xlu0 0
        %643 = vperm.xlu0 %642, %v295
        %v644 = vpop.permute.xlu0 %643
        %v646 = vadd.f32 %v618, %v629
        %v647 = vadd.f32 %v619, %v629
        %v648 = vadd.f32 %v620, %v634
        %v649 = vadd.f32 %v621, %v634
        %v650 = vadd.f32 %v622, %v639
        %v651 = vadd.f32 %v623, %v639
        %v652 = vadd.f32 %v624, %v644
        %v653 = vadd.f32 %v625, %v644
        %v654 = vmax.f32 %v646, 0.0
        %v655 = vmax.f32 %v647, 0.0
        %v656 = vmax.f32 %v648, 0.0
        %v657 = vmax.f32 %v649, 0.0
        %v658 = vmax.f32 %v650, 0.0
        %v659 = vmax.f32 %v651, 0.0
        %v660 = vmax.f32 %v652, 0.0
        %v661 = vmax.f32 %v653, 0.0
        %663 = vset.pattern.permute.xlu0 0
        %664 = vperm.xlu0 %663, %v296
        %v665 = vpop.permute.xlu0 %664
        %668 = vset.pattern.permute.xlu0 0
        %669 = vperm.xlu0 %668, %v297
        %v670 = vpop.permute.xlu0 %669
        %673 = vset.pattern.permute.xlu0 0
        %674 = vperm.xlu0 %673, %v298
        %v675 = vpop.permute.xlu0 %674
        %678 = vset.pattern.permute.xlu0 0
        %679 = vperm.xlu0 %678, %v299
        %v680 = vpop.permute.xlu0 %679
        %v682 = vmul.f32 %v654, %v665
        %v683 = vmul.f32 %v655, %v665
        %v684 = vmul.f32 %v656, %v670
        %v685 = vmul.f32 %v657, %v670
        %v686 = vmul.f32 %v658, %v675
        %v687 = vmul.f32 %v659, %v675
        %v688 = vmul.f32 %v660, %v680
        %v689 = vmul.f32 %v661, %v680
        %691 = vset.pattern.permute.xlu0 0
        %692 = vperm.xlu0 %691, %v300
        %v693 = vpop.permute.xlu0 %692
        %696 = vset.pattern.permute.xlu0 0
        %697 = vperm.xlu0 %696, %v301
        %v698 = vpop.permute.xlu0 %697
        %701 = vset.pattern.permute.xlu0 0
        %702 = vperm.xlu0 %701, %v302
        %v703 = vpop.permute.xlu0 %702
        %706 = vset.pattern.permute.xlu0 0
        %707 = vperm.xlu0 %706, %v303
        %v708 = vpop.permute.xlu0 %707
        %v710 = vadd.f32 %v682, %v693
        %v711 = vadd.f32 %v683, %v693
        %v712 = vadd.f32 %v684, %v698
        %v713 = vadd.f32 %v685, %v698
        %v714 = vadd.f32 %v686, %v703
        %v715 = vadd.f32 %v687, %v703
        %v716 = vadd.f32 %v688, %v708
        %v717 = vadd.f32 %v689, %v708
        %s718 = sadd.s32 %s340, 1
        %s719 = smul.u32 %s718, 8
        %s720 = sshra.s32 %s719, 3
        %s721 = sand.u32 %s719, 7
        %s722 = smul.u32 %s720, 2
        %s723 = smul.addr %s722, 4
        %s724 = scalar_lea.vmem %s265, %s723
        %v725 = vld [vmem:[%s724] sm:$0xff]
        %v726 = vld [vmem:[%s724 + $0x8] sm:$0xff]
        %v727 = vld [vmem:[%s724 + $0x10] sm:$0xff]
        %v731 = vunpack.c.l.b16 %v725
        %v732 = vunpack.c.h.b16 %v725
        %v733 = vunpack.c.l.b16 %v726
        %v734 = vunpack.c.h.b16 %v726
        %v735 = vunpack.c.l.b16 %v727
        %v736 = vunpack.c.h.b16 %v727
        %v737 = vpack.c.b16 %v733, %v731
        %v738 = vpack.c.b16 %v734, %v732
        %v739 = vpack.c.b16 %v735, %v735
        %v740 = vpack.c.b16 %v736, %v736
        %741 = vrot.lane.b32.xlu0 %v737, 127
        %v742 = vpop.permute.xlu0 %741
        %743 = vrot.lane.b32.xlu0 %v738, 127
        %v744 = vpop.permute.xlu0 %743
        %745 = vrot.lane.b32.xlu0 %v739, 127
        %v746 = vpop.permute.xlu0 %745
        %747 = vrot.lane.b32.xlu0 %v740, 127
        %v748 = vpop.permute.xlu0 %747
        %v749 = vsel %vm381, %v742, %v744
        %v750 = vsel %vm381, %v746, %v748
        %v754 = vsel %vm393, %v750, 0
        %v757 = vsel %vm393, %v748, 0
        %759 = vmatprep.subr.bf16.mxu0 0
        %760 = vmatpush1.bf16.msra.mxu0 0
        %761 = vmatprep.subr.bf16.mxu0 0
        %762 = vmatpush1.bf16.msra.mxu0 0
        %763 = vmatprep.subr.bf16.mxu0 0
        %764 = vmatpush1.bf16.msra.mxu0 0
        %765 = vmatprep.subr.bf16.mxu0 0
        %766 = vmatpush1.bf16.msra.mxu0 0
        %767 = vmatprep.subr.bf16.mxu0 0
        %768 = vmatpush1.bf16.msra.mxu0 0
        %769 = vmatprep.subr.bf16.mxu0 0
        %770 = vmatpush1.bf16.msra.mxu0 0
        %771 = vmatprep.subr.bf16.mxu0 %v757
        %772 = vmatpush1.bf16.msra.mxu0 %v754
        %773 = vmatprep.subr.bf16.mxu0 %v744
        %774 = vmatpush1.bf16.msra.mxu0 %v749
        %775 = vmatprep.subr.bf16.mxu0 0
        %776 = vmatpush2.bf16.msra.mxu0 0
        %777 = vmatprep.subr.bf16.mxu0 0
        %778 = vmatpush2.bf16.msra.mxu0 0
        %779 = vmatprep.subr.bf16.mxu0 0
        %780 = vmatpush2.bf16.msra.mxu0 0
        %781 = vmatprep.subr.bf16.mxu0 0
        %782 = vmatpush2.bf16.msra.mxu0 0
        %783 = vmatprep.subr.bf16.mxu0 0
        %784 = vmatpush2.bf16.msra.mxu0 0
        %785 = vmatprep.subr.bf16.mxu0 0
        %786 = vmatpush2.bf16.msra.mxu0 0
        %787 = vmatprep.subr.bf16.mxu0 0
        %788 = vmatpush2.bf16.msra.mxu0 0
        %789 = vmatprep.subr.bf16.mxu0 0
        %790 = vmatpush2.bf16.msra.mxu0 0
        %791 = vmatprep.mubr.bf16.mxu0 0
        %792 = vmatmul.mubr.bf16.gmra.mxu0 %v388
        %v793 = vpop.f32.mrf.mxu0
        %v794 = vadd.f32 0.0, %v793
        %v795 = vpop.f32.mrf.mxu0
        %v796 = vadd.f32 0.0, %v795
        %v797 = vpop.f32.mrf.mxu0
        %v798 = vadd.f32 0.0, %v797
        %v799 = vpop.f32.mrf.mxu0
        %v800 = vadd.f32 0.0, %v799
        %801 = vmatprep.mubr.bf16.mxu0 0
        %802 = vmatmul.mubr.bf16.gmra.mxu0 %v391
        %v803 = vpop.f32.mrf.mxu0
        %v804 = vadd.f32 0.0, %v803
        %v805 = vpop.f32.mrf.mxu0
        %v806 = vadd.f32 0.0, %v805
        %v807 = vpop.f32.mrf.mxu0
        %v808 = vadd.f32 0.0, %v807
        %v809 = vpop.f32.mrf.mxu0
        %v810 = vadd.f32 0.0, %v809
        %811 = vdwg.mxu0
        %v815 = vsel %vm393, %v739, 0
        %v818 = vsel %vm393, %v740, 0
        %820 = vmatprep.subr.bf16.mxu0 0
        %821 = vmatpush1.bf16.msra.mxu0 0
        %822 = vmatprep.subr.bf16.mxu0 0
        %823 = vmatpush1.bf16.msra.mxu0 0
        %824 = vmatprep.subr.bf16.mxu0 0
        %825 = vmatpush1.bf16.msra.mxu0 0
        %826 = vmatprep.subr.bf16.mxu0 0
        %827 = vmatpush1.bf16.msra.mxu0 0
        %828 = vmatprep.subr.bf16.mxu0 0
        %829 = vmatpush1.bf16.msra.mxu0 0
        %830 = vmatprep.subr.bf16.mxu0 0
        %831 = vmatpush1.bf16.msra.mxu0 0
        %832 = vmatprep.subr.bf16.mxu0 %v818
        %833 = vmatpush1.bf16.msra.mxu0 %v815
        %834 = vmatprep.subr.bf16.mxu0 %v738
        %835 = vmatpush1.bf16.msra.mxu0 %v737
        %836 = vmatprep.subr.bf16.mxu0 0
        %837 = vmatpush2.bf16.msra.mxu0 0
        %838 = vmatprep.subr.bf16.mxu0 0
        %839 = vmatpush2.bf16.msra.mxu0 0
        %840 = vmatprep.subr.bf16.mxu0 0
        %841 = vmatpush2.bf16.msra.mxu0 0
        %842 = vmatprep.subr.bf16.mxu0 0
        %843 = vmatpush2.bf16.msra.mxu0 0
        %844 = vmatprep.subr.bf16.mxu0 0
        %845 = vmatpush2.bf16.msra.mxu0 0
        %846 = vmatprep.subr.bf16.mxu0 0
        %847 = vmatpush2.bf16.msra.mxu0 0
        %848 = vmatprep.subr.bf16.mxu0 0
        %849 = vmatpush2.bf16.msra.mxu0 0
        %850 = vmatprep.subr.bf16.mxu0 0
        %851 = vmatpush2.bf16.msra.mxu0 0
        %852 = vmatprep.mubr.bf16.mxu0 0
        %853 = vmatmul.mubr.bf16.gmra.mxu0 %v466
        %v854 = vpop.f32.mrf.mxu0
        %v855 = vadd.f32 %v794, %v854
        %v856 = vpop.f32.mrf.mxu0
        %v857 = vadd.f32 %v796, %v856
        %v858 = vpop.f32.mrf.mxu0
        %v859 = vadd.f32 %v798, %v858
        %v860 = vpop.f32.mrf.mxu0
        %v861 = vadd.f32 %v800, %v860
        %862 = vmatprep.mubr.bf16.mxu0 0
        %863 = vmatmul.mubr.bf16.gmra.mxu0 %v469
        %v864 = vpop.f32.mrf.mxu0
        %v865 = vadd.f32 %v804, %v864
        %v866 = vpop.f32.mrf.mxu0
        %v867 = vadd.f32 %v806, %v866
        %v868 = vpop.f32.mrf.mxu0
        %v869 = vadd.f32 %v808, %v868
        %v870 = vpop.f32.mrf.mxu0
        %v871 = vadd.f32 %v810, %v870
        %872 = vdwg.mxu0
        %873 = vrot.lane.b32.xlu0 %v737, 126
        %v874 = vpop.permute.xlu0 %873
        %875 = vrot.lane.b32.xlu0 %v738, 126
        %v876 = vpop.permute.xlu0 %875
        %877 = vrot.lane.b32.xlu0 %v739, 126
        %v878 = vpop.permute.xlu0 %877
        %879 = vrot.lane.b32.xlu0 %v740, 126
        %v880 = vpop.permute.xlu0 %879
        %v881 = vsel %vm548, %v874, %v876
        %v882 = vsel %vm548, %v878, %v880
        %v886 = vsel %vm393, %v882, 0
        %v889 = vsel %vm393, %v880, 0
        %891 = vmatprep.subr.bf16.mxu0 0
        %892 = vmatpush1.bf16.msra.mxu0 0
        %893 = vmatprep.subr.bf16.mxu0 0
        %894 = vmatpush1.bf16.msra.mxu0 0
        %895 = vmatprep.subr.bf16.mxu0 0
        %896 = vmatpush1.bf16.msra.mxu0 0
        %897 = vmatprep.subr.bf16.mxu0 0
        %898 = vmatpush1.bf16.msra.mxu0 0
        %899 = vmatprep.subr.bf16.mxu0 0
        %900 = vmatpush1.bf16.msra.mxu0 0
        %901 = vmatprep.subr.bf16.mxu0 0
        %902 = vmatpush1.bf16.msra.mxu0 0
        %903 = vmatprep.subr.bf16.mxu0 %v889
        %904 = vmatpush1.bf16.msra.mxu0 %v886
        %905 = vmatprep.subr.bf16.mxu0 %v876
        %906 = vmatpush1.bf16.msra.mxu0 %v881
        %907 = vmatprep.subr.bf16.mxu0 0
        %908 = vmatpush2.bf16.msra.mxu0 0
        %909 = vmatprep.subr.bf16.mxu0 0
        %910 = vmatpush2.bf16.msra.mxu0 0
        %911 = vmatprep.subr.bf16.mxu0 0
        %912 = vmatpush2.bf16.msra.mxu0 0
        %913 = vmatprep.subr.bf16.mxu0 0
        %914 = vmatpush2.bf16.msra.mxu0 0
        %915 = vmatprep.subr.bf16.mxu0 0
        %916 = vmatpush2.bf16.msra.mxu0 0
        %917 = vmatprep.subr.bf16.mxu0 0
        %918 = vmatpush2.bf16.msra.mxu0 0
        %919 = vmatprep.subr.bf16.mxu0 0
        %920 = vmatpush2.bf16.msra.mxu0 0
        %921 = vmatprep.subr.bf16.mxu0 0
        %922 = vmatpush2.bf16.msra.mxu0 0
        %923 = vmatprep.mubr.bf16.mxu0 0
        %924 = vmatmul.mubr.bf16.gmra.mxu0 %v554
        %v925 = vpop.f32.mrf.mxu0
        %v926 = vadd.f32 0.0, %v925
        %v927 = vpop.f32.mrf.mxu0
        %v928 = vadd.f32 0.0, %v927
        %v929 = vpop.f32.mrf.mxu0
        %v930 = vadd.f32 0.0, %v929
        %v931 = vpop.f32.mrf.mxu0
        %v932 = vadd.f32 0.0, %v931
        %933 = vmatprep.mubr.bf16.mxu0 0
        %934 = vmatmul.mubr.bf16.gmra.mxu0 %v557
        %v935 = vpop.f32.mrf.mxu0
        %v936 = vadd.f32 0.0, %v935
        %v937 = vpop.f32.mrf.mxu0
        %v938 = vadd.f32 0.0, %v937
        %v939 = vpop.f32.mrf.mxu0
        %v940 = vadd.f32 0.0, %v939
        %v941 = vpop.f32.mrf.mxu0
        %v942 = vadd.f32 0.0, %v941
        %943 = vdwg.mxu0
        %v944 = vadd.f32 %v855, %v926
        %v945 = vadd.f32 %v857, %v928
        %v946 = vadd.f32 %v859, %v930
        %v947 = vadd.f32 %v861, %v932
        %v948 = vadd.f32 %v865, %v936
        %v949 = vadd.f32 %v867, %v938
        %v950 = vadd.f32 %v869, %v940
        %v951 = vadd.f32 %v871, %v942
        %v952 = vadd.f32 %v944, %v629
        %v953 = vadd.f32 %v945, %v629
        %v954 = vadd.f32 %v946, %v634
        %v955 = vadd.f32 %v947, %v634
        %v956 = vadd.f32 %v948, %v639
        %v957 = vadd.f32 %v949, %v639
        %v958 = vadd.f32 %v950, %v644
        %v959 = vadd.f32 %v951, %v644
        %v960 = vmax.f32 %v952, 0.0
        %v961 = vmax.f32 %v953, 0.0
        %v962 = vmax.f32 %v954, 0.0
        %v963 = vmax.f32 %v955, 0.0
        %v964 = vmax.f32 %v956, 0.0
        %v965 = vmax.f32 %v957, 0.0
        %v966 = vmax.f32 %v958, 0.0
        %v967 = vmax.f32 %v959, 0.0
        %v968 = vmul.f32 %v960, %v665
        %v969 = vmul.f32 %v961, %v665
        %v970 = vmul.f32 %v962, %v670
        %v971 = vmul.f32 %v963, %v670
        %v972 = vmul.f32 %v964, %v675
        %v973 = vmul.f32 %v965, %v675
        %v974 = vmul.f32 %v966, %v680
        %v975 = vmul.f32 %v967, %v680
        %v976 = vadd.f32 %v968, %v693
        %v977 = vadd.f32 %v969, %v693
        %v978 = vadd.f32 %v970, %v698
        %v979 = vadd.f32 %v971, %v698
        %v980 = vadd.f32 %v972, %v703
        %v981 = vadd.f32 %v973, %v703
        %v982 = vadd.f32 %v974, %v708
        %v983 = vadd.f32 %v975, %v708
        %v984 = vmax.f32 %v710, %v976
        %v985 = vmax.f32 %v711, %v977
        %v986 = vmax.f32 %v712, %v978
        %v987 = vmax.f32 %v713, %v979
        %v988 = vmax.f32 %v714, %v980
        %v989 = vmax.f32 %v715, %v981
        %v990 = vmax.f32 %v716, %v982
        %v991 = vmax.f32 %v717, %v983
        %1000 = vrot.lane.b32.xlu0 %v984, 127
        %v1001 = vpop.permute.xlu0 %1000
        %1002 = vrot.lane.b32.xlu0 %v985, 127
        %v1003 = vpop.permute.xlu0 %1002
        %1004 = vrot.lane.b32.xlu0 %v986, 127
        %v1005 = vpop.permute.xlu0 %1004
        %1006 = vrot.lane.b32.xlu0 %v987, 127
        %v1007 = vpop.permute.xlu0 %1006
        %1008 = vrot.lane.b32.xlu0 %v988, 127
        %v1009 = vpop.permute.xlu0 %1008
        %1010 = vrot.lane.b32.xlu0 %v989, 127
        %v1011 = vpop.permute.xlu0 %1010
        %1012 = vrot.lane.b32.xlu0 %v990, 127
        %v1013 = vpop.permute.xlu0 %1012
        %1014 = vrot.lane.b32.xlu0 %v991, 127
        %v1015 = vpop.permute.xlu0 %1014
        %vm1016 = vcmask 1039360
        %v1017 = vsel %vm1016, %v1001, %v1003
        %v1018 = vsel %vm1016, %v1005, %v1007
        %v1019 = vsel %vm1016, %v1009, %v1011
        %v1020 = vsel %vm1016, %v1013, %v1015
        %1029 = vrot.lane.b32.xlu0 %v984, 93
        %v1030 = vpop.permute.xlu0 %1029
        %1031 = vrot.lane.b32.xlu0 %v986, 93
        %v1032 = vpop.permute.xlu0 %1031
        %1033 = vrot.lane.b32.xlu0 %v988, 93
        %v1034 = vpop.permute.xlu0 %1033
        %1035 = vrot.lane.b32.xlu0 %v990, 93
        %v1036 = vpop.permute.xlu0 %1035
        %vm1041 = vcmask 760832
        %v1042 = vsel %vm1041, %v1003, %v1030
        %v1043 = vsel %vm1041, %v1007, %v1032
        %v1044 = vsel %vm1041, %v1011, %v1034
        %v1045 = vsel %vm1041, %v1015, %v1036
        %v1046 = vmax.f32 %v984, %v1017
        %v1047 = vmax.f32 %v985, %v1042
        %v1048 = vmax.f32 %v986, %v1018
        %v1049 = vmax.f32 %v987, %v1043
        %v1050 = vmax.f32 %v988, %v1019
        %v1051 = vmax.f32 %v989, %v1044
        %v1052 = vmax.f32 %v990, %v1020
        %v1053 = vmax.f32 %v991, %v1045
        %v1054 = vpack.c.bf16 %v1048, %v1046
        %v1055 = vpack.c.bf16 %v1049, %v1047
        %v1056 = vpack.c.bf16 %v1052, %v1050
        %v1057 = vpack.c.bf16 %v1053, %v1051
        %v1086 = vunpack.c.l.b16 %v304
        %v1087 = vunpack.c.l.b16 %v305
        %v1088 = vunpack.c.l.b16 %v306
        %v1089 = vunpack.c.l.b16 %v307
        %v1090 = vunpack.c.l.b16 %v308
        %v1091 = vunpack.c.l.b16 %v309
        %v1092 = vunpack.c.l.b16 %v310
        %v1093 = vunpack.c.l.b16 %v311
        %v1094 = vunpack.c.l.b16 %v312
        %v1095 = vunpack.c.l.b16 %v313
        %v1096 = vunpack.c.l.b16 %v314
        %v1097 = vunpack.c.l.b16 %v315
        %v1098 = vunpack.c.l.b16 %v316
        %v1099 = vunpack.c.l.b16 %v317
        %v1100 = vunpack.c.l.b16 %v318
        %v1101 = vunpack.c.l.b16 %v319
        %v1102 = vunpack.c.l.b16 %v320
        %v1103 = vunpack.c.l.b16 %v321
        %v1104 = vunpack.c.l.b16 %v322
        %v1105 = vunpack.c.l.b16 %v323
        %v1106 = vunpack.c.l.b16 %v324
        %v1107 = vunpack.c.l.b16 %v325
        %v1108 = vunpack.c.l.b16 %v326
        %v1109 = vunpack.c.l.b16 %v327
        %v1110 = vunpack.c.l.b16 %v328
        %v1111 = vunpack.c.l.b16 %v329
        %v1112 = vunpack.c.l.b16 %v330
        %v1113 = vunpack.c.l.b16 %v331
        %v1114 = vpack.c.b16 %v1087, %v1086
        %v1115 = vpack.c.b16 %v1089, %v1088
        %v1116 = vpack.c.b16 %v1091, %v1090
        %v1117 = vpack.c.b16 %v1093, %v1092
        %v1118 = vpack.c.b16 %v1095, %v1094
        %v1119 = vpack.c.b16 %v1097, %v1096
        %v1120 = vpack.c.b16 %v1099, %v1098
        %v1121 = vpack.c.b16 %v1101, %v1100
        %v1122 = vpack.c.b16 %v1103, %v1102
        %v1123 = vpack.c.b16 %v1105, %v1104
        %v1124 = vpack.c.b16 %v1107, %v1106
        %v1125 = vpack.c.b16 %v1109, %v1108
        %v1126 = vpack.c.b16 %v1111, %v1110
        %v1127 = vpack.c.b16 %v1113, %v1112
        %vm1141 = vcmask 769024
        %v1143 = vsel %vm1141, %v1055, 0
        %v1146 = vsel %vm1141, %v1057, 0
        %vm1148 = vcmask 1046528
        %v1150 = vsel %vm1148, %v1127, 0
        %1152 = vmatprep.subr.bf16.mxu0 0
        %1153 = vmatpush1.bf16.msra.mxu0 %v1121
        %1154 = vmatprep.subr.bf16.mxu0 0
        %1155 = vmatpush1.bf16.msra.mxu0 %v1120
        %1156 = vmatprep.subr.bf16.mxu0 0
        %1157 = vmatpush1.bf16.msra.mxu0 %v1119
        %1158 = vmatprep.subr.bf16.mxu0 0
        %1159 = vmatpush1.bf16.msra.mxu0 %v1118
        %1160 = vmatprep.subr.bf16.mxu0 0
        %1161 = vmatpush1.bf16.msra.mxu0 %v1117
        %1162 = vmatprep.subr.bf16.mxu0 0
        %1163 = vmatpush1.bf16.msra.mxu0 %v1116
        %1164 = vmatprep.subr.bf16.mxu0 0
        %1165 = vmatpush1.bf16.msra.mxu0 %v1115
        %1166 = vmatprep.subr.bf16.mxu0 0
        %1167 = vmatpush1.bf16.msra.mxu0 %v1114
        %1168 = vmatprep.subr.bf16.mxu0 0
        %1169 = vmatpush2.bf16.msra.mxu0 0
        %1170 = vmatprep.subr.bf16.mxu0 0
        %1171 = vmatpush2.bf16.msra.mxu0 0
        %1172 = vmatprep.subr.bf16.mxu0 0
        %1173 = vmatpush2.bf16.msra.mxu0 %v1150
        %1174 = vmatprep.subr.bf16.mxu0 0
        %1175 = vmatpush2.bf16.msra.mxu0 %v1126
        %1176 = vmatprep.subr.bf16.mxu0 0
        %1177 = vmatpush2.bf16.msra.mxu0 %v1125
        %1178 = vmatprep.subr.bf16.mxu0 0
        %1179 = vmatpush2.bf16.msra.mxu0 %v1124
        %1180 = vmatprep.subr.bf16.mxu0 0
        %1181 = vmatpush2.bf16.msra.mxu0 %v1123
        %1182 = vmatprep.subr.bf16.mxu0 0
        %1183 = vmatpush2.bf16.msra.mxu0 %v1122
        %1184 = vmatprep.mubr.bf16.mxu0 %v1143
        %1185 = vmatmul.mubr.bf16.gmra.mxu0 %v1054
        %v1186 = vpop.f32.mrf.mxu0
        %v1187 = vadd.f32 0.0, %v1186
        %v1188 = vpop.f32.mrf.mxu0
        %v1189 = vpop.f32.mrf.mxu0
        %v1190 = vadd.f32 0.0, %v1189
        %v1191 = vpop.f32.mrf.mxu0
        %1192 = vmatprep.mubr.bf16.mxu0 %v1146
        %1193 = vmatmul.mubr.bf16.gmra.mxu0 %v1056
        %v1194 = vpop.f32.mrf.mxu0
        %v1195 = vadd.f32 0.0, %v1194
        %v1196 = vpop.f32.mrf.mxu0
        %v1197 = vpop.f32.mrf.mxu0
        %v1198 = vadd.f32 0.0, %v1197
        %v1199 = vpop.f32.mrf.mxu0
        %1200 = vdwg.mxu0
        %v1201 = vpack.c.bf16 %v1190, %v1187
        %v1202 = vpack.c.bf16 %v1198, %v1195
        %v1205 = vunpack.c.l.b16 %v1201
        %v1206 = vunpack.c.h.b16 %v1201
        %v1207 = vunpack.c.l.b16 %v1202
        %v1208 = vunpack.c.h.b16 %v1202
        %v1209 = vpack.c.b16 %v1205, %v1205
        %v1210 = vpack.c.b16 %v1206, %v1206
        %v1211 = vpack.c.b16 %v1207, %v1207
        %v1212 = vpack.c.b16 %v1208, %v1208
        %s1217 = smul.u32 %s333, 4
        %s1218 = smul.addr %s1217, 4
        %s1219 = scalar_lea.vmem %s275, %s1218
        %vm1220 = vcmask 904192
        %1221 = vst.msk [vmem:[%s1219] sm:$0xf] %vm1220, %v1209
        %1222 = vst.msk [vmem:[%s1219 + $0x4] sm:$0xf] %vm1220, %v1210
        %1223 = vst.msk [vmem:[%s1219 + $0x8] sm:$0xf] %vm1220, %v1211
        %1224 = vst.msk [vmem:[%s1219 + $0xc] sm:$0xf] %vm1220, %v1212
      $region49: #{net_forward.5} parent=43 // loop_footer
        %s337 = sadd.s32 1, %s333
      $region50: #{net_forward.5} parent=43 // loop_footer_branch
        %332 = sbr.rel target = $region46
      $region51: #{net_forward.5} parent=43 // loop_exit
        _
      %s1225 = smul.u32 37, %s22
      %p1226 = scmp.lt.s32.totalorder %s21, 1
      %s1227 = scalar_select %p1226, %s21, 1
      %p1228 = scmp.lt.s32.totalorder %s1225, 110
      %s1229 = scalar_select %p1228, %s1225, 110
      %s1230 = smul.addr %s1229, 4
      %s1231 = smul.addr %s1227, 444
      %s1232 = sadd.s32 %s1230, %s1231
      %s1233 = smul.addr %s1232, 4
      %s1234 = scalar_lea.vmem %s6, %s1233
      // Predicated region
      $region52: #{net_forward.5} parent=43 // pred_check
        %p1235 = pneg %p180
      $region53: #{net_forward.5} parent=43 // pred_check_branch
        %1237 = sbr.rel (%p1235) target = $region55
      $region54: #{net_forward.5} parent=43 // pred_region
        %s1238 = smul.u32 37, %s22
      $region55: #{net_forward.5} parent=43 // pred_fallthru
        _
    $region44: #{net_forward.5} parent=5 // pred_fallthru
      _
    %p1239 = scmp.le.s32.totalorder 2, %s12
    // Predicated region
    $region56: #{net_forward.5} parent=5 // pred_check
      %p1240 = pneg %p1239
    $region57: #{net_forward.5} parent=5 // pred_check_branch
      %1242 = sbr.rel (%p1240) target = $region59
    $region58: #{net_forward.5} parent=5 // pred_region
      %s1243 = ssub.s32 %s12, 2
      // Predicated region
      $region60: #{net_forward.5} parent=58 // pred_check
        %p1244 = pneg %p186
      $region61: #{net_forward.5} parent=58 // pred_check_branch
        %1246 = sbr.rel (%p1244) target = $region63
      $region62: #{net_forward.5} parent=58 // pred_region
        %s1247 = smul.u32 37, %s24
        %p1248 = scmp.lt.s32.totalorder %s23, 1
        %s1249 = scalar_select %p1248, %s23, 1
        %p1250 = scmp.lt.s32.totalorder %s1247, 110
        %s1251 = scalar_select %p1250, %s1247, 110
        %s1252 = smul.addr %s1251, 4
        %s1253 = smul.addr %s1249, 444
        %s1254 = sadd.s32 %s1252, %s1253
        %s1255 = smul.addr %s1254, 4
        %s1256 = scalar_lea.vmem %s6, %s1255
      $region63: #{net_forward.5} parent=58 // pred_fallthru
        _
    $region59: #{net_forward.5} parent=5 // pred_fallthru
      _
  $region6: #{net_forward.5} parent=0 // loop_footer
    %s16 = sadd.s32 1, %s12
  $region7: #{net_forward.5} parent=0 // loop_footer_branch
    %11 = sbr.rel target = $region3
  $region8: #{net_forward.5} parent=0 // loop_exit
    _

// kernel: net_forward.6
$region0: #{net_forward.6}
  #allocation0 [shape = 'u32[]', space=smem, size = 0x4, offset = 0x4, fixed_abs, tag = 'smem constant byte address 0x4 - core index']
  #allocation1 [shape = 'u32[144,128]{1,0:T(1,128)}', space=vmem, size = 0x12000, scoped, tag = 'internal scratch']
  %s0 = inlined_call_operand.vmem [shape: bf16[2,3552,111], index: 0, kind: input, shape index: {}]
  %s1 = inlined_call_operand.vmem [shape: bf16[3,64,96], index: 1, kind: input, shape index: {}]
  %s2 = inlined_call_operand.vmem [shape: f32[64,1], index: 2, kind: input, shape index: {}]
  %s3 = inlined_call_operand.vmem [shape: f32[64,1], index: 3, kind: input, shape index: {}]
  %s4 = inlined_call_operand.vmem [shape: f32[64,1], index: 4, kind: input, shape index: {}]
  %s5 = inlined_call_operand.vmem [shape: bf16[109,54], index: 5, kind: input, shape index: {}]
  %s6 = inlined_call_operand.vmem [shape: bf16[2,54,64,54], index: 6, kind: output, shape index: {}]
  %s7 = sld [smem:[#allocation0]]
  $region64: #{net_forward.6} parent=0
    _
  %s9 = ssub.s32 1, %s7
  %s10 = scalar_select 0, %s9, %s7
  loop: start=0, step=1, limit=6
  $region2: #{net_forward.6} parent=0 // loop_pre_header
    _
  $region3: #{net_forward.6} parent=0 // loop_header
    %s12 = sphi 0, %s16
    %p13 = scmp.ge.s32.totalorder %s12, 6
    %s19 = sphi 0, %s31
    %s20 = sphi 0, %s27
    %s21 = sphi 0, %s19
    %s22 = sphi 0, %s20
    %s23 = sphi 0, %s21
    %s24 = sphi 0, %s22
    %s34 = sphi 0, %s36
    %s37 = sphi 0, %s34
    %s38 = sphi 0, %s37
    %s54 = sphi 0, %s38
    %s58 = sphi 0, %s58
    %s60 = sphi 0, %s58
    %s61 = sphi 0, %s60
    %s75 = sphi 0, %s61
    %s79 = sphi 0, %s79
    %s81 = sphi 0, %s79
    %s82 = sphi 0, %s81
    %s96 = sphi 0, %s82
    %s100 = sphi 0, %s100
    %s102 = sphi 0, %s100
    %s103 = sphi 0, %s102
    %s117 = sphi 0, %s103
    %s121 = sphi 0, %s121
    %s123 = sphi 0, %s121
    %s124 = sphi 0, %s123
    %s138 = sphi 0, %s124
    %s142 = sphi 0, %s142
    %s144 = sphi 0, %s142
    %s145 = sphi 0, %s144
    %s159 = sphi 0, %s145
    %s167 = sphi 0, %s169
    %s170 = sphi 0, %s167
    %s171 = sphi 0, %s170
    %s187 = sphi 0, %s171
  $region4: #{net_forward.6} parent=0 // loop_header_branch
    %15 = sbr.rel (%p13) target = $region8
  $region5: #{net_forward.6} parent=0 // loop_body
    %s17 = ssub.s32 %s12, 1
    %s18 = ssub.s32 %s12, 2
    %s25 = sadd.s32 1, %s20
    %p26 = scmp.ge.s32.totalorder %s25, 2
    %s27 = scalar_select %p26, 0, %s25
    %s28 = sadd.s32 1, %s19
    %s29 = scalar_select %p26, %s28, %s19
    %p30 = scmp.ge.s32.totalorder %s29, 2
    %s31 = scalar_select %p30, 0, %s29
    %s32 = ssub.s32 %s19, %s31
    %p33 = scmp.eq.s32.totalorder %s32, 0
    %s35 = sadd.s32 %s34, 1
    %s36 = scalar_select %p33, %s34, %s35
    %p39 = pneg %p33
    %p40 = scmp.eq.s32.totalorder %s12, 3
    %p41 = por %p39, %p40
    %p42 = scmp.ne.s32.totalorder %s34, %s37
    %p43 = scmp.eq.s32.totalorder %s12, 0
    %p44 = por %p42, %p43
    %p45 = scmp.ne.s32.totalorder %s34, %s37
    %p46 = scmp.eq.s32.totalorder %s17, 3
    %p47 = por %p45, %p46
    %p48 = scmp.ne.s32.totalorder %s37, %s38
    %p49 = scmp.eq.s32.totalorder %s17, 0
    %p50 = por %p48, %p49
    %p51 = scmp.ne.s32.totalorder %s37, %s38
    %p52 = scmp.eq.s32.totalorder %s18, 3
    %p53 = por %p51, %p52
    %p55 = scmp.ne.s32.totalorder %s38, %s54
    %p56 = scmp.eq.s32.totalorder %s18, 0
    %p57 = por %p55, %p56
    %s59 = sadd.s32 %s58, 1
    %p62 = scmp.eq.s32.totalorder %s12, 3
    %p63 = scmp.ne.s32.totalorder %s58, %s60
    %p64 = scmp.eq.s32.totalorder %s12, 0
    %p65 = por %p63, %p64
    %p66 = scmp.ne.s32.totalorder %s58, %s60
    %p67 = scmp.eq.s32.totalorder %s17, 3
    %p68 = por %p66, %p67
    %p69 = scmp.ne.s32.totalorder %s60, %s61
    %p70 = scmp.eq.s32.totalorder %s17, 0
    %p71 = por %p69, %p70
    %p72 = scmp.ne.s32.totalorder %s60, %s61
    %p73 = scmp.eq.s32.totalorder %s18, 3
    %p74 = por %p72, %p73
    %p76 = scmp.ne.s32.totalorder %s61, %s75
    %p77 = scmp.eq.s32.totalorder %s18, 0
    %p78 = por %p76, %p77
    %s80 = sadd.s32 %s79, 1
    %p83 = scmp.eq.s32.totalorder %s12, 3
    %p84 = scmp.ne.s32.totalorder %s79, %s81
    %p85 = scmp.eq.s32.totalorder %s12, 0
    %p86 = por %p84, %p85
    %p87 = scmp.ne.s32.totalorder %s79, %s81
    %p88 = scmp.eq.s32.totalorder %s17, 3
    %p89 = por %p87, %p88
    %p90 = scmp.ne.s32.totalorder %s81, %s82
    %p91 = scmp.eq.s32.totalorder %s17, 0
    %p92 = por %p90, %p91
    %p93 = scmp.ne.s32.totalorder %s81, %s82
    %p94 = scmp.eq.s32.totalorder %s18, 3
    %p95 = por %p93, %p94
    %p97 = scmp.ne.s32.totalorder %s82, %s96
    %p98 = scmp.eq.s32.totalorder %s18, 0
    %p99 = por %p97, %p98
    %s101 = sadd.s32 %s100, 1
    %p104 = scmp.eq.s32.totalorder %s12, 3
    %p105 = scmp.ne.s32.totalorder %s100, %s102
    %p106 = scmp.eq.s32.totalorder %s12, 0
    %p107 = por %p105, %p106
    %p108 = scmp.ne.s32.totalorder %s100, %s102
    %p109 = scmp.eq.s32.totalorder %s17, 3
    %p110 = por %p108, %p109
    %p111 = scmp.ne.s32.totalorder %s102, %s103
    %p112 = scmp.eq.s32.totalorder %s17, 0
    %p113 = por %p111, %p112
    %p114 = scmp.ne.s32.totalorder %s102, %s103
    %p115 = scmp.eq.s32.totalorder %s18, 3
    %p116 = por %p114, %p115
    %p118 = scmp.ne.s32.totalorder %s103, %s117
    %p119 = scmp.eq.s32.totalorder %s18, 0
    %p120 = por %p118, %p119
    %s122 = sadd.s32 %s121, 1
    %p125 = scmp.eq.s32.totalorder %s12, 3
    %p126 = scmp.ne.s32.totalorder %s121, %s123
    %p127 = scmp.eq.s32.totalorder %s12, 0
    %p128 = por %p126, %p127
    %p129 = scmp.ne.s32.totalorder %s121, %s123
    %p130 = scmp.eq.s32.totalorder %s17, 3
    %p131 = por %p129, %p130
    %p132 = scmp.ne.s32.totalorder %s123, %s124
    %p133 = scmp.eq.s32.totalorder %s17, 0
    %p134 = por %p132, %p133
    %p135 = scmp.ne.s32.totalorder %s123, %s124
    %p136 = scmp.eq.s32.totalorder %s18, 3
    %p137 = por %p135, %p136
    %p139 = scmp.ne.s32.totalorder %s124, %s138
    %p140 = scmp.eq.s32.totalorder %s18, 0
    %p141 = por %p139, %p140
    %s143 = sadd.s32 %s142, 1
    %p146 = scmp.eq.s32.totalorder %s12, 3
    %p147 = scmp.ne.s32.totalorder %s142, %s144
    %p148 = scmp.eq.s32.totalorder %s12, 0
    %p149 = por %p147, %p148
    %p150 = scmp.ne.s32.totalorder %s142, %s144
    %p151 = scmp.eq.s32.totalorder %s17, 3
    %p152 = por %p150, %p151
    %p153 = scmp.ne.s32.totalorder %s144, %s145
    %p154 = scmp.eq.s32.totalorder %s17, 0
    %p155 = por %p153, %p154
    %p156 = scmp.ne.s32.totalorder %s144, %s145
    %p157 = scmp.eq.s32.totalorder %s18, 3
    %p158 = por %p156, %p157
    %p160 = scmp.ne.s32.totalorder %s145, %s159
    %p161 = scmp.eq.s32.totalorder %s18, 0
    %p162 = por %p160, %p161
    %s163 = ssub.s32 %s19, %s31
    %s164 = ssub.s32 %s20, %s27
    %s165 = sor.u32 %s163, %s164
    %p166 = scmp.eq.s32.totalorder %s165, 0
    %s168 = sadd.s32 %s167, 1
    %s169 = scalar_select %p166, %s167, %s168
    %p172 = pneg %p166
    %p173 = scmp.eq.s32.totalorder %s12, 3
    %p174 = por %p172, %p173
    %p175 = scmp.ne.s32.totalorder %s167, %s170
    %p176 = scmp.eq.s32.totalorder %s12, 0
    %p177 = por %p175, %p176
    %p178 = scmp.ne.s32.totalorder %s167, %s170
    %p179 = scmp.eq.s32.totalorder %s17, 3
    %p180 = por %p178, %p179
    %p181 = scmp.ne.s32.totalorder %s170, %s171
    %p182 = scmp.eq.s32.totalorder %s17, 0
    %p183 = por %p181, %p182
    %p184 = scmp.ne.s32.totalorder %s170, %s171
    %p185 = scmp.eq.s32.totalorder %s18, 3
    %p186 = por %p184, %p185
    %p188 = scmp.ne.s32.totalorder %s171, %s187
    %p189 = scmp.eq.s32.totalorder %s18, 0
    %p190 = por %p188, %p189
    %p191 = scmp.le.s32.totalorder 1, %s12
    %p192 = scmp.lt.s32.totalorder %s12, 5
    %p193 = pnand %p191, %p192
    %p194 = pneg %p193
    // Predicated region
    $region9: #{net_forward.6} parent=5 // pred_check
      _
    $region10: #{net_forward.6} parent=5 // pred_check_branch
      %196 = sbr.rel (%p193) target = $region12
    $region11: #{net_forward.6} parent=5 // pred_region
      %s197 = ssub.s32 %s12, 1
      // Predicated region
      $region13: #{net_forward.6} parent=11 // pred_check
        %p198 = pneg %p71
      $region14: #{net_forward.6} parent=11 // pred_check_branch
        %200 = sbr.rel (%p198) target = $region16
      $region15: #{net_forward.6} parent=11 // pred_region
        _
      $region16: #{net_forward.6} parent=11 // pred_fallthru
        _
      // Predicated region
      $region17: #{net_forward.6} parent=11 // pred_check
        %p201 = pneg %p92
      $region18: #{net_forward.6} parent=11 // pred_check_branch
        %203 = sbr.rel (%p201) target = $region20
      $region19: #{net_forward.6} parent=11 // pred_region
        _
      $region20: #{net_forward.6} parent=11 // pred_fallthru
        _
      // Predicated region
      $region21: #{net_forward.6} parent=11 // pred_check
        %p204 = pneg %p113
      $region22: #{net_forward.6} parent=11 // pred_check_branch
        %206 = sbr.rel (%p204) target = $region24
      $region23: #{net_forward.6} parent=11 // pred_region
        _
      $region24: #{net_forward.6} parent=11 // pred_fallthru
        _
      // Predicated region
      $region25: #{net_forward.6} parent=11 // pred_check
        %p207 = pneg %p134
      $region26: #{net_forward.6} parent=11 // pred_check_branch
        %209 = sbr.rel (%p207) target = $region28
      $region27: #{net_forward.6} parent=11 // pred_region
        _
      $region28: #{net_forward.6} parent=11 // pred_fallthru
        _
      // Predicated region
      $region29: #{net_forward.6} parent=11 // pred_check
        %p210 = pneg %p155
      $region30: #{net_forward.6} parent=11 // pred_check_branch
        %212 = sbr.rel (%p210) target = $region32
      $region31: #{net_forward.6} parent=11 // pred_region
        _
      $region32: #{net_forward.6} parent=11 // pred_fallthru
        _
    $region12: #{net_forward.6} parent=5 // pred_fallthru
      _
    %p213 = scmp.lt.s32.totalorder %s12, 4
    // Predicated region
    $region33: #{net_forward.6} parent=5 // pred_check
      %p214 = pneg %p213
    $region34: #{net_forward.6} parent=5 // pred_check_branch
      %216 = sbr.rel (%p214) target = $region36
    $region35: #{net_forward.6} parent=5 // pred_region
      // Predicated region
      $region37: #{net_forward.6} parent=35 // pred_check
        %p217 = pneg %p44
      $region38: #{net_forward.6} parent=35 // pred_check_branch
        %219 = sbr.rel (%p217) target = $region40
      $region39: #{net_forward.6} parent=35 // pred_region
        %p220 = scmp.lt.s32.totalorder %s19, 1
        %s221 = scalar_select %p220, %s19, 1
        %s222 = smul.addr %s221, 444
        %s223 = smul.addr %s222, 4
        %s224 = scalar_lea.vmem %s0, %s223
      $region40: #{net_forward.6} parent=35 // pred_fallthru
        _
    $region36: #{net_forward.6} parent=5 // pred_fallthru
      _
    %p225 = scmp.le.s32.totalorder 1, %s12
    %p226 = scmp.lt.s32.totalorder %s12, 5
    %p227 = pnand %p225, %p226
    %p228 = pneg %p227
    // Predicated region
    $region41: #{net_forward.6} parent=5 // pred_check
      _
    $region42: #{net_forward.6} parent=5 // pred_check_branch
      %230 = sbr.rel (%p227) target = $region44
    $region43: #{net_forward.6} parent=5 // pred_region
      %s231 = ssub.s32 %s12, 1
      %p232 = scmp.lt.s32.totalorder %s21, 1
      %s233 = scalar_select %p232, %s21, 1
      %s234 = smul.addr %s233, 444
      %s235 = smul.addr %s234, 4
      %s236 = scalar_lea.vmem %s0, %s235
      %p237 = pneg %p50
      %p238 = pneg %p47
      %p239 = pneg %p71
      %p240 = pneg %p68
      %p241 = pneg %p92
      %p242 = pneg %p89
      %p243 = pneg %p113
      %p244 = pneg %p110
      %p245 = pneg %p134
      %p246 = pneg %p131
      %p247 = pneg %p155
      %p248 = pneg %p152
      %p249 = pneg %p183
      %p250 = pneg %p180
      %s251 = smul.u32 27, %s22
      %p252 = scmp.lt.s32.totalorder %s21, 1
      %s253 = scalar_select %p252, %s21, 1
      %p254 = scmp.lt.s32.totalorder %s251, 53
      %s255 = scalar_select %p254, %s251, 53
      %s256 = smul.addr %s255, 8
      %s257 = smul.addr %s253, 432
      %s258 = sadd.s32 %s256, %s257
      %s259 = smul.addr %s258, 4
      %s260 = scalar_lea.vmem %s6, %s259
      %p261 = scmp.lt.s32.totalorder %s21, 1
      %s262 = scalar_select %p261, %s21, 1
      %s263 = smul.addr %s262, 444
      %s264 = smul.addr %s263, 4
      %s265 = scalar_lea.vmem %s0, %s264
      %s266 = smul.u32 27, %s22
      %p267 = scmp.lt.s32.totalorder %s21, 1
      %s268 = scalar_select %p267, %s21, 1
      %p269 = scmp.lt.s32.totalorder %s266, 53
      %s270 = scalar_select %p269, %s266, 53
      %s271 = smul.addr %s270, 8
      %s272 = smul.addr %s268, 432
      %s273 = sadd.s32 %s271, %s272
      %s274 = smul.addr %s273, 4
      %s275 = scalar_lea.vmem %s6, %s274
      %s276 = smul.u32 27, %s22
      %v278 = vld [vmem:[%s1] sm:$0xf]
      %v279 = vld [vmem:[%s1 + $0x4] sm:$0xf]
      %v280 = vld [vmem:[%s1 + $0x8] sm:$0xf]
      %v281 = vld [vmem:[%s1 + $0xc] sm:$0xf]
      %v282 = vld [vmem:[%s1 + $0x10] sm:$0xf]
      %v283 = vld [vmem:[%s1 + $0x14] sm:$0xf]
      %v284 = vld [vmem:[%s1 + $0x18] sm:$0xf]
      %v285 = vld [vmem:[%s1 + $0x1c] sm:$0xf]
      %s286 = scalar_lea.vmem %s1, 32
      %v287 = vld [vmem:[%s286] sm:$0xf]
      %v288 = vld [vmem:[%s286 + $0x4] sm:$0xf]
      %v289 = vld [vmem:[%s286 + $0x8] sm:$0xf]
      %v290 = vld [vmem:[%s286 + $0xc] sm:$0xf]
      %v291 = vld [vmem:[%s286 + $0x10] sm:$0xf]
      %v292 = vld [vmem:[%s286 + $0x14] sm:$0xf]
      %v293 = vld [vmem:[%s286 + $0x18] sm:$0xf]
      %v294 = vld [vmem:[%s286 + $0x1c] sm:$0xf]
      %s295 = scalar_lea.vmem %s1, 64
      %v296 = vld [vmem:[%s295] sm:$0xf]
      %v297 = vld [vmem:[%s295 + $0x4] sm:$0xf]
      %v298 = vld [vmem:[%s295 + $0x8] sm:$0xf]
      %v299 = vld [vmem:[%s295 + $0xc] sm:$0xf]
      %v300 = vld [vmem:[%s295 + $0x10] sm:$0xf]
      %v301 = vld [vmem:[%s295 + $0x14] sm:$0xf]
      %v302 = vld [vmem:[%s295 + $0x18] sm:$0xf]
      %v303 = vld [vmem:[%s295 + $0x1c] sm:$0xf]
      %v304 = vld [vmem:[%s2] sm:$0xff]
      %v305 = vld [vmem:[%s2 + $0x8] sm:$0xff]
      %v306 = vld [vmem:[%s2 + $0x10] sm:$0xff]
      %v307 = vld [vmem:[%s2 + $0x18] sm:$0xff]
      %v308 = vld [vmem:[%s2 + $0x20] sm:$0xff]
      %v309 = vld [vmem:[%s2 + $0x28] sm:$0xff]
      %v310 = vld [vmem:[%s2 + $0x30] sm:$0xff]
      %v311 = vld [vmem:[%s2 + $0x38] sm:$0xff]
      %v312 = vld [vmem:[%s3] sm:$0xff]
      %v313 = vld [vmem:[%s3 + $0x8] sm:$0xff]
      %v314 = vld [vmem:[%s3 + $0x10] sm:$0xff]
      %v315 = vld [vmem:[%s3 + $0x18] sm:$0xff]
      %v316 = vld [vmem:[%s3 + $0x20] sm:$0xff]
      %v317 = vld [vmem:[%s3 + $0x28] sm:$0xff]
      %v318 = vld [vmem:[%s3 + $0x30] sm:$0xff]
      %v319 = vld [vmem:[%s3 + $0x38] sm:$0xff]
      %v320 = vld [vmem:[%s4] sm:$0xff]
      %v321 = vld [vmem:[%s4 + $0x8] sm:$0xff]
      %v322 = vld [vmem:[%s4 + $0x10] sm:$0xff]
      %v323 = vld [vmem:[%s4 + $0x18] sm:$0xff]
      %v324 = vld [vmem:[%s4 + $0x20] sm:$0xff]
      %v325 = vld [vmem:[%s4 + $0x28] sm:$0xff]
      %v326 = vld [vmem:[%s4 + $0x30] sm:$0xff]
      %v327 = vld [vmem:[%s4 + $0x38] sm:$0xff]
      %v328 = vld [vmem:[%s5] sm:$0xf]
      %v329 = vld [vmem:[%s5 + $0x4] sm:$0xf]
      %v330 = vld [vmem:[%s5 + $0x8] sm:$0xf]
      %v331 = vld [vmem:[%s5 + $0xc] sm:$0xf]
      %v332 = vld [vmem:[%s5 + $0x10] sm:$0xf]
      %v333 = vld [vmem:[%s5 + $0x14] sm:$0xf]
      %v334 = vld [vmem:[%s5 + $0x18] sm:$0xf]
      %v335 = vld [vmem:[%s5 + $0x1c] sm:$0xf]
      %v336 = vld [vmem:[%s5 + $0x20] sm:$0xf]
      %v337 = vld [vmem:[%s5 + $0x24] sm:$0xf]
      %v338 = vld [vmem:[%s5 + $0x28] sm:$0xf]
      %v339 = vld [vmem:[%s5 + $0x2c] sm:$0xf]
      %v340 = vld [vmem:[%s5 + $0x30] sm:$0xf]
      %v341 = vld [vmem:[%s5 + $0x34] sm:$0x7]
      loop: start=0, step=1, limit=27
      $region45: #{net_forward.6} parent=43 // loop_pre_header
        _
      $region46: #{net_forward.6} parent=43 // loop_header
        %s343 = sphi 0, %s347
        %p344 = scmp.ge.s32.totalorder %s343, 27
      $region47: #{net_forward.6} parent=43 // loop_header_branch
        %346 = sbr.rel (%p344) target = $region51
      $region48: #{net_forward.6} parent=43 // loop_body
        %s348 = smul.u32 %s22, 27
        %s349 = sadd.s32 %s348, %s343
        %s350 = smul.u32 %s349, 2
        %s351 = smul.u32 %s349, 64
        %s352 = sshra.s32 %s351, 3
        %s353 = sand.u32 %s351, 7
        %s354 = smul.addr %s352, 4
        %s355 = scalar_lea.vmem %s265, %s354
        %v356 = vld [vmem:[%s355] sm:$0xf]
        %v357 = vld [vmem:[%s355 + $0x4] sm:$0xf]
        %v358 = vld [vmem:[%s355 + $0x8] sm:$0xf]
        %v359 = vld [vmem:[%s355 + $0xc] sm:$0xf]
        %v360 = vld [vmem:[%s355 + $0x10] sm:$0xf]
        %v361 = vld [vmem:[%s355 + $0x14] sm:$0xf]
        %v362 = vld [vmem:[%s355 + $0x18] sm:$0xf]
        %v363 = vld [vmem:[%s355 + $0x1c] sm:$0xf]
        %v364 = vld [vmem:[%s355 + $0x20] sm:$0xf]
        %v365 = vld [vmem:[%s355 + $0x24] sm:$0xf]
        %v366 = vld [vmem:[%s355 + $0x28] sm:$0xf]
        %v367 = vld [vmem:[%s355 + $0x2c] sm:$0xf]
        %v376 = vunpack.c.l.b16 %v287
        %v377 = vunpack.c.l.b16 %v288
        %v378 = vunpack.c.l.b16 %v289
        %v379 = vunpack.c.l.b16 %v290
        %v380 = vunpack.c.l.b16 %v291
        %v381 = vunpack.c.l.b16 %v292
        %v382 = vunpack.c.l.b16 %v293
        %v383 = vunpack.c.l.b16 %v294
        %v384 = vpack.c.b16 %v377, %v376
        %v385 = vpack.c.b16 %v379, %v378
        %v386 = vpack.c.b16 %v381, %v380
        %v387 = vpack.c.b16 %v383, %v382
        %v400 = vunpack.c.l.b16 %v356
        %v401 = vunpack.c.l.b16 %v357
        %v402 = vunpack.c.l.b16 %v358
        %v403 = vunpack.c.l.b16 %v359
        %v404 = vunpack.c.l.b16 %v360
        %v405 = vunpack.c.l.b16 %v361
        %v406 = vunpack.c.l.b16 %v362
        %v407 = vunpack.c.l.b16 %v363
        %v408 = vunpack.c.l.b16 %v364
        %v409 = vunpack.c.l.b16 %v365
        %v410 = vunpack.c.l.b16 %v366
        %v411 = vunpack.c.l.b16 %v367
        %v412 = vpack.c.b16 %v401, %v400
        %v413 = vpack.c.b16 %v403, %v402
        %v414 = vpack.c.b16 %v405, %v404
        %v415 = vpack.c.b16 %v407, %v406
        %v416 = vpack.c.b16 %v409, %v408
        %v417 = vpack.c.b16 %v411, %v410
        %418 = vrot.lane.b32.xlu0 %v412, 127
        %v419 = vpop.permute.xlu0 %418
        %420 = vrot.lane.b32.xlu0 %v413, 127
        %v421 = vpop.permute.xlu0 %420
        %422 = vrot.lane.b32.xlu0 %v414, 127
        %v423 = vpop.permute.xlu0 %422
        %424 = vrot.lane.b32.xlu0 %v415, 127
        %v425 = vpop.permute.xlu0 %424
        %426 = vrot.lane.b32.xlu0 %v416, 127
        %v427 = vpop.permute.xlu0 %426
        %428 = vrot.lane.b32.xlu0 %v417, 127
        %v429 = vpop.permute.xlu0 %428
        %vm436 = vcmask 785408
        %v438 = vsel %vm436, %v384, 0
        %v441 = vsel %vm436, %v385, 0
        %v444 = vsel %vm436, %v386, 0
        %v447 = vsel %vm436, %v387, 0
        %449 = vmatprep.subr.bf16.mxu0 0
        %450 = vmatpush1.bf16.msra.mxu0 0
        %451 = vmatprep.subr.bf16.mxu0 0
        %452 = vmatpush1.bf16.msra.mxu0 0
        %453 = vmatprep.subr.bf16.mxu0 0
        %454 = vmatpush1.bf16.msra.mxu0 %v429
        %455 = vmatprep.subr.bf16.mxu0 0
        %456 = vmatpush1.bf16.msra.mxu0 %v427
        %457 = vmatprep.subr.bf16.mxu0 0
        %458 = vmatpush1.bf16.msra.mxu0 %v425
        %459 = vmatprep.subr.bf16.mxu0 0
        %460 = vmatpush1.bf16.msra.mxu0 %v423
        %461 = vmatprep.subr.bf16.mxu0 0
        %462 = vmatpush1.bf16.msra.mxu0 %v421
        %463 = vmatprep.subr.bf16.mxu0 0
        %464 = vmatpush1.bf16.msra.mxu0 %v419
        %465 = vmatprep.subr.bf16.mxu0 0
        %466 = vmatpush2.bf16.msra.mxu0 0
        %467 = vmatprep.subr.bf16.mxu0 0
        %468 = vmatpush2.bf16.msra.mxu0 0
        %469 = vmatprep.subr.bf16.mxu0 0
        %470 = vmatpush2.bf16.msra.mxu0 0
        %471 = vmatprep.subr.bf16.mxu0 0
        %472 = vmatpush2.bf16.msra.mxu0 0
        %473 = vmatprep.subr.bf16.mxu0 0
        %474 = vmatpush2.bf16.msra.mxu0 0
        %475 = vmatprep.subr.bf16.mxu0 0
        %476 = vmatpush2.bf16.msra.mxu0 0
        %477 = vmatprep.subr.bf16.mxu0 0
        %478 = vmatpush2.bf16.msra.mxu0 0
        %479 = vmatprep.subr.bf16.mxu0 0
        %480 = vmatpush2.bf16.msra.mxu0 0
        %481 = vmatprep.mubr.bf16.mxu0 0
        %482 = vmatmul.mubr.bf16.gmra.mxu0 %v438
        %v483 = vpop.f32.mrf.mxu0
        %v484 = vadd.f32 0.0, %v483
        %v485 = vpop.f32.mrf.mxu0
        %v486 = vpop.f32.mrf.mxu0
        %v487 = vadd.f32 0.0, %v486
        %v488 = vpop.f32.mrf.mxu0
        %489 = vmatprep.mubr.bf16.mxu0 0
        %490 = vmatmul.mubr.bf16.gmra.mxu0 %v441
        %v491 = vpop.f32.mrf.mxu0
        %v492 = vadd.f32 0.0, %v491
        %v493 = vpop.f32.mrf.mxu0
        %v494 = vpop.f32.mrf.mxu0
        %v495 = vadd.f32 0.0, %v494
        %v496 = vpop.f32.mrf.mxu0
        %497 = vmatprep.mubr.bf16.mxu0 0
        %498 = vmatmul.mubr.bf16.gmra.mxu0 %v444
        %v499 = vpop.f32.mrf.mxu0
        %v500 = vadd.f32 0.0, %v499
        %v501 = vpop.f32.mrf.mxu0
        %v502 = vpop.f32.mrf.mxu0
        %v503 = vadd.f32 0.0, %v502
        %v504 = vpop.f32.mrf.mxu0
        %505 = vmatprep.mubr.bf16.mxu0 0
        %506 = vmatmul.mubr.bf16.gmra.mxu0 %v447
        %v507 = vpop.f32.mrf.mxu0
        %v508 = vadd.f32 0.0, %v507
        %v509 = vpop.f32.mrf.mxu0
        %v510 = vpop.f32.mrf.mxu0
        %v511 = vadd.f32 0.0, %v510
        %v512 = vpop.f32.mrf.mxu0
        %513 = vdwg.mxu0
        %v522 = vunpack.c.l.b16 %v278
        %v523 = vunpack.c.l.b16 %v279
        %v524 = vunpack.c.l.b16 %v280
        %v525 = vunpack.c.l.b16 %v281
        %v526 = vunpack.c.l.b16 %v282
        %v527 = vunpack.c.l.b16 %v283
        %v528 = vunpack.c.l.b16 %v284
        %v529 = vunpack.c.l.b16 %v285
        %v530 = vpack.c.b16 %v523, %v522
        %v531 = vpack.c.b16 %v525, %v524
        %v532 = vpack.c.b16 %v527, %v526
        %v533 = vpack.c.b16 %v529, %v528
        %v541 = vsel %vm436, %v530, 0
        %v544 = vsel %vm436, %v531, 0
        %v547 = vsel %vm436, %v532, 0
        %v550 = vsel %vm436, %v533, 0
        %552 = vmatprep.subr.bf16.mxu0 0
        %553 = vmatpush1.bf16.msra.mxu0 0
        %554 = vmatprep.subr.bf16.mxu0 0
        %555 = vmatpush1.bf16.msra.mxu0 0
        %556 = vmatprep.subr.bf16.mxu0 0
        %557 = vmatpush1.bf16.msra.mxu0 %v417
        %558 = vmatprep.subr.bf16.mxu0 0
        %559 = vmatpush1.bf16.msra.mxu0 %v416
        %560 = vmatprep.subr.bf16.mxu0 0
        %561 = vmatpush1.bf16.msra.mxu0 %v415
        %562 = vmatprep.subr.bf16.mxu0 0
        %563 = vmatpush1.bf16.msra.mxu0 %v414
        %564 = vmatprep.subr.bf16.mxu0 0
        %565 = vmatpush1.bf16.msra.mxu0 %v413
        %566 = vmatprep.subr.bf16.mxu0 0
        %567 = vmatpush1.bf16.msra.mxu0 %v412
        %568 = vmatprep.subr.bf16.mxu0 0
        %569 = vmatpush2.bf16.msra.mxu0 0
        %570 = vmatprep.subr.bf16.mxu0 0
        %571 = vmatpush2.bf16.msra.mxu0 0
        %572 = vmatprep.subr.bf16.mxu0 0
        %573 = vmatpush2.bf16.msra.mxu0 0
        %574 = vmatprep.subr.bf16.mxu0 0
        %575 = vmatpush2.bf16.msra.mxu0 0
        %576 = vmatprep.subr.bf16.mxu0 0
        %577 = vmatpush2.bf16.msra.mxu0 0
        %578 = vmatprep.subr.bf16.mxu0 0
        %579 = vmatpush2.bf16.msra.mxu0 0
        %580 = vmatprep.subr.bf16.mxu0 0
        %581 = vmatpush2.bf16.msra.mxu0 0
        %582 = vmatprep.subr.bf16.mxu0 0
        %583 = vmatpush2.bf16.msra.mxu0 0
        %584 = vmatprep.mubr.bf16.mxu0 0
        %585 = vmatmul.mubr.bf16.gmra.mxu0 %v541
        %v586 = vpop.f32.mrf.mxu0
        %v587 = vadd.f32 %v484, %v586
        %v588 = vpop.f32.mrf.mxu0
        %v589 = vpop.f32.mrf.mxu0
        %v590 = vadd.f32 %v487, %v589
        %v591 = vpop.f32.mrf.mxu0
        %592 = vmatprep.mubr.bf16.mxu0 0
        %593 = vmatmul.mubr.bf16.gmra.mxu0 %v544
        %v594 = vpop.f32.mrf.mxu0
        %v595 = vadd.f32 %v492, %v594
        %v596 = vpop.f32.mrf.mxu0
        %v597 = vpop.f32.mrf.mxu0
        %v598 = vadd.f32 %v495, %v597
        %v599 = vpop.f32.mrf.mxu0
        %600 = vmatprep.mubr.bf16.mxu0 0
        %601 = vmatmul.mubr.bf16.gmra.mxu0 %v547
        %v602 = vpop.f32.mrf.mxu0
        %v603 = vadd.f32 %v500, %v602
        %v604 = vpop.f32.mrf.mxu0
        %v605 = vpop.f32.mrf.mxu0
        %v606 = vadd.f32 %v503, %v605
        %v607 = vpop.f32.mrf.mxu0
        %608 = vmatprep.mubr.bf16.mxu0 0
        %609 = vmatmul.mubr.bf16.gmra.mxu0 %v550
        %v610 = vpop.f32.mrf.mxu0
        %v611 = vadd.f32 %v508, %v610
        %v612 = vpop.f32.mrf.mxu0
        %v613 = vpop.f32.mrf.mxu0
        %v614 = vadd.f32 %v511, %v613
        %v615 = vpop.f32.mrf.mxu0
        %616 = vdwg.mxu0
        %v625 = vunpack.c.l.b16 %v296
        %v626 = vunpack.c.l.b16 %v297
        %v627 = vunpack.c.l.b16 %v298
        %v628 = vunpack.c.l.b16 %v299
        %v629 = vunpack.c.l.b16 %v300
        %v630 = vunpack.c.l.b16 %v301
        %v631 = vunpack.c.l.b16 %v302
        %v632 = vunpack.c.l.b16 %v303
        %v633 = vpack.c.b16 %v626, %v625
        %v634 = vpack.c.b16 %v628, %v627
        %v635 = vpack.c.b16 %v630, %v629
        %v636 = vpack.c.b16 %v632, %v631
        %637 = vrot.lane.b32.xlu0 %v412, 126
        %v638 = vpop.permute.xlu0 %637
        %639 = vrot.lane.b32.xlu0 %v413, 126
        %v640 = vpop.permute.xlu0 %639
        %641 = vrot.lane.b32.xlu0 %v414, 126
        %v642 = vpop.permute.xlu0 %641
        %643 = vrot.lane.b32.xlu0 %v415, 126
        %v644 = vpop.permute.xlu0 %643
        %645 = vrot.lane.b32.xlu0 %v416, 126
        %v646 = vpop.permute.xlu0 %645
        %647 = vrot.lane.b32.xlu0 %v417, 126
        %v648 = vpop.permute.xlu0 %647
        %v656 = vsel %vm436, %v633, 0
        %v659 = vsel %vm436, %v634, 0
        %v662 = vsel %vm436, %v635, 0
        %v665 = vsel %vm436, %v636, 0
        %667 = vmatprep.subr.bf16.mxu0 0
        %668 = vmatpush1.bf16.msra.mxu0 0
        %669 = vmatprep.subr.bf16.mxu0 0
        %670 = vmatpush1.bf16.msra.mxu0 0
        %671 = vmatprep.subr.bf16.mxu0 0
        %672 = vmatpush1.bf16.msra.mxu0 %v648
        %673 = vmatprep.subr.bf16.mxu0 0
        %674 = vmatpush1.bf16.msra.mxu0 %v646
        %675 = vmatprep.subr.bf16.mxu0 0
        %676 = vmatpush1.bf16.msra.mxu0 %v644
        %677 = vmatprep.subr.bf16.mxu0 0
        %678 = vmatpush1.bf16.msra.mxu0 %v642
        %679 = vmatprep.subr.bf16.mxu0 0
        %680 = vmatpush1.bf16.msra.mxu0 %v640
        %681 = vmatprep.subr.bf16.mxu0 0
        %682 = vmatpush1.bf16.msra.mxu0 %v638
        %683 = vmatprep.subr.bf16.mxu0 0
        %684 = vmatpush2.bf16.msra.mxu0 0
        %685 = vmatprep.subr.bf16.mxu0 0
        %686 = vmatpush2.bf16.msra.mxu0 0
        %687 = vmatprep.subr.bf16.mxu0 0
        %688 = vmatpush2.bf16.msra.mxu0 0
        %689 = vmatprep.subr.bf16.mxu0 0
        %690 = vmatpush2.bf16.msra.mxu0 0
        %691 = vmatprep.subr.bf16.mxu0 0
        %692 = vmatpush2.bf16.msra.mxu0 0
        %693 = vmatprep.subr.bf16.mxu0 0
        %694 = vmatpush2.bf16.msra.mxu0 0
        %695 = vmatprep.subr.bf16.mxu0 0
        %696 = vmatpush2.bf16.msra.mxu0 0
        %697 = vmatprep.subr.bf16.mxu0 0
        %698 = vmatpush2.bf16.msra.mxu0 0
        %699 = vmatprep.mubr.bf16.mxu0 0
        %700 = vmatmul.mubr.bf16.gmra.mxu0 %v656
        %v701 = vpop.f32.mrf.mxu0
        %v702 = vadd.f32 0.0, %v701
        %v703 = vpop.f32.mrf.mxu0
        %v704 = vpop.f32.mrf.mxu0
        %v705 = vadd.f32 0.0, %v704
        %v706 = vpop.f32.mrf.mxu0
        %707 = vmatprep.mubr.bf16.mxu0 0
        %708 = vmatmul.mubr.bf16.gmra.mxu0 %v659
        %v709 = vpop.f32.mrf.mxu0
        %v710 = vadd.f32 0.0, %v709
        %v711 = vpop.f32.mrf.mxu0
        %v712 = vpop.f32.mrf.mxu0
        %v713 = vadd.f32 0.0, %v712
        %v714 = vpop.f32.mrf.mxu0
        %715 = vmatprep.mubr.bf16.mxu0 0
        %716 = vmatmul.mubr.bf16.gmra.mxu0 %v662
        %v717 = vpop.f32.mrf.mxu0
        %v718 = vadd.f32 0.0, %v717
        %v719 = vpop.f32.mrf.mxu0
        %v720 = vpop.f32.mrf.mxu0
        %v721 = vadd.f32 0.0, %v720
        %v722 = vpop.f32.mrf.mxu0
        %723 = vmatprep.mubr.bf16.mxu0 0
        %724 = vmatmul.mubr.bf16.gmra.mxu0 %v665
        %v725 = vpop.f32.mrf.mxu0
        %v726 = vadd.f32 0.0, %v725
        %v727 = vpop.f32.mrf.mxu0
        %v728 = vpop.f32.mrf.mxu0
        %v729 = vadd.f32 0.0, %v728
        %v730 = vpop.f32.mrf.mxu0
        %731 = vdwg.mxu0
        %v732 = vadd.f32 %v587, %v702
        %v733 = vadd.f32 %v590, %v705
        %v734 = vadd.f32 %v595, %v710
        %v735 = vadd.f32 %v598, %v713
        %v736 = vadd.f32 %v603, %v718
        %v737 = vadd.f32 %v606, %v721
        %v738 = vadd.f32 %v611, %v726
        %v739 = vadd.f32 %v614, %v729
        %741 = vset.pattern.permute.xlu0 0
        %742 = vperm.xlu0 %741, %v304
        %v743 = vpop.permute.xlu0 %742
        %746 = vset.pattern.permute.xlu0 0
        %747 = vperm.xlu0 %746, %v305
        %v748 = vpop.permute.xlu0 %747
        %751 = vset.pattern.permute.xlu0 0
        %752 = vperm.xlu0 %751, %v306
        %v753 = vpop.permute.xlu0 %752
        %756 = vset.pattern.permute.xlu0 0
        %757 = vperm.xlu0 %756, %v307
        %v758 = vpop.permute.xlu0 %757
        %761 = vset.pattern.permute.xlu0 0
        %762 = vperm.xlu0 %761, %v308
        %v763 = vpop.permute.xlu0 %762
        %766 = vset.pattern.permute.xlu0 0
        %767 = vperm.xlu0 %766, %v309
        %v768 = vpop.permute.xlu0 %767
        %771 = vset.pattern.permute.xlu0 0
        %772 = vperm.xlu0 %771, %v310
        %v773 = vpop.permute.xlu0 %772
        %776 = vset.pattern.permute.xlu0 0
        %777 = vperm.xlu0 %776, %v311
        %v778 = vpop.permute.xlu0 %777
        %v780 = vadd.f32 %v732, %v743
        %v781 = vadd.f32 %v733, %v748
        %v782 = vadd.f32 %v734, %v753
        %v783 = vadd.f32 %v735, %v758
        %v784 = vadd.f32 %v736, %v763
        %v785 = vadd.f32 %v737, %v768
        %v786 = vadd.f32 %v738, %v773
        %v787 = vadd.f32 %v739, %v778
        %v788 = vmax.f32 %v780, 0.0
        %v789 = vmax.f32 %v781, 0.0
        %v790 = vmax.f32 %v782, 0.0
        %v791 = vmax.f32 %v783, 0.0
        %v792 = vmax.f32 %v784, 0.0
        %v793 = vmax.f32 %v785, 0.0
        %v794 = vmax.f32 %v786, 0.0
        %v795 = vmax.f32 %v787, 0.0
        %797 = vset.pattern.permute.xlu0 0
        %798 = vperm.xlu0 %797, %v312
        %v799 = vpop.permute.xlu0 %798
        %802 = vset.pattern.permute.xlu0 0
        %803 = vperm.xlu0 %802, %v313
        %v804 = vpop.permute.xlu0 %803
        %807 = vset.pattern.permute.xlu0 0
        %808 = vperm.xlu0 %807, %v314
        %v809 = vpop.permute.xlu0 %808
        %812 = vset.pattern.permute.xlu0 0
        %813 = vperm.xlu0 %812, %v315
        %v814 = vpop.permute.xlu0 %813
        %817 = vset.pattern.permute.xlu0 0
        %818 = vperm.xlu0 %817, %v316
        %v819 = vpop.permute.xlu0 %818
        %822 = vset.pattern.permute.xlu0 0
        %823 = vperm.xlu0 %822, %v317
        %v824 = vpop.permute.xlu0 %823
        %827 = vset.pattern.permute.xlu0 0
        %828 = vperm.xlu0 %827, %v318
        %v829 = vpop.permute.xlu0 %828
        %832 = vset.pattern.permute.xlu0 0
        %833 = vperm.xlu0 %832, %v319
        %v834 = vpop.permute.xlu0 %833
        %v836 = vmul.f32 %v788, %v799
        %v837 = vmul.f32 %v789, %v804
        %v838 = vmul.f32 %v790, %v809
        %v839 = vmul.f32 %v791, %v814
        %v840 = vmul.f32 %v792, %v819
        %v841 = vmul.f32 %v793, %v824
        %v842 = vmul.f32 %v794, %v829
        %v843 = vmul.f32 %v795, %v834
        %845 = vset.pattern.permute.xlu0 0
        %846 = vperm.xlu0 %845, %v320
        %v847 = vpop.permute.xlu0 %846
        %850 = vset.pattern.permute.xlu0 0
        %851 = vperm.xlu0 %850, %v321
        %v852 = vpop.permute.xlu0 %851
        %855 = vset.pattern.permute.xlu0 0
        %856 = vperm.xlu0 %855, %v322
        %v857 = vpop.permute.xlu0 %856
        %860 = vset.pattern.permute.xlu0 0
        %861 = vperm.xlu0 %860, %v323
        %v862 = vpop.permute.xlu0 %861
        %865 = vset.pattern.permute.xlu0 0
        %866 = vperm.xlu0 %865, %v324
        %v867 = vpop.permute.xlu0 %866
        %870 = vset.pattern.permute.xlu0 0
        %871 = vperm.xlu0 %870, %v325
        %v872 = vpop.permute.xlu0 %871
        %875 = vset.pattern.permute.xlu0 0
        %876 = vperm.xlu0 %875, %v326
        %v877 = vpop.permute.xlu0 %876
        %880 = vset.pattern.permute.xlu0 0
        %881 = vperm.xlu0 %880, %v327
        %v882 = vpop.permute.xlu0 %881
        %v884 = vadd.f32 %v836, %v847
        %v885 = vadd.f32 %v837, %v852
        %v886 = vadd.f32 %v838, %v857
        %v887 = vadd.f32 %v839, %v862
        %v888 = vadd.f32 %v840, %v867
        %v889 = vadd.f32 %v841, %v872
        %v890 = vadd.f32 %v842, %v877
        %v891 = vadd.f32 %v843, %v882
        %s892 = sadd.s32 %s350, 1
        %s893 = smul.u32 %s892, 32
        %s894 = sshra.s32 %s893, 3
        %s895 = sand.u32 %s893, 7
        %s896 = smul.addr %s894, 4
        %s897 = scalar_lea.vmem %s265, %s896
        %v898 = vld [vmem:[%s897] sm:$0xf]
        %v899 = vld [vmem:[%s897 + $0x4] sm:$0xf]
        %v900 = vld [vmem:[%s897 + $0x8] sm:$0xf]
        %v901 = vld [vmem:[%s897 + $0xc] sm:$0xf]
        %v902 = vld [vmem:[%s897 + $0x10] sm:$0xf]
        %v903 = vld [vmem:[%s897 + $0x14] sm:$0xf]
        %v904 = vld [vmem:[%s897 + $0x18] sm:$0xf]
        %v905 = vld [vmem:[%s897 + $0x1c] sm:$0xf]
        %v906 = vld [vmem:[%s897 + $0x20] sm:$0xf]
        %v907 = vld [vmem:[%s897 + $0x24] sm:$0xf]
        %v908 = vld [vmem:[%s897 + $0x28] sm:$0xf]
        %v909 = vld [vmem:[%s897 + $0x2c] sm:$0xf]
        %v922 = vunpack.c.l.b16 %v898
        %v923 = vunpack.c.l.b16 %v899
        %v924 = vunpack.c.l.b16 %v900
        %v925 = vunpack.c.l.b16 %v901
        %v926 = vunpack.c.l.b16 %v902
        %v927 = vunpack.c.l.b16 %v903
        %v928 = vunpack.c.l.b16 %v904
        %v929 = vunpack.c.l.b16 %v905
        %v930 = vunpack.c.l.b16 %v906
        %v931 = vunpack.c.l.b16 %v907
        %v932 = vunpack.c.l.b16 %v908
        %v933 = vunpack.c.l.b16 %v909
        %v934 = vpack.c.b16 %v923, %v922
        %v935 = vpack.c.b16 %v925, %v924
        %v936 = vpack.c.b16 %v927, %v926
        %v937 = vpack.c.b16 %v929, %v928
        %v938 = vpack.c.b16 %v931, %v930
        %v939 = vpack.c.b16 %v933, %v932
        %940 = vrot.lane.b32.xlu0 %v934, 127
        %v941 = vpop.permute.xlu0 %940
        %942 = vrot.lane.b32.xlu0 %v935, 127
        %v943 = vpop.permute.xlu0 %942
        %944 = vrot.lane.b32.xlu0 %v936, 127
        %v945 = vpop.permute.xlu0 %944
        %946 = vrot.lane.b32.xlu0 %v937, 127
        %v947 = vpop.permute.xlu0 %946
        %948 = vrot.lane.b32.xlu0 %v938, 127
        %v949 = vpop.permute.xlu0 %948
        %950 = vrot.lane.b32.xlu0 %v939, 127
        %v951 = vpop.permute.xlu0 %950
        %958 = vmatprep.subr.bf16.mxu0 0
        %959 = vmatpush1.bf16.msra.mxu0 0
        %960 = vmatprep.subr.bf16.mxu0 0
        %961 = vmatpush1.bf16.msra.mxu0 0
        %962 = vmatprep.subr.bf16.mxu0 0
        %963 = vmatpush1.bf16.msra.mxu0 %v951
        %964 = vmatprep.subr.bf16.mxu0 0
        %965 = vmatpush1.bf16.msra.mxu0 %v949
        %966 = vmatprep.subr.bf16.mxu0 0
        %967 = vmatpush1.bf16.msra.mxu0 %v947
        %968 = vmatprep.subr.bf16.mxu0 0
        %969 = vmatpush1.bf16.msra.mxu0 %v945
        %970 = vmatprep.subr.bf16.mxu0 0
        %971 = vmatpush1.bf16.msra.mxu0 %v943
        %972 = vmatprep.subr.bf16.mxu0 0
        %973 = vmatpush1.bf16.msra.mxu0 %v941
        %974 = vmatprep.subr.bf16.mxu0 0
        %975 = vmatpush2.bf16.msra.mxu0 0
        %976 = vmatprep.subr.bf16.mxu0 0
        %977 = vmatpush2.bf16.msra.mxu0 0
        %978 = vmatprep.subr.bf16.mxu0 0
        %979 = vmatpush2.bf16.msra.mxu0 0
        %980 = vmatprep.subr.bf16.mxu0 0
        %981 = vmatpush2.bf16.msra.mxu0 0
        %982 = vmatprep.subr.bf16.mxu0 0
        %983 = vmatpush2.bf16.msra.mxu0 0
        %984 = vmatprep.subr.bf16.mxu0 0
        %985 = vmatpush2.bf16.msra.mxu0 0
        %986 = vmatprep.subr.bf16.mxu0 0
        %987 = vmatpush2.bf16.msra.mxu0 0
        %988 = vmatprep.subr.bf16.mxu0 0
        %989 = vmatpush2.bf16.msra.mxu0 0
        %990 = vmatprep.mubr.bf16.mxu0 0
        %991 = vmatmul.mubr.bf16.gmra.mxu0 %v438
        %v992 = vpop.f32.mrf.mxu0
        %v993 = vadd.f32 0.0, %v992
        %v994 = vpop.f32.mrf.mxu0
        %v995 = vpop.f32.mrf.mxu0
        %v996 = vadd.f32 0.0, %v995
        %v997 = vpop.f32.mrf.mxu0
        %998 = vmatprep.mubr.bf16.mxu0 0
        %999 = vmatmul.mubr.bf16.gmra.mxu0 %v441
        %v1000 = vpop.f32.mrf.mxu0
        %v1001 = vadd.f32 0.0, %v1000
        %v1002 = vpop.f32.mrf.mxu0
        %v1003 = vpop.f32.mrf.mxu0
        %v1004 = vadd.f32 0.0, %v1003
        %v1005 = vpop.f32.mrf.mxu0
        %1006 = vmatprep.mubr.bf16.mxu0 0
        %1007 = vmatmul.mubr.bf16.gmra.mxu0 %v444
        %v1008 = vpop.f32.mrf.mxu0
        %v1009 = vadd.f32 0.0, %v1008
        %v1010 = vpop.f32.mrf.mxu0
        %v1011 = vpop.f32.mrf.mxu0
        %v1012 = vadd.f32 0.0, %v1011
        %v1013 = vpop.f32.mrf.mxu0
        %1014 = vmatprep.mubr.bf16.mxu0 0
        %1015 = vmatmul.mubr.bf16.gmra.mxu0 %v447
        %v1016 = vpop.f32.mrf.mxu0
        %v1017 = vadd.f32 0.0, %v1016
        %v1018 = vpop.f32.mrf.mxu0
        %v1019 = vpop.f32.mrf.mxu0
        %v1020 = vadd.f32 0.0, %v1019
        %v1021 = vpop.f32.mrf.mxu0
        %1022 = vdwg.mxu0
        %1029 = vmatprep.subr.bf16.mxu0 0
        %1030 = vmatpush1.bf16.msra.mxu0 0
        %1031 = vmatprep.subr.bf16.mxu0 0
        %1032 = vmatpush1.bf16.msra.mxu0 0
        %1033 = vmatprep.subr.bf16.mxu0 0
        %1034 = vmatpush1.bf16.msra.mxu0 %v939
        %1035 = vmatprep.subr.bf16.mxu0 0
        %1036 = vmatpush1.bf16.msra.mxu0 %v938
        %1037 = vmatprep.subr.bf16.mxu0 0
        %1038 = vmatpush1.bf16.msra.mxu0 %v937
        %1039 = vmatprep.subr.bf16.mxu0 0
        %1040 = vmatpush1.bf16.msra.mxu0 %v936
        %1041 = vmatprep.subr.bf16.mxu0 0
        %1042 = vmatpush1.bf16.msra.mxu0 %v935
        %1043 = vmatprep.subr.bf16.mxu0 0
        %1044 = vmatpush1.bf16.msra.mxu0 %v934
        %1045 = vmatprep.subr.bf16.mxu0 0
        %1046 = vmatpush2.bf16.msra.mxu0 0
        %1047 = vmatprep.subr.bf16.mxu0 0
        %1048 = vmatpush2.bf16.msra.mxu0 0
        %1049 = vmatprep.subr.bf16.mxu0 0
        %1050 = vmatpush2.bf16.msra.mxu0 0
        %1051 = vmatprep.subr.bf16.mxu0 0
        %1052 = vmatpush2.bf16.msra.mxu0 0
        %1053 = vmatprep.subr.bf16.mxu0 0
        %1054 = vmatpush2.bf16.msra.mxu0 0
        %1055 = vmatprep.subr.bf16.mxu0 0
        %1056 = vmatpush2.bf16.msra.mxu0 0
        %1057 = vmatprep.subr.bf16.mxu0 0
        %1058 = vmatpush2.bf16.msra.mxu0 0
        %1059 = vmatprep.subr.bf16.mxu0 0
        %1060 = vmatpush2.bf16.msra.mxu0 0
        %1061 = vmatprep.mubr.bf16.mxu0 0
        %1062 = vmatmul.mubr.bf16.gmra.mxu0 %v541
        %v1063 = vpop.f32.mrf.mxu0
        %v1064 = vadd.f32 %v993, %v1063
        %v1065 = vpop.f32.mrf.mxu0
        %v1066 = vpop.f32.mrf.mxu0
        %v1067 = vadd.f32 %v996, %v1066
        %v1068 = vpop.f32.mrf.mxu0
        %1069 = vmatprep.mubr.bf16.mxu0 0
        %1070 = vmatmul.mubr.bf16.gmra.mxu0 %v544
        %v1071 = vpop.f32.mrf.mxu0
        %v1072 = vadd.f32 %v1001, %v1071
        %v1073 = vpop.f32.mrf.mxu0
        %v1074 = vpop.f32.mrf.mxu0
        %v1075 = vadd.f32 %v1004, %v1074
        %v1076 = vpop.f32.mrf.mxu0
        %1077 = vmatprep.mubr.bf16.mxu0 0
        %1078 = vmatmul.mubr.bf16.gmra.mxu0 %v547
        %v1079 = vpop.f32.mrf.mxu0
        %v1080 = vadd.f32 %v1009, %v1079
        %v1081 = vpop.f32.mrf.mxu0
        %v1082 = vpop.f32.mrf.mxu0
        %v1083 = vadd.f32 %v1012, %v1082
        %v1084 = vpop.f32.mrf.mxu0
        %1085 = vmatprep.mubr.bf16.mxu0 0
        %1086 = vmatmul.mubr.bf16.gmra.mxu0 %v550
        %v1087 = vpop.f32.mrf.mxu0
        %v1088 = vadd.f32 %v1017, %v1087
        %v1089 = vpop.f32.mrf.mxu0
        %v1090 = vpop.f32.mrf.mxu0
        %v1091 = vadd.f32 %v1020, %v1090
        %v1092 = vpop.f32.mrf.mxu0
        %1093 = vdwg.mxu0
        %1094 = vrot.lane.b32.xlu0 %v934, 126
        %v1095 = vpop.permute.xlu0 %1094
        %1096 = vrot.lane.b32.xlu0 %v935, 126
        %v1097 = vpop.permute.xlu0 %1096
        %1098 = vrot.lane.b32.xlu0 %v936, 126
        %v1099 = vpop.permute.xlu0 %1098
        %1100 = vrot.lane.b32.xlu0 %v937, 126
        %v1101 = vpop.permute.xlu0 %1100
        %1102 = vrot.lane.b32.xlu0 %v938, 126
        %v1103 = vpop.permute.xlu0 %1102
        %1104 = vrot.lane.b32.xlu0 %v939, 126
        %v1105 = vpop.permute.xlu0 %1104
        %1112 = vmatprep.subr.bf16.mxu0 0
        %1113 = vmatpush1.bf16.msra.mxu0 0
        %1114 = vmatprep.subr.bf16.mxu0 0
        %1115 = vmatpush1.bf16.msra.mxu0 0
        %1116 = vmatprep.subr.bf16.mxu0 0
        %1117 = vmatpush1.bf16.msra.mxu0 %v1105
        %1118 = vmatprep.subr.bf16.mxu0 0
        %1119 = vmatpush1.bf16.msra.mxu0 %v1103
        %1120 = vmatprep.subr.bf16.mxu0 0
        %1121 = vmatpush1.bf16.msra.mxu0 %v1101
        %1122 = vmatprep.subr.bf16.mxu0 0
        %1123 = vmatpush1.bf16.msra.mxu0 %v1099
        %1124 = vmatprep.subr.bf16.mxu0 0
        %1125 = vmatpush1.bf16.msra.mxu0 %v1097
        %1126 = vmatprep.subr.bf16.mxu0 0
        %1127 = vmatpush1.bf16.msra.mxu0 %v1095
        %1128 = vmatprep.subr.bf16.mxu0 0
        %1129 = vmatpush2.bf16.msra.mxu0 0
        %1130 = vmatprep.subr.bf16.mxu0 0
        %1131 = vmatpush2.bf16.msra.mxu0 0
        %1132 = vmatprep.subr.bf16.mxu0 0
        %1133 = vmatpush2.bf16.msra.mxu0 0
        %1134 = vmatprep.subr.bf16.mxu0 0
        %1135 = vmatpush2.bf16.msra.mxu0 0
        %1136 = vmatprep.subr.bf16.mxu0 0
        %1137 = vmatpush2.bf16.msra.mxu0 0
        %1138 = vmatprep.subr.bf16.mxu0 0
        %1139 = vmatpush2.bf16.msra.mxu0 0
        %1140 = vmatprep.subr.bf16.mxu0 0
        %1141 = vmatpush2.bf16.msra.mxu0 0
        %1142 = vmatprep.subr.bf16.mxu0 0
        %1143 = vmatpush2.bf16.msra.mxu0 0
        %1144 = vmatprep.mubr.bf16.mxu0 0
        %1145 = vmatmul.mubr.bf16.gmra.mxu0 %v656
        %v1146 = vpop.f32.mrf.mxu0
        %v1147 = vadd.f32 0.0, %v1146
        %v1148 = vpop.f32.mrf.mxu0
        %v1149 = vpop.f32.mrf.mxu0
        %v1150 = vadd.f32 0.0, %v1149
        %v1151 = vpop.f32.mrf.mxu0
        %1152 = vmatprep.mubr.bf16.mxu0 0
        %1153 = vmatmul.mubr.bf16.gmra.mxu0 %v659
        %v1154 = vpop.f32.mrf.mxu0
        %v1155 = vadd.f32 0.0, %v1154
        %v1156 = vpop.f32.mrf.mxu0
        %v1157 = vpop.f32.mrf.mxu0
        %v1158 = vadd.f32 0.0, %v1157
        %v1159 = vpop.f32.mrf.mxu0
        %1160 = vmatprep.mubr.bf16.mxu0 0
        %1161 = vmatmul.mubr.bf16.gmra.mxu0 %v662
        %v1162 = vpop.f32.mrf.mxu0
        %v1163 = vadd.f32 0.0, %v1162
        %v1164 = vpop.f32.mrf.mxu0
        %v1165 = vpop.f32.mrf.mxu0
        %v1166 = vadd.f32 0.0, %v1165
        %v1167 = vpop.f32.mrf.mxu0
        %1168 = vmatprep.mubr.bf16.mxu0 0
        %1169 = vmatmul.mubr.bf16.gmra.mxu0 %v665
        %v1170 = vpop.f32.mrf.mxu0
        %v1171 = vadd.f32 0.0, %v1170
        %v1172 = vpop.f32.mrf.mxu0
        %v1173 = vpop.f32.mrf.mxu0
        %v1174 = vadd.f32 0.0, %v1173
        %v1175 = vpop.f32.mrf.mxu0
        %1176 = vdwg.mxu0
        %v1177 = vadd.f32 %v1064, %v1147
        %v1178 = vadd.f32 %v1067, %v1150
        %v1179 = vadd.f32 %v1072, %v1155
        %v1180 = vadd.f32 %v1075, %v1158
        %v1181 = vadd.f32 %v1080, %v1163
        %v1182 = vadd.f32 %v1083, %v1166
        %v1183 = vadd.f32 %v1088, %v1171
        %v1184 = vadd.f32 %v1091, %v1174
        %v1185 = vadd.f32 %v1177, %v743
        %v1186 = vadd.f32 %v1178, %v748
        %v1187 = vadd.f32 %v1179, %v753
        %v1188 = vadd.f32 %v1180, %v758
        %v1189 = vadd.f32 %v1181, %v763
        %v1190 = vadd.f32 %v1182, %v768
        %v1191 = vadd.f32 %v1183, %v773
        %v1192 = vadd.f32 %v1184, %v778
        %v1193 = vmax.f32 %v1185, 0.0
        %v1194 = vmax.f32 %v1186, 0.0
        %v1195 = vmax.f32 %v1187, 0.0
        %v1196 = vmax.f32 %v1188, 0.0
        %v1197 = vmax.f32 %v1189, 0.0
        %v1198 = vmax.f32 %v1190, 0.0
        %v1199 = vmax.f32 %v1191, 0.0
        %v1200 = vmax.f32 %v1192, 0.0
        %v1201 = vmul.f32 %v1193, %v799
        %v1202 = vmul.f32 %v1194, %v804
        %v1203 = vmul.f32 %v1195, %v809
        %v1204 = vmul.f32 %v1196, %v814
        %v1205 = vmul.f32 %v1197, %v819
        %v1206 = vmul.f32 %v1198, %v824
        %v1207 = vmul.f32 %v1199, %v829
        %v1208 = vmul.f32 %v1200, %v834
        %v1209 = vadd.f32 %v1201, %v847
        %v1210 = vadd.f32 %v1202, %v852
        %v1211 = vadd.f32 %v1203, %v857
        %v1212 = vadd.f32 %v1204, %v862
        %v1213 = vadd.f32 %v1205, %v867
        %v1214 = vadd.f32 %v1206, %v872
        %v1215 = vadd.f32 %v1207, %v877
        %v1216 = vadd.f32 %v1208, %v882
        %v1217 = vmax.f32 %v884, %v1209
        %v1218 = vmax.f32 %v885, %v1210
        %v1219 = vmax.f32 %v886, %v1211
        %v1220 = vmax.f32 %v887, %v1212
        %v1221 = vmax.f32 %v888, %v1213
        %v1222 = vmax.f32 %v889, %v1214
        %v1223 = vmax.f32 %v890, %v1215
        %v1224 = vmax.f32 %v891, %v1216
        %1233 = vrot.lane.b32.xlu0 %v1217, 127
        %v1234 = vpop.permute.xlu0 %1233
        %1235 = vrot.lane.b32.xlu0 %v1218, 127
        %v1236 = vpop.permute.xlu0 %1235
        %1237 = vrot.lane.b32.xlu0 %v1219, 127
        %v1238 = vpop.permute.xlu0 %1237
        %1239 = vrot.lane.b32.xlu0 %v1220, 127
        %v1240 = vpop.permute.xlu0 %1239
        %1241 = vrot.lane.b32.xlu0 %v1221, 127
        %v1242 = vpop.permute.xlu0 %1241
        %1243 = vrot.lane.b32.xlu0 %v1222, 127
        %v1244 = vpop.permute.xlu0 %1243
        %1245 = vrot.lane.b32.xlu0 %v1223, 127
        %v1246 = vpop.permute.xlu0 %1245
        %1247 = vrot.lane.b32.xlu0 %v1224, 127
        %v1248 = vpop.permute.xlu0 %1247
        %1257 = vrot.lane.b32.xlu0 %v1217, 108
        %v1258 = vpop.permute.xlu0 %1257
        %1259 = vrot.lane.b32.xlu0 %v1218, 108
        %v1260 = vpop.permute.xlu0 %1259
        %1261 = vrot.lane.b32.xlu0 %v1219, 108
        %v1262 = vpop.permute.xlu0 %1261
        %1263 = vrot.lane.b32.xlu0 %v1220, 108
        %v1264 = vpop.permute.xlu0 %1263
        %1265 = vrot.lane.b32.xlu0 %v1221, 108
        %v1266 = vpop.permute.xlu0 %1265
        %1267 = vrot.lane.b32.xlu0 %v1222, 108
        %v1268 = vpop.permute.xlu0 %1267
        %1269 = vrot.lane.b32.xlu0 %v1223, 108
        %v1270 = vpop.permute.xlu0 %1269
        %1271 = vrot.lane.b32.xlu0 %v1224, 108
        %v1272 = vpop.permute.xlu0 %1271
        %vm1281 = vcmask 883712
        %v1282 = vsel %vm1281, %v1234, %v1258
        %v1283 = vsel %vm1281, %v1236, %v1260
        %v1284 = vsel %vm1281, %v1238, %v1262
        %v1285 = vsel %vm1281, %v1240, %v1264
        %v1286 = vsel %vm1281, %v1242, %v1266
        %v1287 = vsel %vm1281, %v1244, %v1268
        %v1288 = vsel %vm1281, %v1246, %v1270
        %v1289 = vsel %vm1281, %v1248, %v1272
        %v1290 = vmax.f32 %v1217, %v1282
        %v1291 = vmax.f32 %v1218, %v1283
        %v1292 = vmax.f32 %v1219, %v1284
        %v1293 = vmax.f32 %v1220, %v1285
        %v1294 = vmax.f32 %v1221, %v1286
        %v1295 = vmax.f32 %v1222, %v1287
        %v1296 = vmax.f32 %v1223, %v1288
        %v1297 = vmax.f32 %v1224, %v1289
        %v1298 = vpack.c.bf16 %v1291, %v1290
        %v1299 = vpack.c.bf16 %v1293, %v1292
        %v1300 = vpack.c.bf16 %v1295, %v1294
        %v1301 = vpack.c.bf16 %v1297, %v1296
        %v1316 = vunpack.c.l.b16 %v328
        %v1317 = vunpack.c.l.b16 %v329
        %v1318 = vunpack.c.l.b16 %v330
        %v1319 = vunpack.c.l.b16 %v331
        %v1320 = vunpack.c.l.b16 %v332
        %v1321 = vunpack.c.l.b16 %v333
        %v1322 = vunpack.c.l.b16 %v334
        %v1323 = vunpack.c.l.b16 %v335
        %v1324 = vunpack.c.l.b16 %v336
        %v1325 = vunpack.c.l.b16 %v337
        %v1326 = vunpack.c.l.b16 %v338
        %v1327 = vunpack.c.l.b16 %v339
        %v1328 = vunpack.c.l.b16 %v340
        %v1329 = vunpack.c.l.b16 %v341
        %v1330 = vpack.c.b16 %v1317, %v1316
        %v1331 = vpack.c.b16 %v1319, %v1318
        %v1332 = vpack.c.b16 %v1321, %v1320
        %v1333 = vpack.c.b16 %v1323, %v1322
        %v1334 = vpack.c.b16 %v1325, %v1324
        %v1335 = vpack.c.b16 %v1327, %v1326
        %v1336 = vpack.c.b16 %v1329, %v1328
        %vm1343 = vcmask 891904
        %v1345 = vsel %vm1343, %v1298, 0
        %v1348 = vsel %vm1343, %v1299, 0
        %v1351 = vsel %vm1343, %v1300, 0
        %v1354 = vsel %vm1343, %v1301, 0
        %vm1356 = vcmask 1045504
        %vm1357 = vcmask 1046528
        %v1358 = vsel %vm1356, 4294967295, 65535
        %v1359 = vsel %vm1357, %v1358, 0
        %v1361 = vand.u32 %v1336, %v1359
        %1363 = vmatprep.subr.bf16.mxu0 0
        %1364 = vmatpush1.bf16.msra.mxu0 0
        %1365 = vmatprep.subr.bf16.mxu0 0
        %1366 = vmatpush1.bf16.msra.mxu0 %v1361
        %1367 = vmatprep.subr.bf16.mxu0 0
        %1368 = vmatpush1.bf16.msra.mxu0 %v1335
        %1369 = vmatprep.subr.bf16.mxu0 0
        %1370 = vmatpush1.bf16.msra.mxu0 %v1334
        %1371 = vmatprep.subr.bf16.mxu0 0
        %1372 = vmatpush1.bf16.msra.mxu0 %v1333
        %1373 = vmatprep.subr.bf16.mxu0 0
        %1374 = vmatpush1.bf16.msra.mxu0 %v1332
        %1375 = vmatprep.subr.bf16.mxu0 0
        %1376 = vmatpush1.bf16.msra.mxu0 %v1331
        %1377 = vmatprep.subr.bf16.mxu0 0
        %1378 = vmatpush1.bf16.msra.mxu0 %v1330
        %1379 = vmatprep.subr.bf16.mxu0 0
        %1380 = vmatpush2.bf16.msra.mxu0 0
        %1381 = vmatprep.subr.bf16.mxu0 0
        %1382 = vmatpush2.bf16.msra.mxu0 0
        %1383 = vmatprep.subr.bf16.mxu0 0
        %1384 = vmatpush2.bf16.msra.mxu0 0
        %1385 = vmatprep.subr.bf16.mxu0 0
        %1386 = vmatpush2.bf16.msra.mxu0 0
        %1387 = vmatprep.subr.bf16.mxu0 0
        %1388 = vmatpush2.bf16.msra.mxu0 0
        %1389 = vmatprep.subr.bf16.mxu0 0
        %1390 = vmatpush2.bf16.msra.mxu0 0
        %1391 = vmatprep.subr.bf16.mxu0 0
        %1392 = vmatpush2.bf16.msra.mxu0 0
        %1393 = vmatprep.subr.bf16.mxu0 0
        %1394 = vmatpush2.bf16.msra.mxu0 0
        %1395 = vmatprep.mubr.bf16.mxu0 0
        %1396 = vmatmul.mubr.bf16.gmra.mxu0 %v1345
        %v1397 = vpop.f32.mrf.mxu0
        %v1398 = vadd.f32 0.0, %v1397
        %v1399 = vpop.f32.mrf.mxu0
        %v1400 = vpop.f32.mrf.mxu0
        %v1401 = vadd.f32 0.0, %v1400
        %v1402 = vpop.f32.mrf.mxu0
        %1403 = vmatprep.mubr.bf16.mxu0 0
        %1404 = vmatmul.mubr.bf16.gmra.mxu0 %v1348
        %v1405 = vpop.f32.mrf.mxu0
        %v1406 = vadd.f32 0.0, %v1405
        %v1407 = vpop.f32.mrf.mxu0
        %v1408 = vpop.f32.mrf.mxu0
        %v1409 = vadd.f32 0.0, %v1408
        %v1410 = vpop.f32.mrf.mxu0
        %1411 = vmatprep.mubr.bf16.mxu0 0
        %1412 = vmatmul.mubr.bf16.gmra.mxu0 %v1351
        %v1413 = vpop.f32.mrf.mxu0
        %v1414 = vadd.f32 0.0, %v1413
        %v1415 = vpop.f32.mrf.mxu0
        %v1416 = vpop.f32.mrf.mxu0
        %v1417 = vadd.f32 0.0, %v1416
        %v1418 = vpop.f32.mrf.mxu0
        %1419 = vmatprep.mubr.bf16.mxu0 0
        %1420 = vmatmul.mubr.bf16.gmra.mxu0 %v1354
        %v1421 = vpop.f32.mrf.mxu0
        %v1422 = vadd.f32 0.0, %v1421
        %v1423 = vpop.f32.mrf.mxu0
        %v1424 = vpop.f32.mrf.mxu0
        %v1425 = vadd.f32 0.0, %v1424
        %v1426 = vpop.f32.mrf.mxu0
        %1427 = vdwg.mxu0
        %v1428 = vpack.c.bf16 %v1401, %v1398
        %v1429 = vpack.c.bf16 %v1409, %v1406
        %v1430 = vpack.c.bf16 %v1417, %v1414
        %v1431 = vpack.c.bf16 %v1425, %v1422
        %v1436 = vunpack.c.l.b16 %v1428
        %v1437 = vunpack.c.h.b16 %v1428
        %v1438 = vunpack.c.l.b16 %v1429
        %v1439 = vunpack.c.h.b16 %v1429
        %v1440 = vunpack.c.l.b16 %v1430
        %v1441 = vunpack.c.h.b16 %v1430
        %v1442 = vunpack.c.l.b16 %v1431
        %v1443 = vunpack.c.h.b16 %v1431
        %v1444 = vpack.c.b16 %v1436, %v1436
        %v1445 = vpack.c.b16 %v1437, %v1437
        %v1446 = vpack.c.b16 %v1438, %v1438
        %v1447 = vpack.c.b16 %v1439, %v1439
        %v1448 = vpack.c.b16 %v1440, %v1440
        %v1449 = vpack.c.b16 %v1441, %v1441
        %v1450 = vpack.c.b16 %v1442, %v1442
        %v1451 = vpack.c.b16 %v1443, %v1443
        %s1460 = smul.u32 %s343, 8
        %s1461 = smul.addr %s1460, 4
        %s1462 = scalar_lea.vmem %s275, %s1461
        %vm1463 = vcmask 437248
        %1464 = vst.msk [vmem:[%s1462] sm:$0xf] %vm1463, %v1444
        %1465 = vst.msk [vmem:[%s1462 + $0x4] sm:$0xf] %vm1463, %v1445
        %1466 = vst.msk [vmem:[%s1462 + $0x8] sm:$0xf] %vm1463, %v1446
        %1467 = vst.msk [vmem:[%s1462 + $0xc] sm:$0xf] %vm1463, %v1447
        %1468 = vst.msk [vmem:[%s1462 + $0x10] sm:$0xf] %vm1463, %v1448
        %1469 = vst.msk [vmem:[%s1462 + $0x14] sm:$0xf] %vm1463, %v1449
        %1470 = vst.msk [vmem:[%s1462 + $0x18] sm:$0xf] %vm1463, %v1450
        %1471 = vst.msk [vmem:[%s1462 + $0x1c] sm:$0xf] %vm1463, %v1451
      $region49: #{net_forward.6} parent=43 // loop_footer
        %s347 = sadd.s32 1, %s343
      $region50: #{net_forward.6} parent=43 // loop_footer_branch
        %342 = sbr.rel target = $region46
      $region51: #{net_forward.6} parent=43 // loop_exit
        _
      %s1472 = smul.u32 27, %s22
      %p1473 = scmp.lt.s32.totalorder %s21, 1
      %s1474 = scalar_select %p1473, %s21, 1
      %p1475 = scmp.lt.s32.totalorder %s1472, 53
      %s1476 = scalar_select %p1475, %s1472, 53
      %s1477 = smul.addr %s1476, 8
      %s1478 = smul.addr %s1474, 432
      %s1479 = sadd.s32 %s1477, %s1478
      %s1480 = smul.addr %s1479, 4
      %s1481 = scalar_lea.vmem %s6, %s1480
      // Predicated region
      $region52: #{net_forward.6} parent=43 // pred_check
        %p1482 = pneg %p180
      $region53: #{net_forward.6} parent=43 // pred_check_branch
        %1484 = sbr.rel (%p1482) target = $region55
      $region54: #{net_forward.6} parent=43 // pred_region
        %s1485 = smul.u32 27, %s22
      $region55: #{net_forward.6} parent=43 // pred_fallthru
        _
    $region44: #{net_forward.6} parent=5 // pred_fallthru
      _
    %p1486 = scmp.le.s32.totalorder 2, %s12
    // Predicated region
    $region56: #{net_forward.6} parent=5 // pred_check
      %p1487 = pneg %p1486
    $region57: #{net_forward.6} parent=5 // pred_check_branch
      %1489 = sbr.rel (%p1487) target = $region59
    $region58: #{net_forward.6} parent=5 // pred_region
      %s1490 = ssub.s32 %s12, 2
      // Predicated region
      $region60: #{net_forward.6} parent=58 // pred_check
        %p1491 = pneg %p186
      $region61: #{net_forward.6} parent=58 // pred_check_branch
        %1493 = sbr.rel (%p1491) target = $region63
      $region62: #{net_forward.6} parent=58 // pred_region
        %s1494 = smul.u32 27, %s24
        %p1495 = scmp.lt.s32.totalorder %s23, 1
        %s1496 = scalar_select %p1495, %s23, 1
        %p1497 = scmp.lt.s32.totalorder %s1494, 53
        %s1498 = scalar_select %p1497, %s1494, 53
        %s1499 = smul.addr %s1498, 8
        %s1500 = smul.addr %s1496, 432
        %s1501 = sadd.s32 %s1499, %s1500
        %s1502 = smul.addr %s1501, 4
        %s1503 = scalar_lea.vmem %s6, %s1502
      $region63: #{net_forward.6} parent=58 // pred_fallthru
        _
    $region59: #{net_forward.6} parent=5 // pred_fallthru
      _
  $region6: #{net_forward.6} parent=0 // loop_footer
    %s16 = sadd.s32 1, %s12
  $region7: #{net_forward.6} parent=0 // loop_footer_branch
    %11 = sbr.rel target = $region3
  $region8: #{net_forward.6} parent=0 // loop_exit
    _

// kernel: net_forward.7
$region0: #{net_forward.7}
  #allocation0 [shape = 'u32[]', space=smem, size = 0x4, offset = 0x4, fixed_abs, tag = 'smem constant byte address 0x4 - core index']
  #allocation1 [shape = 'u32[144,128]{1,0:T(1,128)}', space=vmem, size = 0x12000, scoped, tag = 'internal scratch']
  %s0 = inlined_call_operand.vmem [shape: bf16[2,3456,54], index: 0, kind: input, shape index: {}]
  %s1 = inlined_call_operand.vmem [shape: bf16[3,128,192], index: 1, kind: input, shape index: {}]
  %s2 = inlined_call_operand.vmem [shape: f32[128,1], index: 2, kind: input, shape index: {}]
  %s3 = inlined_call_operand.vmem [shape: f32[128,1], index: 3, kind: input, shape index: {}]
  %s4 = inlined_call_operand.vmem [shape: f32[128,1], index: 4, kind: input, shape index: {}]
  %s5 = inlined_call_operand.vmem [shape: bf16[52,26], index: 5, kind: input, shape index: {}]
  %s6 = inlined_call_operand.vmem [shape: bf16[2,26,128,26], index: 6, kind: output, shape index: {}]
  %s7 = sld [smem:[#allocation0]]
  $region64: #{net_forward.7} parent=0
    _
  %s9 = ssub.s32 1, %s7
  %s10 = scalar_select 0, %s9, %s7
  loop: start=0, step=1, limit=6
  $region2: #{net_forward.7} parent=0 // loop_pre_header
    _
  $region3: #{net_forward.7} parent=0 // loop_header
    %s12 = sphi 0, %s16
    %p13 = scmp.ge.s32.totalorder %s12, 6
    %s19 = sphi 0, %s31
    %s20 = sphi 0, %s27
    %s21 = sphi 0, %s19
    %s22 = sphi 0, %s20
    %s23 = sphi 0, %s21
    %s24 = sphi 0, %s22
    %s34 = sphi 0, %s36
    %s37 = sphi 0, %s34
    %s38 = sphi 0, %s37
    %s54 = sphi 0, %s38
    %s58 = sphi 0, %s58
    %s60 = sphi 0, %s58
    %s61 = sphi 0, %s60
    %s75 = sphi 0, %s61
    %s79 = sphi 0, %s79
    %s81 = sphi 0, %s79
    %s82 = sphi 0, %s81
    %s96 = sphi 0, %s82
    %s100 = sphi 0, %s100
    %s102 = sphi 0, %s100
    %s103 = sphi 0, %s102
    %s117 = sphi 0, %s103
    %s121 = sphi 0, %s121
    %s123 = sphi 0, %s121
    %s124 = sphi 0, %s123
    %s138 = sphi 0, %s124
    %s142 = sphi 0, %s142
    %s144 = sphi 0, %s142
    %s145 = sphi 0, %s144
    %s159 = sphi 0, %s145
    %s167 = sphi 0, %s169
    %s170 = sphi 0, %s167
    %s171 = sphi 0, %s170
    %s187 = sphi 0, %s171
  $region4: #{net_forward.7} parent=0 // loop_header_branch
    %15 = sbr.rel (%p13) target = $region8
  $region5: #{net_forward.7} parent=0 // loop_body
    %s17 = ssub.s32 %s12, 1
    %s18 = ssub.s32 %s12, 2
    %s25 = sadd.s32 1, %s20
    %p26 = scmp.ge.s32.totalorder %s25, 2
    %s27 = scalar_select %p26, 0, %s25
    %s28 = sadd.s32 1, %s19
    %s29 = scalar_select %p26, %s28, %s19
    %p30 = scmp.ge.s32.totalorder %s29, 2
    %s31 = scalar_select %p30, 0, %s29
    %s32 = ssub.s32 %s19, %s31
    %p33 = scmp.eq.s32.totalorder %s32, 0
    %s35 = sadd.s32 %s34, 1
    %s36 = scalar_select %p33, %s34, %s35
    %p39 = pneg %p33
    %p40 = scmp.eq.s32.totalorder %s12, 3
    %p41 = por %p39, %p40
    %p42 = scmp.ne.s32.totalorder %s34, %s37
    %p43 = scmp.eq.s32.totalorder %s12, 0
    %p44 = por %p42, %p43
    %p45 = scmp.ne.s32.totalorder %s34, %s37
    %p46 = scmp.eq.s32.totalorder %s17, 3
    %p47 = por %p45, %p46
    %p48 = scmp.ne.s32.totalorder %s37, %s38
    %p49 = scmp.eq.s32.totalorder %s17, 0
    %p50 = por %p48, %p49
    %p51 = scmp.ne.s32.totalorder %s37, %s38
    %p52 = scmp.eq.s32.totalorder %s18, 3
    %p53 = por %p51, %p52
    %p55 = scmp.ne.s32.totalorder %s38, %s54
    %p56 = scmp.eq.s32.totalorder %s18, 0
    %p57 = por %p55, %p56
    %s59 = sadd.s32 %s58, 1
    %p62 = scmp.eq.s32.totalorder %s12, 3
    %p63 = scmp.ne.s32.totalorder %s58, %s60
    %p64 = scmp.eq.s32.totalorder %s12, 0
    %p65 = por %p63, %p64
    %p66 = scmp.ne.s32.totalorder %s58, %s60
    %p67 = scmp.eq.s32.totalorder %s17, 3
    %p68 = por %p66, %p67
    %p69 = scmp.ne.s32.totalorder %s60, %s61
    %p70 = scmp.eq.s32.totalorder %s17, 0
    %p71 = por %p69, %p70
    %p72 = scmp.ne.s32.totalorder %s60, %s61
    %p73 = scmp.eq.s32.totalorder %s18, 3
    %p74 = por %p72, %p73
    %p76 = scmp.ne.s32.totalorder %s61, %s75
    %p77 = scmp.eq.s32.totalorder %s18, 0
    %p78 = por %p76, %p77
    %s80 = sadd.s32 %s79, 1
    %p83 = scmp.eq.s32.totalorder %s12, 3
    %p84 = scmp.ne.s32.totalorder %s79, %s81
    %p85 = scmp.eq.s32.totalorder %s12, 0
    %p86 = por %p84, %p85
    %p87 = scmp.ne.s32.totalorder %s79, %s81
    %p88 = scmp.eq.s32.totalorder %s17, 3
    %p89 = por %p87, %p88
    %p90 = scmp.ne.s32.totalorder %s81, %s82
    %p91 = scmp.eq.s32.totalorder %s17, 0
    %p92 = por %p90, %p91
    %p93 = scmp.ne.s32.totalorder %s81, %s82
    %p94 = scmp.eq.s32.totalorder %s18, 3
    %p95 = por %p93, %p94
    %p97 = scmp.ne.s32.totalorder %s82, %s96
    %p98 = scmp.eq.s32.totalorder %s18, 0
    %p99 = por %p97, %p98
    %s101 = sadd.s32 %s100, 1
    %p104 = scmp.eq.s32.totalorder %s12, 3
    %p105 = scmp.ne.s32.totalorder %s100, %s102
    %p106 = scmp.eq.s32.totalorder %s12, 0
    %p107 = por %p105, %p106
    %p108 = scmp.ne.s32.totalorder %s100, %s102
    %p109 = scmp.eq.s32.totalorder %s17, 3
    %p110 = por %p108, %p109
    %p111 = scmp.ne.s32.totalorder %s102, %s103
    %p112 = scmp.eq.s32.totalorder %s17, 0
    %p113 = por %p111, %p112
    %p114 = scmp.ne.s32.totalorder %s102, %s103
    %p115 = scmp.eq.s32.totalorder %s18, 3
    %p116 = por %p114, %p115
    %p118 = scmp.ne.s32.totalorder %s103, %s117
    %p119 = scmp.eq.s32.totalorder %s18, 0
    %p120 = por %p118, %p119
    %s122 = sadd.s32 %s121, 1
    %p125 = scmp.eq.s32.totalorder %s12, 3
    %p126 = scmp.ne.s32.totalorder %s121, %s123
    %p127 = scmp.eq.s32.totalorder %s12, 0
    %p128 = por %p126, %p127
    %p129 = scmp.ne.s32.totalorder %s121, %s123
    %p130 = scmp.eq.s32.totalorder %s17, 3
    %p131 = por %p129, %p130
    %p132 = scmp.ne.s32.totalorder %s123, %s124
    %p133 = scmp.eq.s32.totalorder %s17, 0
    %p134 = por %p132, %p133
    %p135 = scmp.ne.s32.totalorder %s123, %s124
    %p136 = scmp.eq.s32.totalorder %s18, 3
    %p137 = por %p135, %p136
    %p139 = scmp.ne.s32.totalorder %s124, %s138
    %p140 = scmp.eq.s32.totalorder %s18, 0
    %p141 = por %p139, %p140
    %s143 = sadd.s32 %s142, 1
    %p146 = scmp.eq.s32.totalorder %s12, 3
    %p147 = scmp.ne.s32.totalorder %s142, %s144
    %p148 = scmp.eq.s32.totalorder %s12, 0
    %p149 = por %p147, %p148
    %p150 = scmp.ne.s32.totalorder %s142, %s144
    %p151 = scmp.eq.s32.totalorder %s17, 3
    %p152 = por %p150, %p151
    %p153 = scmp.ne.s32.totalorder %s144, %s145
    %p154 = scmp.eq.s32.totalorder %s17, 0
    %p155 = por %p153, %p154
    %p156 = scmp.ne.s32.totalorder %s144, %s145
    %p157 = scmp.eq.s32.totalorder %s18, 3
    %p158 = por %p156, %p157
    %p160 = scmp.ne.s32.totalorder %s145, %s159
    %p161 = scmp.eq.s32.totalorder %s18, 0
    %p162 = por %p160, %p161
    %s163 = ssub.s32 %s19, %s31
    %s164 = ssub.s32 %s20, %s27
    %s165 = sor.u32 %s163, %s164
    %p166 = scmp.eq.s32.totalorder %s165, 0
    %s168 = sadd.s32 %s167, 1
    %s169 = scalar_select %p166, %s167, %s168
    %p172 = pneg %p166
    %p173 = scmp.eq.s32.totalorder %s12, 3
    %p174 = por %p172, %p173
    %p175 = scmp.ne.s32.totalorder %s167, %s170
    %p176 = scmp.eq.s32.totalorder %s12, 0
    %p177 = por %p175, %p176
    %p178 = scmp.ne.s32.totalorder %s167, %s170
    %p179 = scmp.eq.s32.totalorder %s17, 3
    %p180 = por %p178, %p179
    %p181 = scmp.ne.s32.totalorder %s170, %s171
    %p182 = scmp.eq.s32.totalorder %s17, 0
    %p183 = por %p181, %p182
    %p184 = scmp.ne.s32.totalorder %s170, %s171
    %p185 = scmp.eq.s32.totalorder %s18, 3
    %p186 = por %p184, %p185
    %p188 = scmp.ne.s32.totalorder %s171, %s187
    %p189 = scmp.eq.s32.totalorder %s18, 0
    %p190 = por %p188, %p189
    %p191 = scmp.le.s32.totalorder 1, %s12
    %p192 = scmp.lt.s32.totalorder %s12, 5
    %p193 = pnand %p191, %p192
    %p194 = pneg %p193
    // Predicated region
    $region9: #{net_forward.7} parent=5 // pred_check
      _
    $region10: #{net_forward.7} parent=5 // pred_check_branch
      %196 = sbr.rel (%p193) target = $region12
    $region11: #{net_forward.7} parent=5 // pred_region
      %s197 = ssub.s32 %s12, 1
      // Predicated region
      $region13: #{net_forward.7} parent=11 // pred_check
        %p198 = pneg %p71
      $region14: #{net_forward.7} parent=11 // pred_check_branch
        %200 = sbr.rel (%p198) target = $region16
      $region15: #{net_forward.7} parent=11 // pred_region
        _
      $region16: #{net_forward.7} parent=11 // pred_fallthru
        _
      // Predicated region
      $region17: #{net_forward.7} parent=11 // pred_check
        %p201 = pneg %p92
      $region18: #{net_forward.7} parent=11 // pred_check_branch
        %203 = sbr.rel (%p201) target = $region20
      $region19: #{net_forward.7} parent=11 // pred_region
        _
      $region20: #{net_forward.7} parent=11 // pred_fallthru
        _
      // Predicated region
      $region21: #{net_forward.7} parent=11 // pred_check
        %p204 = pneg %p113
      $region22: #{net_forward.7} parent=11 // pred_check_branch
        %206 = sbr.rel (%p204) target = $region24
      $region23: #{net_forward.7} parent=11 // pred_region
        _
      $region24: #{net_forward.7} parent=11 // pred_fallthru
        _
      // Predicated region
      $region25: #{net_forward.7} parent=11 // pred_check
        %p207 = pneg %p134
      $region26: #{net_forward.7} parent=11 // pred_check_branch
        %209 = sbr.rel (%p207) target = $region28
      $region27: #{net_forward.7} parent=11 // pred_region
        _
      $region28: #{net_forward.7} parent=11 // pred_fallthru
        _
      // Predicated region
      $region29: #{net_forward.7} parent=11 // pred_check
        %p210 = pneg %p155
      $region30: #{net_forward.7} parent=11 // pred_check_branch
        %212 = sbr.rel (%p210) target = $region32
      $region31: #{net_forward.7} parent=11 // pred_region
        _
      $region32: #{net_forward.7} parent=11 // pred_fallthru
        _
    $region12: #{net_forward.7} parent=5 // pred_fallthru
      _
    %p213 = scmp.lt.s32.totalorder %s12, 4
    // Predicated region
    $region33: #{net_forward.7} parent=5 // pred_check
      %p214 = pneg %p213
    $region34: #{net_forward.7} parent=5 // pred_check_branch
      %216 = sbr.rel (%p214) target = $region36
    $region35: #{net_forward.7} parent=5 // pred_region
      // Predicated region
      $region37: #{net_forward.7} parent=35 // pred_check
        %p217 = pneg %p44
      $region38: #{net_forward.7} parent=35 // pred_check_branch
        %219 = sbr.rel (%p217) target = $region40
      $region39: #{net_forward.7} parent=35 // pred_region
        %p220 = scmp.lt.s32.totalorder %s19, 1
        %s221 = scalar_select %p220, %s19, 1
        %s222 = smul.addr %s221, 432
        %s223 = smul.addr %s222, 4
        %s224 = scalar_lea.vmem %s0, %s223
      $region40: #{net_forward.7} parent=35 // pred_fallthru
        _
    $region36: #{net_forward.7} parent=5 // pred_fallthru
      _
    %p225 = scmp.le.s32.totalorder 1, %s12
    %p226 = scmp.lt.s32.totalorder %s12, 5
    %p227 = pnand %p225, %p226
    %p228 = pneg %p227
    // Predicated region
    $region41: #{net_forward.7} parent=5 // pred_check
      _
    $region42: #{net_forward.7} parent=5 // pred_check_branch
      %230 = sbr.rel (%p227) target = $region44
    $region43: #{net_forward.7} parent=5 // pred_region
      %s231 = ssub.s32 %s12, 1
      %p232 = scmp.lt.s32.totalorder %s21, 1
      %s233 = scalar_select %p232, %s21, 1
      %s234 = smul.addr %s233, 432
      %s235 = smul.addr %s234, 4
      %s236 = scalar_lea.vmem %s0, %s235
      %p237 = pneg %p50
      %p238 = pneg %p47
      %p239 = pneg %p71
      %p240 = pneg %p68
      %p241 = pneg %p92
      %p242 = pneg %p89
      %p243 = pneg %p113
      %p244 = pneg %p110
      %p245 = pneg %p134
      %p246 = pneg %p131
      %p247 = pneg %p155
      %p248 = pneg %p152
      %p249 = pneg %p183
      %p250 = pneg %p180
      %s251 = smul.u32 13, %s22
      %p252 = scmp.lt.s32.totalorder %s21, 1
      %s253 = scalar_select %p252, %s21, 1
      %p254 = scmp.lt.s32.totalorder %s251, 25
      %s255 = scalar_select %p254, %s251, 25
      %s256 = smul.addr %s255, 16
      %s257 = smul.addr %s253, 416
      %s258 = sadd.s32 %s256, %s257
      %s259 = smul.addr %s258, 4
      %s260 = scalar_lea.vmem %s6, %s259
      %p261 = scmp.lt.s32.totalorder %s21, 1
      %s262 = scalar_select %p261, %s21, 1
      %s263 = smul.addr %s262, 432
      %s264 = smul.addr %s263, 4
      %s265 = scalar_lea.vmem %s0, %s264
      %s266 = smul.u32 13, %s22
      %p267 = scmp.lt.s32.totalorder %s21, 1
      %s268 = scalar_select %p267, %s21, 1
      %p269 = scmp.lt.s32.totalorder %s266, 25
      %s270 = scalar_select %p269, %s266, 25
      %s271 = smul.addr %s270, 16
      %s272 = smul.addr %s268, 416
      %s273 = sadd.s32 %s271, %s272
      %s274 = smul.addr %s273, 4
      %s275 = scalar_lea.vmem %s6, %s274
      %s276 = smul.u32 13, %s22
      %v278 = vld [vmem:[%s1] sm:$0xff]
      %v279 = vld [vmem:[%s1 + $0x8] sm:$0xff]
      %v280 = vld [vmem:[%s1 + $0x10] sm:$0xff]
      %v281 = vld [vmem:[%s1 + $0x18] sm:$0xff]
      %v282 = vld [vmem:[%s1 + $0x20] sm:$0xff]
      %v283 = vld [vmem:[%s1 + $0x28] sm:$0xff]
      %v284 = vld [vmem:[%s1 + $0x30] sm:$0xff]
      %v285 = vld [vmem:[%s1 + $0x38] sm:$0xff]
      %v286 = vld [vmem:[%s1 + $0x40] sm:$0xff]
      %v287 = vld [vmem:[%s1 + $0x48] sm:$0xff]
      %v288 = vld [vmem:[%s1 + $0x50] sm:$0xff]
      %v289 = vld [vmem:[%s1 + $0x58] sm:$0xff]
      %v290 = vld [vmem:[%s1 + $0x60] sm:$0xff]
      %v291 = vld [vmem:[%s1 + $0x68] sm:$0xff]
      %v292 = vld [vmem:[%s1 + $0x70] sm:$0xff]
      %v293 = vld [vmem:[%s1 + $0x78] sm:$0xff]
      %s294 = scalar_lea.vmem %s1, 128
      %v295 = vld [vmem:[%s294] sm:$0xff]
      %v296 = vld [vmem:[%s294 + $0x8] sm:$0xff]
      %v297 = vld [vmem:[%s294 + $0x10] sm:$0xff]
      %v298 = vld [vmem:[%s294 + $0x18] sm:$0xff]
      %v299 = vld [vmem:[%s294 + $0x20] sm:$0xff]
      %v300 = vld [vmem:[%s294 + $0x28] sm:$0xff]
      %v301 = vld [vmem:[%s294 + $0x30] sm:$0xff]
      %v302 = vld [vmem:[%s294 + $0x38] sm:$0xff]
      %v303 = vld [vmem:[%s294 + $0x40] sm:$0xff]
      %v304 = vld [vmem:[%s294 + $0x48] sm:$0xff]
      %v305 = vld [vmem:[%s294 + $0x50] sm:$0xff]
      %v306 = vld [vmem:[%s294 + $0x58] sm:$0xff]
      %v307 = vld [vmem:[%s294 + $0x60] sm:$0xff]
      %v308 = vld [vmem:[%s294 + $0x68] sm:$0xff]
      %v309 = vld [vmem:[%s294 + $0x70] sm:$0xff]
      %v310 = vld [vmem:[%s294 + $0x78] sm:$0xff]
      %s311 = scalar_lea.vmem %s1, 256
      %v312 = vld [vmem:[%s311] sm:$0xff]
      %v313 = vld [vmem:[%s311 + $0x8] sm:$0xff]
      %v314 = vld [vmem:[%s311 + $0x10] sm:$0xff]
      %v315 = vld [vmem:[%s311 + $0x18] sm:$0xff]
      %v316 = vld [vmem:[%s311 + $0x20] sm:$0xff]
      %v317 = vld [vmem:[%s311 + $0x28] sm:$0xff]
      %v318 = vld [vmem:[%s311 + $0x30] sm:$0xff]
      %v319 = vld [vmem:[%s311 + $0x38] sm:$0xff]
      %v320 = vld [vmem:[%s311 + $0x40] sm:$0xff]
      %v321 = vld [vmem:[%s311 + $0x48] sm:$0xff]
      %v322 = vld [vmem:[%s311 + $0x50] sm:$0xff]
      %v323 = vld [vmem:[%s311 + $0x58] sm:$0xff]
      %v324 = vld [vmem:[%s311 + $0x60] sm:$0xff]
      %v325 = vld [vmem:[%s311 + $0x68] sm:$0xff]
      %v326 = vld [vmem:[%s311 + $0x70] sm:$0xff]
      %v327 = vld [vmem:[%s311 + $0x78] sm:$0xff]
      %v328 = vld [vmem:[%s2] sm:$0xff]
      %v329 = vld [vmem:[%s2 + $0x8] sm:$0xff]
      %v330 = vld [vmem:[%s2 + $0x10] sm:$0xff]
      %v331 = vld [vmem:[%s2 + $0x18] sm:$0xff]
      %v332 = vld [vmem:[%s2 + $0x20] sm:$0xff]
      %v333 = vld [vmem:[%s2 + $0x28] sm:$0xff]
      %v334 = vld [vmem:[%s2 + $0x30] sm:$0xff]
      %v335 = vld [vmem:[%s2 + $0x38] sm:$0xff]
      %v336 = vld [vmem:[%s2 + $0x40] sm:$0xff]
      %v337 = vld [vmem:[%s2 + $0x48] sm:$0xff]
      %v338 = vld [vmem:[%s2 + $0x50] sm:$0xff]
      %v339 = vld [vmem:[%s2 + $0x58] sm:$0xff]
      %v340 = vld [vmem:[%s2 + $0x60] sm:$0xff]
      %v341 = vld [vmem:[%s2 + $0x68] sm:$0xff]
      %v342 = vld [vmem:[%s2 + $0x70] sm:$0xff]
      %v343 = vld [vmem:[%s2 + $0x78] sm:$0xff]
      %v344 = vld [vmem:[%s3] sm:$0xff]
      %v345 = vld [vmem:[%s3 + $0x8] sm:$0xff]
      %v346 = vld [vmem:[%s3 + $0x10] sm:$0xff]
      %v347 = vld [vmem:[%s3 + $0x18] sm:$0xff]
      %v348 = vld [vmem:[%s3 + $0x20] sm:$0xff]
      %v349 = vld [vmem:[%s3 + $0x28] sm:$0xff]
      %v350 = vld [vmem:[%s3 + $0x30] sm:$0xff]
      %v351 = vld [vmem:[%s3 + $0x38] sm:$0xff]
      %v352 = vld [vmem:[%s3 + $0x40] sm:$0xff]
      %v353 = vld [vmem:[%s3 + $0x48] sm:$0xff]
      %v354 = vld [vmem:[%s3 + $0x50] sm:$0xff]
      %v355 = vld [vmem:[%s3 + $0x58] sm:$0xff]
      %v356 = vld [vmem:[%s3 + $0x60] sm:$0xff]
      %v357 = vld [vmem:[%s3 + $0x68] sm:$0xff]
      %v358 = vld [vmem:[%s3 + $0x70] sm:$0xff]
      %v359 = vld [vmem:[%s3 + $0x78] sm:$0xff]
      %v360 = vld [vmem:[%s4] sm:$0xff]
      %v361 = vld [vmem:[%s4 + $0x8] sm:$0xff]
      %v362 = vld [vmem:[%s4 + $0x10] sm:$0xff]
      %v363 = vld [vmem:[%s4 + $0x18] sm:$0xff]
      %v364 = vld [vmem:[%s4 + $0x20] sm:$0xff]
      %v365 = vld [vmem:[%s4 + $0x28] sm:$0xff]
      %v366 = vld [vmem:[%s4 + $0x30] sm:$0xff]
      %v367 = vld [vmem:[%s4 + $0x38] sm:$0xff]
      %v368 = vld [vmem:[%s4 + $0x40] sm:$0xff]
      %v369 = vld [vmem:[%s4 + $0x48] sm:$0xff]
      %v370 = vld [vmem:[%s4 + $0x50] sm:$0xff]
      %v371 = vld [vmem:[%s4 + $0x58] sm:$0xff]
      %v372 = vld [vmem:[%s4 + $0x60] sm:$0xff]
      %v373 = vld [vmem:[%s4 + $0x68] sm:$0xff]
      %v374 = vld [vmem:[%s4 + $0x70] sm:$0xff]
      %v375 = vld [vmem:[%s4 + $0x78] sm:$0xff]
      %v376 = vld [vmem:[%s5] sm:$0xf]
      %v377 = vld [vmem:[%s5 + $0x4] sm:$0xf]
      %v378 = vld [vmem:[%s5 + $0x8] sm:$0xf]
      %v379 = vld [vmem:[%s5 + $0xc] sm:$0xf]
      %v380 = vld [vmem:[%s5 + $0x10] sm:$0xf]
      %v381 = vld [vmem:[%s5 + $0x14] sm:$0xf]
      %v382 = vld [vmem:[%s5 + $0x18] sm:$0x3]
      loop: start=0, step=1, limit=13
      $region45: #{net_forward.7} parent=43 // loop_pre_header
        _
      $region46: #{net_forward.7} parent=43 // loop_header
        %s384 = sphi 0, %s388
        %p385 = scmp.ge.s32.totalorder %s384, 13
      $region47: #{net_forward.7} parent=43 // loop_header_branch
        %387 = sbr.rel (%p385) target = $region51
      $region48: #{net_forward.7} parent=43 // loop_body
        %s389 = smul.u32 %s22, 13
        %s390 = sadd.s32 %s389, %s384
        %s391 = smul.u32 %s390, 2
        %s392 = smul.u32 %s390, 128
        %s393 = sshra.s32 %s392, 3
        %s394 = sand.u32 %s392, 7
        %s395 = smul.addr %s393, 4
        %s396 = scalar_lea.vmem %s265, %s395
        %v397 = vld [vmem:[%s396] sm:$0xf]
        %v398 = vld [vmem:[%s396 + $0x4] sm:$0xf]
        %v399 = vld [vmem:[%s396 + $0x8] sm:$0xf]
        %v400 = vld [vmem:[%s396 + $0xc] sm:$0xf]
        %v401 = vld [vmem:[%s396 + $0x10] sm:$0xf]
        %v402 = vld [vmem:[%s396 + $0x14] sm:$0xf]
        %v403 = vld [vmem:[%s396 + $0x18] sm:$0xf]
        %v404 = vld [vmem:[%s396 + $0x1c] sm:$0xf]
        %v405 = vld [vmem:[%s396 + $0x20] sm:$0xf]
        %v406 = vld [vmem:[%s396 + $0x24] sm:$0xf]
        %v407 = vld [vmem:[%s396 + $0x28] sm:$0xf]
        %v408 = vld [vmem:[%s396 + $0x2c] sm:$0xf]
        %v409 = vld [vmem:[%s396 + $0x30] sm:$0xf]
        %v410 = vld [vmem:[%s396 + $0x34] sm:$0xf]
        %v411 = vld [vmem:[%s396 + $0x38] sm:$0xf]
        %v412 = vld [vmem:[%s396 + $0x3c] sm:$0xf]
        %v413 = vld [vmem:[%s396 + $0x40] sm:$0xf]
        %v414 = vld [vmem:[%s396 + $0x44] sm:$0xf]
        %v415 = vld [vmem:[%s396 + $0x48] sm:$0xf]
        %v416 = vld [vmem:[%s396 + $0x4c] sm:$0xf]
        %v417 = vld [vmem:[%s396 + $0x50] sm:$0xf]
        %v418 = vld [vmem:[%s396 + $0x54] sm:$0xf]
        %v419 = vld [vmem:[%s396 + $0x58] sm:$0xf]
        %v420 = vld [vmem:[%s396 + $0x5c] sm:$0xf]
        %v437 = vunpack.c.l.b16 %v295
        %v438 = vunpack.c.h.b16 %v295
        %v439 = vunpack.c.l.b16 %v296
        %v440 = vunpack.c.h.b16 %v296
        %v441 = vunpack.c.l.b16 %v297
        %v442 = vunpack.c.h.b16 %v297
        %v443 = vunpack.c.l.b16 %v298
        %v444 = vunpack.c.h.b16 %v298
        %v445 = vunpack.c.l.b16 %v299
        %v446 = vunpack.c.h.b16 %v299
        %v447 = vunpack.c.l.b16 %v300
        %v448 = vunpack.c.h.b16 %v300
        %v449 = vunpack.c.l.b16 %v301
        %v450 = vunpack.c.h.b16 %v301
        %v451 = vunpack.c.l.b16 %v302
        %v452 = vunpack.c.h.b16 %v302
        %v453 = vunpack.c.l.b16 %v303
        %v454 = vunpack.c.h.b16 %v303
        %v455 = vunpack.c.l.b16 %v304
        %v456 = vunpack.c.h.b16 %v304
        %v457 = vunpack.c.l.b16 %v305
        %v458 = vunpack.c.h.b16 %v305
        %v459 = vunpack.c.l.b16 %v306
        %v460 = vunpack.c.h.b16 %v306
        %v461 = vunpack.c.l.b16 %v307
        %v462 = vunpack.c.h.b16 %v307
        %v463 = vunpack.c.l.b16 %v308
        %v464 = vunpack.c.h.b16 %v308
        %v465 = vunpack.c.l.b16 %v309
        %v466 = vunpack.c.h.b16 %v309
        %v467 = vunpack.c.l.b16 %v310
        %v468 = vunpack.c.h.b16 %v310
        %v469 = vpack.c.b16 %v439, %v437
        %v470 = vpack.c.b16 %v440, %v438
        %v471 = vpack.c.b16 %v443, %v441
        %v472 = vpack.c.b16 %v444, %v442
        %v473 = vpack.c.b16 %v447, %v445
        %v474 = vpack.c.b16 %v448, %v446
        %v475 = vpack.c.b16 %v451, %v449
        %v476 = vpack.c.b16 %v452, %v450
        %v477 = vpack.c.b16 %v455, %v453
        %v478 = vpack.c.b16 %v456, %v454
        %v479 = vpack.c.b16 %v459, %v457
        %v480 = vpack.c.b16 %v460, %v458
        %v481 = vpack.c.b16 %v463, %v461
        %v482 = vpack.c.b16 %v464, %v462
        %v483 = vpack.c.b16 %v467, %v465
        %v484 = vpack.c.b16 %v468, %v466
        %v517 = vunpack.c.l.b16 %v397
        %v518 = vunpack.c.l.b16 %v398
        %v519 = vunpack.c.l.b16 %v399
        %v520 = vunpack.c.l.b16 %v400
        %v521 = vunpack.c.l.b16 %v401
        %v522 = vunpack.c.l.b16 %v402
        %v523 = vunpack.c.l.b16 %v403
        %v524 = vunpack.c.l.b16 %v404
        %v525 = vunpack.c.l.b16 %v405
        %v526 = vunpack.c.l.b16 %v406
        %v527 = vunpack.c.l.b16 %v407
        %v528 = vunpack.c.l.b16 %v408
        %v529 = vunpack.c.l.b16 %v409
        %v530 = vunpack.c.l.b16 %v410
        %v531 = vunpack.c.l.b16 %v411
        %v532 = vunpack.c.l.b16 %v412
        %v533 = vunpack.c.l.b16 %v413
        %v534 = vunpack.c.l.b16 %v414
        %v535 = vunpack.c.l.b16 %v415
        %v536 = vunpack.c.l.b16 %v416
        %v537 = vunpack.c.l.b16 %v417
        %v538 = vunpack.c.l.b16 %v418
        %v539 = vunpack.c.l.b16 %v419
        %v540 = vunpack.c.l.b16 %v420
        %v541 = vpack.c.b16 %v518, %v517
        %v542 = vpack.c.b16 %v520, %v519
        %v543 = vpack.c.b16 %v522, %v521
        %v544 = vpack.c.b16 %v524, %v523
        %v545 = vpack.c.b16 %v526, %v525
        %v546 = vpack.c.b16 %v528, %v527
        %v547 = vpack.c.b16 %v530, %v529
        %v548 = vpack.c.b16 %v532, %v531
        %v549 = vpack.c.b16 %v534, %v533
        %v550 = vpack.c.b16 %v536, %v535
        %v551 = vpack.c.b16 %v538, %v537
        %v552 = vpack.c.b16 %v540, %v539
        %553 = vrot.lane.b32.xlu0 %v541, 127
        %v554 = vpop.permute.xlu0 %553
        %555 = vrot.lane.b32.xlu0 %v542, 127
        %v556 = vpop.permute.xlu0 %555
        %557 = vrot.lane.b32.xlu0 %v543, 127
        %v558 = vpop.permute.xlu0 %557
        %559 = vrot.lane.b32.xlu0 %v544, 127
        %v560 = vpop.permute.xlu0 %559
        %561 = vrot.lane.b32.xlu0 %v545, 127
        %v562 = vpop.permute.xlu0 %561
        %563 = vrot.lane.b32.xlu0 %v546, 127
        %v564 = vpop.permute.xlu0 %563
        %565 = vrot.lane.b32.xlu0 %v547, 127
        %v566 = vpop.permute.xlu0 %565
        %567 = vrot.lane.b32.xlu0 %v548, 127
        %v568 = vpop.permute.xlu0 %567
        %569 = vrot.lane.b32.xlu0 %v549, 127
        %v570 = vpop.permute.xlu0 %569
        %571 = vrot.lane.b32.xlu0 %v550, 127
        %v572 = vpop.permute.xlu0 %571
        %573 = vrot.lane.b32.xlu0 %v551, 127
        %v574 = vpop.permute.xlu0 %573
        %575 = vrot.lane.b32.xlu0 %v552, 127
        %v576 = vpop.permute.xlu0 %575
        %vm589 = vcmask 523264
        %v591 = vsel %vm589, %v470, 0
        %v594 = vsel %vm589, %v472, 0
        %v597 = vsel %vm589, %v474, 0
        %v600 = vsel %vm589, %v476, 0
        %v603 = vsel %vm589, %v478, 0
        %v606 = vsel %vm589, %v480, 0
        %v609 = vsel %vm589, %v482, 0
        %v612 = vsel %vm589, %v484, 0
        %614 = vmatprep.subr.bf16.mxu0 0
        %615 = vmatpush1.bf16.msra.mxu0 %v568
        %616 = vmatprep.subr.bf16.mxu0 0
        %617 = vmatpush1.bf16.msra.mxu0 %v566
        %618 = vmatprep.subr.bf16.mxu0 0
        %619 = vmatpush1.bf16.msra.mxu0 %v564
        %620 = vmatprep.subr.bf16.mxu0 0
        %621 = vmatpush1.bf16.msra.mxu0 %v562
        %622 = vmatprep.subr.bf16.mxu0 0
        %623 = vmatpush1.bf16.msra.mxu0 %v560
        %624 = vmatprep.subr.bf16.mxu0 0
        %625 = vmatpush1.bf16.msra.mxu0 %v558
        %626 = vmatprep.subr.bf16.mxu0 0
        %627 = vmatpush1.bf16.msra.mxu0 %v556
        %628 = vmatprep.subr.bf16.mxu0 0
        %629 = vmatpush1.bf16.msra.mxu0 %v554
        %630 = vmatprep.subr.bf16.mxu0 0
        %631 = vmatpush2.bf16.msra.mxu0 0
        %632 = vmatprep.subr.bf16.mxu0 0
        %633 = vmatpush2.bf16.msra.mxu0 0
        %634 = vmatprep.subr.bf16.mxu0 0
        %635 = vmatpush2.bf16.msra.mxu0 0
        %636 = vmatprep.subr.bf16.mxu0 0
        %637 = vmatpush2.bf16.msra.mxu0 0
        %638 = vmatprep.subr.bf16.mxu0 0
        %639 = vmatpush2.bf16.msra.mxu0 %v576
        %640 = vmatprep.subr.bf16.mxu0 0
        %641 = vmatpush2.bf16.msra.mxu0 %v574
        %642 = vmatprep.subr.bf16.mxu0 0
        %643 = vmatpush2.bf16.msra.mxu0 %v572
        %644 = vmatprep.subr.bf16.mxu0 0
        %645 = vmatpush2.bf16.msra.mxu0 %v570
        %646 = vmatprep.mubr.bf16.mxu0 %v591
        %647 = vmatmul.mubr.bf16.gmra.mxu0 %v469
        %v648 = vpop.f32.mrf.mxu0
        %v649 = vadd.f32 0.0, %v648
        %v650 = vpop.f32.mrf.mxu0
        %v651 = vpop.f32.mrf.mxu0
        %v652 = vadd.f32 0.0, %v651
        %v653 = vpop.f32.mrf.mxu0
        %654 = vmatprep.mubr.bf16.mxu0 %v594
        %655 = vmatmul.mubr.bf16.gmra.mxu0 %v471
        %v656 = vpop.f32.mrf.mxu0
        %v657 = vadd.f32 0.0, %v656
        %v658 = vpop.f32.mrf.mxu0
        %v659 = vpop.f32.mrf.mxu0
        %v660 = vadd.f32 0.0, %v659
        %v661 = vpop.f32.mrf.mxu0
        %662 = vmatprep.mubr.bf16.mxu0 %v597
        %663 = vmatmul.mubr.bf16.gmra.mxu0 %v473
        %v664 = vpop.f32.mrf.mxu0
        %v665 = vadd.f32 0.0, %v664
        %v666 = vpop.f32.mrf.mxu0
        %v667 = vpop.f32.mrf.mxu0
        %v668 = vadd.f32 0.0, %v667
        %v669 = vpop.f32.mrf.mxu0
        %670 = vmatprep.mubr.bf16.mxu0 %v600
        %671 = vmatmul.mubr.bf16.gmra.mxu0 %v475
        %v672 = vpop.f32.mrf.mxu0
        %v673 = vadd.f32 0.0, %v672
        %v674 = vpop.f32.mrf.mxu0
        %v675 = vpop.f32.mrf.mxu0
        %v676 = vadd.f32 0.0, %v675
        %v677 = vpop.f32.mrf.mxu0
        %678 = vmatprep.mubr.bf16.mxu0 %v603
        %679 = vmatmul.mubr.bf16.gmra.mxu0 %v477
        %v680 = vpop.f32.mrf.mxu0
        %v681 = vadd.f32 0.0, %v680
        %v682 = vpop.f32.mrf.mxu0
        %v683 = vpop.f32.mrf.mxu0
        %v684 = vadd.f32 0.0, %v683
        %v685 = vpop.f32.mrf.mxu0
        %686 = vmatprep.mubr.bf16.mxu0 %v606
        %687 = vmatmul.mubr.bf16.gmra.mxu0 %v479
        %v688 = vpop.f32.mrf.mxu0
        %v689 = vadd.f32 0.0, %v688
        %v690 = vpop.f32.mrf.mxu0
        %v691 = vpop.f32.mrf.mxu0
        %v692 = vadd.f32 0.0, %v691
        %v693 = vpop.f32.mrf.mxu0
        %694 = vmatprep.mubr.bf16.mxu0 %v609
        %695 = vmatmul.mubr.bf16.gmra.mxu0 %v481
        %v696 = vpop.f32.mrf.mxu0
        %v697 = vadd.f32 0.0, %v696
        %v698 = vpop.f32.mrf.mxu0
        %v699 = vpop.f32.mrf.mxu0
        %v700 = vadd.f32 0.0, %v699
        %v701 = vpop.f32.mrf.mxu0
        %702 = vmatprep.mubr.bf16.mxu0 %v612
        %703 = vmatmul.mubr.bf16.gmra.mxu0 %v483
        %v704 = vpop.f32.mrf.mxu0
        %v705 = vadd.f32 0.0, %v704
        %v706 = vpop.f32.mrf.mxu0
        %v707 = vpop.f32.mrf.mxu0
        %v708 = vadd.f32 0.0, %v707
        %v709 = vpop.f32.mrf.mxu0
        %710 = vdwg.mxu0
        %v727 = vunpack.c.l.b16 %v278
        %v728 = vunpack.c.h.b16 %v278
        %v729 = vunpack.c.l.b16 %v279
        %v730 = vunpack.c.h.b16 %v279
        %v731 = vunpack.c.l.b16 %v280
        %v732 = vunpack.c.h.b16 %v280
        %v733 = vunpack.c.l.b16 %v281
        %v734 = vunpack.c.h.b16 %v281
        %v735 = vunpack.c.l.b16 %v282
        %v736 = vunpack.c.h.b16 %v282
        %v737 = vunpack.c.l.b16 %v283
        %v738 = vunpack.c.h.b16 %v283
        %v739 = vunpack.c.l.b16 %v284
        %v740 = vunpack.c.h.b16 %v284
        %v741 = vunpack.c.l.b16 %v285
        %v742 = vunpack.c.h.b16 %v285
        %v743 = vunpack.c.l.b16 %v286
        %v744 = vunpack.c.h.b16 %v286
        %v745 = vunpack.c.l.b16 %v287
        %v746 = vunpack.c.h.b16 %v287
        %v747 = vunpack.c.l.b16 %v288
        %v748 = vunpack.c.h.b16 %v288
        %v749 = vunpack.c.l.b16 %v289
        %v750 = vunpack.c.h.b16 %v289
        %v751 = vunpack.c.l.b16 %v290
        %v752 = vunpack.c.h.b16 %v290
        %v753 = vunpack.c.l.b16 %v291
        %v754 = vunpack.c.h.b16 %v291
        %v755 = vunpack.c.l.b16 %v292
        %v756 = vunpack.c.h.b16 %v292
        %v757 = vunpack.c.l.b16 %v293
        %v758 = vunpack.c.h.b16 %v293
        %v759 = vpack.c.b16 %v729, %v727
        %v760 = vpack.c.b16 %v730, %v728
        %v761 = vpack.c.b16 %v733, %v731
        %v762 = vpack.c.b16 %v734, %v732
        %v763 = vpack.c.b16 %v737, %v735
        %v764 = vpack.c.b16 %v738, %v736
        %v765 = vpack.c.b16 %v741, %v739
        %v766 = vpack.c.b16 %v742, %v740
        %v767 = vpack.c.b16 %v745, %v743
        %v768 = vpack.c.b16 %v746, %v744
        %v769 = vpack.c.b16 %v749, %v747
        %v770 = vpack.c.b16 %v750, %v748
        %v771 = vpack.c.b16 %v753, %v751
        %v772 = vpack.c.b16 %v754, %v752
        %v773 = vpack.c.b16 %v757, %v755
        %v774 = vpack.c.b16 %v758, %v756
        %v796 = vsel %vm589, %v760, 0
        %v799 = vsel %vm589, %v762, 0
        %v802 = vsel %vm589, %v764, 0
        %v805 = vsel %vm589, %v766, 0
        %v808 = vsel %vm589, %v768, 0
        %v811 = vsel %vm589, %v770, 0
        %v814 = vsel %vm589, %v772, 0
        %v817 = vsel %vm589, %v774, 0
        %819 = vmatprep.subr.bf16.mxu0 0
        %820 = vmatpush1.bf16.msra.mxu0 %v548
        %821 = vmatprep.subr.bf16.mxu0 0
        %822 = vmatpush1.bf16.msra.mxu0 %v547
        %823 = vmatprep.subr.bf16.mxu0 0
        %824 = vmatpush1.bf16.msra.mxu0 %v546
        %825 = vmatprep.subr.bf16.mxu0 0
        %826 = vmatpush1.bf16.msra.mxu0 %v545
        %827 = vmatprep.subr.bf16.mxu0 0
        %828 = vmatpush1.bf16.msra.mxu0 %v544
        %829 = vmatprep.subr.bf16.mxu0 0
        %830 = vmatpush1.bf16.msra.mxu0 %v543
        %831 = vmatprep.subr.bf16.mxu0 0
        %832 = vmatpush1.bf16.msra.mxu0 %v542
        %833 = vmatprep.subr.bf16.mxu0 0
        %834 = vmatpush1.bf16.msra.mxu0 %v541
        %835 = vmatprep.subr.bf16.mxu0 0
        %836 = vmatpush2.bf16.msra.mxu0 0
        %837 = vmatprep.subr.bf16.mxu0 0
        %838 = vmatpush2.bf16.msra.mxu0 0
        %839 = vmatprep.subr.bf16.mxu0 0
        %840 = vmatpush2.bf16.msra.mxu0 0
        %841 = vmatprep.subr.bf16.mxu0 0
        %842 = vmatpush2.bf16.msra.mxu0 0
        %843 = vmatprep.subr.bf16.mxu0 0
        %844 = vmatpush2.bf16.msra.mxu0 %v552
        %845 = vmatprep.subr.bf16.mxu0 0
        %846 = vmatpush2.bf16.msra.mxu0 %v551
        %847 = vmatprep.subr.bf16.mxu0 0
        %848 = vmatpush2.bf16.msra.mxu0 %v550
        %849 = vmatprep.subr.bf16.mxu0 0
        %850 = vmatpush2.bf16.msra.mxu0 %v549
        %851 = vmatprep.mubr.bf16.mxu0 %v796
        %852 = vmatmul.mubr.bf16.gmra.mxu0 %v759
        %v853 = vpop.f32.mrf.mxu0
        %v854 = vadd.f32 %v649, %v853
        %v855 = vpop.f32.mrf.mxu0
        %v856 = vpop.f32.mrf.mxu0
        %v857 = vadd.f32 %v652, %v856
        %v858 = vpop.f32.mrf.mxu0
        %859 = vmatprep.mubr.bf16.mxu0 %v799
        %860 = vmatmul.mubr.bf16.gmra.mxu0 %v761
        %v861 = vpop.f32.mrf.mxu0
        %v862 = vadd.f32 %v657, %v861
        %v863 = vpop.f32.mrf.mxu0
        %v864 = vpop.f32.mrf.mxu0
        %v865 = vadd.f32 %v660, %v864
        %v866 = vpop.f32.mrf.mxu0
        %867 = vmatprep.mubr.bf16.mxu0 %v802
        %868 = vmatmul.mubr.bf16.gmra.mxu0 %v763
        %v869 = vpop.f32.mrf.mxu0
        %v870 = vadd.f32 %v665, %v869
        %v871 = vpop.f32.mrf.mxu0
        %v872 = vpop.f32.mrf.mxu0
        %v873 = vadd.f32 %v668, %v872
        %v874 = vpop.f32.mrf.mxu0
        %875 = vmatprep.mubr.bf16.mxu0 %v805
        %876 = vmatmul.mubr.bf16.gmra.mxu0 %v765
        %v877 = vpop.f32.mrf.mxu0
        %v878 = vadd.f32 %v673, %v877
        %v879 = vpop.f32.mrf.mxu0
        %v880 = vpop.f32.mrf.mxu0
        %v881 = vadd.f32 %v676, %v880
        %v882 = vpop.f32.mrf.mxu0
        %883 = vmatprep.mubr.bf16.mxu0 %v808
        %884 = vmatmul.mubr.bf16.gmra.mxu0 %v767
        %v885 = vpop.f32.mrf.mxu0
        %v886 = vadd.f32 %v681, %v885
        %v887 = vpop.f32.mrf.mxu0
        %v888 = vpop.f32.mrf.mxu0
        %v889 = vadd.f32 %v684, %v888
        %v890 = vpop.f32.mrf.mxu0
        %891 = vmatprep.mubr.bf16.mxu0 %v811
        %892 = vmatmul.mubr.bf16.gmra.mxu0 %v769
        %v893 = vpop.f32.mrf.mxu0
        %v894 = vadd.f32 %v689, %v893
        %v895 = vpop.f32.mrf.mxu0
        %v896 = vpop.f32.mrf.mxu0
        %v897 = vadd.f32 %v692, %v896
        %v898 = vpop.f32.mrf.mxu0
        %899 = vmatprep.mubr.bf16.mxu0 %v814
        %900 = vmatmul.mubr.bf16.gmra.mxu0 %v771
        %v901 = vpop.f32.mrf.mxu0
        %v902 = vadd.f32 %v697, %v901
        %v903 = vpop.f32.mrf.mxu0
        %v904 = vpop.f32.mrf.mxu0
        %v905 = vadd.f32 %v700, %v904
        %v906 = vpop.f32.mrf.mxu0
        %907 = vmatprep.mubr.bf16.mxu0 %v817
        %908 = vmatmul.mubr.bf16.gmra.mxu0 %v773
        %v909 = vpop.f32.mrf.mxu0
        %v910 = vadd.f32 %v705, %v909
        %v911 = vpop.f32.mrf.mxu0
        %v912 = vpop.f32.mrf.mxu0
        %v913 = vadd.f32 %v708, %v912
        %v914 = vpop.f32.mrf.mxu0
        %915 = vdwg.mxu0
        %v932 = vunpack.c.l.b16 %v312
        %v933 = vunpack.c.h.b16 %v312
        %v934 = vunpack.c.l.b16 %v313
        %v935 = vunpack.c.h.b16 %v313
        %v936 = vunpack.c.l.b16 %v314
        %v937 = vunpack.c.h.b16 %v314
        %v938 = vunpack.c.l.b16 %v315
        %v939 = vunpack.c.h.b16 %v315
        %v940 = vunpack.c.l.b16 %v316
        %v941 = vunpack.c.h.b16 %v316
        %v942 = vunpack.c.l.b16 %v317
        %v943 = vunpack.c.h.b16 %v317
        %v944 = vunpack.c.l.b16 %v318
        %v945 = vunpack.c.h.b16 %v318
        %v946 = vunpack.c.l.b16 %v319
        %v947 = vunpack.c.h.b16 %v319
        %v948 = vunpack.c.l.b16 %v320
        %v949 = vunpack.c.h.b16 %v320
        %v950 = vunpack.c.l.b16 %v321
        %v951 = vunpack.c.h.b16 %v321
        %v952 = vunpack.c.l.b16 %v322
        %v953 = vunpack.c.h.b16 %v322
        %v954 = vunpack.c.l.b16 %v323
        %v955 = vunpack.c.h.b16 %v323
        %v956 = vunpack.c.l.b16 %v324
        %v957 = vunpack.c.h.b16 %v324
        %v958 = vunpack.c.l.b16 %v325
        %v959 = vunpack.c.h.b16 %v325
        %v960 = vunpack.c.l.b16 %v326
        %v961 = vunpack.c.h.b16 %v326
        %v962 = vunpack.c.l.b16 %v327
        %v963 = vunpack.c.h.b16 %v327
        %v964 = vpack.c.b16 %v934, %v932
        %v965 = vpack.c.b16 %v935, %v933
        %v966 = vpack.c.b16 %v938, %v936
        %v967 = vpack.c.b16 %v939, %v937
        %v968 = vpack.c.b16 %v942, %v940
        %v969 = vpack.c.b16 %v943, %v941
        %v970 = vpack.c.b16 %v946, %v944
        %v971 = vpack.c.b16 %v947, %v945
        %v972 = vpack.c.b16 %v950, %v948
        %v973 = vpack.c.b16 %v951, %v949
        %v974 = vpack.c.b16 %v954, %v952
        %v975 = vpack.c.b16 %v955, %v953
        %v976 = vpack.c.b16 %v958, %v956
        %v977 = vpack.c.b16 %v959, %v957
        %v978 = vpack.c.b16 %v962, %v960
        %v979 = vpack.c.b16 %v963, %v961
        %988 = vrot.lane.b32.xlu0 %v541, 126
        %v989 = vpop.permute.xlu0 %988
        %990 = vrot.lane.b32.xlu0 %v542, 126
        %v991 = vpop.permute.xlu0 %990
        %992 = vrot.lane.b32.xlu0 %v543, 126
        %v993 = vpop.permute.xlu0 %992
        %994 = vrot.lane.b32.xlu0 %v544, 126
        %v995 = vpop.permute.xlu0 %994
        %996 = vrot.lane.b32.xlu0 %v545, 126
        %v997 = vpop.permute.xlu0 %996
        %998 = vrot.lane.b32.xlu0 %v546, 126
        %v999 = vpop.permute.xlu0 %998
        %1000 = vrot.lane.b32.xlu0 %v547, 126
        %v1001 = vpop.permute.xlu0 %1000
        %1002 = vrot.lane.b32.xlu0 %v548, 126
        %v1003 = vpop.permute.xlu0 %1002
        %1004 = vrot.lane.b32.xlu0 %v549, 126
        %v1005 = vpop.permute.xlu0 %1004
        %1006 = vrot.lane.b32.xlu0 %v550, 126
        %v1007 = vpop.permute.xlu0 %1006
        %1008 = vrot.lane.b32.xlu0 %v551, 126
        %v1009 = vpop.permute.xlu0 %1008
        %1010 = vrot.lane.b32.xlu0 %v552, 126
        %v1011 = vpop.permute.xlu0 %1010
        %v1025 = vsel %vm589, %v965, 0
        %v1028 = vsel %vm589, %v967, 0
        %v1031 = vsel %vm589, %v969, 0
        %v1034 = vsel %vm589, %v971, 0
        %v1037 = vsel %vm589, %v973, 0
        %v1040 = vsel %vm589, %v975, 0
        %v1043 = vsel %vm589, %v977, 0
        %v1046 = vsel %vm589, %v979, 0
        %1048 = vmatprep.subr.bf16.mxu0 0
        %1049 = vmatpush1.bf16.msra.mxu0 %v1003
        %1050 = vmatprep.subr.bf16.mxu0 0
        %1051 = vmatpush1.bf16.msra.mxu0 %v1001
        %1052 = vmatprep.subr.bf16.mxu0 0
        %1053 = vmatpush1.bf16.msra.mxu0 %v999
        %1054 = vmatprep.subr.bf16.mxu0 0
        %1055 = vmatpush1.bf16.msra.mxu0 %v997
        %1056 = vmatprep.subr.bf16.mxu0 0
        %1057 = vmatpush1.bf16.msra.mxu0 %v995
        %1058 = vmatprep.subr.bf16.mxu0 0
        %1059 = vmatpush1.bf16.msra.mxu0 %v993
        %1060 = vmatprep.subr.bf16.mxu0 0
        %1061 = vmatpush1.bf16.msra.mxu0 %v991
        %1062 = vmatprep.subr.bf16.mxu0 0
        %1063 = vmatpush1.bf16.msra.mxu0 %v989
        %1064 = vmatprep.subr.bf16.mxu0 0
        %1065 = vmatpush2.bf16.msra.mxu0 0
        %1066 = vmatprep.subr.bf16.mxu0 0
        %1067 = vmatpush2.bf16.msra.mxu0 0
        %1068 = vmatprep.subr.bf16.mxu0 0
        %1069 = vmatpush2.bf16.msra.mxu0 0
        %1070 = vmatprep.subr.bf16.mxu0 0
        %1071 = vmatpush2.bf16.msra.mxu0 0
        %1072 = vmatprep.subr.bf16.mxu0 0
        %1073 = vmatpush2.bf16.msra.mxu0 %v1011
        %1074 = vmatprep.subr.bf16.mxu0 0
        %1075 = vmatpush2.bf16.msra.mxu0 %v1009
        %1076 = vmatprep.subr.bf16.mxu0 0
        %1077 = vmatpush2.bf16.msra.mxu0 %v1007
        %1078 = vmatprep.subr.bf16.mxu0 0
        %1079 = vmatpush2.bf16.msra.mxu0 %v1005
        %1080 = vmatprep.mubr.bf16.mxu0 %v1025
        %1081 = vmatmul.mubr.bf16.gmra.mxu0 %v964
        %v1082 = vpop.f32.mrf.mxu0
        %v1083 = vadd.f32 0.0, %v1082
        %v1084 = vpop.f32.mrf.mxu0
        %v1085 = vpop.f32.mrf.mxu0
        %v1086 = vadd.f32 0.0, %v1085
        %v1087 = vpop.f32.mrf.mxu0
        %1088 = vmatprep.mubr.bf16.mxu0 %v1028
        %1089 = vmatmul.mubr.bf16.gmra.mxu0 %v966
        %v1090 = vpop.f32.mrf.mxu0
        %v1091 = vadd.f32 0.0, %v1090
        %v1092 = vpop.f32.mrf.mxu0
        %v1093 = vpop.f32.mrf.mxu0
        %v1094 = vadd.f32 0.0, %v1093
        %v1095 = vpop.f32.mrf.mxu0
        %1096 = vmatprep.mubr.bf16.mxu0 %v1031
        %1097 = vmatmul.mubr.bf16.gmra.mxu0 %v968
        %v1098 = vpop.f32.mrf.mxu0
        %v1099 = vadd.f32 0.0, %v1098
        %v1100 = vpop.f32.mrf.mxu0
        %v1101 = vpop.f32.mrf.mxu0
        %v1102 = vadd.f32 0.0, %v1101
        %v1103 = vpop.f32.mrf.mxu0
        %1104 = vmatprep.mubr.bf16.mxu0 %v1034
        %1105 = vmatmul.mubr.bf16.gmra.mxu0 %v970
        %v1106 = vpop.f32.mrf.mxu0
        %v1107 = vadd.f32 0.0, %v1106
        %v1108 = vpop.f32.mrf.mxu0
        %v1109 = vpop.f32.mrf.mxu0
        %v1110 = vadd.f32 0.0, %v1109
        %v1111 = vpop.f32.mrf.mxu0
        %1112 = vmatprep.mubr.bf16.mxu0 %v1037
        %1113 = vmatmul.mubr.bf16.gmra.mxu0 %v972
        %v1114 = vpop.f32.mrf.mxu0
        %v1115 = vadd.f32 0.0, %v1114
        %v1116 = vpop.f32.mrf.mxu0
        %v1117 = vpop.f32.mrf.mxu0
        %v1118 = vadd.f32 0.0, %v1117
        %v1119 = vpop.f32.mrf.mxu0
        %1120 = vmatprep.mubr.bf16.mxu0 %v1040
        %1121 = vmatmul.mubr.bf16.gmra.mxu0 %v974
        %v1122 = vpop.f32.mrf.mxu0
        %v1123 = vadd.f32 0.0, %v1122
        %v1124 = vpop.f32.mrf.mxu0
        %v1125 = vpop.f32.mrf.mxu0
        %v1126 = vadd.f32 0.0, %v1125
        %v1127 = vpop.f32.mrf.mxu0
        %1128 = vmatprep.mubr.bf16.mxu0 %v1043
        %1129 = vmatmul.mubr.bf16.gmra.mxu0 %v976
        %v1130 = vpop.f32.mrf.mxu0
        %v1131 = vadd.f32 0.0, %v1130
        %v1132 = vpop.f32.mrf.mxu0
        %v1133 = vpop.f32.mrf.mxu0
        %v1134 = vadd.f32 0.0, %v1133
        %v1135 = vpop.f32.mrf.mxu0
        %1136 = vmatprep.mubr.bf16.mxu0 %v1046
        %1137 = vmatmul.mubr.bf16.gmra.mxu0 %v978
        %v1138 = vpop.f32.mrf.mxu0
        %v1139 = vadd.f32 0.0, %v1138
        %v1140 = vpop.f32.mrf.mxu0
        %v1141 = vpop.f32.mrf.mxu0
        %v1142 = vadd.f32 0.0, %v1141
        %v1143 = vpop.f32.mrf.mxu0
        %1144 = vdwg.mxu0
        %v1145 = vadd.f32 %v854, %v1083
        %v1146 = vadd.f32 %v857, %v1086
        %v1147 = vadd.f32 %v862, %v1091
        %v1148 = vadd.f32 %v865, %v1094
        %v1149 = vadd.f32 %v870, %v1099
        %v1150 = vadd.f32 %v873, %v1102
        %v1151 = vadd.f32 %v878, %v1107
        %v1152 = vadd.f32 %v881, %v1110
        %v1153 = vadd.f32 %v886, %v1115
        %v1154 = vadd.f32 %v889, %v1118
        %v1155 = vadd.f32 %v894, %v1123
        %v1156 = vadd.f32 %v897, %v1126
        %v1157 = vadd.f32 %v902, %v1131
        %v1158 = vadd.f32 %v905, %v1134
        %v1159 = vadd.f32 %v910, %v1139
        %v1160 = vadd.f32 %v913, %v1142
        %1162 = vset.pattern.permute.xlu0 0
        %1163 = vperm.xlu0 %1162, %v328
        %v1164 = vpop.permute.xlu0 %1163
        %1167 = vset.pattern.permute.xlu0 0
        %1168 = vperm.xlu0 %1167, %v329
        %v1169 = vpop.permute.xlu0 %1168
        %1172 = vset.pattern.permute.xlu0 0
        %1173 = vperm.xlu0 %1172, %v330
        %v1174 = vpop.permute.xlu0 %1173
        %1177 = vset.pattern.permute.xlu0 0
        %1178 = vperm.xlu0 %1177, %v331
        %v1179 = vpop.permute.xlu0 %1178
        %1182 = vset.pattern.permute.xlu0 0
        %1183 = vperm.xlu0 %1182, %v332
        %v1184 = vpop.permute.xlu0 %1183
        %1187 = vset.pattern.permute.xlu0 0
        %1188 = vperm.xlu0 %1187, %v333
        %v1189 = vpop.permute.xlu0 %1188
        %1192 = vset.pattern.permute.xlu0 0
        %1193 = vperm.xlu0 %1192, %v334
        %v1194 = vpop.permute.xlu0 %1193
        %1197 = vset.pattern.permute.xlu0 0
        %1198 = vperm.xlu0 %1197, %v335
        %v1199 = vpop.permute.xlu0 %1198
        %1202 = vset.pattern.permute.xlu0 0
        %1203 = vperm.xlu0 %1202, %v336
        %v1204 = vpop.permute.xlu0 %1203
        %1207 = vset.pattern.permute.xlu0 0
        %1208 = vperm.xlu0 %1207, %v337
        %v1209 = vpop.permute.xlu0 %1208
        %1212 = vset.pattern.permute.xlu0 0
        %1213 = vperm.xlu0 %1212, %v338
        %v1214 = vpop.permute.xlu0 %1213
        %1217 = vset.pattern.permute.xlu0 0
        %1218 = vperm.xlu0 %1217, %v339
        %v1219 = vpop.permute.xlu0 %1218
        %1222 = vset.pattern.permute.xlu0 0
        %1223 = vperm.xlu0 %1222, %v340
        %v1224 = vpop.permute.xlu0 %1223
        %1227 = vset.pattern.permute.xlu0 0
        %1228 = vperm.xlu0 %1227, %v341
        %v1229 = vpop.permute.xlu0 %1228
        %1232 = vset.pattern.permute.xlu0 0
        %1233 = vperm.xlu0 %1232, %v342
        %v1234 = vpop.permute.xlu0 %1233
        %1237 = vset.pattern.permute.xlu0 0
        %1238 = vperm.xlu0 %1237, %v343
        %v1239 = vpop.permute.xlu0 %1238
        %v1241 = vadd.f32 %v1145, %v1164
        %v1242 = vadd.f32 %v1146, %v1169
        %v1243 = vadd.f32 %v1147, %v1174
        %v1244 = vadd.f32 %v1148, %v1179
        %v1245 = vadd.f32 %v1149, %v1184
        %v1246 = vadd.f32 %v1150, %v1189
        %v1247 = vadd.f32 %v1151, %v1194
        %v1248 = vadd.f32 %v1152, %v1199
        %v1249 = vadd.f32 %v1153, %v1204
        %v1250 = vadd.f32 %v1154, %v1209
        %v1251 = vadd.f32 %v1155, %v1214
        %v1252 = vadd.f32 %v1156, %v1219
        %v1253 = vadd.f32 %v1157, %v1224
        %v1254 = vadd.f32 %v1158, %v1229
        %v1255 = vadd.f32 %v1159, %v1234
        %v1256 = vadd.f32 %v1160, %v1239
        %v1257 = vmax.f32 %v1241, 0.0
        %v1258 = vmax.f32 %v1242, 0.0
        %v1259 = vmax.f32 %v1243, 0.0
        %v1260 = vmax.f32 %v1244, 0.0
        %v1261 = vmax.f32 %v1245, 0.0
        %v1262 = vmax.f32 %v1246, 0.0
        %v1263 = vmax.f32 %v1247, 0.0
        %v1264 = vmax.f32 %v1248, 0.0
        %v1265 = vmax.f32 %v1249, 0.0
        %v1266 = vmax.f32 %v1250, 0.0
        %v1267 = vmax.f32 %v1251, 0.0
        %v1268 = vmax.f32 %v1252, 0.0
        %v1269 = vmax.f32 %v1253, 0.0
        %v1270 = vmax.f32 %v1254, 0.0
        %v1271 = vmax.f32 %v1255, 0.0
        %v1272 = vmax.f32 %v1256, 0.0
        %1274 = vset.pattern.permute.xlu0 0
        %1275 = vperm.xlu0 %1274, %v344
        %v1276 = vpop.permute.xlu0 %1275
        %1279 = vset.pattern.permute.xlu0 0
        %1280 = vperm.xlu0 %1279, %v345
        %v1281 = vpop.permute.xlu0 %1280
        %1284 = vset.pattern.permute.xlu0 0
        %1285 = vperm.xlu0 %1284, %v346
        %v1286 = vpop.permute.xlu0 %1285
        %1289 = vset.pattern.permute.xlu0 0
        %1290 = vperm.xlu0 %1289, %v347
        %v1291 = vpop.permute.xlu0 %1290
        %1294 = vset.pattern.permute.xlu0 0
        %1295 = vperm.xlu0 %1294, %v348
        %v1296 = vpop.permute.xlu0 %1295
        %1299 = vset.pattern.permute.xlu0 0
        %1300 = vperm.xlu0 %1299, %v349
        %v1301 = vpop.permute.xlu0 %1300
        %1304 = vset.pattern.permute.xlu0 0
        %1305 = vperm.xlu0 %1304, %v350
        %v1306 = vpop.permute.xlu0 %1305
        %1309 = vset.pattern.permute.xlu0 0
        %1310 = vperm.xlu0 %1309, %v351
        %v1311 = vpop.permute.xlu0 %1310
        %1314 = vset.pattern.permute.xlu0 0
        %1315 = vperm.xlu0 %1314, %v352
        %v1316 = vpop.permute.xlu0 %1315
        %1319 = vset.pattern.permute.xlu0 0
        %1320 = vperm.xlu0 %1319, %v353
        %v1321 = vpop.permute.xlu0 %1320
        %1324 = vset.pattern.permute.xlu0 0
        %1325 = vperm.xlu0 %1324, %v354
        %v1326 = vpop.permute.xlu0 %1325
        %1329 = vset.pattern.permute.xlu0 0
        %1330 = vperm.xlu0 %1329, %v355
        %v1331 = vpop.permute.xlu0 %1330
        %1334 = vset.pattern.permute.xlu0 0
        %1335 = vperm.xlu0 %1334, %v356
        %v1336 = vpop.permute.xlu0 %1335
        %1339 = vset.pattern.permute.xlu0 0
        %1340 = vperm.xlu0 %1339, %v357
        %v1341 = vpop.permute.xlu0 %1340
        %1344 = vset.pattern.permute.xlu0 0
        %1345 = vperm.xlu0 %1344, %v358
        %v1346 = vpop.permute.xlu0 %1345
        %1349 = vset.pattern.permute.xlu0 0
        %1350 = vperm.xlu0 %1349, %v359
        %v1351 = vpop.permute.xlu0 %1350
        %v1353 = vmul.f32 %v1257, %v1276
        %v1354 = vmul.f32 %v1258, %v1281
        %v1355 = vmul.f32 %v1259, %v1286
        %v1356 = vmul.f32 %v1260, %v1291
        %v1357 = vmul.f32 %v1261, %v1296
        %v1358 = vmul.f32 %v1262, %v1301
        %v1359 = vmul.f32 %v1263, %v1306
        %v1360 = vmul.f32 %v1264, %v1311
        %v1361 = vmul.f32 %v1265, %v1316
        %v1362 = vmul.f32 %v1266, %v1321
        %v1363 = vmul.f32 %v1267, %v1326
        %v1364 = vmul.f32 %v1268, %v1331
        %v1365 = vmul.f32 %v1269, %v1336
        %v1366 = vmul.f32 %v1270, %v1341
        %v1367 = vmul.f32 %v1271, %v1346
        %v1368 = vmul.f32 %v1272, %v1351
        %1370 = vset.pattern.permute.xlu0 0
        %1371 = vperm.xlu0 %1370, %v360
        %v1372 = vpop.permute.xlu0 %1371
        %1375 = vset.pattern.permute.xlu0 0
        %1376 = vperm.xlu0 %1375, %v361
        %v1377 = vpop.permute.xlu0 %1376
        %1380 = vset.pattern.permute.xlu0 0
        %1381 = vperm.xlu0 %1380, %v362
        %v1382 = vpop.permute.xlu0 %1381
        %1385 = vset.pattern.permute.xlu0 0
        %1386 = vperm.xlu0 %1385, %v363
        %v1387 = vpop.permute.xlu0 %1386
        %1390 = vset.pattern.permute.xlu0 0
        %1391 = vperm.xlu0 %1390, %v364
        %v1392 = vpop.permute.xlu0 %1391
        %1395 = vset.pattern.permute.xlu0 0
        %1396 = vperm.xlu0 %1395, %v365
        %v1397 = vpop.permute.xlu0 %1396
        %1400 = vset.pattern.permute.xlu0 0
        %1401 = vperm.xlu0 %1400, %v366
        %v1402 = vpop.permute.xlu0 %1401
        %1405 = vset.pattern.permute.xlu0 0
        %1406 = vperm.xlu0 %1405, %v367
        %v1407 = vpop.permute.xlu0 %1406
        %1410 = vset.pattern.permute.xlu0 0
        %1411 = vperm.xlu0 %1410, %v368
        %v1412 = vpop.permute.xlu0 %1411
        %1415 = vset.pattern.permute.xlu0 0
        %1416 = vperm.xlu0 %1415, %v369
        %v1417 = vpop.permute.xlu0 %1416
        %1420 = vset.pattern.permute.xlu0 0
        %1421 = vperm.xlu0 %1420, %v370
        %v1422 = vpop.permute.xlu0 %1421
        %1425 = vset.pattern.permute.xlu0 0
        %1426 = vperm.xlu0 %1425, %v371
        %v1427 = vpop.permute.xlu0 %1426
        %1430 = vset.pattern.permute.xlu0 0
        %1431 = vperm.xlu0 %1430, %v372
        %v1432 = vpop.permute.xlu0 %1431
        %1435 = vset.pattern.permute.xlu0 0
        %1436 = vperm.xlu0 %1435, %v373
        %v1437 = vpop.permute.xlu0 %1436
        %1440 = vset.pattern.permute.xlu0 0
        %1441 = vperm.xlu0 %1440, %v374
        %v1442 = vpop.permute.xlu0 %1441
        %1445 = vset.pattern.permute.xlu0 0
        %1446 = vperm.xlu0 %1445, %v375
        %v1447 = vpop.permute.xlu0 %1446
        %v1449 = vadd.f32 %v1353, %v1372
        %v1450 = vadd.f32 %v1354, %v1377
        %v1451 = vadd.f32 %v1355, %v1382
        %v1452 = vadd.f32 %v1356, %v1387
        %v1453 = vadd.f32 %v1357, %v1392
        %v1454 = vadd.f32 %v1358, %v1397
        %v1455 = vadd.f32 %v1359, %v1402
        %v1456 = vadd.f32 %v1360, %v1407
        %v1457 = vadd.f32 %v1361, %v1412
        %v1458 = vadd.f32 %v1362, %v1417
        %v1459 = vadd.f32 %v1363, %v1422
        %v1460 = vadd.f32 %v1364, %v1427
        %v1461 = vadd.f32 %v1365, %v1432
        %v1462 = vadd.f32 %v1366, %v1437
        %v1463 = vadd.f32 %v1367, %v1442
        %v1464 = vadd.f32 %v1368, %v1447
        %s1465 = sadd.s32 %s391, 1
        %s1466 = smul.u32 %s1465, 64
        %s1467 = sshra.s32 %s1466, 3
        %s1468 = sand.u32 %s1466, 7
        %s1469 = smul.addr %s1467, 4
        %s1470 = scalar_lea.vmem %s265, %s1469
        %v1471 = vld [vmem:[%s1470] sm:$0xf]
        %v1472 = vld [vmem:[%s1470 + $0x4] sm:$0xf]
        %v1473 = vld [vmem:[%s1470 + $0x8] sm:$0xf]
        %v1474 = vld [vmem:[%s1470 + $0xc] sm:$0xf]
        %v1475 = vld [vmem:[%s1470 + $0x10] sm:$0xf]
        %v1476 = vld [vmem:[%s1470 + $0x14] sm:$0xf]
        %v1477 = vld [vmem:[%s1470 + $0x18] sm:$0xf]
        %v1478 = vld [vmem:[%s1470 + $0x1c] sm:$0xf]
        %v1479 = vld [vmem:[%s1470 + $0x20] sm:$0xf]
        %v1480 = vld [vmem:[%s1470 + $0x24] sm:$0xf]
        %v1481 = vld [vmem:[%s1470 + $0x28] sm:$0xf]
        %v1482 = vld [vmem:[%s1470 + $0x2c] sm:$0xf]
        %v1483 = vld [vmem:[%s1470 + $0x30] sm:$0xf]
        %v1484 = vld [vmem:[%s1470 + $0x34] sm:$0xf]
        %v1485 = vld [vmem:[%s1470 + $0x38] sm:$0xf]
        %v1486 = vld [vmem:[%s1470 + $0x3c] sm:$0xf]
        %v1487 = vld [vmem:[%s1470 + $0x40] sm:$0xf]
        %v1488 = vld [vmem:[%s1470 + $0x44] sm:$0xf]
        %v1489 = vld [vmem:[%s1470 + $0x48] sm:$0xf]
        %v1490 = vld [vmem:[%s1470 + $0x4c] sm:$0xf]
        %v1491 = vld [vmem:[%s1470 + $0x50] sm:$0xf]
        %v1492 = vld [vmem:[%s1470 + $0x54] sm:$0xf]
        %v1493 = vld [vmem:[%s1470 + $0x58] sm:$0xf]
        %v1494 = vld [vmem:[%s1470 + $0x5c] sm:$0xf]
        %v1519 = vunpack.c.l.b16 %v1471
        %v1520 = vunpack.c.l.b16 %v1472
        %v1521 = vunpack.c.l.b16 %v1473
        %v1522 = vunpack.c.l.b16 %v1474
        %v1523 = vunpack.c.l.b16 %v1475
        %v1524 = vunpack.c.l.b16 %v1476
        %v1525 = vunpack.c.l.b16 %v1477
        %v1526 = vunpack.c.l.b16 %v1478
        %v1527 = vunpack.c.l.b16 %v1479
        %v1528 = vunpack.c.l.b16 %v1480
        %v1529 = vunpack.c.l.b16 %v1481
        %v1530 = vunpack.c.l.b16 %v1482
        %v1531 = vunpack.c.l.b16 %v1483
        %v1532 = vunpack.c.l.b16 %v1484
        %v1533 = vunpack.c.l.b16 %v1485
        %v1534 = vunpack.c.l.b16 %v1486
        %v1535 = vunpack.c.l.b16 %v1487
        %v1536 = vunpack.c.l.b16 %v1488
        %v1537 = vunpack.c.l.b16 %v1489
        %v1538 = vunpack.c.l.b16 %v1490
        %v1539 = vunpack.c.l.b16 %v1491
        %v1540 = vunpack.c.l.b16 %v1492
        %v1541 = vunpack.c.l.b16 %v1493
        %v1542 = vunpack.c.l.b16 %v1494
        %v1543 = vpack.c.b16 %v1520, %v1519
        %v1544 = vpack.c.b16 %v1522, %v1521
        %v1545 = vpack.c.b16 %v1524, %v1523
        %v1546 = vpack.c.b16 %v1526, %v1525
        %v1547 = vpack.c.b16 %v1528, %v1527
        %v1548 = vpack.c.b16 %v1530, %v1529
        %v1549 = vpack.c.b16 %v1532, %v1531
        %v1550 = vpack.c.b16 %v1534, %v1533
        %v1551 = vpack.c.b16 %v1536, %v1535
        %v1552 = vpack.c.b16 %v1538, %v1537
        %v1553 = vpack.c.b16 %v1540, %v1539
        %v1554 = vpack.c.b16 %v1542, %v1541
        %1555 = vrot.lane.b32.xlu0 %v1543, 127
        %v1556 = vpop.permute.xlu0 %1555
        %1557 = vrot.lane.b32.xlu0 %v1544, 127
        %v1558 = vpop.permute.xlu0 %1557
        %1559 = vrot.lane.b32.xlu0 %v1545, 127
        %v1560 = vpop.permute.xlu0 %1559
        %1561 = vrot.lane.b32.xlu0 %v1546, 127
        %v1562 = vpop.permute.xlu0 %1561
        %1563 = vrot.lane.b32.xlu0 %v1547, 127
        %v1564 = vpop.permute.xlu0 %1563
        %1565 = vrot.lane.b32.xlu0 %v1548, 127
        %v1566 = vpop.permute.xlu0 %1565
        %1567 = vrot.lane.b32.xlu0 %v1549, 127
        %v1568 = vpop.permute.xlu0 %1567
        %1569 = vrot.lane.b32.xlu0 %v1550, 127
        %v1570 = vpop.permute.xlu0 %1569
        %1571 = vrot.lane.b32.xlu0 %v1551, 127
        %v1572 = vpop.permute.xlu0 %1571
        %1573 = vrot.lane.b32.xlu0 %v1552, 127
        %v1574 = vpop.permute.xlu0 %1573
        %1575 = vrot.lane.b32.xlu0 %v1553, 127
        %v1576 = vpop.permute.xlu0 %1575
        %1577 = vrot.lane.b32.xlu0 %v1554, 127
        %v1578 = vpop.permute.xlu0 %1577
        %1591 = vmatprep.subr.bf16.mxu0 0
        %1592 = vmatpush1.bf16.msra.mxu0 %v1570
        %1593 = vmatprep.subr.bf16.mxu0 0
        %1594 = vmatpush1.bf16.msra.mxu0 %v1568
        %1595 = vmatprep.subr.bf16.mxu0 0
        %1596 = vmatpush1.bf16.msra.mxu0 %v1566
        %1597 = vmatprep.subr.bf16.mxu0 0
        %1598 = vmatpush1.bf16.msra.mxu0 %v1564
        %1599 = vmatprep.subr.bf16.mxu0 0
        %1600 = vmatpush1.bf16.msra.mxu0 %v1562
        %1601 = vmatprep.subr.bf16.mxu0 0
        %1602 = vmatpush1.bf16.msra.mxu0 %v1560
        %1603 = vmatprep.subr.bf16.mxu0 0
        %1604 = vmatpush1.bf16.msra.mxu0 %v1558
        %1605 = vmatprep.subr.bf16.mxu0 0
        %1606 = vmatpush1.bf16.msra.mxu0 %v1556
        %1607 = vmatprep.subr.bf16.mxu0 0
        %1608 = vmatpush2.bf16.msra.mxu0 0
        %1609 = vmatprep.subr.bf16.mxu0 0
        %1610 = vmatpush2.bf16.msra.mxu0 0
        %1611 = vmatprep.subr.bf16.mxu0 0
        %1612 = vmatpush2.bf16.msra.mxu0 0
        %1613 = vmatprep.subr.bf16.mxu0 0
        %1614 = vmatpush2.bf16.msra.mxu0 0
        %1615 = vmatprep.subr.bf16.mxu0 0
        %1616 = vmatpush2.bf16.msra.mxu0 %v1578
        %1617 = vmatprep.subr.bf16.mxu0 0
        %1618 = vmatpush2.bf16.msra.mxu0 %v1576
        %1619 = vmatprep.subr.bf16.mxu0 0
        %1620 = vmatpush2.bf16.msra.mxu0 %v1574
        %1621 = vmatprep.subr.bf16.mxu0 0
        %1622 = vmatpush2.bf16.msra.mxu0 %v1572
        %1623 = vmatprep.mubr.bf16.mxu0 %v591
        %1624 = vmatmul.mubr.bf16.gmra.mxu0 %v469
        %v1625 = vpop.f32.mrf.mxu0
        %v1626 = vadd.f32 0.0, %v1625
        %v1627 = vpop.f32.mrf.mxu0
        %v1628 = vpop.f32.mrf.mxu0
        %v1629 = vadd.f32 0.0, %v1628
        %v1630 = vpop.f32.mrf.mxu0
        %1631 = vmatprep.mubr.bf16.mxu0 %v594
        %1632 = vmatmul.mubr.bf16.gmra.mxu0 %v471
        %v1633 = vpop.f32.mrf.mxu0
        %v1634 = vadd.f32 0.0, %v1633
        %v1635 = vpop.f32.mrf.mxu0
        %v1636 = vpop.f32.mrf.mxu0
        %v1637 = vadd.f32 0.0, %v1636
        %v1638 = vpop.f32.mrf.mxu0
        %1639 = vmatprep.mubr.bf16.mxu0 %v597
        %1640 = vmatmul.mubr.bf16.gmra.mxu0 %v473
        %v1641 = vpop.f32.mrf.mxu0
        %v1642 = vadd.f32 0.0, %v1641
        %v1643 = vpop.f32.mrf.mxu0
        %v1644 = vpop.f32.mrf.mxu0
        %v1645 = vadd.f32 0.0, %v1644
        %v1646 = vpop.f32.mrf.mxu0
        %1647 = vmatprep.mubr.bf16.mxu0 %v600
        %1648 = vmatmul.mubr.bf16.gmra.mxu0 %v475
        %v1649 = vpop.f32.mrf.mxu0
        %v1650 = vadd.f32 0.0, %v1649
        %v1651 = vpop.f32.mrf.mxu0
        %v1652 = vpop.f32.mrf.mxu0
        %v1653 = vadd.f32 0.0, %v1652
        %v1654 = vpop.f32.mrf.mxu0
        %1655 = vmatprep.mubr.bf16.mxu0 %v603
        %1656 = vmatmul.mubr.bf16.gmra.mxu0 %v477
        %v1657 = vpop.f32.mrf.mxu0
        %v1658 = vadd.f32 0.0, %v1657
        %v1659 = vpop.f32.mrf.mxu0
        %v1660 = vpop.f32.mrf.mxu0
        %v1661 = vadd.f32 0.0, %v1660
        %v1662 = vpop.f32.mrf.mxu0
        %1663 = vmatprep.mubr.bf16.mxu0 %v606
        %1664 = vmatmul.mubr.bf16.gmra.mxu0 %v479
        %v1665 = vpop.f32.mrf.mxu0
        %v1666 = vadd.f32 0.0, %v1665
        %v1667 = vpop.f32.mrf.mxu0
        %v1668 = vpop.f32.mrf.mxu0
        %v1669 = vadd.f32 0.0, %v1668
        %v1670 = vpop.f32.mrf.mxu0
        %1671 = vmatprep.mubr.bf16.mxu0 %v609
        %1672 = vmatmul.mubr.bf16.gmra.mxu0 %v481
        %v1673 = vpop.f32.mrf.mxu0
        %v1674 = vadd.f32 0.0, %v1673
        %v1675 = vpop.f32.mrf.mxu0
        %v1676 = vpop.f32.mrf.mxu0
        %v1677 = vadd.f32 0.0, %v1676
        %v1678 = vpop.f32.mrf.mxu0
        %1679 = vmatprep.mubr.bf16.mxu0 %v612
        %1680 = vmatmul.mubr.bf16.gmra.mxu0 %v483
        %v1681 = vpop.f32.mrf.mxu0
        %v1682 = vadd.f32 0.0, %v1681
        %v1683 = vpop.f32.mrf.mxu0
        %v1684 = vpop.f32.mrf.mxu0
        %v1685 = vadd.f32 0.0, %v1684
        %v1686 = vpop.f32.mrf.mxu0
        %1687 = vdwg.mxu0
        %1700 = vmatprep.subr.bf16.mxu0 0
        %1701 = vmatpush1.bf16.msra.mxu0 %v1550
        %1702 = vmatprep.subr.bf16.mxu0 0
        %1703 = vmatpush1.bf16.msra.mxu0 %v1549
        %1704 = vmatprep.subr.bf16.mxu0 0
        %1705 = vmatpush1.bf16.msra.mxu0 %v1548
        %1706 = vmatprep.subr.bf16.mxu0 0
        %1707 = vmatpush1.bf16.msra.mxu0 %v1547
        %1708 = vmatprep.subr.bf16.mxu0 0
        %1709 = vmatpush1.bf16.msra.mxu0 %v1546
        %1710 = vmatprep.subr.bf16.mxu0 0
        %1711 = vmatpush1.bf16.msra.mxu0 %v1545
        %1712 = vmatprep.subr.bf16.mxu0 0
        %1713 = vmatpush1.bf16.msra.mxu0 %v1544
        %1714 = vmatprep.subr.bf16.mxu0 0
        %1715 = vmatpush1.bf16.msra.mxu0 %v1543
        %1716 = vmatprep.subr.bf16.mxu0 0
        %1717 = vmatpush2.bf16.msra.mxu0 0
        %1718 = vmatprep.subr.bf16.mxu0 0
        %1719 = vmatpush2.bf16.msra.mxu0 0
        %1720 = vmatprep.subr.bf16.mxu0 0
        %1721 = vmatpush2.bf16.msra.mxu0 0
        %1722 = vmatprep.subr.bf16.mxu0 0
        %1723 = vmatpush2.bf16.msra.mxu0 0
        %1724 = vmatprep.subr.bf16.mxu0 0
        %1725 = vmatpush2.bf16.msra.mxu0 %v1554
        %1726 = vmatprep.subr.bf16.mxu0 0
        %1727 = vmatpush2.bf16.msra.mxu0 %v1553
        %1728 = vmatprep.subr.bf16.mxu0 0
        %1729 = vmatpush2.bf16.msra.mxu0 %v1552
        %1730 = vmatprep.subr.bf16.mxu0 0
        %1731 = vmatpush2.bf16.msra.mxu0 %v1551
        %1732 = vmatprep.mubr.bf16.mxu0 %v796
        %1733 = vmatmul.mubr.bf16.gmra.mxu0 %v759
        %v1734 = vpop.f32.mrf.mxu0
        %v1735 = vadd.f32 %v1626, %v1734
        %v1736 = vpop.f32.mrf.mxu0
        %v1737 = vpop.f32.mrf.mxu0
        %v1738 = vadd.f32 %v1629, %v1737
        %v1739 = vpop.f32.mrf.mxu0
        %1740 = vmatprep.mubr.bf16.mxu0 %v799
        %1741 = vmatmul.mubr.bf16.gmra.mxu0 %v761
        %v1742 = vpop.f32.mrf.mxu0
        %v1743 = vadd.f32 %v1634, %v1742
        %v1744 = vpop.f32.mrf.mxu0
        %v1745 = vpop.f32.mrf.mxu0
        %v1746 = vadd.f32 %v1637, %v1745
        %v1747 = vpop.f32.mrf.mxu0
        %1748 = vmatprep.mubr.bf16.mxu0 %v802
        %1749 = vmatmul.mubr.bf16.gmra.mxu0 %v763
        %v1750 = vpop.f32.mrf.mxu0
        %v1751 = vadd.f32 %v1642, %v1750
        %v1752 = vpop.f32.mrf.mxu0
        %v1753 = vpop.f32.mrf.mxu0
        %v1754 = vadd.f32 %v1645, %v1753
        %v1755 = vpop.f32.mrf.mxu0
        %1756 = vmatprep.mubr.bf16.mxu0 %v805
        %1757 = vmatmul.mubr.bf16.gmra.mxu0 %v765
        %v1758 = vpop.f32.mrf.mxu0
        %v1759 = vadd.f32 %v1650, %v1758
        %v1760 = vpop.f32.mrf.mxu0
        %v1761 = vpop.f32.mrf.mxu0
        %v1762 = vadd.f32 %v1653, %v1761
        %v1763 = vpop.f32.mrf.mxu0
        %1764 = vmatprep.mubr.bf16.mxu0 %v808
        %1765 = vmatmul.mubr.bf16.gmra.mxu0 %v767
        %v1766 = vpop.f32.mrf.mxu0
        %v1767 = vadd.f32 %v1658, %v1766
        %v1768 = vpop.f32.mrf.mxu0
        %v1769 = vpop.f32.mrf.mxu0
        %v1770 = vadd.f32 %v1661, %v1769
        %v1771 = vpop.f32.mrf.mxu0
        %1772 = vmatprep.mubr.bf16.mxu0 %v811
        %1773 = vmatmul.mubr.bf16.gmra.mxu0 %v769
        %v1774 = vpop.f32.mrf.mxu0
        %v1775 = vadd.f32 %v1666, %v1774
        %v1776 = vpop.f32.mrf.mxu0
        %v1777 = vpop.f32.mrf.mxu0
        %v1778 = vadd.f32 %v1669, %v1777
        %v1779 = vpop.f32.mrf.mxu0
        %1780 = vmatprep.mubr.bf16.mxu0 %v814
        %1781 = vmatmul.mubr.bf16.gmra.mxu0 %v771
        %v1782 = vpop.f32.mrf.mxu0
        %v1783 = vadd.f32 %v1674, %v1782
        %v1784 = vpop.f32.mrf.mxu0
        %v1785 = vpop.f32.mrf.mxu0
        %v1786 = vadd.f32 %v1677, %v1785
        %v1787 = vpop.f32.mrf.mxu0
        %1788 = vmatprep.mubr.bf16.mxu0 %v817
        %1789 = vmatmul.mubr.bf16.gmra.mxu0 %v773
        %v1790 = vpop.f32.mrf.mxu0
        %v1791 = vadd.f32 %v1682, %v1790
        %v1792 = vpop.f32.mrf.mxu0
        %v1793 = vpop.f32.mrf.mxu0
        %v1794 = vadd.f32 %v1685, %v1793
        %v1795 = vpop.f32.mrf.mxu0
        %1796 = vdwg.mxu0
        %1797 = vrot.lane.b32.xlu0 %v1543, 126
        %v1798 = vpop.permute.xlu0 %1797
        %1799 = vrot.lane.b32.xlu0 %v1544, 126
        %v1800 = vpop.permute.xlu0 %1799
        %1801 = vrot.lane.b32.xlu0 %v1545, 126
        %v1802 = vpop.permute.xlu0 %1801
        %1803 = vrot.lane.b32.xlu0 %v1546, 126
        %v1804 = vpop.permute.xlu0 %1803
        %1805 = vrot.lane.b32.xlu0 %v1547, 126
        %v1806 = vpop.permute.xlu0 %1805
        %1807 = vrot.lane.b32.xlu0 %v1548, 126
        %v1808 = vpop.permute.xlu0 %1807
        %1809 = vrot.lane.b32.xlu0 %v1549, 126
        %v1810 = vpop.permute.xlu0 %1809
        %1811 = vrot.lane.b32.xlu0 %v1550, 126
        %v1812 = vpop.permute.xlu0 %1811
        %1813 = vrot.lane.b32.xlu0 %v1551, 126
        %v1814 = vpop.permute.xlu0 %1813
        %1815 = vrot.lane.b32.xlu0 %v1552, 126
        %v1816 = vpop.permute.xlu0 %1815
        %1817 = vrot.lane.b32.xlu0 %v1553, 126
        %v1818 = vpop.permute.xlu0 %1817
        %1819 = vrot.lane.b32.xlu0 %v1554, 126
        %v1820 = vpop.permute.xlu0 %1819
        %1833 = vmatprep.subr.bf16.mxu0 0
        %1834 = vmatpush1.bf16.msra.mxu0 %v1812
        %1835 = vmatprep.subr.bf16.mxu0 0
        %1836 = vmatpush1.bf16.msra.mxu0 %v1810
        %1837 = vmatprep.subr.bf16.mxu0 0
        %1838 = vmatpush1.bf16.msra.mxu0 %v1808
        %1839 = vmatprep.subr.bf16.mxu0 0
        %1840 = vmatpush1.bf16.msra.mxu0 %v1806
        %1841 = vmatprep.subr.bf16.mxu0 0
        %1842 = vmatpush1.bf16.msra.mxu0 %v1804
        %1843 = vmatprep.subr.bf16.mxu0 0
        %1844 = vmatpush1.bf16.msra.mxu0 %v1802
        %1845 = vmatprep.subr.bf16.mxu0 0
        %1846 = vmatpush1.bf16.msra.mxu0 %v1800
        %1847 = vmatprep.subr.bf16.mxu0 0
        %1848 = vmatpush1.bf16.msra.mxu0 %v1798
        %1849 = vmatprep.subr.bf16.mxu0 0
        %1850 = vmatpush2.bf16.msra.mxu0 0
        %1851 = vmatprep.subr.bf16.mxu0 0
        %1852 = vmatpush2.bf16.msra.mxu0 0
        %1853 = vmatprep.subr.bf16.mxu0 0
        %1854 = vmatpush2.bf16.msra.mxu0 0
        %1855 = vmatprep.subr.bf16.mxu0 0
        %1856 = vmatpush2.bf16.msra.mxu0 0
        %1857 = vmatprep.subr.bf16.mxu0 0
        %1858 = vmatpush2.bf16.msra.mxu0 %v1820
        %1859 = vmatprep.subr.bf16.mxu0 0
        %1860 = vmatpush2.bf16.msra.mxu0 %v1818
        %1861 = vmatprep.subr.bf16.mxu0 0
        %1862 = vmatpush2.bf16.msra.mxu0 %v1816
        %1863 = vmatprep.subr.bf16.mxu0 0
        %1864 = vmatpush2.bf16.msra.mxu0 %v1814
        %1865 = vmatprep.mubr.bf16.mxu0 %v1025
        %1866 = vmatmul.mubr.bf16.gmra.mxu0 %v964
        %v1867 = vpop.f32.mrf.mxu0
        %v1868 = vadd.f32 0.0, %v1867
        %v1869 = vpop.f32.mrf.mxu0
        %v1870 = vpop.f32.mrf.mxu0
        %v1871 = vadd.f32 0.0, %v1870
        %v1872 = vpop.f32.mrf.mxu0
        %1873 = vmatprep.mubr.bf16.mxu0 %v1028
        %1874 = vmatmul.mubr.bf16.gmra.mxu0 %v966
        %v1875 = vpop.f32.mrf.mxu0
        %v1876 = vadd.f32 0.0, %v1875
        %v1877 = vpop.f32.mrf.mxu0
        %v1878 = vpop.f32.mrf.mxu0
        %v1879 = vadd.f32 0.0, %v1878
        %v1880 = vpop.f32.mrf.mxu0
        %1881 = vmatprep.mubr.bf16.mxu0 %v1031
        %1882 = vmatmul.mubr.bf16.gmra.mxu0 %v968
        %v1883 = vpop.f32.mrf.mxu0
        %v1884 = vadd.f32 0.0, %v1883
        %v1885 = vpop.f32.mrf.mxu0
        %v1886 = vpop.f32.mrf.mxu0
        %v1887 = vadd.f32 0.0, %v1886
        %v1888 = vpop.f32.mrf.mxu0
        %1889 = vmatprep.mubr.bf16.mxu0 %v1034
        %1890 = vmatmul.mubr.bf16.gmra.mxu0 %v970
        %v1891 = vpop.f32.mrf.mxu0
        %v1892 = vadd.f32 0.0, %v1891
        %v1893 = vpop.f32.mrf.mxu0
        %v1894 = vpop.f32.mrf.mxu0
        %v1895 = vadd.f32 0.0, %v1894
        %v1896 = vpop.f32.mrf.mxu0
        %1897 = vmatprep.mubr.bf16.mxu0 %v1037
        %1898 = vmatmul.mubr.bf16.gmra.mxu0 %v972
        %v1899 = vpop.f32.mrf.mxu0
        %v1900 = vadd.f32 0.0, %v1899
        %v1901 = vpop.f32.mrf.mxu0
        %v1902 = vpop.f32.mrf.mxu0
        %v1903 = vadd.f32 0.0, %v1902
        %v1904 = vpop.f32.mrf.mxu0
        %1905 = vmatprep.mubr.bf16.mxu0 %v1040
        %1906 = vmatmul.mubr.bf16.gmra.mxu0 %v974
        %v1907 = vpop.f32.mrf.mxu0
        %v1908 = vadd.f32 0.0, %v1907
        %v1909 = vpop.f32.mrf.mxu0
        %v1910 = vpop.f32.mrf.mxu0
        %v1911 = vadd.f32 0.0, %v1910
        %v1912 = vpop.f32.mrf.mxu0
        %1913 = vmatprep.mubr.bf16.mxu0 %v1043
        %1914 = vmatmul.mubr.bf16.gmra.mxu0 %v976
        %v1915 = vpop.f32.mrf.mxu0
        %v1916 = vadd.f32 0.0, %v1915
        %v1917 = vpop.f32.mrf.mxu0
        %v1918 = vpop.f32.mrf.mxu0
        %v1919 = vadd.f32 0.0, %v1918
        %v1920 = vpop.f32.mrf.mxu0
        %1921 = vmatprep.mubr.bf16.mxu0 %v1046
        %1922 = vmatmul.mubr.bf16.gmra.mxu0 %v978
        %v1923 = vpop.f32.mrf.mxu0
        %v1924 = vadd.f32 0.0, %v1923
        %v1925 = vpop.f32.mrf.mxu0
        %v1926 = vpop.f32.mrf.mxu0
        %v1927 = vadd.f32 0.0, %v1926
        %v1928 = vpop.f32.mrf.mxu0
        %1929 = vdwg.mxu0
        %v1930 = vadd.f32 %v1735, %v1868
        %v1931 = vadd.f32 %v1738, %v1871
        %v1932 = vadd.f32 %v1743, %v1876
        %v1933 = vadd.f32 %v1746, %v1879
        %v1934 = vadd.f32 %v1751, %v1884
        %v1935 = vadd.f32 %v1754, %v1887
        %v1936 = vadd.f32 %v1759, %v1892
        %v1937 = vadd.f32 %v1762, %v1895
        %v1938 = vadd.f32 %v1767, %v1900
        %v1939 = vadd.f32 %v1770, %v1903
        %v1940 = vadd.f32 %v1775, %v1908
        %v1941 = vadd.f32 %v1778, %v1911
        %v1942 = vadd.f32 %v1783, %v1916
        %v1943 = vadd.f32 %v1786, %v1919
        %v1944 = vadd.f32 %v1791, %v1924
        %v1945 = vadd.f32 %v1794, %v1927
        %v1946 = vadd.f32 %v1930, %v1164
        %v1947 = vadd.f32 %v1931, %v1169
        %v1948 = vadd.f32 %v1932, %v1174
        %v1949 = vadd.f32 %v1933, %v1179
        %v1950 = vadd.f32 %v1934, %v1184
        %v1951 = vadd.f32 %v1935, %v1189
        %v1952 = vadd.f32 %v1936, %v1194
        %v1953 = vadd.f32 %v1937, %v1199
        %v1954 = vadd.f32 %v1938, %v1204
        %v1955 = vadd.f32 %v1939, %v1209
        %v1956 = vadd.f32 %v1940, %v1214
        %v1957 = vadd.f32 %v1941, %v1219
        %v1958 = vadd.f32 %v1942, %v1224
        %v1959 = vadd.f32 %v1943, %v1229
        %v1960 = vadd.f32 %v1944, %v1234
        %v1961 = vadd.f32 %v1945, %v1239
        %v1962 = vmax.f32 %v1946, 0.0
        %v1963 = vmax.f32 %v1947, 0.0
        %v1964 = vmax.f32 %v1948, 0.0
        %v1965 = vmax.f32 %v1949, 0.0
        %v1966 = vmax.f32 %v1950, 0.0
        %v1967 = vmax.f32 %v1951, 0.0
        %v1968 = vmax.f32 %v1952, 0.0
        %v1969 = vmax.f32 %v1953, 0.0
        %v1970 = vmax.f32 %v1954, 0.0
        %v1971 = vmax.f32 %v1955, 0.0
        %v1972 = vmax.f32 %v1956, 0.0
        %v1973 = vmax.f32 %v1957, 0.0
        %v1974 = vmax.f32 %v1958, 0.0
        %v1975 = vmax.f32 %v1959, 0.0
        %v1976 = vmax.f32 %v1960, 0.0
        %v1977 = vmax.f32 %v1961, 0.0
        %v1978 = vmul.f32 %v1962, %v1276
        %v1979 = vmul.f32 %v1963, %v1281
        %v1980 = vmul.f32 %v1964, %v1286
        %v1981 = vmul.f32 %v1965, %v1291
        %v1982 = vmul.f32 %v1966, %v1296
        %v1983 = vmul.f32 %v1967, %v1301
        %v1984 = vmul.f32 %v1968, %v1306
        %v1985 = vmul.f32 %v1969, %v1311
        %v1986 = vmul.f32 %v1970, %v1316
        %v1987 = vmul.f32 %v1971, %v1321
        %v1988 = vmul.f32 %v1972, %v1326
        %v1989 = vmul.f32 %v1973, %v1331
        %v1990 = vmul.f32 %v1974, %v1336
        %v1991 = vmul.f32 %v1975, %v1341
        %v1992 = vmul.f32 %v1976, %v1346
        %v1993 = vmul.f32 %v1977, %v1351
        %v1994 = vadd.f32 %v1978, %v1372
        %v1995 = vadd.f32 %v1979, %v1377
        %v1996 = vadd.f32 %v1980, %v1382
        %v1997 = vadd.f32 %v1981, %v1387
        %v1998 = vadd.f32 %v1982, %v1392
        %v1999 = vadd.f32 %v1983, %v1397
        %v2000 = vadd.f32 %v1984, %v1402
        %v2001 = vadd.f32 %v1985, %v1407
        %v2002 = vadd.f32 %v1986, %v1412
        %v2003 = vadd.f32 %v1987, %v1417
        %v2004 = vadd.f32 %v1988, %v1422
        %v2005 = vadd.f32 %v1989, %v1427
        %v2006 = vadd.f32 %v1990, %v1432
        %v2007 = vadd.f32 %v1991, %v1437
        %v2008 = vadd.f32 %v1992, %v1442
        %v2009 = vadd.f32 %v1993, %v1447
        %v2010 = vmax.f32 %v1449, %v1994
        %v2011 = vmax.f32 %v1450, %v1995
        %v2012 = vmax.f32 %v1451, %v1996
        %v2013 = vmax.f32 %v1452, %v1997
        %v2014 = vmax.f32 %v1453, %v1998
        %v2015 = vmax.f32 %v1454, %v1999
        %v2016 = vmax.f32 %v1455, %v2000
        %v2017 = vmax.f32 %v1456, %v2001
        %v2018 = vmax.f32 %v1457, %v2002
        %v2019 = vmax.f32 %v1458, %v2003
        %v2020 = vmax.f32 %v1459, %v2004
        %v2021 = vmax.f32 %v1460, %v2005
        %v2022 = vmax.f32 %v1461, %v2006
        %v2023 = vmax.f32 %v1462, %v2007
        %v2024 = vmax.f32 %v1463, %v2008
        %v2025 = vmax.f32 %v1464, %v2009
        %2042 = vrot.lane.b32.xlu0 %v2010, 127
        %v2043 = vpop.permute.xlu0 %2042
        %2044 = vrot.lane.b32.xlu0 %v2011, 127
        %v2045 = vpop.permute.xlu0 %2044
        %2046 = vrot.lane.b32.xlu0 %v2012, 127
        %v2047 = vpop.permute.xlu0 %2046
        %2048 = vrot.lane.b32.xlu0 %v2013, 127
        %v2049 = vpop.permute.xlu0 %2048
        %2050 = vrot.lane.b32.xlu0 %v2014, 127
        %v2051 = vpop.permute.xlu0 %2050
        %2052 = vrot.lane.b32.xlu0 %v2015, 127
        %v2053 = vpop.permute.xlu0 %2052
        %2054 = vrot.lane.b32.xlu0 %v2016, 127
        %v2055 = vpop.permute.xlu0 %2054
        %2056 = vrot.lane.b32.xlu0 %v2017, 127
        %v2057 = vpop.permute.xlu0 %2056
        %2058 = vrot.lane.b32.xlu0 %v2018, 127
        %v2059 = vpop.permute.xlu0 %2058
        %2060 = vrot.lane.b32.xlu0 %v2019, 127
        %v2061 = vpop.permute.xlu0 %2060
        %2062 = vrot.lane.b32.xlu0 %v2020, 127
        %v2063 = vpop.permute.xlu0 %2062
        %2064 = vrot.lane.b32.xlu0 %v2021, 127
        %v2065 = vpop.permute.xlu0 %2064
        %2066 = vrot.lane.b32.xlu0 %v2022, 127
        %v2067 = vpop.permute.xlu0 %2066
        %2068 = vrot.lane.b32.xlu0 %v2023, 127
        %v2069 = vpop.permute.xlu0 %2068
        %2070 = vrot.lane.b32.xlu0 %v2024, 127
        %v2071 = vpop.permute.xlu0 %2070
        %2072 = vrot.lane.b32.xlu0 %v2025, 127
        %v2073 = vpop.permute.xlu0 %2072
        %2090 = vrot.lane.b32.xlu0 %v2010, 51
        %v2091 = vpop.permute.xlu0 %2090
        %2092 = vrot.lane.b32.xlu0 %v2011, 51
        %v2093 = vpop.permute.xlu0 %2092
        %2094 = vrot.lane.b32.xlu0 %v2012, 51
        %v2095 = vpop.permute.xlu0 %2094
        %2096 = vrot.lane.b32.xlu0 %v2013, 51
        %v2097 = vpop.permute.xlu0 %2096
        %2098 = vrot.lane.b32.xlu0 %v2014, 51
        %v2099 = vpop.permute.xlu0 %2098
        %2100 = vrot.lane.b32.xlu0 %v2015, 51
        %v2101 = vpop.permute.xlu0 %2100
        %2102 = vrot.lane.b32.xlu0 %v2016, 51
        %v2103 = vpop.permute.xlu0 %2102
        %2104 = vrot.lane.b32.xlu0 %v2017, 51
        %v2105 = vpop.permute.xlu0 %2104
        %2106 = vrot.lane.b32.xlu0 %v2018, 51
        %v2107 = vpop.permute.xlu0 %2106
        %2108 = vrot.lane.b32.xlu0 %v2019, 51
        %v2109 = vpop.permute.xlu0 %2108
        %2110 = vrot.lane.b32.xlu0 %v2020, 51
        %v2111 = vpop.permute.xlu0 %2110
        %2112 = vrot.lane.b32.xlu0 %v2021, 51
        %v2113 = vpop.permute.xlu0 %2112
        %2114 = vrot.lane.b32.xlu0 %v2022, 51
        %v2115 = vpop.permute.xlu0 %2114
        %2116 = vrot.lane.b32.xlu0 %v2023, 51
        %v2117 = vpop.permute.xlu0 %2116
        %2118 = vrot.lane.b32.xlu0 %v2024, 51
        %v2119 = vpop.permute.xlu0 %2118
        %2120 = vrot.lane.b32.xlu0 %v2025, 51
        %v2121 = vpop.permute.xlu0 %2120
        %vm2138 = vcmask 416768
        %v2139 = vsel %vm2138, %v2043, %v2091
        %v2140 = vsel %vm2138, %v2045, %v2093
        %v2141 = vsel %vm2138, %v2047, %v2095
        %v2142 = vsel %vm2138, %v2049, %v2097
        %v2143 = vsel %vm2138, %v2051, %v2099
        %v2144 = vsel %vm2138, %v2053, %v2101
        %v2145 = vsel %vm2138, %v2055, %v2103
        %v2146 = vsel %vm2138, %v2057, %v2105
        %v2147 = vsel %vm2138, %v2059, %v2107
        %v2148 = vsel %vm2138, %v2061, %v2109
        %v2149 = vsel %vm2138, %v2063, %v2111
        %v2150 = vsel %vm2138, %v2065, %v2113
        %v2151 = vsel %vm2138, %v2067, %v2115
        %v2152 = vsel %vm2138, %v2069, %v2117
        %v2153 = vsel %vm2138, %v2071, %v2119
        %v2154 = vsel %vm2138, %v2073, %v2121
        %v2155 = vmax.f32 %v2010, %v2139
        %v2156 = vmax.f32 %v2011, %v2140
        %v2157 = vmax.f32 %v2012, %v2141
        %v2158 = vmax.f32 %v2013, %v2142
        %v2159 = vmax.f32 %v2014, %v2143
        %v2160 = vmax.f32 %v2015, %v2144
        %v2161 = vmax.f32 %v2016, %v2145
        %v2162 = vmax.f32 %v2017, %v2146
        %v2163 = vmax.f32 %v2018, %v2147
        %v2164 = vmax.f32 %v2019, %v2148
        %v2165 = vmax.f32 %v2020, %v2149
        %v2166 = vmax.f32 %v2021, %v2150
        %v2167 = vmax.f32 %v2022, %v2151
        %v2168 = vmax.f32 %v2023, %v2152
        %v2169 = vmax.f32 %v2024, %v2153
        %v2170 = vmax.f32 %v2025, %v2154
        %v2171 = vpack.c.bf16 %v2156, %v2155
        %v2172 = vpack.c.bf16 %v2158, %v2157
        %v2173 = vpack.c.bf16 %v2160, %v2159
        %v2174 = vpack.c.bf16 %v2162, %v2161
        %v2175 = vpack.c.bf16 %v2164, %v2163
        %v2176 = vpack.c.bf16 %v2166, %v2165
        %v2177 = vpack.c.bf16 %v2168, %v2167
        %v2178 = vpack.c.bf16 %v2170, %v2169
        %v2186 = vunpack.c.l.b16 %v376
        %v2187 = vunpack.c.l.b16 %v377
        %v2188 = vunpack.c.l.b16 %v378
        %v2189 = vunpack.c.l.b16 %v379
        %v2190 = vunpack.c.l.b16 %v380
        %v2191 = vunpack.c.l.b16 %v381
        %v2192 = vunpack.c.l.b16 %v382
        %v2193 = vpack.c.b16 %v2187, %v2186
        %v2194 = vpack.c.b16 %v2189, %v2188
        %v2195 = vpack.c.b16 %v2191, %v2190
        %v2196 = vpack.c.b16 %v2192, %v2192
        %vm2200 = vcmask 424960
        %v2202 = vsel %vm2200, %v2171, 0
        %v2205 = vsel %vm2200, %v2172, 0
        %v2208 = vsel %vm2200, %v2173, 0
        %v2211 = vsel %vm2200, %v2174, 0
        %v2214 = vsel %vm2200, %v2175, 0
        %v2217 = vsel %vm2200, %v2176, 0
        %v2220 = vsel %vm2200, %v2177, 0
        %v2223 = vsel %vm2200, %v2178, 0
        %vm2225 = vcmask 1041408
        %v2227 = vsel %vm2225, %v2196, 0
        %2229 = vmatprep.subr.bf16.mxu0 0
        %2230 = vmatpush1.bf16.msra.mxu0 0
        %2231 = vmatprep.subr.bf16.mxu0 0
        %2232 = vmatpush1.bf16.msra.mxu0 0
        %2233 = vmatprep.subr.bf16.mxu0 0
        %2234 = vmatpush1.bf16.msra.mxu0 0
        %2235 = vmatprep.subr.bf16.mxu0 0
        %2236 = vmatpush1.bf16.msra.mxu0 0
        %2237 = vmatprep.subr.bf16.mxu0 0
        %2238 = vmatpush1.bf16.msra.mxu0 %v2227
        %2239 = vmatprep.subr.bf16.mxu0 0
        %2240 = vmatpush1.bf16.msra.mxu0 %v2195
        %2241 = vmatprep.subr.bf16.mxu0 0
        %2242 = vmatpush1.bf16.msra.mxu0 %v2194
        %2243 = vmatprep.subr.bf16.mxu0 0
        %2244 = vmatpush1.bf16.msra.mxu0 %v2193
        %2245 = vmatprep.subr.bf16.mxu0 0
        %2246 = vmatpush2.bf16.msra.mxu0 0
        %2247 = vmatprep.subr.bf16.mxu0 0
        %2248 = vmatpush2.bf16.msra.mxu0 0
        %2249 = vmatprep.subr.bf16.mxu0 0
        %2250 = vmatpush2.bf16.msra.mxu0 0
        %2251 = vmatprep.subr.bf16.mxu0 0
        %2252 = vmatpush2.bf16.msra.mxu0 0
        %2253 = vmatprep.subr.bf16.mxu0 0
        %2254 = vmatpush2.bf16.msra.mxu0 0
        %2255 = vmatprep.subr.bf16.mxu0 0
        %2256 = vmatpush2.bf16.msra.mxu0 0
        %2257 = vmatprep.subr.bf16.mxu0 0
        %2258 = vmatpush2.bf16.msra.mxu0 0
        %2259 = vmatprep.subr.bf16.mxu0 0
        %2260 = vmatpush2.bf16.msra.mxu0 0
        %2261 = vmatprep.mubr.bf16.mxu0 0
        %2262 = vmatmul.mubr.bf16.gmra.mxu0 %v2202
        %v2263 = vpop.f32.mrf.mxu0
        %v2264 = vadd.f32 0.0, %v2263
        %v2265 = vpop.f32.mrf.mxu0
        %v2266 = vpop.f32.mrf.mxu0
        %v2267 = vadd.f32 0.0, %v2266
        %v2268 = vpop.f32.mrf.mxu0
        %2269 = vmatprep.mubr.bf16.mxu0 0
        %2270 = vmatmul.mubr.bf16.gmra.mxu0 %v2205
        %v2271 = vpop.f32.mrf.mxu0
        %v2272 = vadd.f32 0.0, %v2271
        %v2273 = vpop.f32.mrf.mxu0
        %v2274 = vpop.f32.mrf.mxu0
        %v2275 = vadd.f32 0.0, %v2274
        %v2276 = vpop.f32.mrf.mxu0
        %2277 = vmatprep.mubr.bf16.mxu0 0
        %2278 = vmatmul.mubr.bf16.gmra.mxu0 %v2208
        %v2279 = vpop.f32.mrf.mxu0
        %v2280 = vadd.f32 0.0, %v2279
        %v2281 = vpop.f32.mrf.mxu0
        %v2282 = vpop.f32.mrf.mxu0
        %v2283 = vadd.f32 0.0, %v2282
        %v2284 = vpop.f32.mrf.mxu0
        %2285 = vmatprep.mubr.bf16.mxu0 0
        %2286 = vmatmul.mubr.bf16.gmra.mxu0 %v2211
        %v2287 = vpop.f32.mrf.mxu0
        %v2288 = vadd.f32 0.0, %v2287
        %v2289 = vpop.f32.mrf.mxu0
        %v2290 = vpop.f32.mrf.mxu0
        %v2291 = vadd.f32 0.0, %v2290
        %v2292 = vpop.f32.mrf.mxu0
        %2293 = vmatprep.mubr.bf16.mxu0 0
        %2294 = vmatmul.mubr.bf16.gmra.mxu0 %v2214
        %v2295 = vpop.f32.mrf.mxu0
        %v2296 = vadd.f32 0.0, %v2295
        %v2297 = vpop.f32.mrf.mxu0
        %v2298 = vpop.f32.mrf.mxu0
        %v2299 = vadd.f32 0.0, %v2298
        %v2300 = vpop.f32.mrf.mxu0
        %2301 = vmatprep.mubr.bf16.mxu0 0
        %2302 = vmatmul.mubr.bf16.gmra.mxu0 %v2217
        %v2303 = vpop.f32.mrf.mxu0
        %v2304 = vadd.f32 0.0, %v2303
        %v2305 = vpop.f32.mrf.mxu0
        %v2306 = vpop.f32.mrf.mxu0
        %v2307 = vadd.f32 0.0, %v2306
        %v2308 = vpop.f32.mrf.mxu0
        %2309 = vmatprep.mubr.bf16.mxu0 0
        %2310 = vmatmul.mubr.bf16.gmra.mxu0 %v2220
        %v2311 = vpop.f32.mrf.mxu0
        %v2312 = vadd.f32 0.0, %v2311
        %v2313 = vpop.f32.mrf.mxu0
        %v2314 = vpop.f32.mrf.mxu0
        %v2315 = vadd.f32 0.0, %v2314
        %v2316 = vpop.f32.mrf.mxu0
        %2317 = vmatprep.mubr.bf16.mxu0 0
        %2318 = vmatmul.mubr.bf16.gmra.mxu0 %v2223
        %v2319 = vpop.f32.mrf.mxu0
        %v2320 = vadd.f32 0.0, %v2319
        %v2321 = vpop.f32.mrf.mxu0
        %v2322 = vpop.f32.mrf.mxu0
        %v2323 = vadd.f32 0.0, %v2322
        %v2324 = vpop.f32.mrf.mxu0
        %2325 = vdwg.mxu0
        %v2326 = vpack.c.bf16 %v2267, %v2264
        %v2327 = vpack.c.bf16 %v2275, %v2272
        %v2328 = vpack.c.bf16 %v2283, %v2280
        %v2329 = vpack.c.bf16 %v2291, %v2288
        %v2330 = vpack.c.bf16 %v2299, %v2296
        %v2331 = vpack.c.bf16 %v2307, %v2304
        %v2332 = vpack.c.bf16 %v2315, %v2312
        %v2333 = vpack.c.bf16 %v2323, %v2320
        %v2342 = vunpack.c.l.b16 %v2326
        %v2343 = vunpack.c.h.b16 %v2326
        %v2344 = vunpack.c.l.b16 %v2327
        %v2345 = vunpack.c.h.b16 %v2327
        %v2346 = vunpack.c.l.b16 %v2328
        %v2347 = vunpack.c.h.b16 %v2328
        %v2348 = vunpack.c.l.b16 %v2329
        %v2349 = vunpack.c.h.b16 %v2329
        %v2350 = vunpack.c.l.b16 %v2330
        %v2351 = vunpack.c.h.b16 %v2330
        %v2352 = vunpack.c.l.b16 %v2331
        %v2353 = vunpack.c.h.b16 %v2331
        %v2354 = vunpack.c.l.b16 %v2332
        %v2355 = vunpack.c.h.b16 %v2332
        %v2356 = vunpack.c.l.b16 %v2333
        %v2357 = vunpack.c.h.b16 %v2333
        %v2358 = vpack.c.b16 %v2342, %v2342
        %v2359 = vpack.c.b16 %v2343, %v2343
        %v2360 = vpack.c.b16 %v2344, %v2344
        %v2361 = vpack.c.b16 %v2345, %v2345
        %v2362 = vpack.c.b16 %v2346, %v2346
        %v2363 = vpack.c.b16 %v2347, %v2347
        %v2364 = vpack.c.b16 %v2348, %v2348
        %v2365 = vpack.c.b16 %v2349, %v2349
        %v2366 = vpack.c.b16 %v2350, %v2350
        %v2367 = vpack.c.b16 %v2351, %v2351
        %v2368 = vpack.c.b16 %v2352, %v2352
        %v2369 = vpack.c.b16 %v2353, %v2353
        %v2370 = vpack.c.b16 %v2354, %v2354
        %v2371 = vpack.c.b16 %v2355, %v2355
        %v2372 = vpack.c.b16 %v2356, %v2356
        %v2373 = vpack.c.b16 %v2357, %v2357
        %s2390 = smul.u32 %s384, 16
        %s2391 = smul.addr %s2390, 4
        %s2392 = scalar_lea.vmem %s275, %s2391
        %vm2393 = vcmask 207872
        %2394 = vst.msk [vmem:[%s2392] sm:$0xf] %vm2393, %v2358
        %2395 = vst.msk [vmem:[%s2392 + $0x4] sm:$0xf] %vm2393, %v2359
        %2396 = vst.msk [vmem:[%s2392 + $0x8] sm:$0xf] %vm2393, %v2360
        %2397 = vst.msk [vmem:[%s2392 + $0xc] sm:$0xf] %vm2393, %v2361
        %2398 = vst.msk [vmem:[%s2392 + $0x10] sm:$0xf] %vm2393, %v2362
        %2399 = vst.msk [vmem:[%s2392 + $0x14] sm:$0xf] %vm2393, %v2363
        %2400 = vst.msk [vmem:[%s2392 + $0x18] sm:$0xf] %vm2393, %v2364
        %2401 = vst.msk [vmem:[%s2392 + $0x1c] sm:$0xf] %vm2393, %v2365
        %2402 = vst.msk [vmem:[%s2392 + $0x20] sm:$0xf] %vm2393, %v2366
        %2403 = vst.msk [vmem:[%s2392 + $0x24] sm:$0xf] %vm2393, %v2367
        %2404 = vst.msk [vmem:[%s2392 + $0x28] sm:$0xf] %vm2393, %v2368
        %2405 = vst.msk [vmem:[%s2392 + $0x2c] sm:$0xf] %vm2393, %v2369
        %2406 = vst.msk [vmem:[%s2392 + $0x30] sm:$0xf] %vm2393, %v2370
        %2407 = vst.msk [vmem:[%s2392 + $0x34] sm:$0xf] %vm2393, %v2371
        %2408 = vst.msk [vmem:[%s2392 + $0x38] sm:$0xf] %vm2393, %v2372
        %2409 = vst.msk [vmem:[%s2392 + $0x3c] sm:$0xf] %vm2393, %v2373
      $region49: #{net_forward.7} parent=43 // loop_footer
        %s388 = sadd.s32 1, %s384
      $region50: #{net_forward.7} parent=43 // loop_footer_branch
        %383 = sbr.rel target = $region46
      $region51: #{net_forward.7} parent=43 // loop_exit
        _
      %s2410 = smul.u32 13, %s22
      %p2411 = scmp.lt.s32.totalorder %s21, 1
      %s2412 = scalar_select %p2411, %s21, 1
      %p2413 = scmp.lt.s32.totalorder %s2410, 25
      %s2414 = scalar_select %p2413, %s2410, 25
      %s2415 = smul.addr %s2414, 16
      %s2416 = smul.addr %s2412, 416
      %s2417 = sadd.s32 %s2415, %s2416
      %s2418 = smul.addr %s2417, 4
      %s2419 = scalar_lea.vmem %s6, %s2418
      // Predicated region
      $region52: #{net_forward.7} parent=43 // pred_check
        %p2420 = pneg %p180
      $region53: #{net_forward.7} parent=43 // pred_check_branch
        %2422 = sbr.rel (%p2420) target = $region55
      $region54: #{net_forward.7} parent=43 // pred_region
        %s2423 = smul.u32 13, %s22
      $region55: #{net_forward.7} parent=43 // pred_fallthru
        _
    $region44: #{net_forward.7} parent=5 // pred_fallthru
      _
    %p2424 = scmp.le.s32.totalorder 2, %s12
    // Predicated region
    $region56: #{net_forward.7} parent=5 // pred_check
      %p2425 = pneg %p2424
    $region57: #{net_forward.7} parent=5 // pred_check_branch
      %2427 = sbr.rel (%p2425) target = $region59
    $region58: #{net_forward.7} parent=5 // pred_region
      %s2428 = ssub.s32 %s12, 2
      // Predicated region
      $region60: #{net_forward.7} parent=58 // pred_check
        %p2429 = pneg %p186
      $region61: #{net_forward.7} parent=58 // pred_check_branch
        %2431 = sbr.rel (%p2429) target = $region63
      $region62: #{net_forward.7} parent=58 // pred_region
        %s2432 = smul.u32 13, %s24
        %p2433 = scmp.lt.s32.totalorder %s23, 1
        %s2434 = scalar_select %p2433, %s23, 1
        %p2435 = scmp.lt.s32.totalorder %s2432, 25
        %s2436 = scalar_select %p2435, %s2432, 25
        %s2437 = smul.addr %s2436, 16
        %s2438 = smul.addr %s2434, 416
        %s2439 = sadd.s32 %s2437, %s2438
        %s2440 = smul.addr %s2439, 4
        %s2441 = scalar_lea.vmem %s6, %s2440
      $region63: #{net_forward.7} parent=58 // pred_fallthru
        _
    $region59: #{net_forward.7} parent=5 // pred_fallthru
      _
  $region6: #{net_forward.7} parent=0 // loop_footer
    %s16 = sadd.s32 1, %s12
  $region7: #{net_forward.7} parent=0 // loop_footer_branch
    %11 = sbr.rel target = $region3
  $region8: #{net_forward.7} parent=0 // loop_exit
    _

// kernel: net_forward.9
$region0: #{net_forward.9}
  #allocation0 [shape = 'u32[]', space=smem, size = 0x4, offset = 0x4, fixed_abs, tag = 'smem constant byte address 0x4 - core index']
  #allocation1 [shape = 'u32[144,128]{1,0:T(1,128)}', space=vmem, size = 0x12000, scoped, tag = 'internal scratch']
  #allocation2 [shape = 'f32[1,1]{1,0:T(1,128)S(1)}', space=vmem, size = 0x200, scoped, tag = 'scoped memory for net_forward.9']
  %s0 = inlined_call_operand.vmem [shape: bf16[2,512], index: 0, kind: input, shape index: {}]
  %s1 = inlined_call_operand.vmem [shape: bf16[512,64], index: 1, kind: input, shape index: {}]
  %s2 = inlined_call_operand.vmem [shape: f32[1,64], index: 2, kind: input, shape index: {}]
  %s3 = inlined_call_operand.vmem [shape: bf16[64,1], index: 3, kind: input, shape index: {}]
  %s4 = inlined_call_operand.<no memory space> [shape: f32[1,1], index: 4, kind: input, shape index: {}]
  %s5 = inlined_call_operand.vmem [shape: f32[2,1], index: 5, kind: output, shape index: {}]
  %s6 = sld [smem:[#allocation0]]
  $region30: #{net_forward.9} parent=0
    _
  %s8 = ssub.s32 1, %s6
  %s9 = scalar_select 0, %s8, %s6
  %v10 = vstv %s4
  %11 = vst [vmem:[#allocation2] sm:$0x1] %v10
  // Predicated region
  $region2: #{net_forward.9} parent=0 // pred_check
    _
  $region3: #{net_forward.9} parent=0 // pred_check_branch
    %13 = sbr.rel (0) target = $region5
  $region4: #{net_forward.9} parent=0 // pred_region
    _
  $region5: #{net_forward.9} parent=0 // pred_fallthru
    _
  // Predicated region
  $region6: #{net_forward.9} parent=0 // pred_check
    _
  $region7: #{net_forward.9} parent=0 // pred_check_branch
    %15 = sbr.rel (0) target = $region9
  $region8: #{net_forward.9} parent=0 // pred_region
    _
  $region9: #{net_forward.9} parent=0 // pred_fallthru
    _
  // Predicated region
  $region10: #{net_forward.9} parent=0 // pred_check
    _
  $region11: #{net_forward.9} parent=0 // pred_check_branch
    %17 = sbr.rel (0) target = $region13
  $region12: #{net_forward.9} parent=0 // pred_region
    _
  $region13: #{net_forward.9} parent=0 // pred_fallthru
    _
  // Predicated region
  $region14: #{net_forward.9} parent=0 // pred_check
    _
  $region15: #{net_forward.9} parent=0 // pred_check_branch
    %19 = sbr.rel (0) target = $region17
  $region16: #{net_forward.9} parent=0 // pred_region
    _
  $region17: #{net_forward.9} parent=0 // pred_fallthru
    _
  // Predicated region
  $region18: #{net_forward.9} parent=0 // pred_check
    _
  $region19: #{net_forward.9} parent=0 // pred_check_branch
    %21 = sbr.rel (0) target = $region21
  $region20: #{net_forward.9} parent=0 // pred_region
    _
  $region21: #{net_forward.9} parent=0 // pred_fallthru
    _
  %v23 = vld [vmem:[%s0] sm:$0xf]
  %v24 = vld [vmem:[%s1] sm:$0xf]
  %v25 = vld [vmem:[%s1 + $0x4] sm:$0xf]
  %v26 = vld [vmem:[%s1 + $0x8] sm:$0xf]
  %v27 = vld [vmem:[%s1 + $0xc] sm:$0xf]
  %v28 = vld [vmem:[%s1 + $0x10] sm:$0xf]
  %v29 = vld [vmem:[%s1 + $0x14] sm:$0xf]
  %v30 = vld [vmem:[%s1 + $0x18] sm:$0xf]
  %v31 = vld [vmem:[%s1 + $0x1c] sm:$0xf]
  %v32 = vld [vmem:[%s1 + $0x20] sm:$0xf]
  %v33 = vld [vmem:[%s1 + $0x24] sm:$0xf]
  %v34 = vld [vmem:[%s1 + $0x28] sm:$0xf]
  %v35 = vld [vmem:[%s1 + $0x2c] sm:$0xf]
  %v36 = vld [vmem:[%s1 + $0x30] sm:$0xf]
  %v37 = vld [vmem:[%s1 + $0x34] sm:$0xf]
  %v38 = vld [vmem:[%s1 + $0x38] sm:$0xf]
  %v39 = vld [vmem:[%s1 + $0x3c] sm:$0xf]
  %v40 = vld [vmem:[%s1 + $0x40] sm:$0xf]
  %v41 = vld [vmem:[%s1 + $0x44] sm:$0xf]
  %v42 = vld [vmem:[%s1 + $0x48] sm:$0xf]
  %v43 = vld [vmem:[%s1 + $0x4c] sm:$0xf]
  %v44 = vld [vmem:[%s1 + $0x50] sm:$0xf]
  %v45 = vld [vmem:[%s1 + $0x54] sm:$0xf]
  %v46 = vld [vmem:[%s1 + $0x58] sm:$0xf]
  %v47 = vld [vmem:[%s1 + $0x5c] sm:$0xf]
  %v48 = vld [vmem:[%s1 + $0x60] sm:$0xf]
  %v49 = vld [vmem:[%s1 + $0x64] sm:$0xf]
  %v50 = vld [vmem:[%s1 + $0x68] sm:$0xf]
  %v51 = vld [vmem:[%s1 + $0x6c] sm:$0xf]
  %v52 = vld [vmem:[%s1 + $0x70] sm:$0xf]
  %v53 = vld [vmem:[%s1 + $0x74] sm:$0xf]
  %v54 = vld [vmem:[%s1 + $0x78] sm:$0xf]
  %v55 = vld [vmem:[%s1 + $0x7c] sm:$0xf]
  %v56 = vld [vmem:[%s1 + $0x80] sm:$0xf]
  %v57 = vld [vmem:[%s1 + $0x84] sm:$0xf]
  %v58 = vld [vmem:[%s1 + $0x88] sm:$0xf]
  %v59 = vld [vmem:[%s1 + $0x8c] sm:$0xf]
  %v60 = vld [vmem:[%s1 + $0x90] sm:$0xf]
  %v61 = vld [vmem:[%s1 + $0x94] sm:$0xf]
  %v62 = vld [vmem:[%s1 + $0x98] sm:$0xf]
  %v63 = vld [vmem:[%s1 + $0x9c] sm:$0xf]
  %v64 = vld [vmem:[%s1 + $0xa0] sm:$0xf]
  %v65 = vld [vmem:[%s1 + $0xa4] sm:$0xf]
  %v66 = vld [vmem:[%s1 + $0xa8] sm:$0xf]
  %v67 = vld [vmem:[%s1 + $0xac] sm:$0xf]
  %v68 = vld [vmem:[%s1 + $0xb0] sm:$0xf]
  %v69 = vld [vmem:[%s1 + $0xb4] sm:$0xf]
  %v70 = vld [vmem:[%s1 + $0xb8] sm:$0xf]
  %v71 = vld [vmem:[%s1 + $0xbc] sm:$0xf]
  %v72 = vld [vmem:[%s1 + $0xc0] sm:$0xf]
  %v73 = vld [vmem:[%s1 + $0xc4] sm:$0xf]
  %v74 = vld [vmem:[%s1 + $0xc8] sm:$0xf]
  %v75 = vld [vmem:[%s1 + $0xcc] sm:$0xf]
  %v76 = vld [vmem:[%s1 + $0xd0] sm:$0xf]
  %v77 = vld [vmem:[%s1 + $0xd4] sm:$0xf]
  %v78 = vld [vmem:[%s1 + $0xd8] sm:$0xf]
  %v79 = vld [vmem:[%s1 + $0xdc] sm:$0xf]
  %v80 = vld [vmem:[%s1 + $0xe0] sm:$0xf]
  %v81 = vld [vmem:[%s1 + $0xe4] sm:$0xf]
  %v82 = vld [vmem:[%s1 + $0xe8] sm:$0xf]
  %v83 = vld [vmem:[%s1 + $0xec] sm:$0xf]
  %v84 = vld [vmem:[%s1 + $0xf0] sm:$0xf]
  %v85 = vld [vmem:[%s1 + $0xf4] sm:$0xf]
  %v86 = vld [vmem:[%s1 + $0xf8] sm:$0xf]
  %v87 = vld [vmem:[%s1 + $0xfc] sm:$0xf]
  %v88 = vld [vmem:[%s2] sm:$0x1]
  %v90 = vlaneseq
  %v91 = vshrl.u32 %v90, 7
  %v92 = vsub.s32 0, %v91
  %v93 = vrot.slane %v88, %v92
  %v97 = vunpack.c.l.s4 1966171168
  %v98 = vunpack.c.0.s8 %v97
  %v99 = vlaneseq
  %v100 = vshrl.u32 %v99, 7
  %v101 = vsub.s32 %v98, %v100
  %v102 = vrot.slane %v23, %v101
  %v103 = vcombine.high %v102, %v102
  %v105 = vunpack.c.l.s4 1966171168
  %v106 = vunpack.c.0.s8 %v105
  %v107 = vlaneseq
  %v108 = vshrl.u32 %v107, 7
  %v109 = vsub.s32 %v106, %v108
  %v110 = vrot.slane %v102, %v109
  %v112 = vunpack.c.l.s4 1966171168
  %v113 = vunpack.c.0.s8 %v112
  %v114 = vlaneseq
  %v115 = vshrl.u32 %v114, 7
  %v116 = vsub.s32 %v113, %v115
  %v117 = vrot.slane %v103, %v116
  %v118 = vcombine.high %v110, %v110
  %v119 = vcombine.high %v117, %v117
  %v188 = vunpack.c.l.b16 %v24
  %v189 = vunpack.c.l.b16 %v25
  %v190 = vunpack.c.l.b16 %v26
  %v191 = vunpack.c.l.b16 %v27
  %v192 = vunpack.c.l.b16 %v28
  %v193 = vunpack.c.l.b16 %v29
  %v194 = vunpack.c.l.b16 %v30
  %v195 = vunpack.c.l.b16 %v31
  %v196 = vunpack.c.l.b16 %v32
  %v197 = vunpack.c.l.b16 %v33
  %v198 = vunpack.c.l.b16 %v34
  %v199 = vunpack.c.l.b16 %v35
  %v200 = vunpack.c.l.b16 %v36
  %v201 = vunpack.c.l.b16 %v37
  %v202 = vunpack.c.l.b16 %v38
  %v203 = vunpack.c.l.b16 %v39
  %v204 = vunpack.c.l.b16 %v40
  %v205 = vunpack.c.l.b16 %v41
  %v206 = vunpack.c.l.b16 %v42
  %v207 = vunpack.c.l.b16 %v43
  %v208 = vunpack.c.l.b16 %v44
  %v209 = vunpack.c.l.b16 %v45
  %v210 = vunpack.c.l.b16 %v46
  %v211 = vunpack.c.l.b16 %v47
  %v212 = vunpack.c.l.b16 %v48
  %v213 = vunpack.c.l.b16 %v49
  %v214 = vunpack.c.l.b16 %v50
  %v215 = vunpack.c.l.b16 %v51
  %v216 = vunpack.c.l.b16 %v52
  %v217 = vunpack.c.l.b16 %v53
  %v218 = vunpack.c.l.b16 %v54
  %v219 = vunpack.c.l.b16 %v55
  %v220 = vunpack.c.l.b16 %v56
  %v221 = vunpack.c.l.b16 %v57
  %v222 = vunpack.c.l.b16 %v58
  %v223 = vunpack.c.l.b16 %v59
  %v224 = vunpack.c.l.b16 %v60
  %v225 = vunpack.c.l.b16 %v61
  %v226 = vunpack.c.l.b16 %v62
  %v227 = vunpack.c.l.b16 %v63
  %v228 = vunpack.c.l.b16 %v64
  %v229 = vunpack.c.l.b16 %v65
  %v230 = vunpack.c.l.b16 %v66
  %v231 = vunpack.c.l.b16 %v67
  %v232 = vunpack.c.l.b16 %v68
  %v233 = vunpack.c.l.b16 %v69
  %v234 = vunpack.c.l.b16 %v70
  %v235 = vunpack.c.l.b16 %v71
  %v236 = vunpack.c.l.b16 %v72
  %v237 = vunpack.c.l.b16 %v73
  %v238 = vunpack.c.l.b16 %v74
  %v239 = vunpack.c.l.b16 %v75
  %v240 = vunpack.c.l.b16 %v76
  %v241 = vunpack.c.l.b16 %v77
  %v242 = vunpack.c.l.b16 %v78
  %v243 = vunpack.c.l.b16 %v79
  %v244 = vunpack.c.l.b16 %v80
  %v245 = vunpack.c.l.b16 %v81
  %v246 = vunpack.c.l.b16 %v82
  %v247 = vunpack.c.l.b16 %v83
  %v248 = vunpack.c.l.b16 %v84
  %v249 = vunpack.c.l.b16 %v85
  %v250 = vunpack.c.l.b16 %v86
  %v251 = vunpack.c.l.b16 %v87
  %v252 = vpack.c.b16 %v189, %v188
  %v253 = vpack.c.b16 %v191, %v190
  %v254 = vpack.c.b16 %v193, %v192
  %v255 = vpack.c.b16 %v195, %v194
  %v256 = vpack.c.b16 %v197, %v196
  %v257 = vpack.c.b16 %v199, %v198
  %v258 = vpack.c.b16 %v201, %v200
  %v259 = vpack.c.b16 %v203, %v202
  %v260 = vpack.c.b16 %v205, %v204
  %v261 = vpack.c.b16 %v207, %v206
  %v262 = vpack.c.b16 %v209, %v208
  %v263 = vpack.c.b16 %v211, %v210
  %v264 = vpack.c.b16 %v213, %v212
  %v265 = vpack.c.b16 %v215, %v214
  %v266 = vpack.c.b16 %v217, %v216
  %v267 = vpack.c.b16 %v219, %v218
  %v268 = vpack.c.b16 %v221, %v220
  %v269 = vpack.c.b16 %v223, %v222
  %v270 = vpack.c.b16 %v225, %v224
  %v271 = vpack.c.b16 %v227, %v226
  %v272 = vpack.c.b16 %v229, %v228
  %v273 = vpack.c.b16 %v231, %v230
  %v274 = vpack.c.b16 %v233, %v232
  %v275 = vpack.c.b16 %v235, %v234
  %v276 = vpack.c.b16 %v237, %v236
  %v277 = vpack.c.b16 %v239, %v238
  %v278 = vpack.c.b16 %v241, %v240
  %v279 = vpack.c.b16 %v243, %v242
  %v280 = vpack.c.b16 %v245, %v244
  %v281 = vpack.c.b16 %v247, %v246
  %v282 = vpack.c.b16 %v249, %v248
  %v283 = vpack.c.b16 %v251, %v250
  %316 = vmatprep.subr.bf16.mxu0 0
  %317 = vmatpush1.bf16.msra.mxu0 %v259
  %318 = vmatprep.subr.bf16.mxu0 0
  %319 = vmatpush1.bf16.msra.mxu0 %v258
  %320 = vmatprep.subr.bf16.mxu0 0
  %321 = vmatpush1.bf16.msra.mxu0 %v257
  %322 = vmatprep.subr.bf16.mxu0 0
  %323 = vmatpush1.bf16.msra.mxu0 %v256
  %324 = vmatprep.subr.bf16.mxu0 0
  %325 = vmatpush1.bf16.msra.mxu0 %v255
  %326 = vmatprep.subr.bf16.mxu0 0
  %327 = vmatpush1.bf16.msra.mxu0 %v254
  %328 = vmatprep.subr.bf16.mxu0 0
  %329 = vmatpush1.bf16.msra.mxu0 %v253
  %330 = vmatprep.subr.bf16.mxu0 0
  %331 = vmatpush1.bf16.msra.mxu0 %v252
  %332 = vmatprep.subr.bf16.mxu0 0
  %333 = vmatpush2.bf16.msra.mxu0 %v267
  %334 = vmatprep.subr.bf16.mxu0 0
  %335 = vmatpush2.bf16.msra.mxu0 %v266
  %336 = vmatprep.subr.bf16.mxu0 0
  %337 = vmatpush2.bf16.msra.mxu0 %v265
  %338 = vmatprep.subr.bf16.mxu0 0
  %339 = vmatpush2.bf16.msra.mxu0 %v264
  %340 = vmatprep.subr.bf16.mxu0 0
  %341 = vmatpush2.bf16.msra.mxu0 %v263
  %342 = vmatprep.subr.bf16.mxu0 0
  %343 = vmatpush2.bf16.msra.mxu0 %v262
  %344 = vmatprep.subr.bf16.mxu0 0
  %345 = vmatpush2.bf16.msra.mxu0 %v261
  %346 = vmatprep.subr.bf16.mxu0 0
  %347 = vmatpush2.bf16.msra.mxu0 %v260
  %348 = vmatprep.mubr.bf16.mxu0 %v117
  %349 = vmatmul.mubr.bf16.gmra.mxu0 %v110
  %v350 = vpop.f32.mrf.mxu0
  %v351 = vadd.f32 %v93, %v350
  %v352 = vpop.f32.mrf.mxu0
  %v353 = vpop.f32.mrf.mxu0
  %v354 = vpop.f32.mrf.mxu0
  %355 = vdwg.mxu0
  %356 = vmatprep.subr.bf16.mxu0 0
  %357 = vmatpush1.bf16.msra.mxu0 %v275
  %358 = vmatprep.subr.bf16.mxu0 0
  %359 = vmatpush1.bf16.msra.mxu0 %v274
  %360 = vmatprep.subr.bf16.mxu0 0
  %361 = vmatpush1.bf16.msra.mxu0 %v273
  %362 = vmatprep.subr.bf16.mxu0 0
  %363 = vmatpush1.bf16.msra.mxu0 %v272
  %364 = vmatprep.subr.bf16.mxu0 0
  %365 = vmatpush1.bf16.msra.mxu0 %v271
  %366 = vmatprep.subr.bf16.mxu0 0
  %367 = vmatpush1.bf16.msra.mxu0 %v270
  %368 = vmatprep.subr.bf16.mxu0 0
  %369 = vmatpush1.bf16.msra.mxu0 %v269
  %370 = vmatprep.subr.bf16.mxu0 0
  %371 = vmatpush1.bf16.msra.mxu0 %v268
  %372 = vmatprep.subr.bf16.mxu0 0
  %373 = vmatpush2.bf16.msra.mxu0 %v283
  %374 = vmatprep.subr.bf16.mxu0 0
  %375 = vmatpush2.bf16.msra.mxu0 %v282
  %376 = vmatprep.subr.bf16.mxu0 0
  %377 = vmatpush2.bf16.msra.mxu0 %v281
  %378 = vmatprep.subr.bf16.mxu0 0
  %379 = vmatpush2.bf16.msra.mxu0 %v280
  %380 = vmatprep.subr.bf16.mxu0 0
  %381 = vmatpush2.bf16.msra.mxu0 %v279
  %382 = vmatprep.subr.bf16.mxu0 0
  %383 = vmatpush2.bf16.msra.mxu0 %v278
  %384 = vmatprep.subr.bf16.mxu0 0
  %385 = vmatpush2.bf16.msra.mxu0 %v277
  %386 = vmatprep.subr.bf16.mxu0 0
  %387 = vmatpush2.bf16.msra.mxu0 %v276
  %388 = vmatprep.mubr.bf16.mxu0 %v119
  %389 = vmatmul.mubr.bf16.gmra.mxu0 %v118
  %v390 = vpop.f32.mrf.mxu0
  %v391 = vadd.f32 %v351, %v390
  %v392 = vpop.f32.mrf.mxu0
  %v393 = vpop.f32.mrf.mxu0
  %v394 = vpop.f32.mrf.mxu0
  %395 = vdwg.mxu0
  %v396 = vmax.f32 %v391, 0.0
  %v397 = vpack.c.bf16 %v396, %v396
  %v398 = vld [vmem:[%s3] sm:$0xf]
  %v399 = vld [vmem:[%s3 + $0x4] sm:$0xf]
  %v400 = vld [vmem:[%s3 + $0x8] sm:$0xf]
  %v401 = vld [vmem:[%s3 + $0xc] sm:$0xf]
  %v402 = vld [vmem:[%s3 + $0x10] sm:$0xf]
  %v403 = vld [vmem:[%s3 + $0x14] sm:$0xf]
  %v404 = vld [vmem:[%s3 + $0x18] sm:$0xf]
  %v405 = vld [vmem:[%s3 + $0x1c] sm:$0xf]
  %v406 = vld [vmem:[#allocation2] sm:$0x1]
  %v408 = vlaneseq
  %v409 = vshrl.u32 %v408, 7
  %v410 = vsub.s32 0, %v409
  %v411 = vrot.slane %v406, %v410
  %v421 = vunpack.c.l.b16 %v398
  %v422 = vunpack.c.l.b16 %v399
  %v423 = vunpack.c.l.b16 %v400
  %v424 = vunpack.c.l.b16 %v401
  %v425 = vunpack.c.l.b16 %v402
  %v426 = vunpack.c.l.b16 %v403
  %v427 = vunpack.c.l.b16 %v404
  %v428 = vunpack.c.l.b16 %v405
  %v429 = vpack.c.b16 %v422, %v421
  %v430 = vpack.c.b16 %v424, %v423
  %v431 = vpack.c.b16 %v426, %v425
  %v432 = vpack.c.b16 %v428, %v427
  %vm437 = vcmask 523264
  %v439 = vsel %vm437, %v397, 0
  %441 = vmatprep.subr.bf16.mxu0 0
  %442 = vmatpush1.bf16.msra.mxu0 0
  %443 = vmatprep.subr.bf16.mxu0 0
  %444 = vmatpush1.bf16.msra.mxu0 0
  %445 = vmatprep.subr.bf16.mxu0 0
  %446 = vmatpush1.bf16.msra.mxu0 0
  %447 = vmatprep.subr.bf16.mxu0 0
  %448 = vmatpush1.bf16.msra.mxu0 0
  %449 = vmatprep.subr.bf16.mxu0 0
  %450 = vmatpush1.bf16.msra.mxu0 %v432
  %451 = vmatprep.subr.bf16.mxu0 0
  %452 = vmatpush1.bf16.msra.mxu0 %v431
  %453 = vmatprep.subr.bf16.mxu0 0
  %454 = vmatpush1.bf16.msra.mxu0 %v430
  %455 = vmatprep.subr.bf16.mxu0 0
  %456 = vmatpush1.bf16.msra.mxu0 %v429
  %457 = vmatprep.subr.bf16.mxu0 0
  %458 = vmatpush2.bf16.msra.mxu0 0
  %459 = vmatprep.subr.bf16.mxu0 0
  %460 = vmatpush2.bf16.msra.mxu0 0
  %461 = vmatprep.subr.bf16.mxu0 0
  %462 = vmatpush2.bf16.msra.mxu0 0
  %463 = vmatprep.subr.bf16.mxu0 0
  %464 = vmatpush2.bf16.msra.mxu0 0
  %465 = vmatprep.subr.bf16.mxu0 0
  %466 = vmatpush2.bf16.msra.mxu0 0
  %467 = vmatprep.subr.bf16.mxu0 0
  %468 = vmatpush2.bf16.msra.mxu0 0
  %469 = vmatprep.subr.bf16.mxu0 0
  %470 = vmatpush2.bf16.msra.mxu0 0
  %471 = vmatprep.subr.bf16.mxu0 0
  %472 = vmatpush2.bf16.msra.mxu0 0
  %473 = vmatprep.mubr.bf16.mxu0 0
  %474 = vmatmul.mubr.bf16.gmra.mxu0 %v439
  %v475 = vpop.f32.mrf.mxu0
  %v476 = vadd.f32 %v411, %v475
  %v477 = vpop.f32.mrf.mxu0
  %v478 = vpop.f32.mrf.mxu0
  %v479 = vpop.f32.mrf.mxu0
  %480 = vdwg.mxu0
  %v481 = vxor.u32 %v476, 2147483648
  %v482 = vmul.f32 %v481, 1.442695
  %v483 = vpow.pop %v482
  %v484 = vadd.f32 %v483, 1.0
  %v485 = vrcp.pop %v484
  %v486 = vmul.f32 1.0, %v485
  %vm487 = vcmask 1024
  %488 = vst.msk [vmem:[%s5] sm:$0x3] %vm487, %v486
  // Predicated region
  $region22: #{net_forward.9} parent=0 // pred_check
    _
  $region23: #{net_forward.9} parent=0 // pred_check_branch
    %490 = sbr.rel (0) target = $region25
  $region24: #{net_forward.9} parent=0 // pred_region
    _
  $region25: #{net_forward.9} parent=0 // pred_fallthru
    _
  // Predicated region
  $region26: #{net_forward.9} parent=0 // pred_check
    _
  $region27: #{net_forward.9} parent=0 // pred_check_branch
    %492 = sbr.rel (0) target = $region29
  $region28: #{net_forward.9} parent=0 // pred_region
    _
  $region29: #{net_forward.9} parent=0 // pred_fallthru
    _

// kernel: net_forward.8
$region0: #{net_forward.8}
  #allocation0 [shape = 'u32[]', space=smem, size = 0x4, offset = 0x4, fixed_abs, tag = 'smem constant byte address 0x4 - core index']
  #allocation1 [shape = 'u32[144,128]{1,0:T(1,128)}', space=vmem, size = 0x12000, scoped, tag = 'internal scratch']
  #allocation2 [shape = 'f32[2,256]{1,0:T(2,128)}', space=vmem, size = 0x800, scoped, tag = 'scratch operand']
  %s0 = inlined_call_operand.vmem [shape: bf16[2,86528], index: 0, kind: input, shape index: {}]
  %s1 = inlined_call_operand.hbm [shape: bf16[86528,512], index: 1, kind: input, shape index: {}]
  %s2 = inlined_call_operand.vmem [shape: f32[1,512], index: 2, kind: input, shape index: {}]
  %s3 = inlined_call_operand.vmem [shape: bf16[2,512], index: 3, kind: output, shape index: {}]
  %s4 = sld [smem:[#allocation0]]
  $region57: #{net_forward.8} parent=0
    _
  %s6 = ssub.s32 1, %s4
  %s7 = scalar_select 0, %s6, %s4
  $region1: #{net_forward.8} parent=0
    #allocation3 [shape = 'u8[6815744]{0}', space=vmem, size = 0x680000, scoped, tag = 'input window, operand 1']
    #allocation4 [shape = 's32[2]{0}', space=sflag, size = 0x8, scoped, tag = 'scoped memory for net_forward.8']
    %8 = vsyncpa [#allocation4], 0
    %s9 = scalar_lea.sflag [#allocation4], 1
    %10 = vsyncpa %s9, 0
    loop: start=0, step=1, limit=28
    $region2: #{net_forward.8} parent=1 // loop_pre_header
      _
    $region3: #{net_forward.8} parent=1 // loop_header
      %s12 = sphi 0, %s16
      %p13 = scmp.ge.s32.totalorder %s12, 28
      %s19 = sphi 0, %s31
      %s20 = sphi 0, %s27
      %s21 = sphi 0, %s19
      %s22 = sphi 0, %s20
      %s23 = sphi 0, %s21
      %s24 = sphi 0, %s22
      %s32 = sphi 0, %s32
      %s34 = sphi 0, %s32
      %s35 = sphi 0, %s34
      %s49 = sphi 0, %s35
      %s57 = sphi 0, %s59
      %s60 = sphi 0, %s57
      %s61 = sphi 0, %s60
      %s77 = sphi 0, %s61
      %s83 = sphi 0, %s85
      %s86 = sphi 0, %s83
      %s87 = sphi 0, %s86
      %s103 = sphi 0, %s87
      %s109 = sphi 0, %s111
      %s112 = sphi 0, %s109
      %s113 = sphi 0, %s112
      %s129 = sphi 0, %s113
    $region4: #{net_forward.8} parent=1 // loop_header_branch
      %15 = sbr.rel (%p13) target = $region8
    $region5: #{net_forward.8} parent=1 // loop_body
      %s17 = ssub.s32 %s12, 1
      %s18 = ssub.s32 %s12, 2
      %s25 = sadd.s32 1, %s20
      %p26 = scmp.ge.s32.totalorder %s25, 13
      %s27 = scalar_select %p26, 0, %s25
      %s28 = sadd.s32 1, %s19
      %s29 = scalar_select %p26, %s28, %s19
      %p30 = scmp.ge.s32.totalorder %s29, 2
      %s31 = scalar_select %p30, 0, %s29
      %s33 = sadd.s32 %s32, 1
      %p36 = scmp.eq.s32.totalorder %s12, 25
      %p37 = scmp.ne.s32.totalorder %s32, %s34
      %p38 = scmp.eq.s32.totalorder %s12, 0
      %p39 = por %p37, %p38
      %p40 = scmp.ne.s32.totalorder %s32, %s34
      %p41 = scmp.eq.s32.totalorder %s17, 25
      %p42 = por %p40, %p41
      %p43 = scmp.ne.s32.totalorder %s34, %s35
      %p44 = scmp.eq.s32.totalorder %s17, 0
      %p45 = por %p43, %p44
      %p46 = scmp.ne.s32.totalorder %s34, %s35
      %p47 = scmp.eq.s32.totalorder %s18, 25
      %p48 = por %p46, %p47
      %p50 = scmp.ne.s32.totalorder %s35, %s49
      %p51 = scmp.eq.s32.totalorder %s18, 0
      %p52 = por %p50, %p51
      %s53 = ssub.s32 %s20, %s27
      %s54 = ssub.s32 %s19, %s31
      %s55 = sor.u32 %s53, %s54
      %p56 = scmp.eq.s32.totalorder %s55, 0
      %s58 = sadd.s32 %s57, 1
      %s59 = scalar_select %p56, %s57, %s58
      %p62 = pneg %p56
      %p63 = scmp.eq.s32.totalorder %s12, 25
      %p64 = por %p62, %p63
      %p65 = scmp.ne.s32.totalorder %s57, %s60
      %p66 = scmp.eq.s32.totalorder %s12, 0
      %p67 = por %p65, %p66
      %p68 = scmp.ne.s32.totalorder %s57, %s60
      %p69 = scmp.eq.s32.totalorder %s17, 25
      %p70 = por %p68, %p69
      %p71 = scmp.ne.s32.totalorder %s60, %s61
      %p72 = scmp.eq.s32.totalorder %s17, 0
      %p73 = por %p71, %p72
      %p74 = scmp.ne.s32.totalorder %s60, %s61
      %p75 = scmp.eq.s32.totalorder %s18, 25
      %p76 = por %p74, %p75
      %p78 = scmp.ne.s32.totalorder %s61, %s77
      %p79 = scmp.eq.s32.totalorder %s18, 0
      %p80 = por %p78, %p79
      %s81 = ssub.s32 %s19, %s31
      %p82 = scmp.eq.s32.totalorder %s81, 0
      %s84 = sadd.s32 %s83, 1
      %s85 = scalar_select %p82, %s83, %s84
      %p88 = pneg %p82
      %p89 = scmp.eq.s32.totalorder %s12, 25
      %p90 = por %p88, %p89
      %p91 = scmp.ne.s32.totalorder %s83, %s86
      %p92 = scmp.eq.s32.totalorder %s12, 0
      %p93 = por %p91, %p92
      %p94 = scmp.ne.s32.totalorder %s83, %s86
      %p95 = scmp.eq.s32.totalorder %s17, 25
      %p96 = por %p94, %p95
      %p97 = scmp.ne.s32.totalorder %s86, %s87
      %p98 = scmp.eq.s32.totalorder %s17, 0
      %p99 = por %p97, %p98
      %p100 = scmp.ne.s32.totalorder %s86, %s87
      %p101 = scmp.eq.s32.totalorder %s18, 25
      %p102 = por %p100, %p101
      %p104 = scmp.ne.s32.totalorder %s87, %s103
      %p105 = scmp.eq.s32.totalorder %s18, 0
      %p106 = por %p104, %p105
      %s107 = ssub.s32 %s19, %s31
      %p108 = scmp.eq.s32.totalorder %s107, 0
      %s110 = sadd.s32 %s109, 1
      %s111 = scalar_select %p108, %s109, %s110
      %p114 = pneg %p108
      %p115 = scmp.eq.s32.totalorder %s12, 25
      %p116 = por %p114, %p115
      %p117 = scmp.ne.s32.totalorder %s109, %s112
      %p118 = scmp.eq.s32.totalorder %s12, 0
      %p119 = por %p117, %p118
      %p120 = scmp.ne.s32.totalorder %s109, %s112
      %p121 = scmp.eq.s32.totalorder %s17, 25
      %p122 = por %p120, %p121
      %p123 = scmp.ne.s32.totalorder %s112, %s113
      %p124 = scmp.eq.s32.totalorder %s17, 0
      %p125 = por %p123, %p124
      %p126 = scmp.ne.s32.totalorder %s112, %s113
      %p127 = scmp.eq.s32.totalorder %s18, 25
      %p128 = por %p126, %p127
      %p130 = scmp.ne.s32.totalorder %s113, %s129
      %p131 = scmp.eq.s32.totalorder %s18, 0
      %p132 = por %p130, %p131
      %p133 = scmp.le.s32.totalorder 1, %s12
      %p134 = scmp.lt.s32.totalorder %s12, 27
      %p135 = pnand %p133, %p134
      %p136 = pneg %p135
      // Predicated region
      $region9: #{net_forward.8} parent=5 // pred_check
        _
      $region10: #{net_forward.8} parent=5 // pred_check_branch
        %138 = sbr.rel (%p135) target = $region12
      $region11: #{net_forward.8} parent=5 // pred_region
        %s139 = ssub.s32 %s12, 1
        // Predicated region
        $region13: #{net_forward.8} parent=11 // pred_check
          %p140 = pneg %p45
        $region14: #{net_forward.8} parent=11 // pred_check_branch
          %142 = sbr.rel (%p140) target = $region16
        $region15: #{net_forward.8} parent=11 // pred_region
          _
        $region16: #{net_forward.8} parent=11 // pred_fallthru
          _
      $region12: #{net_forward.8} parent=5 // pred_fallthru
        _
      %p143 = scmp.lt.s32.totalorder %s12, 26
      // Predicated region
      $region17: #{net_forward.8} parent=5 // pred_check
        %p144 = pneg %p143
      $region18: #{net_forward.8} parent=5 // pred_check_branch
        %146 = sbr.rel (%p144) target = $region20
      $region19: #{net_forward.8} parent=5 // pred_region
        // Predicated region
        $region21: #{net_forward.8} parent=19 // pred_check
          %p147 = pneg %p67
        $region22: #{net_forward.8} parent=19 // pred_check_branch
          %149 = sbr.rel (%p147) target = $region24
        $region23: #{net_forward.8} parent=19 // pred_region
          %s150 = sand.u32 %s57, 1
          %s151 = scalar_lea.sflag [#allocation4], %s150
          %s152 = sand.u32 %s57, 1
          %s153 = smul.addr %s152, 6656
          %s154 = scalar_lea.vmem [#allocation3], %s153
          %s155 = smul.u32 832, %s20
          %s156 = smul.u32 2, %s19
          %s158 = ssub.s32 106496, 106496
          %159 = vsyncadd %s151, %s158
          %s160 = smul.addr %s155, 4
          %s161 = sadd.s32 %s156, %s160
          %s162 = smul.addr %s161, 64
          %s163 = scalar_lea.hbm %s1, %s162
          %s164 = sshll.u32 %s154, 4
          %s165 = int_to_ptr.vmem [resolvable:$true] %s164
          %170 = dma.hbm_to_vmem [thread:$0]  %s163, 106496, %s165, %s151, 256, 128, 8
        $region24: #{net_forward.8} parent=19 // pred_fallthru
          _
        // Predicated region
        $region25: #{net_forward.8} parent=19 // pred_check
          %p171 = pneg %p93
        $region26: #{net_forward.8} parent=19 // pred_check_branch
          %173 = sbr.rel (%p171) target = $region28
        $region27: #{net_forward.8} parent=19 // pred_region
          %s174 = smul.u32 2, %s19
          %p175 = scmp.lt.s32.totalorder %s174, 3
          %s176 = scalar_select %p175, %s174, 3
          %s177 = scalar_lea.vmem %s2, %s176
          %s178 = smul.u32 2, %s19
        $region28: #{net_forward.8} parent=19 // pred_fallthru
          _
      $region20: #{net_forward.8} parent=5 // pred_fallthru
        _
      %p179 = scmp.le.s32.totalorder 1, %s12
      %p180 = scmp.lt.s32.totalorder %s12, 27
      %p181 = pnand %p179, %p180
      %p182 = pneg %p181
      // Predicated region
      $region29: #{net_forward.8} parent=5 // pred_check
        _
      $region30: #{net_forward.8} parent=5 // pred_check_branch
        %184 = sbr.rel (%p181) target = $region32
      $region31: #{net_forward.8} parent=5 // pred_region
        %s185 = ssub.s32 %s12, 1
        %s186 = sand.u32 %s60, 1
        %s187 = scalar_lea.sflag [#allocation4], %s186
        %s188 = sand.u32 %s60, 1
        %s189 = smul.addr %s188, 6656
        %s190 = scalar_lea.vmem [#allocation3], %s189
        // Predicated region
        $region33: #{net_forward.8} parent=31 // pred_check
          %p191 = pneg %p73
        $region34: #{net_forward.8} parent=31 // pred_check_branch
          %193 = sbr.rel (%p191) target = $region36
        $region35: #{net_forward.8} parent=31 // pred_region
          %194 = dma.done %s187, 106496
        $region36: #{net_forward.8} parent=31 // pred_fallthru
          _
        %p195 = pneg %p45
        %p196 = pneg %p42
        %s197 = sand.u32 %s60, 1
        %s198 = scalar_lea.sflag [#allocation4], %s197
        %s199 = sand.u32 %s60, 1
        %s200 = smul.addr %s199, 6656
        %s201 = scalar_lea.vmem [#allocation3], %s200
        %p202 = pneg %p73
        %p203 = pneg %p70
        %s204 = smul.u32 2, %s21
        %p205 = scmp.lt.s32.totalorder %s204, 3
        %s206 = scalar_select %p205, %s204, 3
        %s207 = scalar_lea.vmem %s2, %s206
        %p208 = pneg %p99
        %p209 = pneg %p96
        %p210 = pneg %p125
        %p211 = pneg %p122
        %s212 = smul.u32 2, %s21
        %p213 = scmp.lt.s32.totalorder %s212, 3
        %s214 = scalar_select %p213, %s212, 3
        %s215 = scalar_lea.vmem %s3, %s214
        %s216 = smul.u32 832, %s22
        %s217 = smul.u32 2, %s21
        %s218 = smul.u32 2, %s21
        %p219 = scmp.lt.s32.totalorder %s218, 3
        %s220 = scalar_select %p219, %s218, 3
        %s221 = scalar_lea.vmem %s2, %s220
        %s222 = smul.u32 2, %s21
        %s223 = smul.u32 2, %s21
        %p224 = scmp.lt.s32.totalorder %s223, 3
        %s225 = scalar_select %p224, %s223, 3
        %s226 = scalar_lea.vmem %s3, %s225
        %s227 = smul.u32 2, %s21
        %p228 = scmp.eq.s32.totalorder %s22, 0
        // Predicated region
        $region37: #{net_forward.8} parent=31 // pred_check
          %p229 = pneg %p228
        $region38: #{net_forward.8} parent=31 // pred_check_branch
          %231 = sbr.rel (%p229) target = $region40
        $region39: #{net_forward.8} parent=31 // pred_region
          %232 = vst [vmem:[#allocation2] sm:$0xf] 0.0
        $region40: #{net_forward.8} parent=31 // pred_fallthru
          _
        %s233 = smul.u32 %s22, 6656
        %v234 = vld [vmem:[#allocation2] sm:$0xf]
        %s235 = sshra.s32 %s233, 7
        %s236 = sand.u32 %s233, 127
        %s237 = scalar_lea.vmem %s0, %s235
        %v238 = vld [vmem:[%s237] sm:$0xff]
        %v239 = vld [vmem:[%s237 + $0x8] sm:$0xff]
        %v240 = vld [vmem:[%s237 + $0x10] sm:$0xff]
        %v241 = vld [vmem:[%s237 + $0x18] sm:$0xff]
        %v242 = vld [vmem:[%s237 + $0x20] sm:$0xff]
        %v243 = vld [vmem:[%s237 + $0x28] sm:$0xff]
        %v244 = vld [vmem:[%s237 + $0x30] sm:$0xf]
        %v245 = vld [vmem:[%s190] sm:$0xff]
        %v246 = vld [vmem:[%s190 + $0x8] sm:$0xff]
        %v247 = vld [vmem:[%s190 + $0x10] sm:$0xff]
        %v248 = vld [vmem:[%s190 + $0x18] sm:$0xff]
        %v249 = vld [vmem:[%s190 + $0x20] sm:$0xff]
        %v250 = vld [vmem:[%s190 + $0x28] sm:$0xff]
        %v251 = vld [vmem:[%s190 + $0x30] sm:$0xff]
        %v252 = vld [vmem:[%s190 + $0x38] sm:$0xff]
        %v253 = vld [vmem:[%s190 + $0x40] sm:$0xff]
        %v254 = vld [vmem:[%s190 + $0x48] sm:$0xff]
        %v255 = vld [vmem:[%s190 + $0x50] sm:$0xff]
        %v256 = vld [vmem:[%s190 + $0x58] sm:$0xff]
        %v257 = vld [vmem:[%s190 + $0x60] sm:$0xff]
        %v258 = vld [vmem:[%s190 + $0x68] sm:$0xff]
        %v259 = vld [vmem:[%s190 + $0x70] sm:$0xff]
        %v260 = vld [vmem:[%s190 + $0x78] sm:$0xff]
        %v261 = vld [vmem:[%s190 + $0x80] sm:$0xff]
        %v262 = vld [vmem:[%s190 + $0x88] sm:$0xff]
        %v263 = vld [vmem:[%s190 + $0x90] sm:$0xff]
        %v264 = vld [vmem:[%s190 + $0x98] sm:$0xff]
        %v265 = vld [vmem:[%s190 + $0xa0] sm:$0xff]
        %v266 = vld [vmem:[%s190 + $0xa8] sm:$0xff]
        %v267 = vld [vmem:[%s190 + $0xb0] sm:$0xff]
        %v268 = vld [vmem:[%s190 + $0xb8] sm:$0xff]
        %v269 = vld [vmem:[%s190 + $0xc0] sm:$0xff]
        %v270 = vld [vmem:[%s190 + $0xc8] sm:$0xff]
        %v271 = vld [vmem:[%s190 + $0xd0] sm:$0xff]
        %v272 = vld [vmem:[%s190 + $0xd8] sm:$0xff]
        %v273 = vld [vmem:[%s190 + $0xe0] sm:$0xff]
        %v274 = vld [vmem:[%s190 + $0xe8] sm:$0xff]
        %v275 = vld [vmem:[%s190 + $0xf0] sm:$0xff]
        %v276 = vld [vmem:[%s190 + $0xf8] sm:$0xff]
        %v277 = vld [vmem:[%s190 + $0x100] sm:$0xff]
        %v278 = vld [vmem:[%s190 + $0x108] sm:$0xff]
        %v279 = vld [vmem:[%s190 + $0x110] sm:$0xff]
        %v280 = vld [vmem:[%s190 + $0x118] sm:$0xff]
        %v281 = vld [vmem:[%s190 + $0x120] sm:$0xff]
        %v282 = vld [vmem:[%s190 + $0x128] sm:$0xff]
        %v283 = vld [vmem:[%s190 + $0x130] sm:$0xff]
        %v284 = vld [vmem:[%s190 + $0x138] sm:$0xff]
        %v285 = vld [vmem:[%s190 + $0x140] sm:$0xff]
        %v286 = vld [vmem:[%s190 + $0x148] sm:$0xff]
        %v287 = vld [vmem:[%s190 + $0x150] sm:$0xff]
        %v288 = vld [vmem:[%s190 + $0x158] sm:$0xff]
        %v289 = vld [vmem:[%s190 + $0x160] sm:$0xff]
        %v290 = vld [vmem:[%s190 + $0x168] sm:$0xff]
        %v291 = vld [vmem:[%s190 + $0x170] sm:$0xff]
        %v292 = vld [vmem:[%s190 + $0x178] sm:$0xff]
        %v293 = vld [vmem:[%s190 + $0x180] sm:$0xff]
        %v294 = vld [vmem:[%s190 + $0x188] sm:$0xff]
        %v295 = vld [vmem:[%s190 + $0x190] sm:$0xff]
        %v296 = vld [vmem:[%s190 + $0x198] sm:$0xff]
        %v297 = vld [vmem:[%s190 + $0x1a0] sm:$0xff]
        %v298 = vld [vmem:[%s190 + $0x1a8] sm:$0xff]
        %v299 = vld [vmem:[%s190 + $0x1b0] sm:$0xff]
        %v300 = vld [vmem:[%s190 + $0x1b8] sm:$0xff]
        %v301 = vld [vmem:[%s190 + $0x1c0] sm:$0xff]
        %v302 = vld [vmem:[%s190 + $0x1c8] sm:$0xff]
        %v303 = vld [vmem:[%s190 + $0x1d0] sm:$0xff]
        %v304 = vld [vmem:[%s190 + $0x1d8] sm:$0xff]
        %v305 = vld [vmem:[%s190 + $0x1e0] sm:$0xff]
        %v306 = vld [vmem:[%s190 + $0x1e8] sm:$0xff]
        %v307 = vld [vmem:[%s190 + $0x1f0] sm:$0xff]
        %v308 = vld [vmem:[%s190 + $0x1f8] sm:$0xff]
        %v309 = vld [vmem:[%s190 + $0x200] sm:$0xff]
        %v310 = vld [vmem:[%s190 + $0x208] sm:$0xff]
        %v311 = vld [vmem:[%s190 + $0x210] sm:$0xff]
        %v312 = vld [vmem:[%s190 + $0x218] sm:$0xff]
        %v313 = vld [vmem:[%s190 + $0x220] sm:$0xff]
        %v314 = vld [vmem:[%s190 + $0x228] sm:$0xff]
        %v315 = vld [vmem:[%s190 + $0x230] sm:$0xff]
        %v316 = vld [vmem:[%s190 + $0x238] sm:$0xff]
        %v317 = vld [vmem:[%s190 + $0x240] sm:$0xff]
        %v318 = vld [vmem:[%s190 + $0x248] sm:$0xff]
        %v319 = vld [vmem:[%s190 + $0x250] sm:$0xff]
        %v320 = vld [vmem:[%s190 + $0x258] sm:$0xff]
        %v321 = vld [vmem:[%s190 + $0x260] sm:$0xff]
        %v322 = vld [vmem:[%s190 + $0x268] sm:$0xff]
        %v323 = vld [vmem:[%s190 + $0x270] sm:$0xff]
        %v324 = vld [vmem:[%s190 + $0x278] sm:$0xff]
        %v325 = vld [vmem:[%s190 + $0x280] sm:$0xff]
        %v326 = vld [vmem:[%s190 + $0x288] sm:$0xff]
        %v327 = vld [vmem:[%s190 + $0x290] sm:$0xff]
        %v328 = vld [vmem:[%s190 + $0x298] sm:$0xff]
        %v329 = vld [vmem:[%s190 + $0x2a0] sm:$0xff]
        %v330 = vld [vmem:[%s190 + $0x2a8] sm:$0xff]
        %v331 = vld [vmem:[%s190 + $0x2b0] sm:$0xff]
        %v332 = vld [vmem:[%s190 + $0x2b8] sm:$0xff]
        %v333 = vld [vmem:[%s190 + $0x2c0] sm:$0xff]
        %v334 = vld [vmem:[%s190 + $0x2c8] sm:$0xff]
        %v335 = vld [vmem:[%s190 + $0x2d0] sm:$0xff]
        %v336 = vld [vmem:[%s190 + $0x2d8] sm:$0xff]
        %v337 = vld [vmem:[%s190 + $0x2e0] sm:$0xff]
        %v338 = vld [vmem:[%s190 + $0x2e8] sm:$0xff]
        %v339 = vld [vmem:[%s190 + $0x2f0] sm:$0xff]
        %v340 = vld [vmem:[%s190 + $0x2f8] sm:$0xff]
        %v341 = vld [vmem:[%s190 + $0x300] sm:$0xff]
        %v342 = vld [vmem:[%s190 + $0x308] sm:$0xff]
        %v343 = vld [vmem:[%s190 + $0x310] sm:$0xff]
        %v344 = vld [vmem:[%s190 + $0x318] sm:$0xff]
        %v345 = vld [vmem:[%s190 + $0x320] sm:$0xff]
        %v346 = vld [vmem:[%s190 + $0x328] sm:$0xff]
        %v347 = vld [vmem:[%s190 + $0x330] sm:$0xff]
        %v348 = vld [vmem:[%s190 + $0x338] sm:$0xff]
        %v349 = vld [vmem:[%s190 + $0x340] sm:$0xff]
        %v350 = vld [vmem:[%s190 + $0x348] sm:$0xff]
        %v351 = vld [vmem:[%s190 + $0x350] sm:$0xff]
        %v352 = vld [vmem:[%s190 + $0x358] sm:$0xff]
        %v353 = vld [vmem:[%s190 + $0x360] sm:$0xff]
        %v354 = vld [vmem:[%s190 + $0x368] sm:$0xff]
        %v355 = vld [vmem:[%s190 + $0x370] sm:$0xff]
        %v356 = vld [vmem:[%s190 + $0x378] sm:$0xff]
        %v357 = vld [vmem:[%s190 + $0x380] sm:$0xff]
        %v358 = vld [vmem:[%s190 + $0x388] sm:$0xff]
        %v359 = vld [vmem:[%s190 + $0x390] sm:$0xff]
        %v360 = vld [vmem:[%s190 + $0x398] sm:$0xff]
        %v361 = vld [vmem:[%s190 + $0x3a0] sm:$0xff]
        %v362 = vld [vmem:[%s190 + $0x3a8] sm:$0xff]
        %v363 = vld [vmem:[%s190 + $0x3b0] sm:$0xff]
        %v364 = vld [vmem:[%s190 + $0x3b8] sm:$0xff]
        %v365 = vld [vmem:[%s190 + $0x3c0] sm:$0xff]
        %v366 = vld [vmem:[%s190 + $0x3c8] sm:$0xff]
        %v367 = vld [vmem:[%s190 + $0x3d0] sm:$0xff]
        %v368 = vld [vmem:[%s190 + $0x3d8] sm:$0xff]
        %v369 = vld [vmem:[%s190 + $0x3e0] sm:$0xff]
        %v370 = vld [vmem:[%s190 + $0x3e8] sm:$0xff]
        %v371 = vld [vmem:[%s190 + $0x3f0] sm:$0xff]
        %v372 = vld [vmem:[%s190 + $0x3f8] sm:$0xff]
        %v373 = vld [vmem:[%s190 + $0x400] sm:$0xff]
        %v374 = vld [vmem:[%s190 + $0x408] sm:$0xff]
        %v375 = vld [vmem:[%s190 + $0x410] sm:$0xff]
        %v376 = vld [vmem:[%s190 + $0x418] sm:$0xff]
        %v377 = vld [vmem:[%s190 + $0x420] sm:$0xff]
        %v378 = vld [vmem:[%s190 + $0x428] sm:$0xff]
        %v379 = vld [vmem:[%s190 + $0x430] sm:$0xff]
        %v380 = vld [vmem:[%s190 + $0x438] sm:$0xff]
        %v381 = vld [vmem:[%s190 + $0x440] sm:$0xff]
        %v382 = vld [vmem:[%s190 + $0x448] sm:$0xff]
        %v383 = vld [vmem:[%s190 + $0x450] sm:$0xff]
        %v384 = vld [vmem:[%s190 + $0x458] sm:$0xff]
        %v385 = vld [vmem:[%s190 + $0x460] sm:$0xff]
        %v386 = vld [vmem:[%s190 + $0x468] sm:$0xff]
        %v387 = vld [vmem:[%s190 + $0x470] sm:$0xff]
        %v388 = vld [vmem:[%s190 + $0x478] sm:$0xff]
        %v389 = vld [vmem:[%s190 + $0x480] sm:$0xff]
        %v390 = vld [vmem:[%s190 + $0x488] sm:$0xff]
        %v391 = vld [vmem:[%s190 + $0x490] sm:$0xff]
        %v392 = vld [vmem:[%s190 + $0x498] sm:$0xff]
        %v393 = vld [vmem:[%s190 + $0x4a0] sm:$0xff]
        %v394 = vld [vmem:[%s190 + $0x4a8] sm:$0xff]
        %v395 = vld [vmem:[%s190 + $0x4b0] sm:$0xff]
        %v396 = vld [vmem:[%s190 + $0x4b8] sm:$0xff]
        %v397 = vld [vmem:[%s190 + $0x4c0] sm:$0xff]
        %v398 = vld [vmem:[%s190 + $0x4c8] sm:$0xff]
        %v399 = vld [vmem:[%s190 + $0x4d0] sm:$0xff]
        %v400 = vld [vmem:[%s190 + $0x4d8] sm:$0xff]
        %v401 = vld [vmem:[%s190 + $0x4e0] sm:$0xff]
        %v402 = vld [vmem:[%s190 + $0x4e8] sm:$0xff]
        %v403 = vld [vmem:[%s190 + $0x4f0] sm:$0xff]
        %v404 = vld [vmem:[%s190 + $0x4f8] sm:$0xff]
        %v405 = vld [vmem:[%s190 + $0x500] sm:$0xff]
        %v406 = vld [vmem:[%s190 + $0x508] sm:$0xff]
        %v407 = vld [vmem:[%s190 + $0x510] sm:$0xff]
        %v408 = vld [vmem:[%s190 + $0x518] sm:$0xff]
        %v409 = vld [vmem:[%s190 + $0x520] sm:$0xff]
        %v410 = vld [vmem:[%s190 + $0x528] sm:$0xff]
        %v411 = vld [vmem:[%s190 + $0x530] sm:$0xff]
        %v412 = vld [vmem:[%s190 + $0x538] sm:$0xff]
        %v413 = vld [vmem:[%s190 + $0x540] sm:$0xff]
        %v414 = vld [vmem:[%s190 + $0x548] sm:$0xff]
        %v415 = vld [vmem:[%s190 + $0x550] sm:$0xff]
        %v416 = vld [vmem:[%s190 + $0x558] sm:$0xff]
        %v417 = vld [vmem:[%s190 + $0x560] sm:$0xff]
        %v418 = vld [vmem:[%s190 + $0x568] sm:$0xff]
        %v419 = vld [vmem:[%s190 + $0x570] sm:$0xff]
        %v420 = vld [vmem:[%s190 + $0x578] sm:$0xff]
        %v421 = vld [vmem:[%s190 + $0x580] sm:$0xff]
        %v422 = vld [vmem:[%s190 + $0x588] sm:$0xff]
        %v423 = vld [vmem:[%s190 + $0x590] sm:$0xff]
        %v424 = vld [vmem:[%s190 + $0x598] sm:$0xff]
        %v425 = vld [vmem:[%s190 + $0x5a0] sm:$0xff]
        %v426 = vld [vmem:[%s190 + $0x5a8] sm:$0xff]
        %v427 = vld [vmem:[%s190 + $0x5b0] sm:$0xff]
        %v428 = vld [vmem:[%s190 + $0x5b8] sm:$0xff]
        %v429 = vld [vmem:[%s190 + $0x5c0] sm:$0xff]
        %v430 = vld [vmem:[%s190 + $0x5c8] sm:$0xff]
        %v431 = vld [vmem:[%s190 + $0x5d0] sm:$0xff]
        %v432 = vld [vmem:[%s190 + $0x5d8] sm:$0xff]
        %v433 = vld [vmem:[%s190 + $0x5e0] sm:$0xff]
        %v434 = vld [vmem:[%s190 + $0x5e8] sm:$0xff]
        %v435 = vld [vmem:[%s190 + $0x5f0] sm:$0xff]
        %v436 = vld [vmem:[%s190 + $0x5f8] sm:$0xff]
        %v437 = vld [vmem:[%s190 + $0x600] sm:$0xff]
        %v438 = vld [vmem:[%s190 + $0x608] sm:$0xff]
        %v439 = vld [vmem:[%s190 + $0x610] sm:$0xff]
        %v440 = vld [vmem:[%s190 + $0x618] sm:$0xff]
        %v441 = vld [vmem:[%s190 + $0x620] sm:$0xff]
        %v442 = vld [vmem:[%s190 + $0x628] sm:$0xff]
        %v443 = vld [vmem:[%s190 + $0x630] sm:$0xff]
        %v444 = vld [vmem:[%s190 + $0x638] sm:$0xff]
        %v445 = vld [vmem:[%s190 + $0x640] sm:$0xff]
        %v446 = vld [vmem:[%s190 + $0x648] sm:$0xff]
        %v447 = vld [vmem:[%s190 + $0x650] sm:$0xff]
        %v448 = vld [vmem:[%s190 + $0x658] sm:$0xff]
        %v449 = vld [vmem:[%s190 + $0x660] sm:$0xff]
        %v450 = vld [vmem:[%s190 + $0x668] sm:$0xff]
        %v451 = vld [vmem:[%s190 + $0x670] sm:$0xff]
        %v452 = vld [vmem:[%s190 + $0x678] sm:$0xff]
        %v453 = vld [vmem:[%s190 + $0x680] sm:$0xff]
        %v454 = vld [vmem:[%s190 + $0x688] sm:$0xff]
        %v455 = vld [vmem:[%s190 + $0x690] sm:$0xff]
        %v456 = vld [vmem:[%s190 + $0x698] sm:$0xff]
        %v457 = vld [vmem:[%s190 + $0x6a0] sm:$0xff]
        %v458 = vld [vmem:[%s190 + $0x6a8] sm:$0xff]
        %v459 = vld [vmem:[%s190 + $0x6b0] sm:$0xff]
        %v460 = vld [vmem:[%s190 + $0x6b8] sm:$0xff]
        %v461 = vld [vmem:[%s190 + $0x6c0] sm:$0xff]
        %v462 = vld [vmem:[%s190 + $0x6c8] sm:$0xff]
        %v463 = vld [vmem:[%s190 + $0x6d0] sm:$0xff]
        %v464 = vld [vmem:[%s190 + $0x6d8] sm:$0xff]
        %v465 = vld [vmem:[%s190 + $0x6e0] sm:$0xff]
        %v466 = vld [vmem:[%s190 + $0x6e8] sm:$0xff]
        %v467 = vld [vmem:[%s190 + $0x6f0] sm:$0xff]
        %v468 = vld [vmem:[%s190 + $0x6f8] sm:$0xff]
        %v469 = vld [vmem:[%s190 + $0x700] sm:$0xff]
        %v470 = vld [vmem:[%s190 + $0x708] sm:$0xff]
        %v471 = vld [vmem:[%s190 + $0x710] sm:$0xff]
        %v472 = vld [vmem:[%s190 + $0x718] sm:$0xff]
        %v473 = vld [vmem:[%s190 + $0x720] sm:$0xff]
        %v474 = vld [vmem:[%s190 + $0x728] sm:$0xff]
        %v475 = vld [vmem:[%s190 + $0x730] sm:$0xff]
        %v476 = vld [vmem:[%s190 + $0x738] sm:$0xff]
        %v477 = vld [vmem:[%s190 + $0x740] sm:$0xff]
        %v478 = vld [vmem:[%s190 + $0x748] sm:$0xff]
        %v479 = vld [vmem:[%s190 + $0x750] sm:$0xff]
        %v480 = vld [vmem:[%s190 + $0x758] sm:$0xff]
        %v481 = vld [vmem:[%s190 + $0x760] sm:$0xff]
        %v482 = vld [vmem:[%s190 + $0x768] sm:$0xff]
        %v483 = vld [vmem:[%s190 + $0x770] sm:$0xff]
        %v484 = vld [vmem:[%s190 + $0x778] sm:$0xff]
        %v485 = vld [vmem:[%s190 + $0x780] sm:$0xff]
        %v486 = vld [vmem:[%s190 + $0x788] sm:$0xff]
        %v487 = vld [vmem:[%s190 + $0x790] sm:$0xff]
        %v488 = vld [vmem:[%s190 + $0x798] sm:$0xff]
        %v489 = vld [vmem:[%s190 + $0x7a0] sm:$0xff]
        %v490 = vld [vmem:[%s190 + $0x7a8] sm:$0xff]
        %v491 = vld [vmem:[%s190 + $0x7b0] sm:$0xff]
        %v492 = vld [vmem:[%s190 + $0x7b8] sm:$0xff]
        %v493 = vld [vmem:[%s190 + $0x7c0] sm:$0xff]
        %v494 = vld [vmem:[%s190 + $0x7c8] sm:$0xff]
        %v495 = vld [vmem:[%s190 + $0x7d0] sm:$0xff]
        %v496 = vld [vmem:[%s190 + $0x7d8] sm:$0xff]
        %v497 = vld [vmem:[%s190 + $0x7e0] sm:$0xff]
        %v498 = vld [vmem:[%s190 + $0x7e8] sm:$0xff]
        %v499 = vld [vmem:[%s190 + $0x7f0] sm:$0xff]
        %v500 = vld [vmem:[%s190 + $0x7f8] sm:$0xff]
        %v501 = vld [vmem:[%s190 + $0x800] sm:$0xff]
        %v502 = vld [vmem:[%s190 + $0x808] sm:$0xff]
        %v503 = vld [vmem:[%s190 + $0x810] sm:$0xff]
        %v504 = vld [vmem:[%s190 + $0x818] sm:$0xff]
        %v505 = vld [vmem:[%s190 + $0x820] sm:$0xff]
        %v506 = vld [vmem:[%s190 + $0x828] sm:$0xff]
        %v507 = vld [vmem:[%s190 + $0x830] sm:$0xff]
        %v508 = vld [vmem:[%s190 + $0x838] sm:$0xff]
        %v509 = vld [vmem:[%s190 + $0x840] sm:$0xff]
        %v510 = vld [vmem:[%s190 + $0x848] sm:$0xff]
        %v511 = vld [vmem:[%s190 + $0x850] sm:$0xff]
        %v512 = vld [vmem:[%s190 + $0x858] sm:$0xff]
        %v513 = vld [vmem:[%s190 + $0x860] sm:$0xff]
        %v514 = vld [vmem:[%s190 + $0x868] sm:$0xff]
        %v515 = vld [vmem:[%s190 + $0x870] sm:$0xff]
        %v516 = vld [vmem:[%s190 + $0x878] sm:$0xff]
        %v517 = vld [vmem:[%s190 + $0x880] sm:$0xff]
        %v518 = vld [vmem:[%s190 + $0x888] sm:$0xff]
        %v519 = vld [vmem:[%s190 + $0x890] sm:$0xff]
        %v520 = vld [vmem:[%s190 + $0x898] sm:$0xff]
        %v521 = vld [vmem:[%s190 + $0x8a0] sm:$0xff]
        %v522 = vld [vmem:[%s190 + $0x8a8] sm:$0xff]
        %v523 = vld [vmem:[%s190 + $0x8b0] sm:$0xff]
        %v524 = vld [vmem:[%s190 + $0x8b8] sm:$0xff]
        %v525 = vld [vmem:[%s190 + $0x8c0] sm:$0xff]
        %v526 = vld [vmem:[%s190 + $0x8c8] sm:$0xff]
        %v527 = vld [vmem:[%s190 + $0x8d0] sm:$0xff]
        %v528 = vld [vmem:[%s190 + $0x8d8] sm:$0xff]
        %v529 = vld [vmem:[%s190 + $0x8e0] sm:$0xff]
        %v530 = vld [vmem:[%s190 + $0x8e8] sm:$0xff]
        %v531 = vld [vmem:[%s190 + $0x8f0] sm:$0xff]
        %v532 = vld [vmem:[%s190 + $0x8f8] sm:$0xff]
        %v533 = vld [vmem:[%s190 + $0x900] sm:$0xff]
        %v534 = vld [vmem:[%s190 + $0x908] sm:$0xff]
        %v535 = vld [vmem:[%s190 + $0x910] sm:$0xff]
        %v536 = vld [vmem:[%s190 + $0x918] sm:$0xff]
        %v537 = vld [vmem:[%s190 + $0x920] sm:$0xff]
        %v538 = vld [vmem:[%s190 + $0x928] sm:$0xff]
        %v539 = vld [vmem:[%s190 + $0x930] sm:$0xff]
        %v540 = vld [vmem:[%s190 + $0x938] sm:$0xff]
        %v541 = vld [vmem:[%s190 + $0x940] sm:$0xff]
        %v542 = vld [vmem:[%s190 + $0x948] sm:$0xff]
        %v543 = vld [vmem:[%s190 + $0x950] sm:$0xff]
        %v544 = vld [vmem:[%s190 + $0x958] sm:$0xff]
        %v545 = vld [vmem:[%s190 + $0x960] sm:$0xff]
        %v546 = vld [vmem:[%s190 + $0x968] sm:$0xff]
        %v547 = vld [vmem:[%s190 + $0x970] sm:$0xff]
        %v548 = vld [vmem:[%s190 + $0x978] sm:$0xff]
        %v549 = vld [vmem:[%s190 + $0x980] sm:$0xff]
        %v550 = vld [vmem:[%s190 + $0x988] sm:$0xff]
        %v551 = vld [vmem:[%s190 + $0x990] sm:$0xff]
        %v552 = vld [vmem:[%s190 + $0x998] sm:$0xff]
        %v553 = vld [vmem:[%s190 + $0x9a0] sm:$0xff]
        %v554 = vld [vmem:[%s190 + $0x9a8] sm:$0xff]
        %v555 = vld [vmem:[%s190 + $0x9b0] sm:$0xff]
        %v556 = vld [vmem:[%s190 + $0x9b8] sm:$0xff]
        %v557 = vld [vmem:[%s190 + $0x9c0] sm:$0xff]
        %v558 = vld [vmem:[%s190 + $0x9c8] sm:$0xff]
        %v559 = vld [vmem:[%s190 + $0x9d0] sm:$0xff]
        %v560 = vld [vmem:[%s190 + $0x9d8] sm:$0xff]
        %v561 = vld [vmem:[%s190 + $0x9e0] sm:$0xff]
        %v562 = vld [vmem:[%s190 + $0x9e8] sm:$0xff]
        %v563 = vld [vmem:[%s190 + $0x9f0] sm:$0xff]
        %v564 = vld [vmem:[%s190 + $0x9f8] sm:$0xff]
        %v565 = vld [vmem:[%s190 + $0xa00] sm:$0xff]
        %v566 = vld [vmem:[%s190 + $0xa08] sm:$0xff]
        %v567 = vld [vmem:[%s190 + $0xa10] sm:$0xff]
        %v568 = vld [vmem:[%s190 + $0xa18] sm:$0xff]
        %v569 = vld [vmem:[%s190 + $0xa20] sm:$0xff]
        %v570 = vld [vmem:[%s190 + $0xa28] sm:$0xff]
        %v571 = vld [vmem:[%s190 + $0xa30] sm:$0xff]
        %v572 = vld [vmem:[%s190 + $0xa38] sm:$0xff]
        %v573 = vld [vmem:[%s190 + $0xa40] sm:$0xff]
        %v574 = vld [vmem:[%s190 + $0xa48] sm:$0xff]
        %v575 = vld [vmem:[%s190 + $0xa50] sm:$0xff]
        %v576 = vld [vmem:[%s190 + $0xa58] sm:$0xff]
        %v577 = vld [vmem:[%s190 + $0xa60] sm:$0xff]
        %v578 = vld [vmem:[%s190 + $0xa68] sm:$0xff]
        %v579 = vld [vmem:[%s190 + $0xa70] sm:$0xff]
        %v580 = vld [vmem:[%s190 + $0xa78] sm:$0xff]
        %v581 = vld [vmem:[%s190 + $0xa80] sm:$0xff]
        %v582 = vld [vmem:[%s190 + $0xa88] sm:$0xff]
        %v583 = vld [vmem:[%s190 + $0xa90] sm:$0xff]
        %v584 = vld [vmem:[%s190 + $0xa98] sm:$0xff]
        %v585 = vld [vmem:[%s190 + $0xaa0] sm:$0xff]
        %v586 = vld [vmem:[%s190 + $0xaa8] sm:$0xff]
        %v587 = vld [vmem:[%s190 + $0xab0] sm:$0xff]
        %v588 = vld [vmem:[%s190 + $0xab8] sm:$0xff]
        %v589 = vld [vmem:[%s190 + $0xac0] sm:$0xff]
        %v590 = vld [vmem:[%s190 + $0xac8] sm:$0xff]
        %v591 = vld [vmem:[%s190 + $0xad0] sm:$0xff]
        %v592 = vld [vmem:[%s190 + $0xad8] sm:$0xff]
        %v593 = vld [vmem:[%s190 + $0xae0] sm:$0xff]
        %v594 = vld [vmem:[%s190 + $0xae8] sm:$0xff]
        %v595 = vld [vmem:[%s190 + $0xaf0] sm:$0xff]
        %v596 = vld [vmem:[%s190 + $0xaf8] sm:$0xff]
        %v597 = vld [vmem:[%s190 + $0xb00] sm:$0xff]
        %v598 = vld [vmem:[%s190 + $0xb08] sm:$0xff]
        %v599 = vld [vmem:[%s190 + $0xb10] sm:$0xff]
        %v600 = vld [vmem:[%s190 + $0xb18] sm:$0xff]
        %v601 = vld [vmem:[%s190 + $0xb20] sm:$0xff]
        %v602 = vld [vmem:[%s190 + $0xb28] sm:$0xff]
        %v603 = vld [vmem:[%s190 + $0xb30] sm:$0xff]
        %v604 = vld [vmem:[%s190 + $0xb38] sm:$0xff]
        %v605 = vld [vmem:[%s190 + $0xb40] sm:$0xff]
        %v606 = vld [vmem:[%s190 + $0xb48] sm:$0xff]
        %v607 = vld [vmem:[%s190 + $0xb50] sm:$0xff]
        %v608 = vld [vmem:[%s190 + $0xb58] sm:$0xff]
        %v609 = vld [vmem:[%s190 + $0xb60] sm:$0xff]
        %v610 = vld [vmem:[%s190 + $0xb68] sm:$0xff]
        %v611 = vld [vmem:[%s190 + $0xb70] sm:$0xff]
        %v612 = vld [vmem:[%s190 + $0xb78] sm:$0xff]
        %v613 = vld [vmem:[%s190 + $0xb80] sm:$0xff]
        %v614 = vld [vmem:[%s190 + $0xb88] sm:$0xff]
        %v615 = vld [vmem:[%s190 + $0xb90] sm:$0xff]
        %v616 = vld [vmem:[%s190 + $0xb98] sm:$0xff]
        %v617 = vld [vmem:[%s190 + $0xba0] sm:$0xff]
        %v618 = vld [vmem:[%s190 + $0xba8] sm:$0xff]
        %v619 = vld [vmem:[%s190 + $0xbb0] sm:$0xff]
        %v620 = vld [vmem:[%s190 + $0xbb8] sm:$0xff]
        %v621 = vld [vmem:[%s190 + $0xbc0] sm:$0xff]
        %v622 = vld [vmem:[%s190 + $0xbc8] sm:$0xff]
        %v623 = vld [vmem:[%s190 + $0xbd0] sm:$0xff]
        %v624 = vld [vmem:[%s190 + $0xbd8] sm:$0xff]
        %v625 = vld [vmem:[%s190 + $0xbe0] sm:$0xff]
        %v626 = vld [vmem:[%s190 + $0xbe8] sm:$0xff]
        %v627 = vld [vmem:[%s190 + $0xbf0] sm:$0xff]
        %v628 = vld [vmem:[%s190 + $0xbf8] sm:$0xff]
        %v629 = vld [vmem:[%s190 + $0xc00] sm:$0xff]
        %v630 = vld [vmem:[%s190 + $0xc08] sm:$0xff]
        %v631 = vld [vmem:[%s190 + $0xc10] sm:$0xff]
        %v632 = vld [vmem:[%s190 + $0xc18] sm:$0xff]
        %v633 = vld [vmem:[%s190 + $0xc20] sm:$0xff]
        %v634 = vld [vmem:[%s190 + $0xc28] sm:$0xff]
        %v635 = vld [vmem:[%s190 + $0xc30] sm:$0xff]
        %v636 = vld [vmem:[%s190 + $0xc38] sm:$0xff]
        %v637 = vld [vmem:[%s190 + $0xc40] sm:$0xff]
        %v638 = vld [vmem:[%s190 + $0xc48] sm:$0xff]
        %v639 = vld [vmem:[%s190 + $0xc50] sm:$0xff]
        %v640 = vld [vmem:[%s190 + $0xc58] sm:$0xff]
        %v641 = vld [vmem:[%s190 + $0xc60] sm:$0xff]
        %v642 = vld [vmem:[%s190 + $0xc68] sm:$0xff]
        %v643 = vld [vmem:[%s190 + $0xc70] sm:$0xff]
        %v644 = vld [vmem:[%s190 + $0xc78] sm:$0xff]
        %v645 = vld [vmem:[%s190 + $0xc80] sm:$0xff]
        %v646 = vld [vmem:[%s190 + $0xc88] sm:$0xff]
        %v647 = vld [vmem:[%s190 + $0xc90] sm:$0xff]
        %v648 = vld [vmem:[%s190 + $0xc98] sm:$0xff]
        %v649 = vld [vmem:[%s190 + $0xca0] sm:$0xff]
        %v650 = vld [vmem:[%s190 + $0xca8] sm:$0xff]
        %v651 = vld [vmem:[%s190 + $0xcb0] sm:$0xff]
        %v652 = vld [vmem:[%s190 + $0xcb8] sm:$0xff]
        %v653 = vld [vmem:[%s190 + $0xcc0] sm:$0xff]
        %v654 = vld [vmem:[%s190 + $0xcc8] sm:$0xff]
        %v655 = vld [vmem:[%s190 + $0xcd0] sm:$0xff]
        %v656 = vld [vmem:[%s190 + $0xcd8] sm:$0xff]
        %v657 = vld [vmem:[%s190 + $0xce0] sm:$0xff]
        %v658 = vld [vmem:[%s190 + $0xce8] sm:$0xff]
        %v659 = vld [vmem:[%s190 + $0xcf0] sm:$0xff]
        %v660 = vld [vmem:[%s190 + $0xcf8] sm:$0xff]
        %v661 = vld [vmem:[%s190 + $0xd00] sm:$0xff]
        %v662 = vld [vmem:[%s190 + $0xd08] sm:$0xff]
        %v663 = vld [vmem:[%s190 + $0xd10] sm:$0xff]
        %v664 = vld [vmem:[%s190 + $0xd18] sm:$0xff]
        %v665 = vld [vmem:[%s190 + $0xd20] sm:$0xff]
        %v666 = vld [vmem:[%s190 + $0xd28] sm:$0xff]
        %v667 = vld [vmem:[%s190 + $0xd30] sm:$0xff]
        %v668 = vld [vmem:[%s190 + $0xd38] sm:$0xff]
        %v669 = vld [vmem:[%s190 + $0xd40] sm:$0xff]
        %v670 = vld [vmem:[%s190 + $0xd48] sm:$0xff]
        %v671 = vld [vmem:[%s190 + $0xd50] sm:$0xff]
        %v672 = vld [vmem:[%s190 + $0xd58] sm:$0xff]
        %v673 = vld [vmem:[%s190 + $0xd60] sm:$0xff]
        %v674 = vld [vmem:[%s190 + $0xd68] sm:$0xff]
        %v675 = vld [vmem:[%s190 + $0xd70] sm:$0xff]
        %v676 = vld [vmem:[%s190 + $0xd78] sm:$0xff]
        %v677 = vld [vmem:[%s190 + $0xd80] sm:$0xff]
        %v678 = vld [vmem:[%s190 + $0xd88] sm:$0xff]
        %v679 = vld [vmem:[%s190 + $0xd90] sm:$0xff]
        %v680 = vld [vmem:[%s190 + $0xd98] sm:$0xff]
        %v681 = vld [vmem:[%s190 + $0xda0] sm:$0xff]
        %v682 = vld [vmem:[%s190 + $0xda8] sm:$0xff]
        %v683 = vld [vmem:[%s190 + $0xdb0] sm:$0xff]
        %v684 = vld [vmem:[%s190 + $0xdb8] sm:$0xff]
        %v685 = vld [vmem:[%s190 + $0xdc0] sm:$0xff]
        %v686 = vld [vmem:[%s190 + $0xdc8] sm:$0xff]
        %v687 = vld [vmem:[%s190 + $0xdd0] sm:$0xff]
        %v688 = vld [vmem:[%s190 + $0xdd8] sm:$0xff]
        %v689 = vld [vmem:[%s190 + $0xde0] sm:$0xff]
        %v690 = vld [vmem:[%s190 + $0xde8] sm:$0xff]
        %v691 = vld [vmem:[%s190 + $0xdf0] sm:$0xff]
        %v692 = vld [vmem:[%s190 + $0xdf8] sm:$0xff]
        %v693 = vld [vmem:[%s190 + $0xe00] sm:$0xff]
        %v694 = vld [vmem:[%s190 + $0xe08] sm:$0xff]
        %v695 = vld [vmem:[%s190 + $0xe10] sm:$0xff]
        %v696 = vld [vmem:[%s190 + $0xe18] sm:$0xff]
        %v697 = vld [vmem:[%s190 + $0xe20] sm:$0xff]
        %v698 = vld [vmem:[%s190 + $0xe28] sm:$0xff]
        %v699 = vld [vmem:[%s190 + $0xe30] sm:$0xff]
        %v700 = vld [vmem:[%s190 + $0xe38] sm:$0xff]
        %v701 = vld [vmem:[%s190 + $0xe40] sm:$0xff]
        %v702 = vld [vmem:[%s190 + $0xe48] sm:$0xff]
        %v703 = vld [vmem:[%s190 + $0xe50] sm:$0xff]
        %v704 = vld [vmem:[%s190 + $0xe58] sm:$0xff]
        %v705 = vld [vmem:[%s190 + $0xe60] sm:$0xff]
        %v706 = vld [vmem:[%s190 + $0xe68] sm:$0xff]
        %v707 = vld [vmem:[%s190 + $0xe70] sm:$0xff]
        %v708 = vld [vmem:[%s190 + $0xe78] sm:$0xff]
        %v709 = vld [vmem:[%s190 + $0xe80] sm:$0xff]
        %v710 = vld [vmem:[%s190 + $0xe88] sm:$0xff]
        %v711 = vld [vmem:[%s190 + $0xe90] sm:$0xff]
        %v712 = vld [vmem:[%s190 + $0xe98] sm:$0xff]
        %v713 = vld [vmem:[%s190 + $0xea0] sm:$0xff]
        %v714 = vld [vmem:[%s190 + $0xea8] sm:$0xff]
        %v715 = vld [vmem:[%s190 + $0xeb0] sm:$0xff]
        %v716 = vld [vmem:[%s190 + $0xeb8] sm:$0xff]
        %v717 = vld [vmem:[%s190 + $0xec0] sm:$0xff]
        %v718 = vld [vmem:[%s190 + $0xec8] sm:$0xff]
        %v719 = vld [vmem:[%s190 + $0xed0] sm:$0xff]
        %v720 = vld [vmem:[%s190 + $0xed8] sm:$0xff]
        %v721 = vld [vmem:[%s190 + $0xee0] sm:$0xff]
        %v722 = vld [vmem:[%s190 + $0xee8] sm:$0xff]
        %v723 = vld [vmem:[%s190 + $0xef0] sm:$0xff]
        %v724 = vld [vmem:[%s190 + $0xef8] sm:$0xff]
        %v725 = vld [vmem:[%s190 + $0xf00] sm:$0xff]
        %v726 = vld [vmem:[%s190 + $0xf08] sm:$0xff]
        %v727 = vld [vmem:[%s190 + $0xf10] sm:$0xff]
        %v728 = vld [vmem:[%s190 + $0xf18] sm:$0xff]
        %v729 = vld [vmem:[%s190 + $0xf20] sm:$0xff]
        %v730 = vld [vmem:[%s190 + $0xf28] sm:$0xff]
        %v731 = vld [vmem:[%s190 + $0xf30] sm:$0xff]
        %v732 = vld [vmem:[%s190 + $0xf38] sm:$0xff]
        %v733 = vld [vmem:[%s190 + $0xf40] sm:$0xff]
        %v734 = vld [vmem:[%s190 + $0xf48] sm:$0xff]
        %v735 = vld [vmem:[%s190 + $0xf50] sm:$0xff]
        %v736 = vld [vmem:[%s190 + $0xf58] sm:$0xff]
        %v737 = vld [vmem:[%s190 + $0xf60] sm:$0xff]
        %v738 = vld [vmem:[%s190 + $0xf68] sm:$0xff]
        %v739 = vld [vmem:[%s190 + $0xf70] sm:$0xff]
        %v740 = vld [vmem:[%s190 + $0xf78] sm:$0xff]
        %v741 = vld [vmem:[%s190 + $0xf80] sm:$0xff]
        %v742 = vld [vmem:[%s190 + $0xf88] sm:$0xff]
        %v743 = vld [vmem:[%s190 + $0xf90] sm:$0xff]
        %v744 = vld [vmem:[%s190 + $0xf98] sm:$0xff]
        %v745 = vld [vmem:[%s190 + $0xfa0] sm:$0xff]
        %v746 = vld [vmem:[%s190 + $0xfa8] sm:$0xff]
        %v747 = vld [vmem:[%s190 + $0xfb0] sm:$0xff]
        %v748 = vld [vmem:[%s190 + $0xfb8] sm:$0xff]
        %v749 = vld [vmem:[%s190 + $0xfc0] sm:$0xff]
        %v750 = vld [vmem:[%s190 + $0xfc8] sm:$0xff]
        %v751 = vld [vmem:[%s190 + $0xfd0] sm:$0xff]
        %v752 = vld [vmem:[%s190 + $0xfd8] sm:$0xff]
        %v753 = vld [vmem:[%s190 + $0xfe0] sm:$0xff]
        %v754 = vld [vmem:[%s190 + $0xfe8] sm:$0xff]
        %v755 = vld [vmem:[%s190 + $0xff0] sm:$0xff]
        %v756 = vld [vmem:[%s190 + $0xff8] sm:$0xff]
        %v757 = vld [vmem:[%s190 + $0x1000] sm:$0xff]
        %v758 = vld [vmem:[%s190 + $0x1008] sm:$0xff]
        %v759 = vld [vmem:[%s190 + $0x1010] sm:$0xff]
        %v760 = vld [vmem:[%s190 + $0x1018] sm:$0xff]
        %v761 = vld [vmem:[%s190 + $0x1020] sm:$0xff]
        %v762 = vld [vmem:[%s190 + $0x1028] sm:$0xff]
        %v763 = vld [vmem:[%s190 + $0x1030] sm:$0xff]
        %v764 = vld [vmem:[%s190 + $0x1038] sm:$0xff]
        %v765 = vld [vmem:[%s190 + $0x1040] sm:$0xff]
        %v766 = vld [vmem:[%s190 + $0x1048] sm:$0xff]
        %v767 = vld [vmem:[%s190 + $0x1050] sm:$0xff]
        %v768 = vld [vmem:[%s190 + $0x1058] sm:$0xff]
        %v769 = vld [vmem:[%s190 + $0x1060] sm:$0xff]
        %v770 = vld [vmem:[%s190 + $0x1068] sm:$0xff]
        %v771 = vld [vmem:[%s190 + $0x1070] sm:$0xff]
        %v772 = vld [vmem:[%s190 + $0x1078] sm:$0xff]
        %v773 = vld [vmem:[%s190 + $0x1080] sm:$0xff]
        %v774 = vld [vmem:[%s190 + $0x1088] sm:$0xff]
        %v775 = vld [vmem:[%s190 + $0x1090] sm:$0xff]
        %v776 = vld [vmem:[%s190 + $0x1098] sm:$0xff]
        %v777 = vld [vmem:[%s190 + $0x10a0] sm:$0xff]
        %v778 = vld [vmem:[%s190 + $0x10a8] sm:$0xff]
        %v779 = vld [vmem:[%s190 + $0x10b0] sm:$0xff]
        %v780 = vld [vmem:[%s190 + $0x10b8] sm:$0xff]
        %v781 = vld [vmem:[%s190 + $0x10c0] sm:$0xff]
        %v782 = vld [vmem:[%s190 + $0x10c8] sm:$0xff]
        %v783 = vld [vmem:[%s190 + $0x10d0] sm:$0xff]
        %v784 = vld [vmem:[%s190 + $0x10d8] sm:$0xff]
        %v785 = vld [vmem:[%s190 + $0x10e0] sm:$0xff]
        %v786 = vld [vmem:[%s190 + $0x10e8] sm:$0xff]
        %v787 = vld [vmem:[%s190 + $0x10f0] sm:$0xff]
        %v788 = vld [vmem:[%s190 + $0x10f8] sm:$0xff]
        %v789 = vld [vmem:[%s190 + $0x1100] sm:$0xff]
        %v790 = vld [vmem:[%s190 + $0x1108] sm:$0xff]
        %v791 = vld [vmem:[%s190 + $0x1110] sm:$0xff]
        %v792 = vld [vmem:[%s190 + $0x1118] sm:$0xff]
        %v793 = vld [vmem:[%s190 + $0x1120] sm:$0xff]
        %v794 = vld [vmem:[%s190 + $0x1128] sm:$0xff]
        %v795 = vld [vmem:[%s190 + $0x1130] sm:$0xff]
        %v796 = vld [vmem:[%s190 + $0x1138] sm:$0xff]
        %v797 = vld [vmem:[%s190 + $0x1140] sm:$0xff]
        %v798 = vld [vmem:[%s190 + $0x1148] sm:$0xff]
        %v799 = vld [vmem:[%s190 + $0x1150] sm:$0xff]
        %v800 = vld [vmem:[%s190 + $0x1158] sm:$0xff]
        %v801 = vld [vmem:[%s190 + $0x1160] sm:$0xff]
        %v802 = vld [vmem:[%s190 + $0x1168] sm:$0xff]
        %v803 = vld [vmem:[%s190 + $0x1170] sm:$0xff]
        %v804 = vld [vmem:[%s190 + $0x1178] sm:$0xff]
        %v805 = vld [vmem:[%s190 + $0x1180] sm:$0xff]
        %v806 = vld [vmem:[%s190 + $0x1188] sm:$0xff]
        %v807 = vld [vmem:[%s190 + $0x1190] sm:$0xff]
        %v808 = vld [vmem:[%s190 + $0x1198] sm:$0xff]
        %v809 = vld [vmem:[%s190 + $0x11a0] sm:$0xff]
        %v810 = vld [vmem:[%s190 + $0x11a8] sm:$0xff]
        %v811 = vld [vmem:[%s190 + $0x11b0] sm:$0xff]
        %v812 = vld [vmem:[%s190 + $0x11b8] sm:$0xff]
        %v813 = vld [vmem:[%s190 + $0x11c0] sm:$0xff]
        %v814 = vld [vmem:[%s190 + $0x11c8] sm:$0xff]
        %v815 = vld [vmem:[%s190 + $0x11d0] sm:$0xff]
        %v816 = vld [vmem:[%s190 + $0x11d8] sm:$0xff]
        %v817 = vld [vmem:[%s190 + $0x11e0] sm:$0xff]
        %v818 = vld [vmem:[%s190 + $0x11e8] sm:$0xff]
        %v819 = vld [vmem:[%s190 + $0x11f0] sm:$0xff]
        %v820 = vld [vmem:[%s190 + $0x11f8] sm:$0xff]
        %v821 = vld [vmem:[%s190 + $0x1200] sm:$0xff]
        %v822 = vld [vmem:[%s190 + $0x1208] sm:$0xff]
        %v823 = vld [vmem:[%s190 + $0x1210] sm:$0xff]
        %v824 = vld [vmem:[%s190 + $0x1218] sm:$0xff]
        %v825 = vld [vmem:[%s190 + $0x1220] sm:$0xff]
        %v826 = vld [vmem:[%s190 + $0x1228] sm:$0xff]
        %v827 = vld [vmem:[%s190 + $0x1230] sm:$0xff]
        %v828 = vld [vmem:[%s190 + $0x1238] sm:$0xff]
        %v829 = vld [vmem:[%s190 + $0x1240] sm:$0xff]
        %v830 = vld [vmem:[%s190 + $0x1248] sm:$0xff]
        %v831 = vld [vmem:[%s190 + $0x1250] sm:$0xff]
        %v832 = vld [vmem:[%s190 + $0x1258] sm:$0xff]
        %v833 = vld [vmem:[%s190 + $0x1260] sm:$0xff]
        %v834 = vld [vmem:[%s190 + $0x1268] sm:$0xff]
        %v835 = vld [vmem:[%s190 + $0x1270] sm:$0xff]
        %v836 = vld [vmem:[%s190 + $0x1278] sm:$0xff]
        %v837 = vld [vmem:[%s190 + $0x1280] sm:$0xff]
        %v838 = vld [vmem:[%s190 + $0x1288] sm:$0xff]
        %v839 = vld [vmem:[%s190 + $0x1290] sm:$0xff]
        %v840 = vld [vmem:[%s190 + $0x1298] sm:$0xff]
        %v841 = vld [vmem:[%s190 + $0x12a0] sm:$0xff]
        %v842 = vld [vmem:[%s190 + $0x12a8] sm:$0xff]
        %v843 = vld [vmem:[%s190 + $0x12b0] sm:$0xff]
        %v844 = vld [vmem:[%s190 + $0x12b8] sm:$0xff]
        %v845 = vld [vmem:[%s190 + $0x12c0] sm:$0xff]
        %v846 = vld [vmem:[%s190 + $0x12c8] sm:$0xff]
        %v847 = vld [vmem:[%s190 + $0x12d0] sm:$0xff]
        %v848 = vld [vmem:[%s190 + $0x12d8] sm:$0xff]
        %v849 = vld [vmem:[%s190 + $0x12e0] sm:$0xff]
        %v850 = vld [vmem:[%s190 + $0x12e8] sm:$0xff]
        %v851 = vld [vmem:[%s190 + $0x12f0] sm:$0xff]
        %v852 = vld [vmem:[%s190 + $0x12f8] sm:$0xff]
        %v853 = vld [vmem:[%s190 + $0x1300] sm:$0xff]
        %v854 = vld [vmem:[%s190 + $0x1308] sm:$0xff]
        %v855 = vld [vmem:[%s190 + $0x1310] sm:$0xff]
        %v856 = vld [vmem:[%s190 + $0x1318] sm:$0xff]
        %v857 = vld [vmem:[%s190 + $0x1320] sm:$0xff]
        %v858 = vld [vmem:[%s190 + $0x1328] sm:$0xff]
        %v859 = vld [vmem:[%s190 + $0x1330] sm:$0xff]
        %v860 = vld [vmem:[%s190 + $0x1338] sm:$0xff]
        %v861 = vld [vmem:[%s190 + $0x1340] sm:$0xff]
        %v862 = vld [vmem:[%s190 + $0x1348] sm:$0xff]
        %v863 = vld [vmem:[%s190 + $0x1350] sm:$0xff]
        %v864 = vld [vmem:[%s190 + $0x1358] sm:$0xff]
        %v865 = vld [vmem:[%s190 + $0x1360] sm:$0xff]
        %v866 = vld [vmem:[%s190 + $0x1368] sm:$0xff]
        %v867 = vld [vmem:[%s190 + $0x1370] sm:$0xff]
        %v868 = vld [vmem:[%s190 + $0x1378] sm:$0xff]
        %v869 = vld [vmem:[%s190 + $0x1380] sm:$0xff]
        %v870 = vld [vmem:[%s190 + $0x1388] sm:$0xff]
        %v871 = vld [vmem:[%s190 + $0x1390] sm:$0xff]
        %v872 = vld [vmem:[%s190 + $0x1398] sm:$0xff]
        %v873 = vld [vmem:[%s190 + $0x13a0] sm:$0xff]
        %v874 = vld [vmem:[%s190 + $0x13a8] sm:$0xff]
        %v875 = vld [vmem:[%s190 + $0x13b0] sm:$0xff]
        %v876 = vld [vmem:[%s190 + $0x13b8] sm:$0xff]
        %v877 = vld [vmem:[%s190 + $0x13c0] sm:$0xff]
        %v878 = vld [vmem:[%s190 + $0x13c8] sm:$0xff]
        %v879 = vld [vmem:[%s190 + $0x13d0] sm:$0xff]
        %v880 = vld [vmem:[%s190 + $0x13d8] sm:$0xff]
        %v881 = vld [vmem:[%s190 + $0x13e0] sm:$0xff]
        %v882 = vld [vmem:[%s190 + $0x13e8] sm:$0xff]
        %v883 = vld [vmem:[%s190 + $0x13f0] sm:$0xff]
        %v884 = vld [vmem:[%s190 + $0x13f8] sm:$0xff]
        %v885 = vld [vmem:[%s190 + $0x1400] sm:$0xff]
        %v886 = vld [vmem:[%s190 + $0x1408] sm:$0xff]
        %v887 = vld [vmem:[%s190 + $0x1410] sm:$0xff]
        %v888 = vld [vmem:[%s190 + $0x1418] sm:$0xff]
        %v889 = vld [vmem:[%s190 + $0x1420] sm:$0xff]
        %v890 = vld [vmem:[%s190 + $0x1428] sm:$0xff]
        %v891 = vld [vmem:[%s190 + $0x1430] sm:$0xff]
        %v892 = vld [vmem:[%s190 + $0x1438] sm:$0xff]
        %v893 = vld [vmem:[%s190 + $0x1440] sm:$0xff]
        %v894 = vld [vmem:[%s190 + $0x1448] sm:$0xff]
        %v895 = vld [vmem:[%s190 + $0x1450] sm:$0xff]
        %v896 = vld [vmem:[%s190 + $0x1458] sm:$0xff]
        %v897 = vld [vmem:[%s190 + $0x1460] sm:$0xff]
        %v898 = vld [vmem:[%s190 + $0x1468] sm:$0xff]
        %v899 = vld [vmem:[%s190 + $0x1470] sm:$0xff]
        %v900 = vld [vmem:[%s190 + $0x1478] sm:$0xff]
        %v901 = vld [vmem:[%s190 + $0x1480] sm:$0xff]
        %v902 = vld [vmem:[%s190 + $0x1488] sm:$0xff]
        %v903 = vld [vmem:[%s190 + $0x1490] sm:$0xff]
        %v904 = vld [vmem:[%s190 + $0x1498] sm:$0xff]
        %v905 = vld [vmem:[%s190 + $0x14a0] sm:$0xff]
        %v906 = vld [vmem:[%s190 + $0x14a8] sm:$0xff]
        %v907 = vld [vmem:[%s190 + $0x14b0] sm:$0xff]
        %v908 = vld [vmem:[%s190 + $0x14b8] sm:$0xff]
        %v909 = vld [vmem:[%s190 + $0x14c0] sm:$0xff]
        %v910 = vld [vmem:[%s190 + $0x14c8] sm:$0xff]
        %v911 = vld [vmem:[%s190 + $0x14d0] sm:$0xff]
        %v912 = vld [vmem:[%s190 + $0x14d8] sm:$0xff]
        %v913 = vld [vmem:[%s190 + $0x14e0] sm:$0xff]
        %v914 = vld [vmem:[%s190 + $0x14e8] sm:$0xff]
        %v915 = vld [vmem:[%s190 + $0x14f0] sm:$0xff]
        %v916 = vld [vmem:[%s190 + $0x14f8] sm:$0xff]
        %v917 = vld [vmem:[%s190 + $0x1500] sm:$0xff]
        %v918 = vld [vmem:[%s190 + $0x1508] sm:$0xff]
        %v919 = vld [vmem:[%s190 + $0x1510] sm:$0xff]
        %v920 = vld [vmem:[%s190 + $0x1518] sm:$0xff]
        %v921 = vld [vmem:[%s190 + $0x1520] sm:$0xff]
        %v922 = vld [vmem:[%s190 + $0x1528] sm:$0xff]
        %v923 = vld [vmem:[%s190 + $0x1530] sm:$0xff]
        %v924 = vld [vmem:[%s190 + $0x1538] sm:$0xff]
        %v925 = vld [vmem:[%s190 + $0x1540] sm:$0xff]
        %v926 = vld [vmem:[%s190 + $0x1548] sm:$0xff]
        %v927 = vld [vmem:[%s190 + $0x1550] sm:$0xff]
        %v928 = vld [vmem:[%s190 + $0x1558] sm:$0xff]
        %v929 = vld [vmem:[%s190 + $0x1560] sm:$0xff]
        %v930 = vld [vmem:[%s190 + $0x1568] sm:$0xff]
        %v931 = vld [vmem:[%s190 + $0x1570] sm:$0xff]
        %v932 = vld [vmem:[%s190 + $0x1578] sm:$0xff]
        %v933 = vld [vmem:[%s190 + $0x1580] sm:$0xff]
        %v934 = vld [vmem:[%s190 + $0x1588] sm:$0xff]
        %v935 = vld [vmem:[%s190 + $0x1590] sm:$0xff]
        %v936 = vld [vmem:[%s190 + $0x1598] sm:$0xff]
        %v937 = vld [vmem:[%s190 + $0x15a0] sm:$0xff]
        %v938 = vld [vmem:[%s190 + $0x15a8] sm:$0xff]
        %v939 = vld [vmem:[%s190 + $0x15b0] sm:$0xff]
        %v940 = vld [vmem:[%s190 + $0x15b8] sm:$0xff]
        %v941 = vld [vmem:[%s190 + $0x15c0] sm:$0xff]
        %v942 = vld [vmem:[%s190 + $0x15c8] sm:$0xff]
        %v943 = vld [vmem:[%s190 + $0x15d0] sm:$0xff]
        %v944 = vld [vmem:[%s190 + $0x15d8] sm:$0xff]
        %v945 = vld [vmem:[%s190 + $0x15e0] sm:$0xff]
        %v946 = vld [vmem:[%s190 + $0x15e8] sm:$0xff]
        %v947 = vld [vmem:[%s190 + $0x15f0] sm:$0xff]
        %v948 = vld [vmem:[%s190 + $0x15f8] sm:$0xff]
        %v949 = vld [vmem:[%s190 + $0x1600] sm:$0xff]
        %v950 = vld [vmem:[%s190 + $0x1608] sm:$0xff]
        %v951 = vld [vmem:[%s190 + $0x1610] sm:$0xff]
        %v952 = vld [vmem:[%s190 + $0x1618] sm:$0xff]
        %v953 = vld [vmem:[%s190 + $0x1620] sm:$0xff]
        %v954 = vld [vmem:[%s190 + $0x1628] sm:$0xff]
        %v955 = vld [vmem:[%s190 + $0x1630] sm:$0xff]
        %v956 = vld [vmem:[%s190 + $0x1638] sm:$0xff]
        %v957 = vld [vmem:[%s190 + $0x1640] sm:$0xff]
        %v958 = vld [vmem:[%s190 + $0x1648] sm:$0xff]
        %v959 = vld [vmem:[%s190 + $0x1650] sm:$0xff]
        %v960 = vld [vmem:[%s190 + $0x1658] sm:$0xff]
        %v961 = vld [vmem:[%s190 + $0x1660] sm:$0xff]
        %v962 = vld [vmem:[%s190 + $0x1668] sm:$0xff]
        %v963 = vld [vmem:[%s190 + $0x1670] sm:$0xff]
        %v964 = vld [vmem:[%s190 + $0x1678] sm:$0xff]
        %v965 = vld [vmem:[%s190 + $0x1680] sm:$0xff]
        %v966 = vld [vmem:[%s190 + $0x1688] sm:$0xff]
        %v967 = vld [vmem:[%s190 + $0x1690] sm:$0xff]
        %v968 = vld [vmem:[%s190 + $0x1698] sm:$0xff]
        %v969 = vld [vmem:[%s190 + $0x16a0] sm:$0xff]
        %v970 = vld [vmem:[%s190 + $0x16a8] sm:$0xff]
        %v971 = vld [vmem:[%s190 + $0x16b0] sm:$0xff]
        %v972 = vld [vmem:[%s190 + $0x16b8] sm:$0xff]
        %v973 = vld [vmem:[%s190 + $0x16c0] sm:$0xff]
        %v974 = vld [vmem:[%s190 + $0x16c8] sm:$0xff]
        %v975 = vld [vmem:[%s190 + $0x16d0] sm:$0xff]
        %v976 = vld [vmem:[%s190 + $0x16d8] sm:$0xff]
        %v977 = vld [vmem:[%s190 + $0x16e0] sm:$0xff]
        %v978 = vld [vmem:[%s190 + $0x16e8] sm:$0xff]
        %v979 = vld [vmem:[%s190 + $0x16f0] sm:$0xff]
        %v980 = vld [vmem:[%s190 + $0x16f8] sm:$0xff]
        %v981 = vld [vmem:[%s190 + $0x1700] sm:$0xff]
        %v982 = vld [vmem:[%s190 + $0x1708] sm:$0xff]
        %v983 = vld [vmem:[%s190 + $0x1710] sm:$0xff]
        %v984 = vld [vmem:[%s190 + $0x1718] sm:$0xff]
        %v985 = vld [vmem:[%s190 + $0x1720] sm:$0xff]
        %v986 = vld [vmem:[%s190 + $0x1728] sm:$0xff]
        %v987 = vld [vmem:[%s190 + $0x1730] sm:$0xff]
        %v988 = vld [vmem:[%s190 + $0x1738] sm:$0xff]
        %v989 = vld [vmem:[%s190 + $0x1740] sm:$0xff]
        %v990 = vld [vmem:[%s190 + $0x1748] sm:$0xff]
        %v991 = vld [vmem:[%s190 + $0x1750] sm:$0xff]
        %v992 = vld [vmem:[%s190 + $0x1758] sm:$0xff]
        %v993 = vld [vmem:[%s190 + $0x1760] sm:$0xff]
        %v994 = vld [vmem:[%s190 + $0x1768] sm:$0xff]
        %v995 = vld [vmem:[%s190 + $0x1770] sm:$0xff]
        %v996 = vld [vmem:[%s190 + $0x1778] sm:$0xff]
        %v997 = vld [vmem:[%s190 + $0x1780] sm:$0xff]
        %v998 = vld [vmem:[%s190 + $0x1788] sm:$0xff]
        %v999 = vld [vmem:[%s190 + $0x1790] sm:$0xff]
        %v1000 = vld [vmem:[%s190 + $0x1798] sm:$0xff]
        %v1001 = vld [vmem:[%s190 + $0x17a0] sm:$0xff]
        %v1002 = vld [vmem:[%s190 + $0x17a8] sm:$0xff]
        %v1003 = vld [vmem:[%s190 + $0x17b0] sm:$0xff]
        %v1004 = vld [vmem:[%s190 + $0x17b8] sm:$0xff]
        %v1005 = vld [vmem:[%s190 + $0x17c0] sm:$0xff]
        %v1006 = vld [vmem:[%s190 + $0x17c8] sm:$0xff]
        %v1007 = vld [vmem:[%s190 + $0x17d0] sm:$0xff]
        %v1008 = vld [vmem:[%s190 + $0x17d8] sm:$0xff]
        %v1009 = vld [vmem:[%s190 + $0x17e0] sm:$0xff]
        %v1010 = vld [vmem:[%s190 + $0x17e8] sm:$0xff]
        %v1011 = vld [vmem:[%s190 + $0x17f0] sm:$0xff]
        %v1012 = vld [vmem:[%s190 + $0x17f8] sm:$0xff]
        %v1013 = vld [vmem:[%s190 + $0x1800] sm:$0xff]
        %v1014 = vld [vmem:[%s190 + $0x1808] sm:$0xff]
        %v1015 = vld [vmem:[%s190 + $0x1810] sm:$0xff]
        %v1016 = vld [vmem:[%s190 + $0x1818] sm:$0xff]
        %v1017 = vld [vmem:[%s190 + $0x1820] sm:$0xff]
        %v1018 = vld [vmem:[%s190 + $0x1828] sm:$0xff]
        %v1019 = vld [vmem:[%s190 + $0x1830] sm:$0xff]
        %v1020 = vld [vmem:[%s190 + $0x1838] sm:$0xff]
        %v1021 = vld [vmem:[%s190 + $0x1840] sm:$0xff]
        %v1022 = vld [vmem:[%s190 + $0x1848] sm:$0xff]
        %v1023 = vld [vmem:[%s190 + $0x1850] sm:$0xff]
        %v1024 = vld [vmem:[%s190 + $0x1858] sm:$0xff]
        %v1025 = vld [vmem:[%s190 + $0x1860] sm:$0xff]
        %v1026 = vld [vmem:[%s190 + $0x1868] sm:$0xff]
        %v1027 = vld [vmem:[%s190 + $0x1870] sm:$0xff]
        %v1028 = vld [vmem:[%s190 + $0x1878] sm:$0xff]
        %v1029 = vld [vmem:[%s190 + $0x1880] sm:$0xff]
        %v1030 = vld [vmem:[%s190 + $0x1888] sm:$0xff]
        %v1031 = vld [vmem:[%s190 + $0x1890] sm:$0xff]
        %v1032 = vld [vmem:[%s190 + $0x1898] sm:$0xff]
        %v1033 = vld [vmem:[%s190 + $0x18a0] sm:$0xff]
        %v1034 = vld [vmem:[%s190 + $0x18a8] sm:$0xff]
        %v1035 = vld [vmem:[%s190 + $0x18b0] sm:$0xff]
        %v1036 = vld [vmem:[%s190 + $0x18b8] sm:$0xff]
        %v1037 = vld [vmem:[%s190 + $0x18c0] sm:$0xff]
        %v1038 = vld [vmem:[%s190 + $0x18c8] sm:$0xff]
        %v1039 = vld [vmem:[%s190 + $0x18d0] sm:$0xff]
        %v1040 = vld [vmem:[%s190 + $0x18d8] sm:$0xff]
        %v1041 = vld [vmem:[%s190 + $0x18e0] sm:$0xff]
        %v1042 = vld [vmem:[%s190 + $0x18e8] sm:$0xff]
        %v1043 = vld [vmem:[%s190 + $0x18f0] sm:$0xff]
        %v1044 = vld [vmem:[%s190 + $0x18f8] sm:$0xff]
        %v1045 = vld [vmem:[%s190 + $0x1900] sm:$0xff]
        %v1046 = vld [vmem:[%s190 + $0x1908] sm:$0xff]
        %v1047 = vld [vmem:[%s190 + $0x1910] sm:$0xff]
        %v1048 = vld [vmem:[%s190 + $0x1918] sm:$0xff]
        %v1049 = vld [vmem:[%s190 + $0x1920] sm:$0xff]
        %v1050 = vld [vmem:[%s190 + $0x1928] sm:$0xff]
        %v1051 = vld [vmem:[%s190 + $0x1930] sm:$0xff]
        %v1052 = vld [vmem:[%s190 + $0x1938] sm:$0xff]
        %v1053 = vld [vmem:[%s190 + $0x1940] sm:$0xff]
        %v1054 = vld [vmem:[%s190 + $0x1948] sm:$0xff]
        %v1055 = vld [vmem:[%s190 + $0x1950] sm:$0xff]
        %v1056 = vld [vmem:[%s190 + $0x1958] sm:$0xff]
        %v1057 = vld [vmem:[%s190 + $0x1960] sm:$0xff]
        %v1058 = vld [vmem:[%s190 + $0x1968] sm:$0xff]
        %v1059 = vld [vmem:[%s190 + $0x1970] sm:$0xff]
        %v1060 = vld [vmem:[%s190 + $0x1978] sm:$0xff]
        %v1061 = vld [vmem:[%s190 + $0x1980] sm:$0xff]
        %v1062 = vld [vmem:[%s190 + $0x1988] sm:$0xff]
        %v1063 = vld [vmem:[%s190 + $0x1990] sm:$0xff]
        %v1064 = vld [vmem:[%s190 + $0x1998] sm:$0xff]
        %v1065 = vld [vmem:[%s190 + $0x19a0] sm:$0xff]
        %v1066 = vld [vmem:[%s190 + $0x19a8] sm:$0xff]
        %v1067 = vld [vmem:[%s190 + $0x19b0] sm:$0xff]
        %v1068 = vld [vmem:[%s190 + $0x19b8] sm:$0xff]
        %v1069 = vld [vmem:[%s190 + $0x19c0] sm:$0xff]
        %v1070 = vld [vmem:[%s190 + $0x19c8] sm:$0xff]
        %v1071 = vld [vmem:[%s190 + $0x19d0] sm:$0xff]
        %v1072 = vld [vmem:[%s190 + $0x19d8] sm:$0xff]
        %v1073 = vld [vmem:[%s190 + $0x19e0] sm:$0xff]
        %v1074 = vld [vmem:[%s190 + $0x19e8] sm:$0xff]
        %v1075 = vld [vmem:[%s190 + $0x19f0] sm:$0xff]
        %v1076 = vld [vmem:[%s190 + $0x19f8] sm:$0xff]
        %v1084 = vcombine.high %v238, %v238
        %v1086 = vunpack.c.l.s4 1966171168
        %v1087 = vunpack.c.0.s8 %v1086
        %v1088 = vlaneseq
        %v1089 = vshrl.u32 %v1088, 7
        %v1090 = vsub.s32 %v1087, %v1089
        %v1091 = vrot.slane %v238, %v1090
        %v1093 = vunpack.c.l.s4 1966171168
        %v1094 = vunpack.c.0.s8 %v1093
        %v1095 = vlaneseq
        %v1096 = vshrl.u32 %v1095, 7
        %v1097 = vsub.s32 %v1094, %v1096
        %v1098 = vrot.slane %v1084, %v1097
        %v1099 = vcombine.high %v1091, %v1091
        %v1100 = vcombine.high %v1098, %v1098
        %v1102 = vunpack.c.l.s4 1966171168
        %v1103 = vunpack.c.0.s8 %v1102
        %v1104 = vlaneseq
        %v1105 = vshrl.u32 %v1104, 7
        %v1106 = vsub.s32 %v1103, %v1105
        %v1107 = vrot.slane %v1091, %v1106
        %v1109 = vunpack.c.l.s4 1966171168
        %v1110 = vunpack.c.0.s8 %v1109
        %v1111 = vlaneseq
        %v1112 = vshrl.u32 %v1111, 7
        %v1113 = vsub.s32 %v1110, %v1112
        %v1114 = vrot.slane %v1098, %v1113
        %v1116 = vunpack.c.l.s4 1966171168
        %v1117 = vunpack.c.0.s8 %v1116
        %v1118 = vlaneseq
        %v1119 = vshrl.u32 %v1118, 7
        %v1120 = vsub.s32 %v1117, %v1119
        %v1121 = vrot.slane %v1099, %v1120
        %v1123 = vunpack.c.l.s4 1966171168
        %v1124 = vunpack.c.0.s8 %v1123
        %v1125 = vlaneseq
        %v1126 = vshrl.u32 %v1125, 7
        %v1127 = vsub.s32 %v1124, %v1126
        %v1128 = vrot.slane %v1100, %v1127
        %v1129 = vcombine.high %v1107, %v1107
        %v1130 = vcombine.high %v1114, %v1114
        %v1131 = vcombine.high %v1121, %v1121
        %v1132 = vcombine.high %v1128, %v1128
        %v1133 = vcombine.high %v239, %v239
        %v1135 = vunpack.c.l.s4 1966171168
        %v1136 = vunpack.c.0.s8 %v1135
        %v1137 = vlaneseq
        %v1138 = vshrl.u32 %v1137, 7
        %v1139 = vsub.s32 %v1136, %v1138
        %v1140 = vrot.slane %v239, %v1139
        %v1142 = vunpack.c.l.s4 1966171168
        %v1143 = vunpack.c.0.s8 %v1142
        %v1144 = vlaneseq
        %v1145 = vshrl.u32 %v1144, 7
        %v1146 = vsub.s32 %v1143, %v1145
        %v1147 = vrot.slane %v1133, %v1146
        %v1148 = vcombine.high %v1140, %v1140
        %v1149 = vcombine.high %v1147, %v1147
        %v1151 = vunpack.c.l.s4 1966171168
        %v1152 = vunpack.c.0.s8 %v1151
        %v1153 = vlaneseq
        %v1154 = vshrl.u32 %v1153, 7
        %v1155 = vsub.s32 %v1152, %v1154
        %v1156 = vrot.slane %v1140, %v1155
        %v1158 = vunpack.c.l.s4 1966171168
        %v1159 = vunpack.c.0.s8 %v1158
        %v1160 = vlaneseq
        %v1161 = vshrl.u32 %v1160, 7
        %v1162 = vsub.s32 %v1159, %v1161
        %v1163 = vrot.slane %v1147, %v1162
        %v1165 = vunpack.c.l.s4 1966171168
        %v1166 = vunpack.c.0.s8 %v1165
        %v1167 = vlaneseq
        %v1168 = vshrl.u32 %v1167, 7
        %v1169 = vsub.s32 %v1166, %v1168
        %v1170 = vrot.slane %v1148, %v1169
        %v1172 = vunpack.c.l.s4 1966171168
        %v1173 = vunpack.c.0.s8 %v1172
        %v1174 = vlaneseq
        %v1175 = vshrl.u32 %v1174, 7
        %v1176 = vsub.s32 %v1173, %v1175
        %v1177 = vrot.slane %v1149, %v1176
        %v1178 = vcombine.high %v1156, %v1156
        %v1179 = vcombine.high %v1163, %v1163
        %v1180 = vcombine.high %v1170, %v1170
        %v1181 = vcombine.high %v1177, %v1177
        %v1182 = vcombine.high %v240, %v240
        %v1184 = vunpack.c.l.s4 1966171168
        %v1185 = vunpack.c.0.s8 %v1184
        %v1186 = vlaneseq
        %v1187 = vshrl.u32 %v1186, 7
        %v1188 = vsub.s32 %v1185, %v1187
        %v1189 = vrot.slane %v240, %v1188
        %v1191 = vunpack.c.l.s4 1966171168
        %v1192 = vunpack.c.0.s8 %v1191
        %v1193 = vlaneseq
        %v1194 = vshrl.u32 %v1193, 7
        %v1195 = vsub.s32 %v1192, %v1194
        %v1196 = vrot.slane %v1182, %v1195
        %v1197 = vcombine.high %v1189, %v1189
        %v1198 = vcombine.high %v1196, %v1196
        %v1200 = vunpack.c.l.s4 1966171168
        %v1201 = vunpack.c.0.s8 %v1200
        %v1202 = vlaneseq
        %v1203 = vshrl.u32 %v1202, 7
        %v1204 = vsub.s32 %v1201, %v1203
        %v1205 = vrot.slane %v1189, %v1204
        %v1207 = vunpack.c.l.s4 1966171168
        %v1208 = vunpack.c.0.s8 %v1207
        %v1209 = vlaneseq
        %v1210 = vshrl.u32 %v1209, 7
        %v1211 = vsub.s32 %v1208, %v1210
        %v1212 = vrot.slane %v1196, %v1211
        %v1214 = vunpack.c.l.s4 1966171168
        %v1215 = vunpack.c.0.s8 %v1214
        %v1216 = vlaneseq
        %v1217 = vshrl.u32 %v1216, 7
        %v1218 = vsub.s32 %v1215, %v1217
        %v1219 = vrot.slane %v1197, %v1218
        %v1221 = vunpack.c.l.s4 1966171168
        %v1222 = vunpack.c.0.s8 %v1221
        %v1223 = vlaneseq
        %v1224 = vshrl.u32 %v1223, 7
        %v1225 = vsub.s32 %v1222, %v1224
        %v1226 = vrot.slane %v1198, %v1225
        %v1227 = vcombine.high %v1205, %v1205
        %v1228 = vcombine.high %v1212, %v1212
        %v1229 = vcombine.high %v1219, %v1219
        %v1230 = vcombine.high %v1226, %v1226
        %v1231 = vcombine.high %v241, %v241
        %v1233 = vunpack.c.l.s4 1966171168
        %v1234 = vunpack.c.0.s8 %v1233
        %v1235 = vlaneseq
        %v1236 = vshrl.u32 %v1235, 7
        %v1237 = vsub.s32 %v1234, %v1236
        %v1238 = vrot.slane %v241, %v1237
        %v1240 = vunpack.c.l.s4 1966171168
        %v1241 = vunpack.c.0.s8 %v1240
        %v1242 = vlaneseq
        %v1243 = vshrl.u32 %v1242, 7
        %v1244 = vsub.s32 %v1241, %v1243
        %v1245 = vrot.slane %v1231, %v1244
        %v1246 = vcombine.high %v1238, %v1238
        %v1247 = vcombine.high %v1245, %v1245
        %v1249 = vunpack.c.l.s4 1966171168
        %v1250 = vunpack.c.0.s8 %v1249
        %v1251 = vlaneseq
        %v1252 = vshrl.u32 %v1251, 7
        %v1253 = vsub.s32 %v1250, %v1252
        %v1254 = vrot.slane %v1238, %v1253
        %v1256 = vunpack.c.l.s4 1966171168
        %v1257 = vunpack.c.0.s8 %v1256
        %v1258 = vlaneseq
        %v1259 = vshrl.u32 %v1258, 7
        %v1260 = vsub.s32 %v1257, %v1259
        %v1261 = vrot.slane %v1245, %v1260
        %v1263 = vunpack.c.l.s4 1966171168
        %v1264 = vunpack.c.0.s8 %v1263
        %v1265 = vlaneseq
        %v1266 = vshrl.u32 %v1265, 7
        %v1267 = vsub.s32 %v1264, %v1266
        %v1268 = vrot.slane %v1246, %v1267
        %v1270 = vunpack.c.l.s4 1966171168
        %v1271 = vunpack.c.0.s8 %v1270
        %v1272 = vlaneseq
        %v1273 = vshrl.u32 %v1272, 7
        %v1274 = vsub.s32 %v1271, %v1273
        %v1275 = vrot.slane %v1247, %v1274
        %v1276 = vcombine.high %v1254, %v1254
        %v1277 = vcombine.high %v1261, %v1261
        %v1278 = vcombine.high %v1268, %v1268
        %v1279 = vcombine.high %v1275, %v1275
        %v1280 = vcombine.high %v242, %v242
        %v1282 = vunpack.c.l.s4 1966171168
        %v1283 = vunpack.c.0.s8 %v1282
        %v1284 = vlaneseq
        %v1285 = vshrl.u32 %v1284, 7
        %v1286 = vsub.s32 %v1283, %v1285
        %v1287 = vrot.slane %v242, %v1286
        %v1289 = vunpack.c.l.s4 1966171168
        %v1290 = vunpack.c.0.s8 %v1289
        %v1291 = vlaneseq
        %v1292 = vshrl.u32 %v1291, 7
        %v1293 = vsub.s32 %v1290, %v1292
        %v1294 = vrot.slane %v1280, %v1293
        %v1295 = vcombine.high %v1287, %v1287
        %v1296 = vcombine.high %v1294, %v1294
        %v1298 = vunpack.c.l.s4 1966171168
        %v1299 = vunpack.c.0.s8 %v1298
        %v1300 = vlaneseq
        %v1301 = vshrl.u32 %v1300, 7
        %v1302 = vsub.s32 %v1299, %v1301
        %v1303 = vrot.slane %v1287, %v1302
        %v1305 = vunpack.c.l.s4 1966171168
        %v1306 = vunpack.c.0.s8 %v1305
        %v1307 = vlaneseq
        %v1308 = vshrl.u32 %v1307, 7
        %v1309 = vsub.s32 %v1306, %v1308
        %v1310 = vrot.slane %v1294, %v1309
        %v1312 = vunpack.c.l.s4 1966171168
        %v1313 = vunpack.c.0.s8 %v1312
        %v1314 = vlaneseq
        %v1315 = vshrl.u32 %v1314, 7
        %v1316 = vsub.s32 %v1313, %v1315
        %v1317 = vrot.slane %v1295, %v1316
        %v1319 = vunpack.c.l.s4 1966171168
        %v1320 = vunpack.c.0.s8 %v1319
        %v1321 = vlaneseq
        %v1322 = vshrl.u32 %v1321, 7
        %v1323 = vsub.s32 %v1320, %v1322
        %v1324 = vrot.slane %v1296, %v1323
        %v1325 = vcombine.high %v1303, %v1303
        %v1326 = vcombine.high %v1310, %v1310
        %v1327 = vcombine.high %v1317, %v1317
        %v1328 = vcombine.high %v1324, %v1324
        %v1329 = vcombine.high %v243, %v243
        %v1331 = vunpack.c.l.s4 1966171168
        %v1332 = vunpack.c.0.s8 %v1331
        %v1333 = vlaneseq
        %v1334 = vshrl.u32 %v1333, 7
        %v1335 = vsub.s32 %v1332, %v1334
        %v1336 = vrot.slane %v243, %v1335
        %v1338 = vunpack.c.l.s4 1966171168
        %v1339 = vunpack.c.0.s8 %v1338
        %v1340 = vlaneseq
        %v1341 = vshrl.u32 %v1340, 7
        %v1342 = vsub.s32 %v1339, %v1341
        %v1343 = vrot.slane %v1329, %v1342
        %v1344 = vcombine.high %v1336, %v1336
        %v1345 = vcombine.high %v1343, %v1343
        %v1347 = vunpack.c.l.s4 1966171168
        %v1348 = vunpack.c.0.s8 %v1347
        %v1349 = vlaneseq
        %v1350 = vshrl.u32 %v1349, 7
        %v1351 = vsub.s32 %v1348, %v1350
        %v1352 = vrot.slane %v1336, %v1351
        %v1354 = vunpack.c.l.s4 1966171168
        %v1355 = vunpack.c.0.s8 %v1354
        %v1356 = vlaneseq
        %v1357 = vshrl.u32 %v1356, 7
        %v1358 = vsub.s32 %v1355, %v1357
        %v1359 = vrot.slane %v1343, %v1358
        %v1361 = vunpack.c.l.s4 1966171168
        %v1362 = vunpack.c.0.s8 %v1361
        %v1363 = vlaneseq
        %v1364 = vshrl.u32 %v1363, 7
        %v1365 = vsub.s32 %v1362, %v1364
        %v1366 = vrot.slane %v1344, %v1365
        %v1368 = vunpack.c.l.s4 1966171168
        %v1369 = vunpack.c.0.s8 %v1368
        %v1370 = vlaneseq
        %v1371 = vshrl.u32 %v1370, 7
        %v1372 = vsub.s32 %v1369, %v1371
        %v1373 = vrot.slane %v1345, %v1372
        %v1374 = vcombine.high %v1352, %v1352
        %v1375 = vcombine.high %v1359, %v1359
        %v1376 = vcombine.high %v1366, %v1366
        %v1377 = vcombine.high %v1373, %v1373
        %v1379 = vunpack.c.l.s4 1966171168
        %v1380 = vunpack.c.0.s8 %v1379
        %v1381 = vlaneseq
        %v1382 = vshrl.u32 %v1381, 7
        %v1383 = vsub.s32 %v1380, %v1382
        %v1384 = vrot.slane %v244, %v1383
        %v1385 = vcombine.high %v1384, %v1384
        %v1387 = vunpack.c.l.s4 1966171168
        %v1388 = vunpack.c.0.s8 %v1387
        %v1389 = vlaneseq
        %v1390 = vshrl.u32 %v1389, 7
        %v1391 = vsub.s32 %v1388, %v1390
        %v1392 = vrot.slane %v1384, %v1391
        %v1394 = vunpack.c.l.s4 1966171168
        %v1395 = vunpack.c.0.s8 %v1394
        %v1396 = vlaneseq
        %v1397 = vshrl.u32 %v1396, 7
        %v1398 = vsub.s32 %v1395, %v1397
        %v1399 = vrot.slane %v1385, %v1398
        %v1400 = vcombine.high %v1392, %v1392
        %v1401 = vcombine.high %v1399, %v1399
        %v2286 = vunpack.c.l.b16 %v245
        %v2287 = vunpack.c.h.b16 %v245
        %v2288 = vunpack.c.l.b16 %v246
        %v2289 = vunpack.c.h.b16 %v246
        %v2290 = vunpack.c.l.b16 %v247
        %v2291 = vunpack.c.h.b16 %v247
        %v2292 = vunpack.c.l.b16 %v248
        %v2293 = vunpack.c.h.b16 %v248
        %v2294 = vunpack.c.l.b16 %v249
        %v2295 = vunpack.c.h.b16 %v249
        %v2296 = vunpack.c.l.b16 %v250
        %v2297 = vunpack.c.h.b16 %v250
        %v2298 = vunpack.c.l.b16 %v251
        %v2299 = vunpack.c.h.b16 %v251
        %v2300 = vunpack.c.l.b16 %v252
        %v2301 = vunpack.c.h.b16 %v252
        %v2302 = vunpack.c.l.b16 %v253
        %v2303 = vunpack.c.h.b16 %v253
        %v2304 = vunpack.c.l.b16 %v254
        %v2305 = vunpack.c.h.b16 %v254
        %v2306 = vunpack.c.l.b16 %v255
        %v2307 = vunpack.c.h.b16 %v255
        %v2308 = vunpack.c.l.b16 %v256
        %v2309 = vunpack.c.h.b16 %v256
        %v2310 = vunpack.c.l.b16 %v257
        %v2311 = vunpack.c.h.b16 %v257
        %v2312 = vunpack.c.l.b16 %v258
        %v2313 = vunpack.c.h.b16 %v258
        %v2314 = vunpack.c.l.b16 %v259
        %v2315 = vunpack.c.h.b16 %v259
        %v2316 = vunpack.c.l.b16 %v260
        %v2317 = vunpack.c.h.b16 %v260
        %v2318 = vunpack.c.l.b16 %v261
        %v2319 = vunpack.c.h.b16 %v261
        %v2320 = vunpack.c.l.b16 %v262
        %v2321 = vunpack.c.h.b16 %v262
        %v2322 = vunpack.c.l.b16 %v263
        %v2323 = vunpack.c.h.b16 %v263
        %v2324 = vunpack.c.l.b16 %v264
        %v2325 = vunpack.c.h.b16 %v264
        %v2326 = vunpack.c.l.b16 %v265
        %v2327 = vunpack.c.h.b16 %v265
        %v2328 = vunpack.c.l.b16 %v266
        %v2329 = vunpack.c.h.b16 %v266
        %v2330 = vunpack.c.l.b16 %v267
        %v2331 = vunpack.c.h.b16 %v267
        %v2332 = vunpack.c.l.b16 %v268
        %v2333 = vunpack.c.h.b16 %v268
        %v2334 = vunpack.c.l.b16 %v269
        %v2335 = vunpack.c.h.b16 %v269
        %v2336 = vunpack.c.l.b16 %v270
        %v2337 = vunpack.c.h.b16 %v270
        %v2338 = vunpack.c.l.b16 %v271
        %v2339 = vunpack.c.h.b16 %v271
        %v2340 = vunpack.c.l.b16 %v272
        %v2341 = vunpack.c.h.b16 %v272
        %v2342 = vunpack.c.l.b16 %v273
        %v2343 = vunpack.c.h.b16 %v273
        %v2344 = vunpack.c.l.b16 %v274
        %v2345 = vunpack.c.h.b16 %v274
        %v2346 = vunpack.c.l.b16 %v275
        %v2347 = vunpack.c.h.b16 %v275
        %v2348 = vunpack.c.l.b16 %v276
        %v2349 = vunpack.c.h.b16 %v276
        %v2350 = vunpack.c.l.b16 %v277
        %v2351 = vunpack.c.h.b16 %v277
        %v2352 = vunpack.c.l.b16 %v278
        %v2353 = vunpack.c.h.b16 %v278
        %v2354 = vunpack.c.l.b16 %v279
        %v2355 = vunpack.c.h.b16 %v279
        %v2356 = vunpack.c.l.b16 %v280
        %v2357 = vunpack.c.h.b16 %v280
        %v2358 = vunpack.c.l.b16 %v281
        %v2359 = vunpack.c.h.b16 %v281
        %v2360 = vunpack.c.l.b16 %v282
        %v2361 = vunpack.c.h.b16 %v282
        %v2362 = vunpack.c.l.b16 %v283
        %v2363 = vunpack.c.h.b16 %v283
        %v2364 = vunpack.c.l.b16 %v284
        %v2365 = vunpack.c.h.b16 %v284
        %v2366 = vunpack.c.l.b16 %v285
        %v2367 = vunpack.c.h.b16 %v285
        %v2368 = vunpack.c.l.b16 %v286
        %v2369 = vunpack.c.h.b16 %v286
        %v2370 = vunpack.c.l.b16 %v287
        %v2371 = vunpack.c.h.b16 %v287
        %v2372 = vunpack.c.l.b16 %v288
        %v2373 = vunpack.c.h.b16 %v288
        %v2374 = vunpack.c.l.b16 %v289
        %v2375 = vunpack.c.h.b16 %v289
        %v2376 = vunpack.c.l.b16 %v290
        %v2377 = vunpack.c.h.b16 %v290
        %v2378 = vunpack.c.l.b16 %v291
        %v2379 = vunpack.c.h.b16 %v291
        %v2380 = vunpack.c.l.b16 %v292
        %v2381 = vunpack.c.h.b16 %v292
        %v2382 = vunpack.c.l.b16 %v293
        %v2383 = vunpack.c.h.b16 %v293
        %v2384 = vunpack.c.l.b16 %v294
        %v2385 = vunpack.c.h.b16 %v294
        %v2386 = vunpack.c.l.b16 %v295
        %v2387 = vunpack.c.h.b16 %v295
        %v2388 = vunpack.c.l.b16 %v296
        %v2389 = vunpack.c.h.b16 %v296
        %v2390 = vunpack.c.l.b16 %v297
        %v2391 = vunpack.c.h.b16 %v297
        %v2392 = vunpack.c.l.b16 %v298
        %v2393 = vunpack.c.h.b16 %v298
        %v2394 = vunpack.c.l.b16 %v299
        %v2395 = vunpack.c.h.b16 %v299
        %v2396 = vunpack.c.l.b16 %v300
        %v2397 = vunpack.c.h.b16 %v300
        %v2398 = vunpack.c.l.b16 %v301
        %v2399 = vunpack.c.h.b16 %v301
        %v2400 = vunpack.c.l.b16 %v302
        %v2401 = vunpack.c.h.b16 %v302
        %v2402 = vunpack.c.l.b16 %v303
        %v2403 = vunpack.c.h.b16 %v303
        %v2404 = vunpack.c.l.b16 %v304
        %v2405 = vunpack.c.h.b16 %v304
        %v2406 = vunpack.c.l.b16 %v305
        %v2407 = vunpack.c.h.b16 %v305
        %v2408 = vunpack.c.l.b16 %v306
        %v2409 = vunpack.c.h.b16 %v306
        %v2410 = vunpack.c.l.b16 %v307
        %v2411 = vunpack.c.h.b16 %v307
        %v2412 = vunpack.c.l.b16 %v308
        %v2413 = vunpack.c.h.b16 %v308
        %v2414 = vunpack.c.l.b16 %v309
        %v2415 = vunpack.c.h.b16 %v309
        %v2416 = vunpack.c.l.b16 %v310
        %v2417 = vunpack.c.h.b16 %v310
        %v2418 = vunpack.c.l.b16 %v311
        %v2419 = vunpack.c.h.b16 %v311
        %v2420 = vunpack.c.l.b16 %v312
        %v2421 = vunpack.c.h.b16 %v312
        %v2422 = vunpack.c.l.b16 %v313
        %v2423 = vunpack.c.h.b16 %v313
        %v2424 = vunpack.c.l.b16 %v314
        %v2425 = vunpack.c.h.b16 %v314
        %v2426 = vunpack.c.l.b16 %v315
        %v2427 = vunpack.c.h.b16 %v315
        %v2428 = vunpack.c.l.b16 %v316
        %v2429 = vunpack.c.h.b16 %v316
        %v2430 = vunpack.c.l.b16 %v317
        %v2431 = vunpack.c.h.b16 %v317
        %v2432 = vunpack.c.l.b16 %v318
        %v2433 = vunpack.c.h.b16 %v318
        %v2434 = vunpack.c.l.b16 %v319
        %v2435 = vunpack.c.h.b16 %v319
        %v2436 = vunpack.c.l.b16 %v320
        %v2437 = vunpack.c.h.b16 %v320
        %v2438 = vunpack.c.l.b16 %v321
        %v2439 = vunpack.c.h.b16 %v321
        %v2440 = vunpack.c.l.b16 %v322
        %v2441 = vunpack.c.h.b16 %v322
        %v2442 = vunpack.c.l.b16 %v323
        %v2443 = vunpack.c.h.b16 %v323
        %v2444 = vunpack.c.l.b16 %v324
        %v2445 = vunpack.c.h.b16 %v324
        %v2446 = vunpack.c.l.b16 %v325
        %v2447 = vunpack.c.h.b16 %v325
        %v2448 = vunpack.c.l.b16 %v326
        %v2449 = vunpack.c.h.b16 %v326
        %v2450 = vunpack.c.l.b16 %v327
        %v2451 = vunpack.c.h.b16 %v327
        %v2452 = vunpack.c.l.b16 %v328
        %v2453 = vunpack.c.h.b16 %v328
        %v2454 = vunpack.c.l.b16 %v329
        %v2455 = vunpack.c.h.b16 %v329
        %v2456 = vunpack.c.l.b16 %v330
        %v2457 = vunpack.c.h.b16 %v330
        %v2458 = vunpack.c.l.b16 %v331
        %v2459 = vunpack.c.h.b16 %v331
        %v2460 = vunpack.c.l.b16 %v332
        %v2461 = vunpack.c.h.b16 %v332
        %v2462 = vunpack.c.l.b16 %v333
        %v2463 = vunpack.c.h.b16 %v333
        %v2464 = vunpack.c.l.b16 %v334
        %v2465 = vunpack.c.h.b16 %v334
        %v2466 = vunpack.c.l.b16 %v335
        %v2467 = vunpack.c.h.b16 %v335
        %v2468 = vunpack.c.l.b16 %v336
        %v2469 = vunpack.c.h.b16 %v336
        %v2470 = vunpack.c.l.b16 %v337
        %v2471 = vunpack.c.h.b16 %v337
        %v2472 = vunpack.c.l.b16 %v338
        %v2473 = vunpack.c.h.b16 %v338
        %v2474 = vunpack.c.l.b16 %v339
        %v2475 = vunpack.c.h.b16 %v339
        %v2476 = vunpack.c.l.b16 %v340
        %v2477 = vunpack.c.h.b16 %v340
        %v2478 = vunpack.c.l.b16 %v341
        %v2479 = vunpack.c.h.b16 %v341
        %v2480 = vunpack.c.l.b16 %v342
        %v2481 = vunpack.c.h.b16 %v342
        %v2482 = vunpack.c.l.b16 %v343
        %v2483 = vunpack.c.h.b16 %v343
        %v2484 = vunpack.c.l.b16 %v344
        %v2485 = vunpack.c.h.b16 %v344
        %v2486 = vunpack.c.l.b16 %v345
        %v2487 = vunpack.c.h.b16 %v345
        %v2488 = vunpack.c.l.b16 %v346
        %v2489 = vunpack.c.h.b16 %v346
        %v2490 = vunpack.c.l.b16 %v347
        %v2491 = vunpack.c.h.b16 %v347
        %v2492 = vunpack.c.l.b16 %v348
        %v2493 = vunpack.c.h.b16 %v348
        %v2494 = vunpack.c.l.b16 %v349
        %v2495 = vunpack.c.h.b16 %v349
        %v2496 = vunpack.c.l.b16 %v350
        %v2497 = vunpack.c.h.b16 %v350
        %v2498 = vunpack.c.l.b16 %v351
        %v2499 = vunpack.c.h.b16 %v351
        %v2500 = vunpack.c.l.b16 %v352
        %v2501 = vunpack.c.h.b16 %v352
        %v2502 = vunpack.c.l.b16 %v353
        %v2503 = vunpack.c.h.b16 %v353
        %v2504 = vunpack.c.l.b16 %v354
        %v2505 = vunpack.c.h.b16 %v354
        %v2506 = vunpack.c.l.b16 %v355
        %v2507 = vunpack.c.h.b16 %v355
        %v2508 = vunpack.c.l.b16 %v356
        %v2509 = vunpack.c.h.b16 %v356
        %v2510 = vunpack.c.l.b16 %v357
        %v2511 = vunpack.c.h.b16 %v357
        %v2512 = vunpack.c.l.b16 %v358
        %v2513 = vunpack.c.h.b16 %v358
        %v2514 = vunpack.c.l.b16 %v359
        %v2515 = vunpack.c.h.b16 %v359
        %v2516 = vunpack.c.l.b16 %v360
        %v2517 = vunpack.c.h.b16 %v360
        %v2518 = vunpack.c.l.b16 %v361
        %v2519 = vunpack.c.h.b16 %v361
        %v2520 = vunpack.c.l.b16 %v362
        %v2521 = vunpack.c.h.b16 %v362
        %v2522 = vunpack.c.l.b16 %v363
        %v2523 = vunpack.c.h.b16 %v363
        %v2524 = vunpack.c.l.b16 %v364
        %v2525 = vunpack.c.h.b16 %v364
        %v2526 = vunpack.c.l.b16 %v365
        %v2527 = vunpack.c.h.b16 %v365
        %v2528 = vunpack.c.l.b16 %v366
        %v2529 = vunpack.c.h.b16 %v366
        %v2530 = vunpack.c.l.b16 %v367
        %v2531 = vunpack.c.h.b16 %v367
        %v2532 = vunpack.c.l.b16 %v368
        %v2533 = vunpack.c.h.b16 %v368
        %v2534 = vunpack.c.l.b16 %v369
        %v2535 = vunpack.c.h.b16 %v369
        %v2536 = vunpack.c.l.b16 %v370
        %v2537 = vunpack.c.h.b16 %v370
        %v2538 = vunpack.c.l.b16 %v371
        %v2539 = vunpack.c.h.b16 %v371
        %v2540 = vunpack.c.l.b16 %v372
        %v2541 = vunpack.c.h.b16 %v372
        %v2542 = vunpack.c.l.b16 %v373
        %v2543 = vunpack.c.h.b16 %v373
        %v2544 = vunpack.c.l.b16 %v374
        %v2545 = vunpack.c.h.b16 %v374
        %v2546 = vunpack.c.l.b16 %v375
        %v2547 = vunpack.c.h.b16 %v375
        %v2548 = vunpack.c.l.b16 %v376
        %v2549 = vunpack.c.h.b16 %v376
        %v2550 = vunpack.c.l.b16 %v377
        %v2551 = vunpack.c.h.b16 %v377
        %v2552 = vunpack.c.l.b16 %v378
        %v2553 = vunpack.c.h.b16 %v378
        %v2554 = vunpack.c.l.b16 %v379
        %v2555 = vunpack.c.h.b16 %v379
        %v2556 = vunpack.c.l.b16 %v380
        %v2557 = vunpack.c.h.b16 %v380
        %v2558 = vunpack.c.l.b16 %v381
        %v2559 = vunpack.c.h.b16 %v381
        %v2560 = vunpack.c.l.b16 %v382
        %v2561 = vunpack.c.h.b16 %v382
        %v2562 = vunpack.c.l.b16 %v383
        %v2563 = vunpack.c.h.b16 %v383
        %v2564 = vunpack.c.l.b16 %v384
        %v2565 = vunpack.c.h.b16 %v384
        %v2566 = vunpack.c.l.b16 %v385
        %v2567 = vunpack.c.h.b16 %v385
        %v2568 = vunpack.c.l.b16 %v386
        %v2569 = vunpack.c.h.b16 %v386
        %v2570 = vunpack.c.l.b16 %v387
        %v2571 = vunpack.c.h.b16 %v387
        %v2572 = vunpack.c.l.b16 %v388
        %v2573 = vunpack.c.h.b16 %v388
        %v2574 = vunpack.c.l.b16 %v389
        %v2575 = vunpack.c.h.b16 %v389
        %v2576 = vunpack.c.l.b16 %v390
        %v2577 = vunpack.c.h.b16 %v390
        %v2578 = vunpack.c.l.b16 %v391
        %v2579 = vunpack.c.h.b16 %v391
        %v2580 = vunpack.c.l.b16 %v392
        %v2581 = vunpack.c.h.b16 %v392
        %v2582 = vunpack.c.l.b16 %v393
        %v2583 = vunpack.c.h.b16 %v393
        %v2584 = vunpack.c.l.b16 %v394
        %v2585 = vunpack.c.h.b16 %v394
        %v2586 = vunpack.c.l.b16 %v395
        %v2587 = vunpack.c.h.b16 %v395
        %v2588 = vunpack.c.l.b16 %v396
        %v2589 = vunpack.c.h.b16 %v396
        %v2590 = vunpack.c.l.b16 %v397
        %v2591 = vunpack.c.h.b16 %v397
        %v2592 = vunpack.c.l.b16 %v398
        %v2593 = vunpack.c.h.b16 %v398
        %v2594 = vunpack.c.l.b16 %v399
        %v2595 = vunpack.c.h.b16 %v399
        %v2596 = vunpack.c.l.b16 %v400
        %v2597 = vunpack.c.h.b16 %v400
        %v2598 = vunpack.c.l.b16 %v401
        %v2599 = vunpack.c.h.b16 %v401
        %v2600 = vunpack.c.l.b16 %v402
        %v2601 = vunpack.c.h.b16 %v402
        %v2602 = vunpack.c.l.b16 %v403
        %v2603 = vunpack.c.h.b16 %v403
        %v2604 = vunpack.c.l.b16 %v404
        %v2605 = vunpack.c.h.b16 %v404
        %v2606 = vunpack.c.l.b16 %v405
        %v2607 = vunpack.c.h.b16 %v405
        %v2608 = vunpack.c.l.b16 %v406
        %v2609 = vunpack.c.h.b16 %v406
        %v2610 = vunpack.c.l.b16 %v407
        %v2611 = vunpack.c.h.b16 %v407
        %v2612 = vunpack.c.l.b16 %v408
        %v2613 = vunpack.c.h.b16 %v408
        %v2614 = vunpack.c.l.b16 %v409
        %v2615 = vunpack.c.h.b16 %v409
        %v2616 = vunpack.c.l.b16 %v410
        %v2617 = vunpack.c.h.b16 %v410
        %v2618 = vunpack.c.l.b16 %v411
        %v2619 = vunpack.c.h.b16 %v411
        %v2620 = vunpack.c.l.b16 %v412
        %v2621 = vunpack.c.h.b16 %v412
        %v2622 = vunpack.c.l.b16 %v413
        %v2623 = vunpack.c.h.b16 %v413
        %v2624 = vunpack.c.l.b16 %v414
        %v2625 = vunpack.c.h.b16 %v414
        %v2626 = vunpack.c.l.b16 %v415
        %v2627 = vunpack.c.h.b16 %v415
        %v2628 = vunpack.c.l.b16 %v416
        %v2629 = vunpack.c.h.b16 %v416
        %v2630 = vunpack.c.l.b16 %v417
        %v2631 = vunpack.c.h.b16 %v417
        %v2632 = vunpack.c.l.b16 %v418
        %v2633 = vunpack.c.h.b16 %v418
        %v2634 = vunpack.c.l.b16 %v419
        %v2635 = vunpack.c.h.b16 %v419
        %v2636 = vunpack.c.l.b16 %v420
        %v2637 = vunpack.c.h.b16 %v420
        %v2638 = vunpack.c.l.b16 %v421
        %v2639 = vunpack.c.h.b16 %v421
        %v2640 = vunpack.c.l.b16 %v422
        %v2641 = vunpack.c.h.b16 %v422
        %v2642 = vunpack.c.l.b16 %v423
        %v2643 = vunpack.c.h.b16 %v423
        %v2644 = vunpack.c.l.b16 %v424
        %v2645 = vunpack.c.h.b16 %v424
        %v2646 = vunpack.c.l.b16 %v425
        %v2647 = vunpack.c.h.b16 %v425
        %v2648 = vunpack.c.l.b16 %v426
        %v2649 = vunpack.c.h.b16 %v426
        %v2650 = vunpack.c.l.b16 %v427
        %v2651 = vunpack.c.h.b16 %v427
        %v2652 = vunpack.c.l.b16 %v428
        %v2653 = vunpack.c.h.b16 %v428
        %v2654 = vunpack.c.l.b16 %v429
        %v2655 = vunpack.c.h.b16 %v429
        %v2656 = vunpack.c.l.b16 %v430
        %v2657 = vunpack.c.h.b16 %v430
        %v2658 = vunpack.c.l.b16 %v431
        %v2659 = vunpack.c.h.b16 %v431
        %v2660 = vunpack.c.l.b16 %v432
        %v2661 = vunpack.c.h.b16 %v432
        %v2662 = vunpack.c.l.b16 %v433
        %v2663 = vunpack.c.h.b16 %v433
        %v2664 = vunpack.c.l.b16 %v434
        %v2665 = vunpack.c.h.b16 %v434
        %v2666 = vunpack.c.l.b16 %v435
        %v2667 = vunpack.c.h.b16 %v435
        %v2668 = vunpack.c.l.b16 %v436
        %v2669 = vunpack.c.h.b16 %v436
        %v2670 = vunpack.c.l.b16 %v437
        %v2671 = vunpack.c.h.b16 %v437
        %v2672 = vunpack.c.l.b16 %v438
        %v2673 = vunpack.c.h.b16 %v438
        %v2674 = vunpack.c.l.b16 %v439
        %v2675 = vunpack.c.h.b16 %v439
        %v2676 = vunpack.c.l.b16 %v440
        %v2677 = vunpack.c.h.b16 %v440
        %v2678 = vunpack.c.l.b16 %v441
        %v2679 = vunpack.c.h.b16 %v441
        %v2680 = vunpack.c.l.b16 %v442
        %v2681 = vunpack.c.h.b16 %v442
        %v2682 = vunpack.c.l.b16 %v443
        %v2683 = vunpack.c.h.b16 %v443
        %v2684 = vunpack.c.l.b16 %v444
        %v2685 = vunpack.c.h.b16 %v444
        %v2686 = vunpack.c.l.b16 %v445
        %v2687 = vunpack.c.h.b16 %v445
        %v2688 = vunpack.c.l.b16 %v446
        %v2689 = vunpack.c.h.b16 %v446
        %v2690 = vunpack.c.l.b16 %v447
        %v2691 = vunpack.c.h.b16 %v447
        %v2692 = vunpack.c.l.b16 %v448
        %v2693 = vunpack.c.h.b16 %v448
        %v2694 = vunpack.c.l.b16 %v449
        %v2695 = vunpack.c.h.b16 %v449
        %v2696 = vunpack.c.l.b16 %v450
        %v2697 = vunpack.c.h.b16 %v450
        %v2698 = vunpack.c.l.b16 %v451
        %v2699 = vunpack.c.h.b16 %v451
        %v2700 = vunpack.c.l.b16 %v452
        %v2701 = vunpack.c.h.b16 %v452
        %v2702 = vunpack.c.l.b16 %v453
        %v2703 = vunpack.c.h.b16 %v453
        %v2704 = vunpack.c.l.b16 %v454
        %v2705 = vunpack.c.h.b16 %v454
        %v2706 = vunpack.c.l.b16 %v455
        %v2707 = vunpack.c.h.b16 %v455
        %v2708 = vunpack.c.l.b16 %v456
        %v2709 = vunpack.c.h.b16 %v456
        %v2710 = vunpack.c.l.b16 %v457
        %v2711 = vunpack.c.h.b16 %v457
        %v2712 = vunpack.c.l.b16 %v458
        %v2713 = vunpack.c.h.b16 %v458
        %v2714 = vunpack.c.l.b16 %v459
        %v2715 = vunpack.c.h.b16 %v459
        %v2716 = vunpack.c.l.b16 %v460
        %v2717 = vunpack.c.h.b16 %v460
        %v2718 = vunpack.c.l.b16 %v461
        %v2719 = vunpack.c.h.b16 %v461
        %v2720 = vunpack.c.l.b16 %v462
        %v2721 = vunpack.c.h.b16 %v462
        %v2722 = vunpack.c.l.b16 %v463
        %v2723 = vunpack.c.h.b16 %v463
        %v2724 = vunpack.c.l.b16 %v464
        %v2725 = vunpack.c.h.b16 %v464
        %v2726 = vunpack.c.l.b16 %v465
        %v2727 = vunpack.c.h.b16 %v465
        %v2728 = vunpack.c.l.b16 %v466
        %v2729 = vunpack.c.h.b16 %v466
        %v2730 = vunpack.c.l.b16 %v467
        %v2731 = vunpack.c.h.b16 %v467
        %v2732 = vunpack.c.l.b16 %v468
        %v2733 = vunpack.c.h.b16 %v468
        %v2734 = vunpack.c.l.b16 %v469
        %v2735 = vunpack.c.h.b16 %v469
        %v2736 = vunpack.c.l.b16 %v470
        %v2737 = vunpack.c.h.b16 %v470
        %v2738 = vunpack.c.l.b16 %v471
        %v2739 = vunpack.c.h.b16 %v471
        %v2740 = vunpack.c.l.b16 %v472
        %v2741 = vunpack.c.h.b16 %v472
        %v2742 = vunpack.c.l.b16 %v473
        %v2743 = vunpack.c.h.b16 %v473
        %v2744 = vunpack.c.l.b16 %v474
        %v2745 = vunpack.c.h.b16 %v474
        %v2746 = vunpack.c.l.b16 %v475
        %v2747 = vunpack.c.h.b16 %v475
        %v2748 = vunpack.c.l.b16 %v476
        %v2749 = vunpack.c.h.b16 %v476
        %v2750 = vunpack.c.l.b16 %v477
        %v2751 = vunpack.c.h.b16 %v477
        %v2752 = vunpack.c.l.b16 %v478
        %v2753 = vunpack.c.h.b16 %v478
        %v2754 = vunpack.c.l.b16 %v479
        %v2755 = vunpack.c.h.b16 %v479
        %v2756 = vunpack.c.l.b16 %v480
        %v2757 = vunpack.c.h.b16 %v480
        %v2758 = vunpack.c.l.b16 %v481
        %v2759 = vunpack.c.h.b16 %v481
        %v2760 = vunpack.c.l.b16 %v482
        %v2761 = vunpack.c.h.b16 %v482
        %v2762 = vunpack.c.l.b16 %v483
        %v2763 = vunpack.c.h.b16 %v483
        %v2764 = vunpack.c.l.b16 %v484
        %v2765 = vunpack.c.h.b16 %v484
        %v2766 = vunpack.c.l.b16 %v485
        %v2767 = vunpack.c.h.b16 %v485
        %v2768 = vunpack.c.l.b16 %v486
        %v2769 = vunpack.c.h.b16 %v486
        %v2770 = vunpack.c.l.b16 %v487
        %v2771 = vunpack.c.h.b16 %v487
        %v2772 = vunpack.c.l.b16 %v488
        %v2773 = vunpack.c.h.b16 %v488
        %v2774 = vunpack.c.l.b16 %v489
        %v2775 = vunpack.c.h.b16 %v489
        %v2776 = vunpack.c.l.b16 %v490
        %v2777 = vunpack.c.h.b16 %v490
        %v2778 = vunpack.c.l.b16 %v491
        %v2779 = vunpack.c.h.b16 %v491
        %v2780 = vunpack.c.l.b16 %v492
        %v2781 = vunpack.c.h.b16 %v492
        %v2782 = vunpack.c.l.b16 %v493
        %v2783 = vunpack.c.h.b16 %v493
        %v2784 = vunpack.c.l.b16 %v494
        %v2785 = vunpack.c.h.b16 %v494
        %v2786 = vunpack.c.l.b16 %v495
        %v2787 = vunpack.c.h.b16 %v495
        %v2788 = vunpack.c.l.b16 %v496
        %v2789 = vunpack.c.h.b16 %v496
        %v2790 = vunpack.c.l.b16 %v497
        %v2791 = vunpack.c.h.b16 %v497
        %v2792 = vunpack.c.l.b16 %v498
        %v2793 = vunpack.c.h.b16 %v498
        %v2794 = vunpack.c.l.b16 %v499
        %v2795 = vunpack.c.h.b16 %v499
        %v2796 = vunpack.c.l.b16 %v500
        %v2797 = vunpack.c.h.b16 %v500
        %v2798 = vunpack.c.l.b16 %v501
        %v2799 = vunpack.c.h.b16 %v501
        %v2800 = vunpack.c.l.b16 %v502
        %v2801 = vunpack.c.h.b16 %v502
        %v2802 = vunpack.c.l.b16 %v503
        %v2803 = vunpack.c.h.b16 %v503
        %v2804 = vunpack.c.l.b16 %v504
        %v2805 = vunpack.c.h.b16 %v504
        %v2806 = vunpack.c.l.b16 %v505
        %v2807 = vunpack.c.h.b16 %v505
        %v2808 = vunpack.c.l.b16 %v506
        %v2809 = vunpack.c.h.b16 %v506
        %v2810 = vunpack.c.l.b16 %v507
        %v2811 = vunpack.c.h.b16 %v507
        %v2812 = vunpack.c.l.b16 %v508
        %v2813 = vunpack.c.h.b16 %v508
        %v2814 = vunpack.c.l.b16 %v509
        %v2815 = vunpack.c.h.b16 %v509
        %v2816 = vunpack.c.l.b16 %v510
        %v2817 = vunpack.c.h.b16 %v510
        %v2818 = vunpack.c.l.b16 %v511
        %v2819 = vunpack.c.h.b16 %v511
        %v2820 = vunpack.c.l.b16 %v512
        %v2821 = vunpack.c.h.b16 %v512
        %v2822 = vunpack.c.l.b16 %v513
        %v2823 = vunpack.c.h.b16 %v513
        %v2824 = vunpack.c.l.b16 %v514
        %v2825 = vunpack.c.h.b16 %v514
        %v2826 = vunpack.c.l.b16 %v515
        %v2827 = vunpack.c.h.b16 %v515
        %v2828 = vunpack.c.l.b16 %v516
        %v2829 = vunpack.c.h.b16 %v516
        %v2830 = vunpack.c.l.b16 %v517
        %v2831 = vunpack.c.h.b16 %v517
        %v2832 = vunpack.c.l.b16 %v518
        %v2833 = vunpack.c.h.b16 %v518
        %v2834 = vunpack.c.l.b16 %v519
        %v2835 = vunpack.c.h.b16 %v519
        %v2836 = vunpack.c.l.b16 %v520
        %v2837 = vunpack.c.h.b16 %v520
        %v2838 = vunpack.c.l.b16 %v521
        %v2839 = vunpack.c.h.b16 %v521
        %v2840 = vunpack.c.l.b16 %v522
        %v2841 = vunpack.c.h.b16 %v522
        %v2842 = vunpack.c.l.b16 %v523
        %v2843 = vunpack.c.h.b16 %v523
        %v2844 = vunpack.c.l.b16 %v524
        %v2845 = vunpack.c.h.b16 %v524
        %v2846 = vunpack.c.l.b16 %v525
        %v2847 = vunpack.c.h.b16 %v525
        %v2848 = vunpack.c.l.b16 %v526
        %v2849 = vunpack.c.h.b16 %v526
        %v2850 = vunpack.c.l.b16 %v527
        %v2851 = vunpack.c.h.b16 %v527
        %v2852 = vunpack.c.l.b16 %v528
        %v2853 = vunpack.c.h.b16 %v528
        %v2854 = vunpack.c.l.b16 %v529
        %v2855 = vunpack.c.h.b16 %v529
        %v2856 = vunpack.c.l.b16 %v530
        %v2857 = vunpack.c.h.b16 %v530
        %v2858 = vunpack.c.l.b16 %v531
        %v2859 = vunpack.c.h.b16 %v531
        %v2860 = vunpack.c.l.b16 %v532
        %v2861 = vunpack.c.h.b16 %v532
        %v2862 = vunpack.c.l.b16 %v533
        %v2863 = vunpack.c.h.b16 %v533
        %v2864 = vunpack.c.l.b16 %v534
        %v2865 = vunpack.c.h.b16 %v534
        %v2866 = vunpack.c.l.b16 %v535
        %v2867 = vunpack.c.h.b16 %v535
        %v2868 = vunpack.c.l.b16 %v536
        %v2869 = vunpack.c.h.b16 %v536
        %v2870 = vunpack.c.l.b16 %v537
        %v2871 = vunpack.c.h.b16 %v537
        %v2872 = vunpack.c.l.b16 %v538
        %v2873 = vunpack.c.h.b16 %v538
        %v2874 = vunpack.c.l.b16 %v539
        %v2875 = vunpack.c.h.b16 %v539
        %v2876 = vunpack.c.l.b16 %v540
        %v2877 = vunpack.c.h.b16 %v540
        %v2878 = vunpack.c.l.b16 %v541
        %v2879 = vunpack.c.h.b16 %v541
        %v2880 = vunpack.c.l.b16 %v542
        %v2881 = vunpack.c.h.b16 %v542
        %v2882 = vunpack.c.l.b16 %v543
        %v2883 = vunpack.c.h.b16 %v543
        %v2884 = vunpack.c.l.b16 %v544
        %v2885 = vunpack.c.h.b16 %v544
        %v2886 = vunpack.c.l.b16 %v545
        %v2887 = vunpack.c.h.b16 %v545
        %v2888 = vunpack.c.l.b16 %v546
        %v2889 = vunpack.c.h.b16 %v546
        %v2890 = vunpack.c.l.b16 %v547
        %v2891 = vunpack.c.h.b16 %v547
        %v2892 = vunpack.c.l.b16 %v548
        %v2893 = vunpack.c.h.b16 %v548
        %v2894 = vunpack.c.l.b16 %v549
        %v2895 = vunpack.c.h.b16 %v549
        %v2896 = vunpack.c.l.b16 %v550
        %v2897 = vunpack.c.h.b16 %v550
        %v2898 = vunpack.c.l.b16 %v551
        %v2899 = vunpack.c.h.b16 %v551
        %v2900 = vunpack.c.l.b16 %v552
        %v2901 = vunpack.c.h.b16 %v552
        %v2902 = vunpack.c.l.b16 %v553
        %v2903 = vunpack.c.h.b16 %v553
        %v2904 = vunpack.c.l.b16 %v554
        %v2905 = vunpack.c.h.b16 %v554
        %v2906 = vunpack.c.l.b16 %v555
        %v2907 = vunpack.c.h.b16 %v555
        %v2908 = vunpack.c.l.b16 %v556
        %v2909 = vunpack.c.h.b16 %v556
        %v2910 = vunpack.c.l.b16 %v557
        %v2911 = vunpack.c.h.b16 %v557
        %v2912 = vunpack.c.l.b16 %v558
        %v2913 = vunpack.c.h.b16 %v558
        %v2914 = vunpack.c.l.b16 %v559
        %v2915 = vunpack.c.h.b16 %v559
        %v2916 = vunpack.c.l.b16 %v560
        %v2917 = vunpack.c.h.b16 %v560
        %v2918 = vunpack.c.l.b16 %v561
        %v2919 = vunpack.c.h.b16 %v561
        %v2920 = vunpack.c.l.b16 %v562
        %v2921 = vunpack.c.h.b16 %v562
        %v2922 = vunpack.c.l.b16 %v563
        %v2923 = vunpack.c.h.b16 %v563
        %v2924 = vunpack.c.l.b16 %v564
        %v2925 = vunpack.c.h.b16 %v564
        %v2926 = vunpack.c.l.b16 %v565
        %v2927 = vunpack.c.h.b16 %v565
        %v2928 = vunpack.c.l.b16 %v566
        %v2929 = vunpack.c.h.b16 %v566
        %v2930 = vunpack.c.l.b16 %v567
        %v2931 = vunpack.c.h.b16 %v567
        %v2932 = vunpack.c.l.b16 %v568
        %v2933 = vunpack.c.h.b16 %v568
        %v2934 = vunpack.c.l.b16 %v569
        %v2935 = vunpack.c.h.b16 %v569
        %v2936 = vunpack.c.l.b16 %v570
        %v2937 = vunpack.c.h.b16 %v570
        %v2938 = vunpack.c.l.b16 %v571
        %v2939 = vunpack.c.h.b16 %v571
        %v2940 = vunpack.c.l.b16 %v572
        %v2941 = vunpack.c.h.b16 %v572
        %v2942 = vunpack.c.l.b16 %v573
        %v2943 = vunpack.c.h.b16 %v573
        %v2944 = vunpack.c.l.b16 %v574
        %v2945 = vunpack.c.h.b16 %v574
        %v2946 = vunpack.c.l.b16 %v575
        %v2947 = vunpack.c.h.b16 %v575
        %v2948 = vunpack.c.l.b16 %v576
        %v2949 = vunpack.c.h.b16 %v576
        %v2950 = vunpack.c.l.b16 %v577
        %v2951 = vunpack.c.h.b16 %v577
        %v2952 = vunpack.c.l.b16 %v578
        %v2953 = vunpack.c.h.b16 %v578
        %v2954 = vunpack.c.l.b16 %v579
        %v2955 = vunpack.c.h.b16 %v579
        %v2956 = vunpack.c.l.b16 %v580
        %v2957 = vunpack.c.h.b16 %v580
        %v2958 = vunpack.c.l.b16 %v581
        %v2959 = vunpack.c.h.b16 %v581
        %v2960 = vunpack.c.l.b16 %v582
        %v2961 = vunpack.c.h.b16 %v582
        %v2962 = vunpack.c.l.b16 %v583
        %v2963 = vunpack.c.h.b16 %v583
        %v2964 = vunpack.c.l.b16 %v584
        %v2965 = vunpack.c.h.b16 %v584
        %v2966 = vunpack.c.l.b16 %v585
        %v2967 = vunpack.c.h.b16 %v585
        %v2968 = vunpack.c.l.b16 %v586
        %v2969 = vunpack.c.h.b16 %v586
        %v2970 = vunpack.c.l.b16 %v587
        %v2971 = vunpack.c.h.b16 %v587
        %v2972 = vunpack.c.l.b16 %v588
        %v2973 = vunpack.c.h.b16 %v588
        %v2974 = vunpack.c.l.b16 %v589
        %v2975 = vunpack.c.h.b16 %v589
        %v2976 = vunpack.c.l.b16 %v590
        %v2977 = vunpack.c.h.b16 %v590
        %v2978 = vunpack.c.l.b16 %v591
        %v2979 = vunpack.c.h.b16 %v591
        %v2980 = vunpack.c.l.b16 %v592
        %v2981 = vunpack.c.h.b16 %v592
        %v2982 = vunpack.c.l.b16 %v593
        %v2983 = vunpack.c.h.b16 %v593
        %v2984 = vunpack.c.l.b16 %v594
        %v2985 = vunpack.c.h.b16 %v594
        %v2986 = vunpack.c.l.b16 %v595
        %v2987 = vunpack.c.h.b16 %v595
        %v2988 = vunpack.c.l.b16 %v596
        %v2989 = vunpack.c.h.b16 %v596
        %v2990 = vunpack.c.l.b16 %v597
        %v2991 = vunpack.c.h.b16 %v597
        %v2992 = vunpack.c.l.b16 %v598
        %v2993 = vunpack.c.h.b16 %v598
        %v2994 = vunpack.c.l.b16 %v599
        %v2995 = vunpack.c.h.b16 %v599
        %v2996 = vunpack.c.l.b16 %v600
        %v2997 = vunpack.c.h.b16 %v600
        %v2998 = vunpack.c.l.b16 %v601
        %v2999 = vunpack.c.h.b16 %v601
        %v3000 = vunpack.c.l.b16 %v602
        %v3001 = vunpack.c.h.b16 %v602
        %v3002 = vunpack.c.l.b16 %v603
        %v3003 = vunpack.c.h.b16 %v603
        %v3004 = vunpack.c.l.b16 %v604
        %v3005 = vunpack.c.h.b16 %v604
        %v3006 = vunpack.c.l.b16 %v605
        %v3007 = vunpack.c.h.b16 %v605
        %v3008 = vunpack.c.l.b16 %v606
        %v3009 = vunpack.c.h.b16 %v606
        %v3010 = vunpack.c.l.b16 %v607
        %v3011 = vunpack.c.h.b16 %v607
        %v3012 = vunpack.c.l.b16 %v608
        %v3013 = vunpack.c.h.b16 %v608
        %v3014 = vunpack.c.l.b16 %v609
        %v3015 = vunpack.c.h.b16 %v609
        %v3016 = vunpack.c.l.b16 %v610
        %v3017 = vunpack.c.h.b16 %v610
        %v3018 = vunpack.c.l.b16 %v611
        %v3019 = vunpack.c.h.b16 %v611
        %v3020 = vunpack.c.l.b16 %v612
        %v3021 = vunpack.c.h.b16 %v612
        %v3022 = vunpack.c.l.b16 %v613
        %v3023 = vunpack.c.h.b16 %v613
        %v3024 = vunpack.c.l.b16 %v614
        %v3025 = vunpack.c.h.b16 %v614
        %v3026 = vunpack.c.l.b16 %v615
        %v3027 = vunpack.c.h.b16 %v615
        %v3028 = vunpack.c.l.b16 %v616
        %v3029 = vunpack.c.h.b16 %v616
        %v3030 = vunpack.c.l.b16 %v617
        %v3031 = vunpack.c.h.b16 %v617
        %v3032 = vunpack.c.l.b16 %v618
        %v3033 = vunpack.c.h.b16 %v618
        %v3034 = vunpack.c.l.b16 %v619
        %v3035 = vunpack.c.h.b16 %v619
        %v3036 = vunpack.c.l.b16 %v620
        %v3037 = vunpack.c.h.b16 %v620
        %v3038 = vunpack.c.l.b16 %v621
        %v3039 = vunpack.c.h.b16 %v621
        %v3040 = vunpack.c.l.b16 %v622
        %v3041 = vunpack.c.h.b16 %v622
        %v3042 = vunpack.c.l.b16 %v623
        %v3043 = vunpack.c.h.b16 %v623
        %v3044 = vunpack.c.l.b16 %v624
        %v3045 = vunpack.c.h.b16 %v624
        %v3046 = vunpack.c.l.b16 %v625
        %v3047 = vunpack.c.h.b16 %v625
        %v3048 = vunpack.c.l.b16 %v626
        %v3049 = vunpack.c.h.b16 %v626
        %v3050 = vunpack.c.l.b16 %v627
        %v3051 = vunpack.c.h.b16 %v627
        %v3052 = vunpack.c.l.b16 %v628
        %v3053 = vunpack.c.h.b16 %v628
        %v3054 = vunpack.c.l.b16 %v629
        %v3055 = vunpack.c.h.b16 %v629
        %v3056 = vunpack.c.l.b16 %v630
        %v3057 = vunpack.c.h.b16 %v630
        %v3058 = vunpack.c.l.b16 %v631
        %v3059 = vunpack.c.h.b16 %v631
        %v3060 = vunpack.c.l.b16 %v632
        %v3061 = vunpack.c.h.b16 %v632
        %v3062 = vunpack.c.l.b16 %v633
        %v3063 = vunpack.c.h.b16 %v633
        %v3064 = vunpack.c.l.b16 %v634
        %v3065 = vunpack.c.h.b16 %v634
        %v3066 = vunpack.c.l.b16 %v635
        %v3067 = vunpack.c.h.b16 %v635
        %v3068 = vunpack.c.l.b16 %v636
        %v3069 = vunpack.c.h.b16 %v636
        %v3070 = vunpack.c.l.b16 %v637
        %v3071 = vunpack.c.h.b16 %v637
        %v3072 = vunpack.c.l.b16 %v638
        %v3073 = vunpack.c.h.b16 %v638
        %v3074 = vunpack.c.l.b16 %v639
        %v3075 = vunpack.c.h.b16 %v639
        %v3076 = vunpack.c.l.b16 %v640
        %v3077 = vunpack.c.h.b16 %v640
        %v3078 = vunpack.c.l.b16 %v641
        %v3079 = vunpack.c.h.b16 %v641
        %v3080 = vunpack.c.l.b16 %v642
        %v3081 = vunpack.c.h.b16 %v642
        %v3082 = vunpack.c.l.b16 %v643
        %v3083 = vunpack.c.h.b16 %v643
        %v3084 = vunpack.c.l.b16 %v644
        %v3085 = vunpack.c.h.b16 %v644
        %v3086 = vunpack.c.l.b16 %v645
        %v3087 = vunpack.c.h.b16 %v645
        %v3088 = vunpack.c.l.b16 %v646
        %v3089 = vunpack.c.h.b16 %v646
        %v3090 = vunpack.c.l.b16 %v647
        %v3091 = vunpack.c.h.b16 %v647
        %v3092 = vunpack.c.l.b16 %v648
        %v3093 = vunpack.c.h.b16 %v648
        %v3094 = vunpack.c.l.b16 %v649
        %v3095 = vunpack.c.h.b16 %v649
        %v3096 = vunpack.c.l.b16 %v650
        %v3097 = vunpack.c.h.b16 %v650
        %v3098 = vunpack.c.l.b16 %v651
        %v3099 = vunpack.c.h.b16 %v651
        %v3100 = vunpack.c.l.b16 %v652
        %v3101 = vunpack.c.h.b16 %v652
        %v3102 = vunpack.c.l.b16 %v653
        %v3103 = vunpack.c.h.b16 %v653
        %v3104 = vunpack.c.l.b16 %v654
        %v3105 = vunpack.c.h.b16 %v654
        %v3106 = vunpack.c.l.b16 %v655
        %v3107 = vunpack.c.h.b16 %v655
        %v3108 = vunpack.c.l.b16 %v656
        %v3109 = vunpack.c.h.b16 %v656
        %v3110 = vunpack.c.l.b16 %v657
        %v3111 = vunpack.c.h.b16 %v657
        %v3112 = vunpack.c.l.b16 %v658
        %v3113 = vunpack.c.h.b16 %v658
        %v3114 = vunpack.c.l.b16 %v659
        %v3115 = vunpack.c.h.b16 %v659
        %v3116 = vunpack.c.l.b16 %v660
        %v3117 = vunpack.c.h.b16 %v660
        %v3118 = vunpack.c.l.b16 %v661
        %v3119 = vunpack.c.h.b16 %v661
        %v3120 = vunpack.c.l.b16 %v662
        %v3121 = vunpack.c.h.b16 %v662
        %v3122 = vunpack.c.l.b16 %v663
        %v3123 = vunpack.c.h.b16 %v663
        %v3124 = vunpack.c.l.b16 %v664
        %v3125 = vunpack.c.h.b16 %v664
        %v3126 = vunpack.c.l.b16 %v665
        %v3127 = vunpack.c.h.b16 %v665
        %v3128 = vunpack.c.l.b16 %v666
        %v3129 = vunpack.c.h.b16 %v666
        %v3130 = vunpack.c.l.b16 %v667
        %v3131 = vunpack.c.h.b16 %v667
        %v3132 = vunpack.c.l.b16 %v668
        %v3133 = vunpack.c.h.b16 %v668
        %v3134 = vunpack.c.l.b16 %v669
        %v3135 = vunpack.c.h.b16 %v669
        %v3136 = vunpack.c.l.b16 %v670
        %v3137 = vunpack.c.h.b16 %v670
        %v3138 = vunpack.c.l.b16 %v671
        %v3139 = vunpack.c.h.b16 %v671
        %v3140 = vunpack.c.l.b16 %v672
        %v3141 = vunpack.c.h.b16 %v672
        %v3142 = vunpack.c.l.b16 %v673
        %v3143 = vunpack.c.h.b16 %v673
        %v3144 = vunpack.c.l.b16 %v674
        %v3145 = vunpack.c.h.b16 %v674
        %v3146 = vunpack.c.l.b16 %v675
        %v3147 = vunpack.c.h.b16 %v675
        %v3148 = vunpack.c.l.b16 %v676
        %v3149 = vunpack.c.h.b16 %v676
        %v3150 = vunpack.c.l.b16 %v677
        %v3151 = vunpack.c.h.b16 %v677
        %v3152 = vunpack.c.l.b16 %v678
        %v3153 = vunpack.c.h.b16 %v678
        %v3154 = vunpack.c.l.b16 %v679
        %v3155 = vunpack.c.h.b16 %v679
        %v3156 = vunpack.c.l.b16 %v680
        %v3157 = vunpack.c.h.b16 %v680
        %v3158 = vunpack.c.l.b16 %v681
        %v3159 = vunpack.c.h.b16 %v681
        %v3160 = vunpack.c.l.b16 %v682
        %v3161 = vunpack.c.h.b16 %v682
        %v3162 = vunpack.c.l.b16 %v683
        %v3163 = vunpack.c.h.b16 %v683
        %v3164 = vunpack.c.l.b16 %v684
        %v3165 = vunpack.c.h.b16 %v684
        %v3166 = vunpack.c.l.b16 %v685
        %v3167 = vunpack.c.h.b16 %v685
        %v3168 = vunpack.c.l.b16 %v686
        %v3169 = vunpack.c.h.b16 %v686
        %v3170 = vunpack.c.l.b16 %v687
        %v3171 = vunpack.c.h.b16 %v687
        %v3172 = vunpack.c.l.b16 %v688
        %v3173 = vunpack.c.h.b16 %v688
        %v3174 = vunpack.c.l.b16 %v689
        %v3175 = vunpack.c.h.b16 %v689
        %v3176 = vunpack.c.l.b16 %v690
        %v3177 = vunpack.c.h.b16 %v690
        %v3178 = vunpack.c.l.b16 %v691
        %v3179 = vunpack.c.h.b16 %v691
        %v3180 = vunpack.c.l.b16 %v692
        %v3181 = vunpack.c.h.b16 %v692
        %v3182 = vunpack.c.l.b16 %v693
        %v3183 = vunpack.c.h.b16 %v693
        %v3184 = vunpack.c.l.b16 %v694
        %v3185 = vunpack.c.h.b16 %v694
        %v3186 = vunpack.c.l.b16 %v695
        %v3187 = vunpack.c.h.b16 %v695
        %v3188 = vunpack.c.l.b16 %v696
        %v3189 = vunpack.c.h.b16 %v696
        %v3190 = vunpack.c.l.b16 %v697
        %v3191 = vunpack.c.h.b16 %v697
        %v3192 = vunpack.c.l.b16 %v698
        %v3193 = vunpack.c.h.b16 %v698
        %v3194 = vunpack.c.l.b16 %v699
        %v3195 = vunpack.c.h.b16 %v699
        %v3196 = vunpack.c.l.b16 %v700
        %v3197 = vunpack.c.h.b16 %v700
        %v3198 = vunpack.c.l.b16 %v701
        %v3199 = vunpack.c.h.b16 %v701
        %v3200 = vunpack.c.l.b16 %v702
        %v3201 = vunpack.c.h.b16 %v702
        %v3202 = vunpack.c.l.b16 %v703
        %v3203 = vunpack.c.h.b16 %v703
        %v3204 = vunpack.c.l.b16 %v704
        %v3205 = vunpack.c.h.b16 %v704
        %v3206 = vunpack.c.l.b16 %v705
        %v3207 = vunpack.c.h.b16 %v705
        %v3208 = vunpack.c.l.b16 %v706
        %v3209 = vunpack.c.h.b16 %v706
        %v3210 = vunpack.c.l.b16 %v707
        %v3211 = vunpack.c.h.b16 %v707
        %v3212 = vunpack.c.l.b16 %v708
        %v3213 = vunpack.c.h.b16 %v708
        %v3214 = vunpack.c.l.b16 %v709
        %v3215 = vunpack.c.h.b16 %v709
        %v3216 = vunpack.c.l.b16 %v710
        %v3217 = vunpack.c.h.b16 %v710
        %v3218 = vunpack.c.l.b16 %v711
        %v3219 = vunpack.c.h.b16 %v711
        %v3220 = vunpack.c.l.b16 %v712
        %v3221 = vunpack.c.h.b16 %v712
        %v3222 = vunpack.c.l.b16 %v713
        %v3223 = vunpack.c.h.b16 %v713
        %v3224 = vunpack.c.l.b16 %v714
        %v3225 = vunpack.c.h.b16 %v714
        %v3226 = vunpack.c.l.b16 %v715
        %v3227 = vunpack.c.h.b16 %v715
        %v3228 = vunpack.c.l.b16 %v716
        %v3229 = vunpack.c.h.b16 %v716
        %v3230 = vunpack.c.l.b16 %v717
        %v3231 = vunpack.c.h.b16 %v717
        %v3232 = vunpack.c.l.b16 %v718
        %v3233 = vunpack.c.h.b16 %v718
        %v3234 = vunpack.c.l.b16 %v719
        %v3235 = vunpack.c.h.b16 %v719
        %v3236 = vunpack.c.l.b16 %v720
        %v3237 = vunpack.c.h.b16 %v720
        %v3238 = vunpack.c.l.b16 %v721
        %v3239 = vunpack.c.h.b16 %v721
        %v3240 = vunpack.c.l.b16 %v722
        %v3241 = vunpack.c.h.b16 %v722
        %v3242 = vunpack.c.l.b16 %v723
        %v3243 = vunpack.c.h.b16 %v723
        %v3244 = vunpack.c.l.b16 %v724
        %v3245 = vunpack.c.h.b16 %v724
        %v3246 = vunpack.c.l.b16 %v725
        %v3247 = vunpack.c.h.b16 %v725
        %v3248 = vunpack.c.l.b16 %v726
        %v3249 = vunpack.c.h.b16 %v726
        %v3250 = vunpack.c.l.b16 %v727
        %v3251 = vunpack.c.h.b16 %v727
        %v3252 = vunpack.c.l.b16 %v728
        %v3253 = vunpack.c.h.b16 %v728
        %v3254 = vunpack.c.l.b16 %v729
        %v3255 = vunpack.c.h.b16 %v729
        %v3256 = vunpack.c.l.b16 %v730
        %v3257 = vunpack.c.h.b16 %v730
        %v3258 = vunpack.c.l.b16 %v731
        %v3259 = vunpack.c.h.b16 %v731
        %v3260 = vunpack.c.l.b16 %v732
        %v3261 = vunpack.c.h.b16 %v732
        %v3262 = vunpack.c.l.b16 %v733
        %v3263 = vunpack.c.h.b16 %v733
        %v3264 = vunpack.c.l.b16 %v734
        %v3265 = vunpack.c.h.b16 %v734
        %v3266 = vunpack.c.l.b16 %v735
        %v3267 = vunpack.c.h.b16 %v735
        %v3268 = vunpack.c.l.b16 %v736
        %v3269 = vunpack.c.h.b16 %v736
        %v3270 = vunpack.c.l.b16 %v737
        %v3271 = vunpack.c.h.b16 %v737
        %v3272 = vunpack.c.l.b16 %v738
        %v3273 = vunpack.c.h.b16 %v738
        %v3274 = vunpack.c.l.b16 %v739
        %v3275 = vunpack.c.h.b16 %v739
        %v3276 = vunpack.c.l.b16 %v740
        %v3277 = vunpack.c.h.b16 %v740
        %v3278 = vunpack.c.l.b16 %v741
        %v3279 = vunpack.c.h.b16 %v741
        %v3280 = vunpack.c.l.b16 %v742
        %v3281 = vunpack.c.h.b16 %v742
        %v3282 = vunpack.c.l.b16 %v743
        %v3283 = vunpack.c.h.b16 %v743
        %v3284 = vunpack.c.l.b16 %v744
        %v3285 = vunpack.c.h.b16 %v744
        %v3286 = vunpack.c.l.b16 %v745
        %v3287 = vunpack.c.h.b16 %v745
        %v3288 = vunpack.c.l.b16 %v746
        %v3289 = vunpack.c.h.b16 %v746
        %v3290 = vunpack.c.l.b16 %v747
        %v3291 = vunpack.c.h.b16 %v747
        %v3292 = vunpack.c.l.b16 %v748
        %v3293 = vunpack.c.h.b16 %v748
        %v3294 = vunpack.c.l.b16 %v749
        %v3295 = vunpack.c.h.b16 %v749
        %v3296 = vunpack.c.l.b16 %v750
        %v3297 = vunpack.c.h.b16 %v750
        %v3298 = vunpack.c.l.b16 %v751
        %v3299 = vunpack.c.h.b16 %v751
        %v3300 = vunpack.c.l.b16 %v752
        %v3301 = vunpack.c.h.b16 %v752
        %v3302 = vunpack.c.l.b16 %v753
        %v3303 = vunpack.c.h.b16 %v753
        %v3304 = vunpack.c.l.b16 %v754
        %v3305 = vunpack.c.h.b16 %v754
        %v3306 = vunpack.c.l.b16 %v755
        %v3307 = vunpack.c.h.b16 %v755
        %v3308 = vunpack.c.l.b16 %v756
        %v3309 = vunpack.c.h.b16 %v756
        %v3310 = vunpack.c.l.b16 %v757
        %v3311 = vunpack.c.h.b16 %v757
        %v3312 = vunpack.c.l.b16 %v758
        %v3313 = vunpack.c.h.b16 %v758
        %v3314 = vunpack.c.l.b16 %v759
        %v3315 = vunpack.c.h.b16 %v759
        %v3316 = vunpack.c.l.b16 %v760
        %v3317 = vunpack.c.h.b16 %v760
        %v3318 = vunpack.c.l.b16 %v761
        %v3319 = vunpack.c.h.b16 %v761
        %v3320 = vunpack.c.l.b16 %v762
        %v3321 = vunpack.c.h.b16 %v762
        %v3322 = vunpack.c.l.b16 %v763
        %v3323 = vunpack.c.h.b16 %v763
        %v3324 = vunpack.c.l.b16 %v764
        %v3325 = vunpack.c.h.b16 %v764
        %v3326 = vunpack.c.l.b16 %v765
        %v3327 = vunpack.c.h.b16 %v765
        %v3328 = vunpack.c.l.b16 %v766
        %v3329 = vunpack.c.h.b16 %v766
        %v3330 = vunpack.c.l.b16 %v767
        %v3331 = vunpack.c.h.b16 %v767
        %v3332 = vunpack.c.l.b16 %v768
        %v3333 = vunpack.c.h.b16 %v768
        %v3334 = vunpack.c.l.b16 %v769
        %v3335 = vunpack.c.h.b16 %v769
        %v3336 = vunpack.c.l.b16 %v770
        %v3337 = vunpack.c.h.b16 %v770
        %v3338 = vunpack.c.l.b16 %v771
        %v3339 = vunpack.c.h.b16 %v771
        %v3340 = vunpack.c.l.b16 %v772
        %v3341 = vunpack.c.h.b16 %v772
        %v3342 = vunpack.c.l.b16 %v773
        %v3343 = vunpack.c.h.b16 %v773
        %v3344 = vunpack.c.l.b16 %v774
        %v3345 = vunpack.c.h.b16 %v774
        %v3346 = vunpack.c.l.b16 %v775
        %v3347 = vunpack.c.h.b16 %v775
        %v3348 = vunpack.c.l.b16 %v776
        %v3349 = vunpack.c.h.b16 %v776
        %v3350 = vunpack.c.l.b16 %v777
        %v3351 = vunpack.c.h.b16 %v777
        %v3352 = vunpack.c.l.b16 %v778
        %v3353 = vunpack.c.h.b16 %v778
        %v3354 = vunpack.c.l.b16 %v779
        %v3355 = vunpack.c.h.b16 %v779
        %v3356 = vunpack.c.l.b16 %v780
        %v3357 = vunpack.c.h.b16 %v780
        %v3358 = vunpack.c.l.b16 %v781
        %v3359 = vunpack.c.h.b16 %v781
        %v3360 = vunpack.c.l.b16 %v782
        %v3361 = vunpack.c.h.b16 %v782
        %v3362 = vunpack.c.l.b16 %v783
        %v3363 = vunpack.c.h.b16 %v783
        %v3364 = vunpack.c.l.b16 %v784
        %v3365 = vunpack.c.h.b16 %v784
        %v3366 = vunpack.c.l.b16 %v785
        %v3367 = vunpack.c.h.b16 %v785
        %v3368 = vunpack.c.l.b16 %v786
        %v3369 = vunpack.c.h.b16 %v786
        %v3370 = vunpack.c.l.b16 %v787
        %v3371 = vunpack.c.h.b16 %v787
        %v3372 = vunpack.c.l.b16 %v788
        %v3373 = vunpack.c.h.b16 %v788
        %v3374 = vunpack.c.l.b16 %v789
        %v3375 = vunpack.c.h.b16 %v789
        %v3376 = vunpack.c.l.b16 %v790
        %v3377 = vunpack.c.h.b16 %v790
        %v3378 = vunpack.c.l.b16 %v791
        %v3379 = vunpack.c.h.b16 %v791
        %v3380 = vunpack.c.l.b16 %v792
        %v3381 = vunpack.c.h.b16 %v792
        %v3382 = vunpack.c.l.b16 %v793
        %v3383 = vunpack.c.h.b16 %v793
        %v3384 = vunpack.c.l.b16 %v794
        %v3385 = vunpack.c.h.b16 %v794
        %v3386 = vunpack.c.l.b16 %v795
        %v3387 = vunpack.c.h.b16 %v795
        %v3388 = vunpack.c.l.b16 %v796
        %v3389 = vunpack.c.h.b16 %v796
        %v3390 = vunpack.c.l.b16 %v797
        %v3391 = vunpack.c.h.b16 %v797
        %v3392 = vunpack.c.l.b16 %v798
        %v3393 = vunpack.c.h.b16 %v798
        %v3394 = vunpack.c.l.b16 %v799
        %v3395 = vunpack.c.h.b16 %v799
        %v3396 = vunpack.c.l.b16 %v800
        %v3397 = vunpack.c.h.b16 %v800
        %v3398 = vunpack.c.l.b16 %v801
        %v3399 = vunpack.c.h.b16 %v801
        %v3400 = vunpack.c.l.b16 %v802
        %v3401 = vunpack.c.h.b16 %v802
        %v3402 = vunpack.c.l.b16 %v803
        %v3403 = vunpack.c.h.b16 %v803
        %v3404 = vunpack.c.l.b16 %v804
        %v3405 = vunpack.c.h.b16 %v804
        %v3406 = vunpack.c.l.b16 %v805
        %v3407 = vunpack.c.h.b16 %v805
        %v3408 = vunpack.c.l.b16 %v806
        %v3409 = vunpack.c.h.b16 %v806
        %v3410 = vunpack.c.l.b16 %v807
        %v3411 = vunpack.c.h.b16 %v807
        %v3412 = vunpack.c.l.b16 %v808
        %v3413 = vunpack.c.h.b16 %v808
        %v3414 = vunpack.c.l.b16 %v809
        %v3415 = vunpack.c.h.b16 %v809
        %v3416 = vunpack.c.l.b16 %v810
        %v3417 = vunpack.c.h.b16 %v810
        %v3418 = vunpack.c.l.b16 %v811
        %v3419 = vunpack.c.h.b16 %v811
        %v3420 = vunpack.c.l.b16 %v812
        %v3421 = vunpack.c.h.b16 %v812
        %v3422 = vunpack.c.l.b16 %v813
        %v3423 = vunpack.c.h.b16 %v813
        %v3424 = vunpack.c.l.b16 %v814
        %v3425 = vunpack.c.h.b16 %v814
        %v3426 = vunpack.c.l.b16 %v815
        %v3427 = vunpack.c.h.b16 %v815
        %v3428 = vunpack.c.l.b16 %v816
        %v3429 = vunpack.c.h.b16 %v816
        %v3430 = vunpack.c.l.b16 %v817
        %v3431 = vunpack.c.h.b16 %v817
        %v3432 = vunpack.c.l.b16 %v818
        %v3433 = vunpack.c.h.b16 %v818
        %v3434 = vunpack.c.l.b16 %v819
        %v3435 = vunpack.c.h.b16 %v819
        %v3436 = vunpack.c.l.b16 %v820
        %v3437 = vunpack.c.h.b16 %v820
        %v3438 = vunpack.c.l.b16 %v821
        %v3439 = vunpack.c.h.b16 %v821
        %v3440 = vunpack.c.l.b16 %v822
        %v3441 = vunpack.c.h.b16 %v822
        %v3442 = vunpack.c.l.b16 %v823
        %v3443 = vunpack.c.h.b16 %v823
        %v3444 = vunpack.c.l.b16 %v824
        %v3445 = vunpack.c.h.b16 %v824
        %v3446 = vunpack.c.l.b16 %v825
        %v3447 = vunpack.c.h.b16 %v825
        %v3448 = vunpack.c.l.b16 %v826
        %v3449 = vunpack.c.h.b16 %v826
        %v3450 = vunpack.c.l.b16 %v827
        %v3451 = vunpack.c.h.b16 %v827
        %v3452 = vunpack.c.l.b16 %v828
        %v3453 = vunpack.c.h.b16 %v828
        %v3454 = vunpack.c.l.b16 %v829
        %v3455 = vunpack.c.h.b16 %v829
        %v3456 = vunpack.c.l.b16 %v830
        %v3457 = vunpack.c.h.b16 %v830
        %v3458 = vunpack.c.l.b16 %v831
        %v3459 = vunpack.c.h.b16 %v831
        %v3460 = vunpack.c.l.b16 %v832
        %v3461 = vunpack.c.h.b16 %v832
        %v3462 = vunpack.c.l.b16 %v833
        %v3463 = vunpack.c.h.b16 %v833
        %v3464 = vunpack.c.l.b16 %v834
        %v3465 = vunpack.c.h.b16 %v834
        %v3466 = vunpack.c.l.b16 %v835
        %v3467 = vunpack.c.h.b16 %v835
        %v3468 = vunpack.c.l.b16 %v836
        %v3469 = vunpack.c.h.b16 %v836
        %v3470 = vunpack.c.l.b16 %v837
        %v3471 = vunpack.c.h.b16 %v837
        %v3472 = vunpack.c.l.b16 %v838
        %v3473 = vunpack.c.h.b16 %v838
        %v3474 = vunpack.c.l.b16 %v839
        %v3475 = vunpack.c.h.b16 %v839
        %v3476 = vunpack.c.l.b16 %v840
        %v3477 = vunpack.c.h.b16 %v840
        %v3478 = vunpack.c.l.b16 %v841
        %v3479 = vunpack.c.h.b16 %v841
        %v3480 = vunpack.c.l.b16 %v842
        %v3481 = vunpack.c.h.b16 %v842
        %v3482 = vunpack.c.l.b16 %v843
        %v3483 = vunpack.c.h.b16 %v843
        %v3484 = vunpack.c.l.b16 %v844
        %v3485 = vunpack.c.h.b16 %v844
        %v3486 = vunpack.c.l.b16 %v845
        %v3487 = vunpack.c.h.b16 %v845
        %v3488 = vunpack.c.l.b16 %v846
        %v3489 = vunpack.c.h.b16 %v846
        %v3490 = vunpack.c.l.b16 %v847
        %v3491 = vunpack.c.h.b16 %v847
        %v3492 = vunpack.c.l.b16 %v848
        %v3493 = vunpack.c.h.b16 %v848
        %v3494 = vunpack.c.l.b16 %v849
        %v3495 = vunpack.c.h.b16 %v849
        %v3496 = vunpack.c.l.b16 %v850
        %v3497 = vunpack.c.h.b16 %v850
        %v3498 = vunpack.c.l.b16 %v851
        %v3499 = vunpack.c.h.b16 %v851
        %v3500 = vunpack.c.l.b16 %v852
        %v3501 = vunpack.c.h.b16 %v852
        %v3502 = vunpack.c.l.b16 %v853
        %v3503 = vunpack.c.h.b16 %v853
        %v3504 = vunpack.c.l.b16 %v854
        %v3505 = vunpack.c.h.b16 %v854
        %v3506 = vunpack.c.l.b16 %v855
        %v3507 = vunpack.c.h.b16 %v855
        %v3508 = vunpack.c.l.b16 %v856
        %v3509 = vunpack.c.h.b16 %v856
        %v3510 = vunpack.c.l.b16 %v857
        %v3511 = vunpack.c.h.b16 %v857
        %v3512 = vunpack.c.l.b16 %v858
        %v3513 = vunpack.c.h.b16 %v858
        %v3514 = vunpack.c.l.b16 %v859
        %v3515 = vunpack.c.h.b16 %v859
        %v3516 = vunpack.c.l.b16 %v860
        %v3517 = vunpack.c.h.b16 %v860
        %v3518 = vunpack.c.l.b16 %v861
        %v3519 = vunpack.c.h.b16 %v861
        %v3520 = vunpack.c.l.b16 %v862
        %v3521 = vunpack.c.h.b16 %v862
        %v3522 = vunpack.c.l.b16 %v863
        %v3523 = vunpack.c.h.b16 %v863
        %v3524 = vunpack.c.l.b16 %v864
        %v3525 = vunpack.c.h.b16 %v864
        %v3526 = vunpack.c.l.b16 %v865
        %v3527 = vunpack.c.h.b16 %v865
        %v3528 = vunpack.c.l.b16 %v866
        %v3529 = vunpack.c.h.b16 %v866
        %v3530 = vunpack.c.l.b16 %v867
        %v3531 = vunpack.c.h.b16 %v867
        %v3532 = vunpack.c.l.b16 %v868
        %v3533 = vunpack.c.h.b16 %v868
        %v3534 = vunpack.c.l.b16 %v869
        %v3535 = vunpack.c.h.b16 %v869
        %v3536 = vunpack.c.l.b16 %v870
        %v3537 = vunpack.c.h.b16 %v870
        %v3538 = vunpack.c.l.b16 %v871
        %v3539 = vunpack.c.h.b16 %v871
        %v3540 = vunpack.c.l.b16 %v872
        %v3541 = vunpack.c.h.b16 %v872
        %v3542 = vunpack.c.l.b16 %v873
        %v3543 = vunpack.c.h.b16 %v873
        %v3544 = vunpack.c.l.b16 %v874
        %v3545 = vunpack.c.h.b16 %v874
        %v3546 = vunpack.c.l.b16 %v875
        %v3547 = vunpack.c.h.b16 %v875
        %v3548 = vunpack.c.l.b16 %v876
        %v3549 = vunpack.c.h.b16 %v876
        %v3550 = vunpack.c.l.b16 %v877
        %v3551 = vunpack.c.h.b16 %v877
        %v3552 = vunpack.c.l.b16 %v878
        %v3553 = vunpack.c.h.b16 %v878
        %v3554 = vunpack.c.l.b16 %v879
        %v3555 = vunpack.c.h.b16 %v879
        %v3556 = vunpack.c.l.b16 %v880
        %v3557 = vunpack.c.h.b16 %v880
        %v3558 = vunpack.c.l.b16 %v881
        %v3559 = vunpack.c.h.b16 %v881
        %v3560 = vunpack.c.l.b16 %v882
        %v3561 = vunpack.c.h.b16 %v882
        %v3562 = vunpack.c.l.b16 %v883
        %v3563 = vunpack.c.h.b16 %v883
        %v3564 = vunpack.c.l.b16 %v884
        %v3565 = vunpack.c.h.b16 %v884
        %v3566 = vunpack.c.l.b16 %v885
        %v3567 = vunpack.c.h.b16 %v885
        %v3568 = vunpack.c.l.b16 %v886
        %v3569 = vunpack.c.h.b16 %v886
        %v3570 = vunpack.c.l.b16 %v887
        %v3571 = vunpack.c.h.b16 %v887
        %v3572 = vunpack.c.l.b16 %v888
        %v3573 = vunpack.c.h.b16 %v888
        %v3574 = vunpack.c.l.b16 %v889
        %v3575 = vunpack.c.h.b16 %v889
        %v3576 = vunpack.c.l.b16 %v890
        %v3577 = vunpack.c.h.b16 %v890
        %v3578 = vunpack.c.l.b16 %v891
        %v3579 = vunpack.c.h.b16 %v891
        %v3580 = vunpack.c.l.b16 %v892
        %v3581 = vunpack.c.h.b16 %v892
        %v3582 = vunpack.c.l.b16 %v893
        %v3583 = vunpack.c.h.b16 %v893
        %v3584 = vunpack.c.l.b16 %v894
        %v3585 = vunpack.c.h.b16 %v894
        %v3586 = vunpack.c.l.b16 %v895
        %v3587 = vunpack.c.h.b16 %v895
        %v3588 = vunpack.c.l.b16 %v896
        %v3589 = vunpack.c.h.b16 %v896
        %v3590 = vunpack.c.l.b16 %v897
        %v3591 = vunpack.c.h.b16 %v897
        %v3592 = vunpack.c.l.b16 %v898
        %v3593 = vunpack.c.h.b16 %v898
        %v3594 = vunpack.c.l.b16 %v899
        %v3595 = vunpack.c.h.b16 %v899
        %v3596 = vunpack.c.l.b16 %v900
        %v3597 = vunpack.c.h.b16 %v900
        %v3598 = vunpack.c.l.b16 %v901
        %v3599 = vunpack.c.h.b16 %v901
        %v3600 = vunpack.c.l.b16 %v902
        %v3601 = vunpack.c.h.b16 %v902
        %v3602 = vunpack.c.l.b16 %v903
        %v3603 = vunpack.c.h.b16 %v903
        %v3604 = vunpack.c.l.b16 %v904
        %v3605 = vunpack.c.h.b16 %v904
        %v3606 = vunpack.c.l.b16 %v905
        %v3607 = vunpack.c.h.b16 %v905
        %v3608 = vunpack.c.l.b16 %v906
        %v3609 = vunpack.c.h.b16 %v906
        %v3610 = vunpack.c.l.b16 %v907
        %v3611 = vunpack.c.h.b16 %v907
        %v3612 = vunpack.c.l.b16 %v908
        %v3613 = vunpack.c.h.b16 %v908
        %v3614 = vunpack.c.l.b16 %v909
        %v3615 = vunpack.c.h.b16 %v909
        %v3616 = vunpack.c.l.b16 %v910
        %v3617 = vunpack.c.h.b16 %v910
        %v3618 = vunpack.c.l.b16 %v911
        %v3619 = vunpack.c.h.b16 %v911
        %v3620 = vunpack.c.l.b16 %v912
        %v3621 = vunpack.c.h.b16 %v912
        %v3622 = vunpack.c.l.b16 %v913
        %v3623 = vunpack.c.h.b16 %v913
        %v3624 = vunpack.c.l.b16 %v914
        %v3625 = vunpack.c.h.b16 %v914
        %v3626 = vunpack.c.l.b16 %v915
        %v3627 = vunpack.c.h.b16 %v915
        %v3628 = vunpack.c.l.b16 %v916
        %v3629 = vunpack.c.h.b16 %v916
        %v3630 = vunpack.c.l.b16 %v917
        %v3631 = vunpack.c.h.b16 %v917
        %v3632 = vunpack.c.l.b16 %v918
        %v3633 = vunpack.c.h.b16 %v918
        %v3634 = vunpack.c.l.b16 %v919
        %v3635 = vunpack.c.h.b16 %v919
        %v3636 = vunpack.c.l.b16 %v920
        %v3637 = vunpack.c.h.b16 %v920
        %v3638 = vunpack.c.l.b16 %v921
        %v3639 = vunpack.c.h.b16 %v921
        %v3640 = vunpack.c.l.b16 %v922
        %v3641 = vunpack.c.h.b16 %v922
        %v3642 = vunpack.c.l.b16 %v923
        %v3643 = vunpack.c.h.b16 %v923
        %v3644 = vunpack.c.l.b16 %v924
        %v3645 = vunpack.c.h.b16 %v924
        %v3646 = vunpack.c.l.b16 %v925
        %v3647 = vunpack.c.h.b16 %v925
        %v3648 = vunpack.c.l.b16 %v926
        %v3649 = vunpack.c.h.b16 %v926
        %v3650 = vunpack.c.l.b16 %v927
        %v3651 = vunpack.c.h.b16 %v927
        %v3652 = vunpack.c.l.b16 %v928
        %v3653 = vunpack.c.h.b16 %v928
        %v3654 = vunpack.c.l.b16 %v929
        %v3655 = vunpack.c.h.b16 %v929
        %v3656 = vunpack.c.l.b16 %v930
        %v3657 = vunpack.c.h.b16 %v930
        %v3658 = vunpack.c.l.b16 %v931
        %v3659 = vunpack.c.h.b16 %v931
        %v3660 = vunpack.c.l.b16 %v932
        %v3661 = vunpack.c.h.b16 %v932
        %v3662 = vunpack.c.l.b16 %v933
        %v3663 = vunpack.c.h.b16 %v933
        %v3664 = vunpack.c.l.b16 %v934
        %v3665 = vunpack.c.h.b16 %v934
        %v3666 = vunpack.c.l.b16 %v935
        %v3667 = vunpack.c.h.b16 %v935
        %v3668 = vunpack.c.l.b16 %v936
        %v3669 = vunpack.c.h.b16 %v936
        %v3670 = vunpack.c.l.b16 %v937
        %v3671 = vunpack.c.h.b16 %v937
        %v3672 = vunpack.c.l.b16 %v938
        %v3673 = vunpack.c.h.b16 %v938
        %v3674 = vunpack.c.l.b16 %v939
        %v3675 = vunpack.c.h.b16 %v939
        %v3676 = vunpack.c.l.b16 %v940
        %v3677 = vunpack.c.h.b16 %v940
        %v3678 = vunpack.c.l.b16 %v941
        %v3679 = vunpack.c.h.b16 %v941
        %v3680 = vunpack.c.l.b16 %v942
        %v3681 = vunpack.c.h.b16 %v942
        %v3682 = vunpack.c.l.b16 %v943
        %v3683 = vunpack.c.h.b16 %v943
        %v3684 = vunpack.c.l.b16 %v944
        %v3685 = vunpack.c.h.b16 %v944
        %v3686 = vunpack.c.l.b16 %v945
        %v3687 = vunpack.c.h.b16 %v945
        %v3688 = vunpack.c.l.b16 %v946
        %v3689 = vunpack.c.h.b16 %v946
        %v3690 = vunpack.c.l.b16 %v947
        %v3691 = vunpack.c.h.b16 %v947
        %v3692 = vunpack.c.l.b16 %v948
        %v3693 = vunpack.c.h.b16 %v948
        %v3694 = vunpack.c.l.b16 %v949
        %v3695 = vunpack.c.h.b16 %v949
        %v3696 = vunpack.c.l.b16 %v950
        %v3697 = vunpack.c.h.b16 %v950
        %v3698 = vunpack.c.l.b16 %v951
        %v3699 = vunpack.c.h.b16 %v951
        %v3700 = vunpack.c.l.b16 %v952
        %v3701 = vunpack.c.h.b16 %v952
        %v3702 = vunpack.c.l.b16 %v953
        %v3703 = vunpack.c.h.b16 %v953
        %v3704 = vunpack.c.l.b16 %v954
        %v3705 = vunpack.c.h.b16 %v954
        %v3706 = vunpack.c.l.b16 %v955
        %v3707 = vunpack.c.h.b16 %v955
        %v3708 = vunpack.c.l.b16 %v956
        %v3709 = vunpack.c.h.b16 %v956
        %v3710 = vunpack.c.l.b16 %v957
        %v3711 = vunpack.c.h.b16 %v957
        %v3712 = vunpack.c.l.b16 %v958
        %v3713 = vunpack.c.h.b16 %v958
        %v3714 = vunpack.c.l.b16 %v959
        %v3715 = vunpack.c.h.b16 %v959
        %v3716 = vunpack.c.l.b16 %v960
        %v3717 = vunpack.c.h.b16 %v960
        %v3718 = vunpack.c.l.b16 %v961
        %v3719 = vunpack.c.h.b16 %v961
        %v3720 = vunpack.c.l.b16 %v962
        %v3721 = vunpack.c.h.b16 %v962
        %v3722 = vunpack.c.l.b16 %v963
        %v3723 = vunpack.c.h.b16 %v963
        %v3724 = vunpack.c.l.b16 %v964
        %v3725 = vunpack.c.h.b16 %v964
        %v3726 = vunpack.c.l.b16 %v965
        %v3727 = vunpack.c.h.b16 %v965
        %v3728 = vunpack.c.l.b16 %v966
        %v3729 = vunpack.c.h.b16 %v966
        %v3730 = vunpack.c.l.b16 %v967
        %v3731 = vunpack.c.h.b16 %v967
        %v3732 = vunpack.c.l.b16 %v968
        %v3733 = vunpack.c.h.b16 %v968
        %v3734 = vunpack.c.l.b16 %v969
        %v3735 = vunpack.c.h.b16 %v969
        %v3736 = vunpack.c.l.b16 %v970
        %v3737 = vunpack.c.h.b16 %v970
        %v3738 = vunpack.c.l.b16 %v971
        %v3739 = vunpack.c.h.b16 %v971
        %v3740 = vunpack.c.l.b16 %v972
        %v3741 = vunpack.c.h.b16 %v972
        %v3742 = vunpack.c.l.b16 %v973
        %v3743 = vunpack.c.h.b16 %v973
        %v3744 = vunpack.c.l.b16 %v974
        %v3745 = vunpack.c.h.b16 %v974
        %v3746 = vunpack.c.l.b16 %v975
        %v3747 = vunpack.c.h.b16 %v975
        %v3748 = vunpack.c.l.b16 %v976
        %v3749 = vunpack.c.h.b16 %v976
        %v3750 = vunpack.c.l.b16 %v977
        %v3751 = vunpack.c.h.b16 %v977
        %v3752 = vunpack.c.l.b16 %v978
        %v3753 = vunpack.c.h.b16 %v978
        %v3754 = vunpack.c.l.b16 %v979
        %v3755 = vunpack.c.h.b16 %v979
        %v3756 = vunpack.c.l.b16 %v980
        %v3757 = vunpack.c.h.b16 %v980
        %v3758 = vunpack.c.l.b16 %v981
        %v3759 = vunpack.c.h.b16 %v981
        %v3760 = vunpack.c.l.b16 %v982
        %v3761 = vunpack.c.h.b16 %v982
        %v3762 = vunpack.c.l.b16 %v983
        %v3763 = vunpack.c.h.b16 %v983
        %v3764 = vunpack.c.l.b16 %v984
        %v3765 = vunpack.c.h.b16 %v984
        %v3766 = vunpack.c.l.b16 %v985
        %v3767 = vunpack.c.h.b16 %v985
        %v3768 = vunpack.c.l.b16 %v986
        %v3769 = vunpack.c.h.b16 %v986
        %v3770 = vunpack.c.l.b16 %v987
        %v3771 = vunpack.c.h.b16 %v987
        %v3772 = vunpack.c.l.b16 %v988
        %v3773 = vunpack.c.h.b16 %v988
        %v3774 = vunpack.c.l.b16 %v989
        %v3775 = vunpack.c.h.b16 %v989
        %v3776 = vunpack.c.l.b16 %v990
        %v3777 = vunpack.c.h.b16 %v990
        %v3778 = vunpack.c.l.b16 %v991
        %v3779 = vunpack.c.h.b16 %v991
        %v3780 = vunpack.c.l.b16 %v992
        %v3781 = vunpack.c.h.b16 %v992
        %v3782 = vunpack.c.l.b16 %v993
        %v3783 = vunpack.c.h.b16 %v993
        %v3784 = vunpack.c.l.b16 %v994
        %v3785 = vunpack.c.h.b16 %v994
        %v3786 = vunpack.c.l.b16 %v995
        %v3787 = vunpack.c.h.b16 %v995
        %v3788 = vunpack.c.l.b16 %v996
        %v3789 = vunpack.c.h.b16 %v996
        %v3790 = vunpack.c.l.b16 %v997
        %v3791 = vunpack.c.h.b16 %v997
        %v3792 = vunpack.c.l.b16 %v998
        %v3793 = vunpack.c.h.b16 %v998
        %v3794 = vunpack.c.l.b16 %v999
        %v3795 = vunpack.c.h.b16 %v999
        %v3796 = vunpack.c.l.b16 %v1000
        %v3797 = vunpack.c.h.b16 %v1000
        %v3798 = vunpack.c.l.b16 %v1001
        %v3799 = vunpack.c.h.b16 %v1001
        %v3800 = vunpack.c.l.b16 %v1002
        %v3801 = vunpack.c.h.b16 %v1002
        %v3802 = vunpack.c.l.b16 %v1003
        %v3803 = vunpack.c.h.b16 %v1003
        %v3804 = vunpack.c.l.b16 %v1004
        %v3805 = vunpack.c.h.b16 %v1004
        %v3806 = vunpack.c.l.b16 %v1005
        %v3807 = vunpack.c.h.b16 %v1005
        %v3808 = vunpack.c.l.b16 %v1006
        %v3809 = vunpack.c.h.b16 %v1006
        %v3810 = vunpack.c.l.b16 %v1007
        %v3811 = vunpack.c.h.b16 %v1007
        %v3812 = vunpack.c.l.b16 %v1008
        %v3813 = vunpack.c.h.b16 %v1008
        %v3814 = vunpack.c.l.b16 %v1009
        %v3815 = vunpack.c.h.b16 %v1009
        %v3816 = vunpack.c.l.b16 %v1010
        %v3817 = vunpack.c.h.b16 %v1010
        %v3818 = vunpack.c.l.b16 %v1011
        %v3819 = vunpack.c.h.b16 %v1011
        %v3820 = vunpack.c.l.b16 %v1012
        %v3821 = vunpack.c.h.b16 %v1012
        %v3822 = vunpack.c.l.b16 %v1013
        %v3823 = vunpack.c.h.b16 %v1013
        %v3824 = vunpack.c.l.b16 %v1014
        %v3825 = vunpack.c.h.b16 %v1014
        %v3826 = vunpack.c.l.b16 %v1015
        %v3827 = vunpack.c.h.b16 %v1015
        %v3828 = vunpack.c.l.b16 %v1016
        %v3829 = vunpack.c.h.b16 %v1016
        %v3830 = vunpack.c.l.b16 %v1017
        %v3831 = vunpack.c.h.b16 %v1017
        %v3832 = vunpack.c.l.b16 %v1018
        %v3833 = vunpack.c.h.b16 %v1018
        %v3834 = vunpack.c.l.b16 %v1019
        %v3835 = vunpack.c.h.b16 %v1019
        %v3836 = vunpack.c.l.b16 %v1020
        %v3837 = vunpack.c.h.b16 %v1020
        %v3838 = vunpack.c.l.b16 %v1021
        %v3839 = vunpack.c.h.b16 %v1021
        %v3840 = vunpack.c.l.b16 %v1022
        %v3841 = vunpack.c.h.b16 %v1022
        %v3842 = vunpack.c.l.b16 %v1023
        %v3843 = vunpack.c.h.b16 %v1023
        %v3844 = vunpack.c.l.b16 %v1024
        %v3845 = vunpack.c.h.b16 %v1024
        %v3846 = vunpack.c.l.b16 %v1025
        %v3847 = vunpack.c.h.b16 %v1025
        %v3848 = vunpack.c.l.b16 %v1026
        %v3849 = vunpack.c.h.b16 %v1026
        %v3850 = vunpack.c.l.b16 %v1027
        %v3851 = vunpack.c.h.b16 %v1027
        %v3852 = vunpack.c.l.b16 %v1028
        %v3853 = vunpack.c.h.b16 %v1028
        %v3854 = vunpack.c.l.b16 %v1029
        %v3855 = vunpack.c.h.b16 %v1029
        %v3856 = vunpack.c.l.b16 %v1030
        %v3857 = vunpack.c.h.b16 %v1030
        %v3858 = vunpack.c.l.b16 %v1031
        %v3859 = vunpack.c.h.b16 %v1031
        %v3860 = vunpack.c.l.b16 %v1032
        %v3861 = vunpack.c.h.b16 %v1032
        %v3862 = vunpack.c.l.b16 %v1033
        %v3863 = vunpack.c.h.b16 %v1033
        %v3864 = vunpack.c.l.b16 %v1034
        %v3865 = vunpack.c.h.b16 %v1034
        %v3866 = vunpack.c.l.b16 %v1035
        %v3867 = vunpack.c.h.b16 %v1035
        %v3868 = vunpack.c.l.b16 %v1036
        %v3869 = vunpack.c.h.b16 %v1036
        %v3870 = vunpack.c.l.b16 %v1037
        %v3871 = vunpack.c.h.b16 %v1037
        %v3872 = vunpack.c.l.b16 %v1038
        %v3873 = vunpack.c.h.b16 %v1038
        %v3874 = vunpack.c.l.b16 %v1039
        %v3875 = vunpack.c.h.b16 %v1039
        %v3876 = vunpack.c.l.b16 %v1040
        %v3877 = vunpack.c.h.b16 %v1040
        %v3878 = vunpack.c.l.b16 %v1041
        %v3879 = vunpack.c.h.b16 %v1041
        %v3880 = vunpack.c.l.b16 %v1042
        %v3881 = vunpack.c.h.b16 %v1042
        %v3882 = vunpack.c.l.b16 %v1043
        %v3883 = vunpack.c.h.b16 %v1043
        %v3884 = vunpack.c.l.b16 %v1044
        %v3885 = vunpack.c.h.b16 %v1044
        %v3886 = vunpack.c.l.b16 %v1045
        %v3887 = vunpack.c.h.b16 %v1045
        %v3888 = vunpack.c.l.b16 %v1046
        %v3889 = vunpack.c.h.b16 %v1046
        %v3890 = vunpack.c.l.b16 %v1047
        %v3891 = vunpack.c.h.b16 %v1047
        %v3892 = vunpack.c.l.b16 %v1048
        %v3893 = vunpack.c.h.b16 %v1048
        %v3894 = vunpack.c.l.b16 %v1049
        %v3895 = vunpack.c.h.b16 %v1049
        %v3896 = vunpack.c.l.b16 %v1050
        %v3897 = vunpack.c.h.b16 %v1050
        %v3898 = vunpack.c.l.b16 %v1051
        %v3899 = vunpack.c.h.b16 %v1051
        %v3900 = vunpack.c.l.b16 %v1052
        %v3901 = vunpack.c.h.b16 %v1052
        %v3902 = vunpack.c.l.b16 %v1053
        %v3903 = vunpack.c.h.b16 %v1053
        %v3904 = vunpack.c.l.b16 %v1054
        %v3905 = vunpack.c.h.b16 %v1054
        %v3906 = vunpack.c.l.b16 %v1055
        %v3907 = vunpack.c.h.b16 %v1055
        %v3908 = vunpack.c.l.b16 %v1056
        %v3909 = vunpack.c.h.b16 %v1056
        %v3910 = vunpack.c.l.b16 %v1057
        %v3911 = vunpack.c.h.b16 %v1057
        %v3912 = vunpack.c.l.b16 %v1058
        %v3913 = vunpack.c.h.b16 %v1058
        %v3914 = vunpack.c.l.b16 %v1059
        %v3915 = vunpack.c.h.b16 %v1059
        %v3916 = vunpack.c.l.b16 %v1060
        %v3917 = vunpack.c.h.b16 %v1060
        %v3918 = vunpack.c.l.b16 %v1061
        %v3919 = vunpack.c.h.b16 %v1061
        %v3920 = vunpack.c.l.b16 %v1062
        %v3921 = vunpack.c.h.b16 %v1062
        %v3922 = vunpack.c.l.b16 %v1063
        %v3923 = vunpack.c.h.b16 %v1063
        %v3924 = vunpack.c.l.b16 %v1064
        %v3925 = vunpack.c.h.b16 %v1064
        %v3926 = vunpack.c.l.b16 %v1065
        %v3927 = vunpack.c.h.b16 %v1065
        %v3928 = vunpack.c.l.b16 %v1066
        %v3929 = vunpack.c.h.b16 %v1066
        %v3930 = vunpack.c.l.b16 %v1067
        %v3931 = vunpack.c.h.b16 %v1067
        %v3932 = vunpack.c.l.b16 %v1068
        %v3933 = vunpack.c.h.b16 %v1068
        %v3934 = vunpack.c.l.b16 %v1069
        %v3935 = vunpack.c.h.b16 %v1069
        %v3936 = vunpack.c.l.b16 %v1070
        %v3937 = vunpack.c.h.b16 %v1070
        %v3938 = vunpack.c.l.b16 %v1071
        %v3939 = vunpack.c.h.b16 %v1071
        %v3940 = vunpack.c.l.b16 %v1072
        %v3941 = vunpack.c.h.b16 %v1072
        %v3942 = vunpack.c.l.b16 %v1073
        %v3943 = vunpack.c.h.b16 %v1073
        %v3944 = vunpack.c.l.b16 %v1074
        %v3945 = vunpack.c.h.b16 %v1074
        %v3946 = vunpack.c.l.b16 %v1075
        %v3947 = vunpack.c.h.b16 %v1075
        %v3948 = vunpack.c.l.b16 %v1076
        %v3949 = vunpack.c.h.b16 %v1076
        %v3950 = vpack.c.b16 %v2288, %v2286
        %v3951 = vpack.c.b16 %v2289, %v2287
        %v3952 = vpack.c.b16 %v2292, %v2290
        %v3953 = vpack.c.b16 %v2293, %v2291
        %v3954 = vpack.c.b16 %v2296, %v2294
        %v3955 = vpack.c.b16 %v2297, %v2295
        %v3956 = vpack.c.b16 %v2300, %v2298
        %v3957 = vpack.c.b16 %v2301, %v2299
        %v3958 = vpack.c.b16 %v2304, %v2302
        %v3959 = vpack.c.b16 %v2305, %v2303
        %v3960 = vpack.c.b16 %v2308, %v2306
        %v3961 = vpack.c.b16 %v2309, %v2307
        %v3962 = vpack.c.b16 %v2312, %v2310
        %v3963 = vpack.c.b16 %v2313, %v2311
        %v3964 = vpack.c.b16 %v2316, %v2314
        %v3965 = vpack.c.b16 %v2317, %v2315
        %v3966 = vpack.c.b16 %v2320, %v2318
        %v3967 = vpack.c.b16 %v2321, %v2319
        %v3968 = vpack.c.b16 %v2324, %v2322
        %v3969 = vpack.c.b16 %v2325, %v2323
        %v3970 = vpack.c.b16 %v2328, %v2326
        %v3971 = vpack.c.b16 %v2329, %v2327
        %v3972 = vpack.c.b16 %v2332, %v2330
        %v3973 = vpack.c.b16 %v2333, %v2331
        %v3974 = vpack.c.b16 %v2336, %v2334
        %v3975 = vpack.c.b16 %v2337, %v2335
        %v3976 = vpack.c.b16 %v2340, %v2338
        %v3977 = vpack.c.b16 %v2341, %v2339
        %v3978 = vpack.c.b16 %v2344, %v2342
        %v3979 = vpack.c.b16 %v2345, %v2343
        %v3980 = vpack.c.b16 %v2348, %v2346
        %v3981 = vpack.c.b16 %v2349, %v2347
        %v3982 = vpack.c.b16 %v2352, %v2350
        %v3983 = vpack.c.b16 %v2353, %v2351
        %v3984 = vpack.c.b16 %v2356, %v2354
        %v3985 = vpack.c.b16 %v2357, %v2355
        %v3986 = vpack.c.b16 %v2360, %v2358
        %v3987 = vpack.c.b16 %v2361, %v2359
        %v3988 = vpack.c.b16 %v2364, %v2362
        %v3989 = vpack.c.b16 %v2365, %v2363
        %v3990 = vpack.c.b16 %v2368, %v2366
        %v3991 = vpack.c.b16 %v2369, %v2367
        %v3992 = vpack.c.b16 %v2372, %v2370
        %v3993 = vpack.c.b16 %v2373, %v2371
        %v3994 = vpack.c.b16 %v2376, %v2374
        %v3995 = vpack.c.b16 %v2377, %v2375
        %v3996 = vpack.c.b16 %v2380, %v2378
        %v3997 = vpack.c.b16 %v2381, %v2379
        %v3998 = vpack.c.b16 %v2384, %v2382
        %v3999 = vpack.c.b16 %v2385, %v2383
        %v4000 = vpack.c.b16 %v2388, %v2386
        %v4001 = vpack.c.b16 %v2389, %v2387
        %v4002 = vpack.c.b16 %v2392, %v2390
        %v4003 = vpack.c.b16 %v2393, %v2391
        %v4004 = vpack.c.b16 %v2396, %v2394
        %v4005 = vpack.c.b16 %v2397, %v2395
        %v4006 = vpack.c.b16 %v2400, %v2398
        %v4007 = vpack.c.b16 %v2401, %v2399
        %v4008 = vpack.c.b16 %v2404, %v2402
        %v4009 = vpack.c.b16 %v2405, %v2403
        %v4010 = vpack.c.b16 %v2408, %v2406
        %v4011 = vpack.c.b16 %v2409, %v2407
        %v4012 = vpack.c.b16 %v2412, %v2410
        %v4013 = vpack.c.b16 %v2413, %v2411
        %v4014 = vpack.c.b16 %v2416, %v2414
        %v4015 = vpack.c.b16 %v2417, %v2415
        %v4016 = vpack.c.b16 %v2420, %v2418
        %v4017 = vpack.c.b16 %v2421, %v2419
        %v4018 = vpack.c.b16 %v2424, %v2422
        %v4019 = vpack.c.b16 %v2425, %v2423
        %v4020 = vpack.c.b16 %v2428, %v2426
        %v4021 = vpack.c.b16 %v2429, %v2427
        %v4022 = vpack.c.b16 %v2432, %v2430
        %v4023 = vpack.c.b16 %v2433, %v2431
        %v4024 = vpack.c.b16 %v2436, %v2434
        %v4025 = vpack.c.b16 %v2437, %v2435
        %v4026 = vpack.c.b16 %v2440, %v2438
        %v4027 = vpack.c.b16 %v2441, %v2439
        %v4028 = vpack.c.b16 %v2444, %v2442
        %v4029 = vpack.c.b16 %v2445, %v2443
        %v4030 = vpack.c.b16 %v2448, %v2446
        %v4031 = vpack.c.b16 %v2449, %v2447
        %v4032 = vpack.c.b16 %v2452, %v2450
        %v4033 = vpack.c.b16 %v2453, %v2451
        %v4034 = vpack.c.b16 %v2456, %v2454
        %v4035 = vpack.c.b16 %v2457, %v2455
        %v4036 = vpack.c.b16 %v2460, %v2458
        %v4037 = vpack.c.b16 %v2461, %v2459
        %v4038 = vpack.c.b16 %v2464, %v2462
        %v4039 = vpack.c.b16 %v2465, %v2463
        %v4040 = vpack.c.b16 %v2468, %v2466
        %v4041 = vpack.c.b16 %v2469, %v2467
        %v4042 = vpack.c.b16 %v2472, %v2470
        %v4043 = vpack.c.b16 %v2473, %v2471
        %v4044 = vpack.c.b16 %v2476, %v2474
        %v4045 = vpack.c.b16 %v2477, %v2475
        %v4046 = vpack.c.b16 %v2480, %v2478
        %v4047 = vpack.c.b16 %v2481, %v2479
        %v4048 = vpack.c.b16 %v2484, %v2482
        %v4049 = vpack.c.b16 %v2485, %v2483
        %v4050 = vpack.c.b16 %v2488, %v2486
        %v4051 = vpack.c.b16 %v2489, %v2487
        %v4052 = vpack.c.b16 %v2492, %v2490
        %v4053 = vpack.c.b16 %v2493, %v2491
        %v4054 = vpack.c.b16 %v2496, %v2494
        %v4055 = vpack.c.b16 %v2497, %v2495
        %v4056 = vpack.c.b16 %v2500, %v2498
        %v4057 = vpack.c.b16 %v2501, %v2499
        %v4058 = vpack.c.b16 %v2504, %v2502
        %v4059 = vpack.c.b16 %v2505, %v2503
        %v4060 = vpack.c.b16 %v2508, %v2506
        %v4061 = vpack.c.b16 %v2509, %v2507
        %v4062 = vpack.c.b16 %v2512, %v2510
        %v4063 = vpack.c.b16 %v2513, %v2511
        %v4064 = vpack.c.b16 %v2516, %v2514
        %v4065 = vpack.c.b16 %v2517, %v2515
        %v4066 = vpack.c.b16 %v2520, %v2518
        %v4067 = vpack.c.b16 %v2521, %v2519
        %v4068 = vpack.c.b16 %v2524, %v2522
        %v4069 = vpack.c.b16 %v2525, %v2523
        %v4070 = vpack.c.b16 %v2528, %v2526
        %v4071 = vpack.c.b16 %v2529, %v2527
        %v4072 = vpack.c.b16 %v2532, %v2530
        %v4073 = vpack.c.b16 %v2533, %v2531
        %v4074 = vpack.c.b16 %v2536, %v2534
        %v4075 = vpack.c.b16 %v2537, %v2535
        %v4076 = vpack.c.b16 %v2540, %v2538
        %v4077 = vpack.c.b16 %v2541, %v2539
        %v4078 = vpack.c.b16 %v2544, %v2542
        %v4079 = vpack.c.b16 %v2545, %v2543
        %v4080 = vpack.c.b16 %v2548, %v2546
        %v4081 = vpack.c.b16 %v2549, %v2547
        %v4082 = vpack.c.b16 %v2552, %v2550
        %v4083 = vpack.c.b16 %v2553, %v2551
        %v4084 = vpack.c.b16 %v2556, %v2554
        %v4085 = vpack.c.b16 %v2557, %v2555
        %v4086 = vpack.c.b16 %v2560, %v2558
        %v4087 = vpack.c.b16 %v2561, %v2559
        %v4088 = vpack.c.b16 %v2564, %v2562
        %v4089 = vpack.c.b16 %v2565, %v2563
        %v4090 = vpack.c.b16 %v2568, %v2566
        %v4091 = vpack.c.b16 %v2569, %v2567
        %v4092 = vpack.c.b16 %v2572, %v2570
        %v4093 = vpack.c.b16 %v2573, %v2571
        %v4094 = vpack.c.b16 %v2576, %v2574
        %v4095 = vpack.c.b16 %v2577, %v2575
        %v4096 = vpack.c.b16 %v2580, %v2578
        %v4097 = vpack.c.b16 %v2581, %v2579
        %v4098 = vpack.c.b16 %v2584, %v2582
        %v4099 = vpack.c.b16 %v2585, %v2583
        %v4100 = vpack.c.b16 %v2588, %v2586
        %v4101 = vpack.c.b16 %v2589, %v2587
        %v4102 = vpack.c.b16 %v2592, %v2590
        %v4103 = vpack.c.b16 %v2593, %v2591
        %v4104 = vpack.c.b16 %v2596, %v2594
        %v4105 = vpack.c.b16 %v2597, %v2595
        %v4106 = vpack.c.b16 %v2600, %v2598
        %v4107 = vpack.c.b16 %v2601, %v2599
        %v4108 = vpack.c.b16 %v2604, %v2602
        %v4109 = vpack.c.b16 %v2605, %v2603
        %v4110 = vpack.c.b16 %v2608, %v2606
        %v4111 = vpack.c.b16 %v2609, %v2607
        %v4112 = vpack.c.b16 %v2612, %v2610
        %v4113 = vpack.c.b16 %v2613, %v2611
        %v4114 = vpack.c.b16 %v2616, %v2614
        %v4115 = vpack.c.b16 %v2617, %v2615
        %v4116 = vpack.c.b16 %v2620, %v2618
        %v4117 = vpack.c.b16 %v2621, %v2619
        %v4118 = vpack.c.b16 %v2624, %v2622
        %v4119 = vpack.c.b16 %v2625, %v2623
        %v4120 = vpack.c.b16 %v2628, %v2626
        %v4121 = vpack.c.b16 %v2629, %v2627
        %v4122 = vpack.c.b16 %v2632, %v2630
        %v4123 = vpack.c.b16 %v2633, %v2631
        %v4124 = vpack.c.b16 %v2636, %v2634
        %v4125 = vpack.c.b16 %v2637, %v2635
        %v4126 = vpack.c.b16 %v2640, %v2638
        %v4127 = vpack.c.b16 %v2641, %v2639
        %v4128 = vpack.c.b16 %v2644, %v2642
        %v4129 = vpack.c.b16 %v2645, %v2643
        %v4130 = vpack.c.b16 %v2648, %v2646
        %v4131 = vpack.c.b16 %v2649, %v2647
        %v4132 = vpack.c.b16 %v2652, %v2650
        %v4133 = vpack.c.b16 %v2653, %v2651
        %v4134 = vpack.c.b16 %v2656, %v2654
        %v4135 = vpack.c.b16 %v2657, %v2655
        %v4136 = vpack.c.b16 %v2660, %v2658
        %v4137 = vpack.c.b16 %v2661, %v2659
        %v4138 = vpack.c.b16 %v2664, %v2662
        %v4139 = vpack.c.b16 %v2665, %v2663
        %v4140 = vpack.c.b16 %v2668, %v2666
        %v4141 = vpack.c.b16 %v2669, %v2667
        %v4142 = vpack.c.b16 %v2672, %v2670
        %v4143 = vpack.c.b16 %v2673, %v2671
        %v4144 = vpack.c.b16 %v2676, %v2674
        %v4145 = vpack.c.b16 %v2677, %v2675
        %v4146 = vpack.c.b16 %v2680, %v2678
        %v4147 = vpack.c.b16 %v2681, %v2679
        %v4148 = vpack.c.b16 %v2684, %v2682
        %v4149 = vpack.c.b16 %v2685, %v2683
        %v4150 = vpack.c.b16 %v2688, %v2686
        %v4151 = vpack.c.b16 %v2689, %v2687
        %v4152 = vpack.c.b16 %v2692, %v2690
        %v4153 = vpack.c.b16 %v2693, %v2691
        %v4154 = vpack.c.b16 %v2696, %v2694
        %v4155 = vpack.c.b16 %v2697, %v2695
        %v4156 = vpack.c.b16 %v2700, %v2698
        %v4157 = vpack.c.b16 %v2701, %v2699
        %v4158 = vpack.c.b16 %v2704, %v2702
        %v4159 = vpack.c.b16 %v2705, %v2703
        %v4160 = vpack.c.b16 %v2708, %v2706
        %v4161 = vpack.c.b16 %v2709, %v2707
        %v4162 = vpack.c.b16 %v2712, %v2710
        %v4163 = vpack.c.b16 %v2713, %v2711
        %v4164 = vpack.c.b16 %v2716, %v2714
        %v4165 = vpack.c.b16 %v2717, %v2715
        %v4166 = vpack.c.b16 %v2720, %v2718
        %v4167 = vpack.c.b16 %v2721, %v2719
        %v4168 = vpack.c.b16 %v2724, %v2722
        %v4169 = vpack.c.b16 %v2725, %v2723
        %v4170 = vpack.c.b16 %v2728, %v2726
        %v4171 = vpack.c.b16 %v2729, %v2727
        %v4172 = vpack.c.b16 %v2732, %v2730
        %v4173 = vpack.c.b16 %v2733, %v2731
        %v4174 = vpack.c.b16 %v2736, %v2734
        %v4175 = vpack.c.b16 %v2737, %v2735
        %v4176 = vpack.c.b16 %v2740, %v2738
        %v4177 = vpack.c.b16 %v2741, %v2739
        %v4178 = vpack.c.b16 %v2744, %v2742
        %v4179 = vpack.c.b16 %v2745, %v2743
        %v4180 = vpack.c.b16 %v2748, %v2746
        %v4181 = vpack.c.b16 %v2749, %v2747
        %v4182 = vpack.c.b16 %v2752, %v2750
        %v4183 = vpack.c.b16 %v2753, %v2751
        %v4184 = vpack.c.b16 %v2756, %v2754
        %v4185 = vpack.c.b16 %v2757, %v2755
        %v4186 = vpack.c.b16 %v2760, %v2758
        %v4187 = vpack.c.b16 %v2761, %v2759
        %v4188 = vpack.c.b16 %v2764, %v2762
        %v4189 = vpack.c.b16 %v2765, %v2763
        %v4190 = vpack.c.b16 %v2768, %v2766
        %v4191 = vpack.c.b16 %v2769, %v2767
        %v4192 = vpack.c.b16 %v2772, %v2770
        %v4193 = vpack.c.b16 %v2773, %v2771
        %v4194 = vpack.c.b16 %v2776, %v2774
        %v4195 = vpack.c.b16 %v2777, %v2775
        %v4196 = vpack.c.b16 %v2780, %v2778
        %v4197 = vpack.c.b16 %v2781, %v2779
        %v4198 = vpack.c.b16 %v2784, %v2782
        %v4199 = vpack.c.b16 %v2785, %v2783
        %v4200 = vpack.c.b16 %v2788, %v2786
        %v4201 = vpack.c.b16 %v2789, %v2787
        %v4202 = vpack.c.b16 %v2792, %v2790
        %v4203 = vpack.c.b16 %v2793, %v2791
        %v4204 = vpack.c.b16 %v2796, %v2794
        %v4205 = vpack.c.b16 %v2797, %v2795
        %v4206 = vpack.c.b16 %v2800, %v2798
        %v4207 = vpack.c.b16 %v2801, %v2799
        %v4208 = vpack.c.b16 %v2804, %v2802
        %v4209 = vpack.c.b16 %v2805, %v2803
        %v4210 = vpack.c.b16 %v2808, %v2806
        %v4211 = vpack.c.b16 %v2809, %v2807
        %v4212 = vpack.c.b16 %v2812, %v2810
        %v4213 = vpack.c.b16 %v2813, %v2811
        %v4214 = vpack.c.b16 %v2816, %v2814
        %v4215 = vpack.c.b16 %v2817, %v2815
        %v4216 = vpack.c.b16 %v2820, %v2818
        %v4217 = vpack.c.b16 %v2821, %v2819
        %v4218 = vpack.c.b16 %v2824, %v2822
        %v4219 = vpack.c.b16 %v2825, %v2823
        %v4220 = vpack.c.b16 %v2828, %v2826
        %v4221 = vpack.c.b16 %v2829, %v2827
        %v4222 = vpack.c.b16 %v2832, %v2830
        %v4223 = vpack.c.b16 %v2833, %v2831
        %v4224 = vpack.c.b16 %v2836, %v2834
        %v4225 = vpack.c.b16 %v2837, %v2835
        %v4226 = vpack.c.b16 %v2840, %v2838
        %v4227 = vpack.c.b16 %v2841, %v2839
        %v4228 = vpack.c.b16 %v2844, %v2842
        %v4229 = vpack.c.b16 %v2845, %v2843
        %v4230 = vpack.c.b16 %v2848, %v2846
        %v4231 = vpack.c.b16 %v2849, %v2847
        %v4232 = vpack.c.b16 %v2852, %v2850
        %v4233 = vpack.c.b16 %v2853, %v2851
        %v4234 = vpack.c.b16 %v2856, %v2854
        %v4235 = vpack.c.b16 %v2857, %v2855
        %v4236 = vpack.c.b16 %v2860, %v2858
        %v4237 = vpack.c.b16 %v2861, %v2859
        %v4238 = vpack.c.b16 %v2864, %v2862
        %v4239 = vpack.c.b16 %v2865, %v2863
        %v4240 = vpack.c.b16 %v2868, %v2866
        %v4241 = vpack.c.b16 %v2869, %v2867
        %v4242 = vpack.c.b16 %v2872, %v2870
        %v4243 = vpack.c.b16 %v2873, %v2871
        %v4244 = vpack.c.b16 %v2876, %v2874
        %v4245 = vpack.c.b16 %v2877, %v2875
        %v4246 = vpack.c.b16 %v2880, %v2878
        %v4247 = vpack.c.b16 %v2881, %v2879
        %v4248 = vpack.c.b16 %v2884, %v2882
        %v4249 = vpack.c.b16 %v2885, %v2883
        %v4250 = vpack.c.b16 %v2888, %v2886
        %v4251 = vpack.c.b16 %v2889, %v2887
        %v4252 = vpack.c.b16 %v2892, %v2890
        %v4253 = vpack.c.b16 %v2893, %v2891
        %v4254 = vpack.c.b16 %v2896, %v2894
        %v4255 = vpack.c.b16 %v2897, %v2895
        %v4256 = vpack.c.b16 %v2900, %v2898
        %v4257 = vpack.c.b16 %v2901, %v2899
        %v4258 = vpack.c.b16 %v2904, %v2902
        %v4259 = vpack.c.b16 %v2905, %v2903
        %v4260 = vpack.c.b16 %v2908, %v2906
        %v4261 = vpack.c.b16 %v2909, %v2907
        %v4262 = vpack.c.b16 %v2912, %v2910
        %v4263 = vpack.c.b16 %v2913, %v2911
        %v4264 = vpack.c.b16 %v2916, %v2914
        %v4265 = vpack.c.b16 %v2917, %v2915
        %v4266 = vpack.c.b16 %v2920, %v2918
        %v4267 = vpack.c.b16 %v2921, %v2919
        %v4268 = vpack.c.b16 %v2924, %v2922
        %v4269 = vpack.c.b16 %v2925, %v2923
        %v4270 = vpack.c.b16 %v2928, %v2926
        %v4271 = vpack.c.b16 %v2929, %v2927
        %v4272 = vpack.c.b16 %v2932, %v2930
        %v4273 = vpack.c.b16 %v2933, %v2931
        %v4274 = vpack.c.b16 %v2936, %v2934
        %v4275 = vpack.c.b16 %v2937, %v2935
        %v4276 = vpack.c.b16 %v2940, %v2938
        %v4277 = vpack.c.b16 %v2941, %v2939
        %v4278 = vpack.c.b16 %v2944, %v2942
        %v4279 = vpack.c.b16 %v2945, %v2943
        %v4280 = vpack.c.b16 %v2948, %v2946
        %v4281 = vpack.c.b16 %v2949, %v2947
        %v4282 = vpack.c.b16 %v2952, %v2950
        %v4283 = vpack.c.b16 %v2953, %v2951
        %v4284 = vpack.c.b16 %v2956, %v2954
        %v4285 = vpack.c.b16 %v2957, %v2955
        %v4286 = vpack.c.b16 %v2960, %v2958
        %v4287 = vpack.c.b16 %v2961, %v2959
        %v4288 = vpack.c.b16 %v2964, %v2962
        %v4289 = vpack.c.b16 %v2965, %v2963
        %v4290 = vpack.c.b16 %v2968, %v2966
        %v4291 = vpack.c.b16 %v2969, %v2967
        %v4292 = vpack.c.b16 %v2972, %v2970
        %v4293 = vpack.c.b16 %v2973, %v2971
        %v4294 = vpack.c.b16 %v2976, %v2974
        %v4295 = vpack.c.b16 %v2977, %v2975
        %v4296 = vpack.c.b16 %v2980, %v2978
        %v4297 = vpack.c.b16 %v2981, %v2979
        %v4298 = vpack.c.b16 %v2984, %v2982
        %v4299 = vpack.c.b16 %v2985, %v2983
        %v4300 = vpack.c.b16 %v2988, %v2986
        %v4301 = vpack.c.b16 %v2989, %v2987
        %v4302 = vpack.c.b16 %v2992, %v2990
        %v4303 = vpack.c.b16 %v2993, %v2991
        %v4304 = vpack.c.b16 %v2996, %v2994
        %v4305 = vpack.c.b16 %v2997, %v2995
        %v4306 = vpack.c.b16 %v3000, %v2998
        %v4307 = vpack.c.b16 %v3001, %v2999
        %v4308 = vpack.c.b16 %v3004, %v3002
        %v4309 = vpack.c.b16 %v3005, %v3003
        %v4310 = vpack.c.b16 %v3008, %v3006
        %v4311 = vpack.c.b16 %v3009, %v3007
        %v4312 = vpack.c.b16 %v3012, %v3010
        %v4313 = vpack.c.b16 %v3013, %v3011
        %v4314 = vpack.c.b16 %v3016, %v3014
        %v4315 = vpack.c.b16 %v3017, %v3015
        %v4316 = vpack.c.b16 %v3020, %v3018
        %v4317 = vpack.c.b16 %v3021, %v3019
        %v4318 = vpack.c.b16 %v3024, %v3022
        %v4319 = vpack.c.b16 %v3025, %v3023
        %v4320 = vpack.c.b16 %v3028, %v3026
        %v4321 = vpack.c.b16 %v3029, %v3027
        %v4322 = vpack.c.b16 %v3032, %v3030
        %v4323 = vpack.c.b16 %v3033, %v3031
        %v4324 = vpack.c.b16 %v3036, %v3034
        %v4325 = vpack.c.b16 %v3037, %v3035
        %v4326 = vpack.c.b16 %v3040, %v3038
        %v4327 = vpack.c.b16 %v3041, %v3039
        %v4328 = vpack.c.b16 %v3044, %v3042
        %v4329 = vpack.c.b16 %v3045, %v3043
        %v4330 = vpack.c.b16 %v3048, %v3046
        %v4331 = vpack.c.b16 %v3049, %v3047
        %v4332 = vpack.c.b16 %v3052, %v3050
        %v4333 = vpack.c.b16 %v3053, %v3051
        %v4334 = vpack.c.b16 %v3056, %v3054
        %v4335 = vpack.c.b16 %v3057, %v3055
        %v4336 = vpack.c.b16 %v3060, %v3058
        %v4337 = vpack.c.b16 %v3061, %v3059
        %v4338 = vpack.c.b16 %v3064, %v3062
        %v4339 = vpack.c.b16 %v3065, %v3063
        %v4340 = vpack.c.b16 %v3068, %v3066
        %v4341 = vpack.c.b16 %v3069, %v3067
        %v4342 = vpack.c.b16 %v3072, %v3070
        %v4343 = vpack.c.b16 %v3073, %v3071
        %v4344 = vpack.c.b16 %v3076, %v3074
        %v4345 = vpack.c.b16 %v3077, %v3075
        %v4346 = vpack.c.b16 %v3080, %v3078
        %v4347 = vpack.c.b16 %v3081, %v3079
        %v4348 = vpack.c.b16 %v3084, %v3082
        %v4349 = vpack.c.b16 %v3085, %v3083
        %v4350 = vpack.c.b16 %v3088, %v3086
        %v4351 = vpack.c.b16 %v3089, %v3087
        %v4352 = vpack.c.b16 %v3092, %v3090
        %v4353 = vpack.c.b16 %v3093, %v3091
        %v4354 = vpack.c.b16 %v3096, %v3094
        %v4355 = vpack.c.b16 %v3097, %v3095
        %v4356 = vpack.c.b16 %v3100, %v3098
        %v4357 = vpack.c.b16 %v3101, %v3099
        %v4358 = vpack.c.b16 %v3104, %v3102
        %v4359 = vpack.c.b16 %v3105, %v3103
        %v4360 = vpack.c.b16 %v3108, %v3106
        %v4361 = vpack.c.b16 %v3109, %v3107
        %v4362 = vpack.c.b16 %v3112, %v3110
        %v4363 = vpack.c.b16 %v3113, %v3111
        %v4364 = vpack.c.b16 %v3116, %v3114
        %v4365 = vpack.c.b16 %v3117, %v3115
        %v4366 = vpack.c.b16 %v3120, %v3118
        %v4367 = vpack.c.b16 %v3121, %v3119
        %v4368 = vpack.c.b16 %v3124, %v3122
        %v4369 = vpack.c.b16 %v3125, %v3123
        %v4370 = vpack.c.b16 %v3128, %v3126
        %v4371 = vpack.c.b16 %v3129, %v3127
        %v4372 = vpack.c.b16 %v3132, %v3130
        %v4373 = vpack.c.b16 %v3133, %v3131
        %v4374 = vpack.c.b16 %v3136, %v3134
        %v4375 = vpack.c.b16 %v3137, %v3135
        %v4376 = vpack.c.b16 %v3140, %v3138
        %v4377 = vpack.c.b16 %v3141, %v3139
        %v4378 = vpack.c.b16 %v3144, %v3142
        %v4379 = vpack.c.b16 %v3145, %v3143
        %v4380 = vpack.c.b16 %v3148, %v3146
        %v4381 = vpack.c.b16 %v3149, %v3147
        %v4382 = vpack.c.b16 %v3152, %v3150
        %v4383 = vpack.c.b16 %v3153, %v3151
        %v4384 = vpack.c.b16 %v3156, %v3154
        %v4385 = vpack.c.b16 %v3157, %v3155
        %v4386 = vpack.c.b16 %v3160, %v3158
        %v4387 = vpack.c.b16 %v3161, %v3159
        %v4388 = vpack.c.b16 %v3164, %v3162
        %v4389 = vpack.c.b16 %v3165, %v3163
        %v4390 = vpack.c.b16 %v3168, %v3166
        %v4391 = vpack.c.b16 %v3169, %v3167
        %v4392 = vpack.c.b16 %v3172, %v3170
        %v4393 = vpack.c.b16 %v3173, %v3171
        %v4394 = vpack.c.b16 %v3176, %v3174
        %v4395 = vpack.c.b16 %v3177, %v3175
        %v4396 = vpack.c.b16 %v3180, %v3178
        %v4397 = vpack.c.b16 %v3181, %v3179
        %v4398 = vpack.c.b16 %v3184, %v3182
        %v4399 = vpack.c.b16 %v3185, %v3183
        %v4400 = vpack.c.b16 %v3188, %v3186
        %v4401 = vpack.c.b16 %v3189, %v3187
        %v4402 = vpack.c.b16 %v3192, %v3190
        %v4403 = vpack.c.b16 %v3193, %v3191
        %v4404 = vpack.c.b16 %v3196, %v3194
        %v4405 = vpack.c.b16 %v3197, %v3195
        %v4406 = vpack.c.b16 %v3200, %v3198
        %v4407 = vpack.c.b16 %v3201, %v3199
        %v4408 = vpack.c.b16 %v3204, %v3202
        %v4409 = vpack.c.b16 %v3205, %v3203
        %v4410 = vpack.c.b16 %v3208, %v3206
        %v4411 = vpack.c.b16 %v3209, %v3207
        %v4412 = vpack.c.b16 %v3212, %v3210
        %v4413 = vpack.c.b16 %v3213, %v3211
        %v4414 = vpack.c.b16 %v3216, %v3214
        %v4415 = vpack.c.b16 %v3217, %v3215
        %v4416 = vpack.c.b16 %v3220, %v3218
        %v4417 = vpack.c.b16 %v3221, %v3219
        %v4418 = vpack.c.b16 %v3224, %v3222
        %v4419 = vpack.c.b16 %v3225, %v3223
        %v4420 = vpack.c.b16 %v3228, %v3226
        %v4421 = vpack.c.b16 %v3229, %v3227
        %v4422 = vpack.c.b16 %v3232, %v3230
        %v4423 = vpack.c.b16 %v3233, %v3231
        %v4424 = vpack.c.b16 %v3236, %v3234
        %v4425 = vpack.c.b16 %v3237, %v3235
        %v4426 = vpack.c.b16 %v3240, %v3238
        %v4427 = vpack.c.b16 %v3241, %v3239
        %v4428 = vpack.c.b16 %v3244, %v3242
        %v4429 = vpack.c.b16 %v3245, %v3243
        %v4430 = vpack.c.b16 %v3248, %v3246
        %v4431 = vpack.c.b16 %v3249, %v3247
        %v4432 = vpack.c.b16 %v3252, %v3250
        %v4433 = vpack.c.b16 %v3253, %v3251
        %v4434 = vpack.c.b16 %v3256, %v3254
        %v4435 = vpack.c.b16 %v3257, %v3255
        %v4436 = vpack.c.b16 %v3260, %v3258
        %v4437 = vpack.c.b16 %v3261, %v3259
        %v4438 = vpack.c.b16 %v3264, %v3262
        %v4439 = vpack.c.b16 %v3265, %v3263
        %v4440 = vpack.c.b16 %v3268, %v3266
        %v4441 = vpack.c.b16 %v3269, %v3267
        %v4442 = vpack.c.b16 %v3272, %v3270
        %v4443 = vpack.c.b16 %v3273, %v3271
        %v4444 = vpack.c.b16 %v3276, %v3274
        %v4445 = vpack.c.b16 %v3277, %v3275
        %v4446 = vpack.c.b16 %v3280, %v3278
        %v4447 = vpack.c.b16 %v3281, %v3279
        %v4448 = vpack.c.b16 %v3284, %v3282
        %v4449 = vpack.c.b16 %v3285, %v3283
        %v4450 = vpack.c.b16 %v3288, %v3286
        %v4451 = vpack.c.b16 %v3289, %v3287
        %v4452 = vpack.c.b16 %v3292, %v3290
        %v4453 = vpack.c.b16 %v3293, %v3291
        %v4454 = vpack.c.b16 %v3296, %v3294
        %v4455 = vpack.c.b16 %v3297, %v3295
        %v4456 = vpack.c.b16 %v3300, %v3298
        %v4457 = vpack.c.b16 %v3301, %v3299
        %v4458 = vpack.c.b16 %v3304, %v3302
        %v4459 = vpack.c.b16 %v3305, %v3303
        %v4460 = vpack.c.b16 %v3308, %v3306
        %v4461 = vpack.c.b16 %v3309, %v3307
        %v4462 = vpack.c.b16 %v3312, %v3310
        %v4463 = vpack.c.b16 %v3313, %v3311
        %v4464 = vpack.c.b16 %v3316, %v3314
        %v4465 = vpack.c.b16 %v3317, %v3315
        %v4466 = vpack.c.b16 %v3320, %v3318
        %v4467 = vpack.c.b16 %v3321, %v3319
        %v4468 = vpack.c.b16 %v3324, %v3322
        %v4469 = vpack.c.b16 %v3325, %v3323
        %v4470 = vpack.c.b16 %v3328, %v3326
        %v4471 = vpack.c.b16 %v3329, %v3327
        %v4472 = vpack.c.b16 %v3332, %v3330
        %v4473 = vpack.c.b16 %v3333, %v3331
        %v4474 = vpack.c.b16 %v3336, %v3334
        %v4475 = vpack.c.b16 %v3337, %v3335
        %v4476 = vpack.c.b16 %v3340, %v3338
        %v4477 = vpack.c.b16 %v3341, %v3339
        %v4478 = vpack.c.b16 %v3344, %v3342
        %v4479 = vpack.c.b16 %v3345, %v3343
        %v4480 = vpack.c.b16 %v3348, %v3346
        %v4481 = vpack.c.b16 %v3349, %v3347
        %v4482 = vpack.c.b16 %v3352, %v3350
        %v4483 = vpack.c.b16 %v3353, %v3351
        %v4484 = vpack.c.b16 %v3356, %v3354
        %v4485 = vpack.c.b16 %v3357, %v3355
        %v4486 = vpack.c.b16 %v3360, %v3358
        %v4487 = vpack.c.b16 %v3361, %v3359
        %v4488 = vpack.c.b16 %v3364, %v3362
        %v4489 = vpack.c.b16 %v3365, %v3363
        %v4490 = vpack.c.b16 %v3368, %v3366
        %v4491 = vpack.c.b16 %v3369, %v3367
        %v4492 = vpack.c.b16 %v3372, %v3370
        %v4493 = vpack.c.b16 %v3373, %v3371
        %v4494 = vpack.c.b16 %v3376, %v3374
        %v4495 = vpack.c.b16 %v3377, %v3375
        %v4496 = vpack.c.b16 %v3380, %v3378
        %v4497 = vpack.c.b16 %v3381, %v3379
        %v4498 = vpack.c.b16 %v3384, %v3382
        %v4499 = vpack.c.b16 %v3385, %v3383
        %v4500 = vpack.c.b16 %v3388, %v3386
        %v4501 = vpack.c.b16 %v3389, %v3387
        %v4502 = vpack.c.b16 %v3392, %v3390
        %v4503 = vpack.c.b16 %v3393, %v3391
        %v4504 = vpack.c.b16 %v3396, %v3394
        %v4505 = vpack.c.b16 %v3397, %v3395
        %v4506 = vpack.c.b16 %v3400, %v3398
        %v4507 = vpack.c.b16 %v3401, %v3399
        %v4508 = vpack.c.b16 %v3404, %v3402
        %v4509 = vpack.c.b16 %v3405, %v3403
        %v4510 = vpack.c.b16 %v3408, %v3406
        %v4511 = vpack.c.b16 %v3409, %v3407
        %v4512 = vpack.c.b16 %v3412, %v3410
        %v4513 = vpack.c.b16 %v3413, %v3411
        %v4514 = vpack.c.b16 %v3416, %v3414
        %v4515 = vpack.c.b16 %v3417, %v3415
        %v4516 = vpack.c.b16 %v3420, %v3418
        %v4517 = vpack.c.b16 %v3421, %v3419
        %v4518 = vpack.c.b16 %v3424, %v3422
        %v4519 = vpack.c.b16 %v3425, %v3423
        %v4520 = vpack.c.b16 %v3428, %v3426
        %v4521 = vpack.c.b16 %v3429, %v3427
        %v4522 = vpack.c.b16 %v3432, %v3430
        %v4523 = vpack.c.b16 %v3433, %v3431
        %v4524 = vpack.c.b16 %v3436, %v3434
        %v4525 = vpack.c.b16 %v3437, %v3435
        %v4526 = vpack.c.b16 %v3440, %v3438
        %v4527 = vpack.c.b16 %v3441, %v3439
        %v4528 = vpack.c.b16 %v3444, %v3442
        %v4529 = vpack.c.b16 %v3445, %v3443
        %v4530 = vpack.c.b16 %v3448, %v3446
        %v4531 = vpack.c.b16 %v3449, %v3447
        %v4532 = vpack.c.b16 %v3452, %v3450
        %v4533 = vpack.c.b16 %v3453, %v3451
        %v4534 = vpack.c.b16 %v3456, %v3454
        %v4535 = vpack.c.b16 %v3457, %v3455
        %v4536 = vpack.c.b16 %v3460, %v3458
        %v4537 = vpack.c.b16 %v3461, %v3459
        %v4538 = vpack.c.b16 %v3464, %v3462
        %v4539 = vpack.c.b16 %v3465, %v3463
        %v4540 = vpack.c.b16 %v3468, %v3466
        %v4541 = vpack.c.b16 %v3469, %v3467
        %v4542 = vpack.c.b16 %v3472, %v3470
        %v4543 = vpack.c.b16 %v3473, %v3471
        %v4544 = vpack.c.b16 %v3476, %v3474
        %v4545 = vpack.c.b16 %v3477, %v3475
        %v4546 = vpack.c.b16 %v3480, %v3478
        %v4547 = vpack.c.b16 %v3481, %v3479
        %v4548 = vpack.c.b16 %v3484, %v3482
        %v4549 = vpack.c.b16 %v3485, %v3483
        %v4550 = vpack.c.b16 %v3488, %v3486
        %v4551 = vpack.c.b16 %v3489, %v3487
        %v4552 = vpack.c.b16 %v3492, %v3490
        %v4553 = vpack.c.b16 %v3493, %v3491
        %v4554 = vpack.c.b16 %v3496, %v3494
        %v4555 = vpack.c.b16 %v3497, %v3495
        %v4556 = vpack.c.b16 %v3500, %v3498
        %v4557 = vpack.c.b16 %v3501, %v3499
        %v4558 = vpack.c.b16 %v3504, %v3502
        %v4559 = vpack.c.b16 %v3505, %v3503
        %v4560 = vpack.c.b16 %v3508, %v3506
        %v4561 = vpack.c.b16 %v3509, %v3507
        %v4562 = vpack.c.b16 %v3512, %v3510
        %v4563 = vpack.c.b16 %v3513, %v3511
        %v4564 = vpack.c.b16 %v3516, %v3514
        %v4565 = vpack.c.b16 %v3517, %v3515
        %v4566 = vpack.c.b16 %v3520, %v3518
        %v4567 = vpack.c.b16 %v3521, %v3519
        %v4568 = vpack.c.b16 %v3524, %v3522
        %v4569 = vpack.c.b16 %v3525, %v3523
        %v4570 = vpack.c.b16 %v3528, %v3526
        %v4571 = vpack.c.b16 %v3529, %v3527
        %v4572 = vpack.c.b16 %v3532, %v3530
        %v4573 = vpack.c.b16 %v3533, %v3531
        %v4574 = vpack.c.b16 %v3536, %v3534
        %v4575 = vpack.c.b16 %v3537, %v3535
        %v4576 = vpack.c.b16 %v3540, %v3538
        %v4577 = vpack.c.b16 %v3541, %v3539
        %v4578 = vpack.c.b16 %v3544, %v3542
        %v4579 = vpack.c.b16 %v3545, %v3543
        %v4580 = vpack.c.b16 %v3548, %v3546
        %v4581 = vpack.c.b16 %v3549, %v3547
        %v4582 = vpack.c.b16 %v3552, %v3550
        %v4583 = vpack.c.b16 %v3553, %v3551
        %v4584 = vpack.c.b16 %v3556, %v3554
        %v4585 = vpack.c.b16 %v3557, %v3555
        %v4586 = vpack.c.b16 %v3560, %v3558
        %v4587 = vpack.c.b16 %v3561, %v3559
        %v4588 = vpack.c.b16 %v3564, %v3562
        %v4589 = vpack.c.b16 %v3565, %v3563
        %v4590 = vpack.c.b16 %v3568, %v3566
        %v4591 = vpack.c.b16 %v3569, %v3567
        %v4592 = vpack.c.b16 %v3572, %v3570
        %v4593 = vpack.c.b16 %v3573, %v3571
        %v4594 = vpack.c.b16 %v3576, %v3574
        %v4595 = vpack.c.b16 %v3577, %v3575
        %v4596 = vpack.c.b16 %v3580, %v3578
        %v4597 = vpack.c.b16 %v3581, %v3579
        %v4598 = vpack.c.b16 %v3584, %v3582
        %v4599 = vpack.c.b16 %v3585, %v3583
        %v4600 = vpack.c.b16 %v3588, %v3586
        %v4601 = vpack.c.b16 %v3589, %v3587
        %v4602 = vpack.c.b16 %v3592, %v3590
        %v4603 = vpack.c.b16 %v3593, %v3591
        %v4604 = vpack.c.b16 %v3596, %v3594
        %v4605 = vpack.c.b16 %v3597, %v3595
        %v4606 = vpack.c.b16 %v3600, %v3598
        %v4607 = vpack.c.b16 %v3601, %v3599
        %v4608 = vpack.c.b16 %v3604, %v3602
        %v4609 = vpack.c.b16 %v3605, %v3603
        %v4610 = vpack.c.b16 %v3608, %v3606
        %v4611 = vpack.c.b16 %v3609, %v3607
        %v4612 = vpack.c.b16 %v3612, %v3610
        %v4613 = vpack.c.b16 %v3613, %v3611
        %v4614 = vpack.c.b16 %v3616, %v3614
        %v4615 = vpack.c.b16 %v3617, %v3615
        %v4616 = vpack.c.b16 %v3620, %v3618
        %v4617 = vpack.c.b16 %v3621, %v3619
        %v4618 = vpack.c.b16 %v3624, %v3622
        %v4619 = vpack.c.b16 %v3625, %v3623
        %v4620 = vpack.c.b16 %v3628, %v3626
        %v4621 = vpack.c.b16 %v3629, %v3627
        %v4622 = vpack.c.b16 %v3632, %v3630
        %v4623 = vpack.c.b16 %v3633, %v3631
        %v4624 = vpack.c.b16 %v3636, %v3634
        %v4625 = vpack.c.b16 %v3637, %v3635
        %v4626 = vpack.c.b16 %v3640, %v3638
        %v4627 = vpack.c.b16 %v3641, %v3639
        %v4628 = vpack.c.b16 %v3644, %v3642
        %v4629 = vpack.c.b16 %v3645, %v3643
        %v4630 = vpack.c.b16 %v3648, %v3646
        %v4631 = vpack.c.b16 %v3649, %v3647
        %v4632 = vpack.c.b16 %v3652, %v3650
        %v4633 = vpack.c.b16 %v3653, %v3651
        %v4634 = vpack.c.b16 %v3656, %v3654
        %v4635 = vpack.c.b16 %v3657, %v3655
        %v4636 = vpack.c.b16 %v3660, %v3658
        %v4637 = vpack.c.b16 %v3661, %v3659
        %v4638 = vpack.c.b16 %v3664, %v3662
        %v4639 = vpack.c.b16 %v3665, %v3663
        %v4640 = vpack.c.b16 %v3668, %v3666
        %v4641 = vpack.c.b16 %v3669, %v3667
        %v4642 = vpack.c.b16 %v3672, %v3670
        %v4643 = vpack.c.b16 %v3673, %v3671
        %v4644 = vpack.c.b16 %v3676, %v3674
        %v4645 = vpack.c.b16 %v3677, %v3675
        %v4646 = vpack.c.b16 %v3680, %v3678
        %v4647 = vpack.c.b16 %v3681, %v3679
        %v4648 = vpack.c.b16 %v3684, %v3682
        %v4649 = vpack.c.b16 %v3685, %v3683
        %v4650 = vpack.c.b16 %v3688, %v3686
        %v4651 = vpack.c.b16 %v3689, %v3687
        %v4652 = vpack.c.b16 %v3692, %v3690
        %v4653 = vpack.c.b16 %v3693, %v3691
        %v4654 = vpack.c.b16 %v3696, %v3694
        %v4655 = vpack.c.b16 %v3697, %v3695
        %v4656 = vpack.c.b16 %v3700, %v3698
        %v4657 = vpack.c.b16 %v3701, %v3699
        %v4658 = vpack.c.b16 %v3704, %v3702
        %v4659 = vpack.c.b16 %v3705, %v3703
        %v4660 = vpack.c.b16 %v3708, %v3706
        %v4661 = vpack.c.b16 %v3709, %v3707
        %v4662 = vpack.c.b16 %v3712, %v3710
        %v4663 = vpack.c.b16 %v3713, %v3711
        %v4664 = vpack.c.b16 %v3716, %v3714
        %v4665 = vpack.c.b16 %v3717, %v3715
        %v4666 = vpack.c.b16 %v3720, %v3718
        %v4667 = vpack.c.b16 %v3721, %v3719
        %v4668 = vpack.c.b16 %v3724, %v3722
        %v4669 = vpack.c.b16 %v3725, %v3723
        %v4670 = vpack.c.b16 %v3728, %v3726
        %v4671 = vpack.c.b16 %v3729, %v3727
        %v4672 = vpack.c.b16 %v3732, %v3730
        %v4673 = vpack.c.b16 %v3733, %v3731
        %v4674 = vpack.c.b16 %v3736, %v3734
        %v4675 = vpack.c.b16 %v3737, %v3735
        %v4676 = vpack.c.b16 %v3740, %v3738
        %v4677 = vpack.c.b16 %v3741, %v3739
        %v4678 = vpack.c.b16 %v3744, %v3742
        %v4679 = vpack.c.b16 %v3745, %v3743
        %v4680 = vpack.c.b16 %v3748, %v3746
        %v4681 = vpack.c.b16 %v3749, %v3747
        %v4682 = vpack.c.b16 %v3752, %v3750
        %v4683 = vpack.c.b16 %v3753, %v3751
        %v4684 = vpack.c.b16 %v3756, %v3754
        %v4685 = vpack.c.b16 %v3757, %v3755
        %v4686 = vpack.c.b16 %v3760, %v3758
        %v4687 = vpack.c.b16 %v3761, %v3759
        %v4688 = vpack.c.b16 %v3764, %v3762
        %v4689 = vpack.c.b16 %v3765, %v3763
        %v4690 = vpack.c.b16 %v3768, %v3766
        %v4691 = vpack.c.b16 %v3769, %v3767
        %v4692 = vpack.c.b16 %v3772, %v3770
        %v4693 = vpack.c.b16 %v3773, %v3771
        %v4694 = vpack.c.b16 %v3776, %v3774
        %v4695 = vpack.c.b16 %v3777, %v3775
        %v4696 = vpack.c.b16 %v3780, %v3778
        %v4697 = vpack.c.b16 %v3781, %v3779
        %v4698 = vpack.c.b16 %v3784, %v3782
        %v4699 = vpack.c.b16 %v3785, %v3783
        %v4700 = vpack.c.b16 %v3788, %v3786
        %v4701 = vpack.c.b16 %v3789, %v3787
        %v4702 = vpack.c.b16 %v3792, %v3790
        %v4703 = vpack.c.b16 %v3793, %v3791
        %v4704 = vpack.c.b16 %v3796, %v3794
        %v4705 = vpack.c.b16 %v3797, %v3795
        %v4706 = vpack.c.b16 %v3800, %v3798
        %v4707 = vpack.c.b16 %v3801, %v3799
        %v4708 = vpack.c.b16 %v3804, %v3802
        %v4709 = vpack.c.b16 %v3805, %v3803
        %v4710 = vpack.c.b16 %v3808, %v3806
        %v4711 = vpack.c.b16 %v3809, %v3807
        %v4712 = vpack.c.b16 %v3812, %v3810
        %v4713 = vpack.c.b16 %v3813, %v3811
        %v4714 = vpack.c.b16 %v3816, %v3814
        %v4715 = vpack.c.b16 %v3817, %v3815
        %v4716 = vpack.c.b16 %v3820, %v3818
        %v4717 = vpack.c.b16 %v3821, %v3819
        %v4718 = vpack.c.b16 %v3824, %v3822
        %v4719 = vpack.c.b16 %v3825, %v3823
        %v4720 = vpack.c.b16 %v3828, %v3826
        %v4721 = vpack.c.b16 %v3829, %v3827
        %v4722 = vpack.c.b16 %v3832, %v3830
        %v4723 = vpack.c.b16 %v3833, %v3831
        %v4724 = vpack.c.b16 %v3836, %v3834
        %v4725 = vpack.c.b16 %v3837, %v3835
        %v4726 = vpack.c.b16 %v3840, %v3838
        %v4727 = vpack.c.b16 %v3841, %v3839
        %v4728 = vpack.c.b16 %v3844, %v3842
        %v4729 = vpack.c.b16 %v3845, %v3843
        %v4730 = vpack.c.b16 %v3848, %v3846
        %v4731 = vpack.c.b16 %v3849, %v3847
        %v4732 = vpack.c.b16 %v3852, %v3850
        %v4733 = vpack.c.b16 %v3853, %v3851
        %v4734 = vpack.c.b16 %v3856, %v3854
        %v4735 = vpack.c.b16 %v3857, %v3855
        %v4736 = vpack.c.b16 %v3860, %v3858
        %v4737 = vpack.c.b16 %v3861, %v3859
        %v4738 = vpack.c.b16 %v3864, %v3862
        %v4739 = vpack.c.b16 %v3865, %v3863
        %v4740 = vpack.c.b16 %v3868, %v3866
        %v4741 = vpack.c.b16 %v3869, %v3867
        %v4742 = vpack.c.b16 %v3872, %v3870
        %v4743 = vpack.c.b16 %v3873, %v3871
        %v4744 = vpack.c.b16 %v3876, %v3874
        %v4745 = vpack.c.b16 %v3877, %v3875
        %v4746 = vpack.c.b16 %v3880, %v3878
        %v4747 = vpack.c.b16 %v3881, %v3879
        %v4748 = vpack.c.b16 %v3884, %v3882
        %v4749 = vpack.c.b16 %v3885, %v3883
        %v4750 = vpack.c.b16 %v3888, %v3886
        %v4751 = vpack.c.b16 %v3889, %v3887
        %v4752 = vpack.c.b16 %v3892, %v3890
        %v4753 = vpack.c.b16 %v3893, %v3891
        %v4754 = vpack.c.b16 %v3896, %v3894
        %v4755 = vpack.c.b16 %v3897, %v3895
        %v4756 = vpack.c.b16 %v3900, %v3898
        %v4757 = vpack.c.b16 %v3901, %v3899
        %v4758 = vpack.c.b16 %v3904, %v3902
        %v4759 = vpack.c.b16 %v3905, %v3903
        %v4760 = vpack.c.b16 %v3908, %v3906
        %v4761 = vpack.c.b16 %v3909, %v3907
        %v4762 = vpack.c.b16 %v3912, %v3910
        %v4763 = vpack.c.b16 %v3913, %v3911
        %v4764 = vpack.c.b16 %v3916, %v3914
        %v4765 = vpack.c.b16 %v3917, %v3915
        %v4766 = vpack.c.b16 %v3920, %v3918
        %v4767 = vpack.c.b16 %v3921, %v3919
        %v4768 = vpack.c.b16 %v3924, %v3922
        %v4769 = vpack.c.b16 %v3925, %v3923
        %v4770 = vpack.c.b16 %v3928, %v3926
        %v4771 = vpack.c.b16 %v3929, %v3927
        %v4772 = vpack.c.b16 %v3932, %v3930
        %v4773 = vpack.c.b16 %v3933, %v3931
        %v4774 = vpack.c.b16 %v3936, %v3934
        %v4775 = vpack.c.b16 %v3937, %v3935
        %v4776 = vpack.c.b16 %v3940, %v3938
        %v4777 = vpack.c.b16 %v3941, %v3939
        %v4778 = vpack.c.b16 %v3944, %v3942
        %v4779 = vpack.c.b16 %v3945, %v3943
        %v4780 = vpack.c.b16 %v3948, %v3946
        %v4781 = vpack.c.b16 %v3949, %v3947
        %5614 = vmatprep.subr.bf16.mxu0 %v3965
        %5615 = vmatpush1.bf16.msra.mxu0 %v3964
        %5616 = vmatprep.subr.bf16.mxu0 %v3963
        %5617 = vmatpush1.bf16.msra.mxu0 %v3962
        %5618 = vmatprep.subr.bf16.mxu0 %v3961
        %5619 = vmatpush1.bf16.msra.mxu0 %v3960
        %5620 = vmatprep.subr.bf16.mxu0 %v3959
        %5621 = vmatpush1.bf16.msra.mxu0 %v3958
        %5622 = vmatprep.subr.bf16.mxu0 %v3957
        %5623 = vmatpush1.bf16.msra.mxu0 %v3956
        %5624 = vmatprep.subr.bf16.mxu0 %v3955
        %5625 = vmatpush1.bf16.msra.mxu0 %v3954
        %5626 = vmatprep.subr.bf16.mxu0 %v3953
        %5627 = vmatpush1.bf16.msra.mxu0 %v3952
        %5628 = vmatprep.subr.bf16.mxu0 %v3951
        %5629 = vmatpush1.bf16.msra.mxu0 %v3950
        %5630 = vmatprep.subr.bf16.mxu0 %v3981
        %5631 = vmatpush2.bf16.msra.mxu0 %v3980
        %5632 = vmatprep.subr.bf16.mxu0 %v3979
        %5633 = vmatpush2.bf16.msra.mxu0 %v3978
        %5634 = vmatprep.subr.bf16.mxu0 %v3977
        %5635 = vmatpush2.bf16.msra.mxu0 %v3976
        %5636 = vmatprep.subr.bf16.mxu0 %v3975
        %5637 = vmatpush2.bf16.msra.mxu0 %v3974
        %5638 = vmatprep.subr.bf16.mxu0 %v3973
        %5639 = vmatpush2.bf16.msra.mxu0 %v3972
        %5640 = vmatprep.subr.bf16.mxu0 %v3971
        %5641 = vmatpush2.bf16.msra.mxu0 %v3970
        %5642 = vmatprep.subr.bf16.mxu0 %v3969
        %5643 = vmatpush2.bf16.msra.mxu0 %v3968
        %5644 = vmatprep.subr.bf16.mxu0 %v3967
        %5645 = vmatpush2.bf16.msra.mxu0 %v3966
        %5646 = vmatprep.mubr.bf16.mxu0 %v1121
        %5647 = vmatmul.mubr.bf16.gmra.mxu0 %v1107
        %v5648 = vpop.f32.mrf.mxu0
        %v5649 = vadd.f32 0.0, %v5648
        %v5650 = vpop.f32.mrf.mxu0
        %v5651 = vadd.f32 0.0, %v5650
        %v5652 = vpop.f32.mrf.mxu0
        %v5653 = vpop.f32.mrf.mxu0
        %5654 = vdwg.mxu0
        %5655 = vmatprep.subr.bf16.mxu0 %v3997
        %5656 = vmatpush1.bf16.msra.mxu0 %v3996
        %5657 = vmatprep.subr.bf16.mxu0 %v3995
        %5658 = vmatpush1.bf16.msra.mxu0 %v3994
        %5659 = vmatprep.subr.bf16.mxu0 %v3993
        %5660 = vmatpush1.bf16.msra.mxu0 %v3992
        %5661 = vmatprep.subr.bf16.mxu0 %v3991
        %5662 = vmatpush1.bf16.msra.mxu0 %v3990
        %5663 = vmatprep.subr.bf16.mxu0 %v3989
        %5664 = vmatpush1.bf16.msra.mxu0 %v3988
        %5665 = vmatprep.subr.bf16.mxu0 %v3987
        %5666 = vmatpush1.bf16.msra.mxu0 %v3986
        %5667 = vmatprep.subr.bf16.mxu0 %v3985
        %5668 = vmatpush1.bf16.msra.mxu0 %v3984
        %5669 = vmatprep.subr.bf16.mxu0 %v3983
        %5670 = vmatpush1.bf16.msra.mxu0 %v3982
        %5671 = vmatprep.subr.bf16.mxu0 %v4013
        %5672 = vmatpush2.bf16.msra.mxu0 %v4012
        %5673 = vmatprep.subr.bf16.mxu0 %v4011
        %5674 = vmatpush2.bf16.msra.mxu0 %v4010
        %5675 = vmatprep.subr.bf16.mxu0 %v4009
        %5676 = vmatpush2.bf16.msra.mxu0 %v4008
        %5677 = vmatprep.subr.bf16.mxu0 %v4007
        %5678 = vmatpush2.bf16.msra.mxu0 %v4006
        %5679 = vmatprep.subr.bf16.mxu0 %v4005
        %5680 = vmatpush2.bf16.msra.mxu0 %v4004
        %5681 = vmatprep.subr.bf16.mxu0 %v4003
        %5682 = vmatpush2.bf16.msra.mxu0 %v4002
        %5683 = vmatprep.subr.bf16.mxu0 %v4001
        %5684 = vmatpush2.bf16.msra.mxu0 %v4000
        %5685 = vmatprep.subr.bf16.mxu0 %v3999
        %5686 = vmatpush2.bf16.msra.mxu0 %v3998
        %5687 = vmatprep.mubr.bf16.mxu0 %v1131
        %5688 = vmatmul.mubr.bf16.gmra.mxu0 %v1129
        %v5689 = vpop.f32.mrf.mxu0
        %v5690 = vadd.f32 %v5649, %v5689
        %v5691 = vpop.f32.mrf.mxu0
        %v5692 = vadd.f32 %v5651, %v5691
        %v5693 = vpop.f32.mrf.mxu0
        %v5694 = vpop.f32.mrf.mxu0
        %5695 = vdwg.mxu0
        %5696 = vmatprep.subr.bf16.mxu0 %v4029
        %5697 = vmatpush1.bf16.msra.mxu0 %v4028
        %5698 = vmatprep.subr.bf16.mxu0 %v4027
        %5699 = vmatpush1.bf16.msra.mxu0 %v4026
        %5700 = vmatprep.subr.bf16.mxu0 %v4025
        %5701 = vmatpush1.bf16.msra.mxu0 %v4024
        %5702 = vmatprep.subr.bf16.mxu0 %v4023
        %5703 = vmatpush1.bf16.msra.mxu0 %v4022
        %5704 = vmatprep.subr.bf16.mxu0 %v4021
        %5705 = vmatpush1.bf16.msra.mxu0 %v4020
        %5706 = vmatprep.subr.bf16.mxu0 %v4019
        %5707 = vmatpush1.bf16.msra.mxu0 %v4018
        %5708 = vmatprep.subr.bf16.mxu0 %v4017
        %5709 = vmatpush1.bf16.msra.mxu0 %v4016
        %5710 = vmatprep.subr.bf16.mxu0 %v4015
        %5711 = vmatpush1.bf16.msra.mxu0 %v4014
        %5712 = vmatprep.subr.bf16.mxu0 %v4045
        %5713 = vmatpush2.bf16.msra.mxu0 %v4044
        %5714 = vmatprep.subr.bf16.mxu0 %v4043
        %5715 = vmatpush2.bf16.msra.mxu0 %v4042
        %5716 = vmatprep.subr.bf16.mxu0 %v4041
        %5717 = vmatpush2.bf16.msra.mxu0 %v4040
        %5718 = vmatprep.subr.bf16.mxu0 %v4039
        %5719 = vmatpush2.bf16.msra.mxu0 %v4038
        %5720 = vmatprep.subr.bf16.mxu0 %v4037
        %5721 = vmatpush2.bf16.msra.mxu0 %v4036
        %5722 = vmatprep.subr.bf16.mxu0 %v4035
        %5723 = vmatpush2.bf16.msra.mxu0 %v4034
        %5724 = vmatprep.subr.bf16.mxu0 %v4033
        %5725 = vmatpush2.bf16.msra.mxu0 %v4032
        %5726 = vmatprep.subr.bf16.mxu0 %v4031
        %5727 = vmatpush2.bf16.msra.mxu0 %v4030
        %5728 = vmatprep.mubr.bf16.mxu0 %v1128
        %5729 = vmatmul.mubr.bf16.gmra.mxu0 %v1114
        %v5730 = vpop.f32.mrf.mxu0
        %v5731 = vadd.f32 %v5690, %v5730
        %v5732 = vpop.f32.mrf.mxu0
        %v5733 = vadd.f32 %v5692, %v5732
        %v5734 = vpop.f32.mrf.mxu0
        %v5735 = vpop.f32.mrf.mxu0
        %5736 = vdwg.mxu0
        %5737 = vmatprep.subr.bf16.mxu0 %v4061
        %5738 = vmatpush1.bf16.msra.mxu0 %v4060
        %5739 = vmatprep.subr.bf16.mxu0 %v4059
        %5740 = vmatpush1.bf16.msra.mxu0 %v4058
        %5741 = vmatprep.subr.bf16.mxu0 %v4057
        %5742 = vmatpush1.bf16.msra.mxu0 %v4056
        %5743 = vmatprep.subr.bf16.mxu0 %v4055
        %5744 = vmatpush1.bf16.msra.mxu0 %v4054
        %5745 = vmatprep.subr.bf16.mxu0 %v4053
        %5746 = vmatpush1.bf16.msra.mxu0 %v4052
        %5747 = vmatprep.subr.bf16.mxu0 %v4051
        %5748 = vmatpush1.bf16.msra.mxu0 %v4050
        %5749 = vmatprep.subr.bf16.mxu0 %v4049
        %5750 = vmatpush1.bf16.msra.mxu0 %v4048
        %5751 = vmatprep.subr.bf16.mxu0 %v4047
        %5752 = vmatpush1.bf16.msra.mxu0 %v4046
        %5753 = vmatprep.subr.bf16.mxu0 %v4077
        %5754 = vmatpush2.bf16.msra.mxu0 %v4076
        %5755 = vmatprep.subr.bf16.mxu0 %v4075
        %5756 = vmatpush2.bf16.msra.mxu0 %v4074
        %5757 = vmatprep.subr.bf16.mxu0 %v4073
        %5758 = vmatpush2.bf16.msra.mxu0 %v4072
        %5759 = vmatprep.subr.bf16.mxu0 %v4071
        %5760 = vmatpush2.bf16.msra.mxu0 %v4070
        %5761 = vmatprep.subr.bf16.mxu0 %v4069
        %5762 = vmatpush2.bf16.msra.mxu0 %v4068
        %5763 = vmatprep.subr.bf16.mxu0 %v4067
        %5764 = vmatpush2.bf16.msra.mxu0 %v4066
        %5765 = vmatprep.subr.bf16.mxu0 %v4065
        %5766 = vmatpush2.bf16.msra.mxu0 %v4064
        %5767 = vmatprep.subr.bf16.mxu0 %v4063
        %5768 = vmatpush2.bf16.msra.mxu0 %v4062
        %5769 = vmatprep.mubr.bf16.mxu0 %v1132
        %5770 = vmatmul.mubr.bf16.gmra.mxu0 %v1130
        %v5771 = vpop.f32.mrf.mxu0
        %v5772 = vadd.f32 %v5731, %v5771
        %v5773 = vpop.f32.mrf.mxu0
        %v5774 = vadd.f32 %v5733, %v5773
        %v5775 = vpop.f32.mrf.mxu0
        %v5776 = vpop.f32.mrf.mxu0
        %5777 = vdwg.mxu0
        %5778 = vmatprep.subr.bf16.mxu0 %v4093
        %5779 = vmatpush1.bf16.msra.mxu0 %v4092
        %5780 = vmatprep.subr.bf16.mxu0 %v4091
        %5781 = vmatpush1.bf16.msra.mxu0 %v4090
        %5782 = vmatprep.subr.bf16.mxu0 %v4089
        %5783 = vmatpush1.bf16.msra.mxu0 %v4088
        %5784 = vmatprep.subr.bf16.mxu0 %v4087
        %5785 = vmatpush1.bf16.msra.mxu0 %v4086
        %5786 = vmatprep.subr.bf16.mxu0 %v4085
        %5787 = vmatpush1.bf16.msra.mxu0 %v4084
        %5788 = vmatprep.subr.bf16.mxu0 %v4083
        %5789 = vmatpush1.bf16.msra.mxu0 %v4082
        %5790 = vmatprep.subr.bf16.mxu0 %v4081
        %5791 = vmatpush1.bf16.msra.mxu0 %v4080
        %5792 = vmatprep.subr.bf16.mxu0 %v4079
        %5793 = vmatpush1.bf16.msra.mxu0 %v4078
        %5794 = vmatprep.subr.bf16.mxu0 %v4109
        %5795 = vmatpush2.bf16.msra.mxu0 %v4108
        %5796 = vmatprep.subr.bf16.mxu0 %v4107
        %5797 = vmatpush2.bf16.msra.mxu0 %v4106
        %5798 = vmatprep.subr.bf16.mxu0 %v4105
        %5799 = vmatpush2.bf16.msra.mxu0 %v4104
        %5800 = vmatprep.subr.bf16.mxu0 %v4103
        %5801 = vmatpush2.bf16.msra.mxu0 %v4102
        %5802 = vmatprep.subr.bf16.mxu0 %v4101
        %5803 = vmatpush2.bf16.msra.mxu0 %v4100
        %5804 = vmatprep.subr.bf16.mxu0 %v4099
        %5805 = vmatpush2.bf16.msra.mxu0 %v4098
        %5806 = vmatprep.subr.bf16.mxu0 %v4097
        %5807 = vmatpush2.bf16.msra.mxu0 %v4096
        %5808 = vmatprep.subr.bf16.mxu0 %v4095
        %5809 = vmatpush2.bf16.msra.mxu0 %v4094
        %5810 = vmatprep.mubr.bf16.mxu0 %v1170
        %5811 = vmatmul.mubr.bf16.gmra.mxu0 %v1156
        %v5812 = vpop.f32.mrf.mxu0
        %v5813 = vadd.f32 %v5772, %v5812
        %v5814 = vpop.f32.mrf.mxu0
        %v5815 = vadd.f32 %v5774, %v5814
        %v5816 = vpop.f32.mrf.mxu0
        %v5817 = vpop.f32.mrf.mxu0
        %5818 = vdwg.mxu0
        %5819 = vmatprep.subr.bf16.mxu0 %v4125
        %5820 = vmatpush1.bf16.msra.mxu0 %v4124
        %5821 = vmatprep.subr.bf16.mxu0 %v4123
        %5822 = vmatpush1.bf16.msra.mxu0 %v4122
        %5823 = vmatprep.subr.bf16.mxu0 %v4121
        %5824 = vmatpush1.bf16.msra.mxu0 %v4120
        %5825 = vmatprep.subr.bf16.mxu0 %v4119
        %5826 = vmatpush1.bf16.msra.mxu0 %v4118
        %5827 = vmatprep.subr.bf16.mxu0 %v4117
        %5828 = vmatpush1.bf16.msra.mxu0 %v4116
        %5829 = vmatprep.subr.bf16.mxu0 %v4115
        %5830 = vmatpush1.bf16.msra.mxu0 %v4114
        %5831 = vmatprep.subr.bf16.mxu0 %v4113
        %5832 = vmatpush1.bf16.msra.mxu0 %v4112
        %5833 = vmatprep.subr.bf16.mxu0 %v4111
        %5834 = vmatpush1.bf16.msra.mxu0 %v4110
        %5835 = vmatprep.subr.bf16.mxu0 %v4141
        %5836 = vmatpush2.bf16.msra.mxu0 %v4140
        %5837 = vmatprep.subr.bf16.mxu0 %v4139
        %5838 = vmatpush2.bf16.msra.mxu0 %v4138
        %5839 = vmatprep.subr.bf16.mxu0 %v4137
        %5840 = vmatpush2.bf16.msra.mxu0 %v4136
        %5841 = vmatprep.subr.bf16.mxu0 %v4135
        %5842 = vmatpush2.bf16.msra.mxu0 %v4134
        %5843 = vmatprep.subr.bf16.mxu0 %v4133
        %5844 = vmatpush2.bf16.msra.mxu0 %v4132
        %5845 = vmatprep.subr.bf16.mxu0 %v4131
        %5846 = vmatpush2.bf16.msra.mxu0 %v4130
        %5847 = vmatprep.subr.bf16.mxu0 %v4129
        %5848 = vmatpush2.bf16.msra.mxu0 %v4128
        %5849 = vmatprep.subr.bf16.mxu0 %v4127
        %5850 = vmatpush2.bf16.msra.mxu0 %v4126
        %5851 = vmatprep.mubr.bf16.mxu0 %v1180
        %5852 = vmatmul.mubr.bf16.gmra.mxu0 %v1178
        %v5853 = vpop.f32.mrf.mxu0
        %v5854 = vadd.f32 %v5813, %v5853
        %v5855 = vpop.f32.mrf.mxu0
        %v5856 = vadd.f32 %v5815, %v5855
        %v5857 = vpop.f32.mrf.mxu0
        %v5858 = vpop.f32.mrf.mxu0
        %5859 = vdwg.mxu0
        %5860 = vmatprep.subr.bf16.mxu0 %v4157
        %5861 = vmatpush1.bf16.msra.mxu0 %v4156
        %5862 = vmatprep.subr.bf16.mxu0 %v4155
        %5863 = vmatpush1.bf16.msra.mxu0 %v4154
        %5864 = vmatprep.subr.bf16.mxu0 %v4153
        %5865 = vmatpush1.bf16.msra.mxu0 %v4152
        %5866 = vmatprep.subr.bf16.mxu0 %v4151
        %5867 = vmatpush1.bf16.msra.mxu0 %v4150
        %5868 = vmatprep.subr.bf16.mxu0 %v4149
        %5869 = vmatpush1.bf16.msra.mxu0 %v4148
        %5870 = vmatprep.subr.bf16.mxu0 %v4147
        %5871 = vmatpush1.bf16.msra.mxu0 %v4146
        %5872 = vmatprep.subr.bf16.mxu0 %v4145
        %5873 = vmatpush1.bf16.msra.mxu0 %v4144
        %5874 = vmatprep.subr.bf16.mxu0 %v4143
        %5875 = vmatpush1.bf16.msra.mxu0 %v4142
        %5876 = vmatprep.subr.bf16.mxu0 %v4173
        %5877 = vmatpush2.bf16.msra.mxu0 %v4172
        %5878 = vmatprep.subr.bf16.mxu0 %v4171
        %5879 = vmatpush2.bf16.msra.mxu0 %v4170
        %5880 = vmatprep.subr.bf16.mxu0 %v4169
        %5881 = vmatpush2.bf16.msra.mxu0 %v4168
        %5882 = vmatprep.subr.bf16.mxu0 %v4167
        %5883 = vmatpush2.bf16.msra.mxu0 %v4166
        %5884 = vmatprep.subr.bf16.mxu0 %v4165
        %5885 = vmatpush2.bf16.msra.mxu0 %v4164
        %5886 = vmatprep.subr.bf16.mxu0 %v4163
        %5887 = vmatpush2.bf16.msra.mxu0 %v4162
        %5888 = vmatprep.subr.bf16.mxu0 %v4161
        %5889 = vmatpush2.bf16.msra.mxu0 %v4160
        %5890 = vmatprep.subr.bf16.mxu0 %v4159
        %5891 = vmatpush2.bf16.msra.mxu0 %v4158
        %5892 = vmatprep.mubr.bf16.mxu0 %v1177
        %5893 = vmatmul.mubr.bf16.gmra.mxu0 %v1163
        %v5894 = vpop.f32.mrf.mxu0
        %v5895 = vadd.f32 %v5854, %v5894
        %v5896 = vpop.f32.mrf.mxu0
        %v5897 = vadd.f32 %v5856, %v5896
        %v5898 = vpop.f32.mrf.mxu0
        %v5899 = vpop.f32.mrf.mxu0
        %5900 = vdwg.mxu0
        %5901 = vmatprep.subr.bf16.mxu0 %v4189
        %5902 = vmatpush1.bf16.msra.mxu0 %v4188
        %5903 = vmatprep.subr.bf16.mxu0 %v4187
        %5904 = vmatpush1.bf16.msra.mxu0 %v4186
        %5905 = vmatprep.subr.bf16.mxu0 %v4185
        %5906 = vmatpush1.bf16.msra.mxu0 %v4184
        %5907 = vmatprep.subr.bf16.mxu0 %v4183
        %5908 = vmatpush1.bf16.msra.mxu0 %v4182
        %5909 = vmatprep.subr.bf16.mxu0 %v4181
        %5910 = vmatpush1.bf16.msra.mxu0 %v4180
        %5911 = vmatprep.subr.bf16.mxu0 %v4179
        %5912 = vmatpush1.bf16.msra.mxu0 %v4178
        %5913 = vmatprep.subr.bf16.mxu0 %v4177
        %5914 = vmatpush1.bf16.msra.mxu0 %v4176
        %5915 = vmatprep.subr.bf16.mxu0 %v4175
        %5916 = vmatpush1.bf16.msra.mxu0 %v4174
        %5917 = vmatprep.subr.bf16.mxu0 %v4205
        %5918 = vmatpush2.bf16.msra.mxu0 %v4204
        %5919 = vmatprep.subr.bf16.mxu0 %v4203
        %5920 = vmatpush2.bf16.msra.mxu0 %v4202
        %5921 = vmatprep.subr.bf16.mxu0 %v4201
        %5922 = vmatpush2.bf16.msra.mxu0 %v4200
        %5923 = vmatprep.subr.bf16.mxu0 %v4199
        %5924 = vmatpush2.bf16.msra.mxu0 %v4198
        %5925 = vmatprep.subr.bf16.mxu0 %v4197
        %5926 = vmatpush2.bf16.msra.mxu0 %v4196
        %5927 = vmatprep.subr.bf16.mxu0 %v4195
        %5928 = vmatpush2.bf16.msra.mxu0 %v4194
        %5929 = vmatprep.subr.bf16.mxu0 %v4193
        %5930 = vmatpush2.bf16.msra.mxu0 %v4192
        %5931 = vmatprep.subr.bf16.mxu0 %v4191
        %5932 = vmatpush2.bf16.msra.mxu0 %v4190
        %5933 = vmatprep.mubr.bf16.mxu0 %v1181
        %5934 = vmatmul.mubr.bf16.gmra.mxu0 %v1179
        %v5935 = vpop.f32.mrf.mxu0
        %v5936 = vadd.f32 %v5895, %v5935
        %v5937 = vpop.f32.mrf.mxu0
        %v5938 = vadd.f32 %v5897, %v5937
        %v5939 = vpop.f32.mrf.mxu0
        %v5940 = vpop.f32.mrf.mxu0
        %5941 = vdwg.mxu0
        %5942 = vmatprep.subr.bf16.mxu0 %v4221
        %5943 = vmatpush1.bf16.msra.mxu0 %v4220
        %5944 = vmatprep.subr.bf16.mxu0 %v4219
        %5945 = vmatpush1.bf16.msra.mxu0 %v4218
        %5946 = vmatprep.subr.bf16.mxu0 %v4217
        %5947 = vmatpush1.bf16.msra.mxu0 %v4216
        %5948 = vmatprep.subr.bf16.mxu0 %v4215
        %5949 = vmatpush1.bf16.msra.mxu0 %v4214
        %5950 = vmatprep.subr.bf16.mxu0 %v4213
        %5951 = vmatpush1.bf16.msra.mxu0 %v4212
        %5952 = vmatprep.subr.bf16.mxu0 %v4211
        %5953 = vmatpush1.bf16.msra.mxu0 %v4210
        %5954 = vmatprep.subr.bf16.mxu0 %v4209
        %5955 = vmatpush1.bf16.msra.mxu0 %v4208
        %5956 = vmatprep.subr.bf16.mxu0 %v4207
        %5957 = vmatpush1.bf16.msra.mxu0 %v4206
        %5958 = vmatprep.subr.bf16.mxu0 %v4237
        %5959 = vmatpush2.bf16.msra.mxu0 %v4236
        %5960 = vmatprep.subr.bf16.mxu0 %v4235
        %5961 = vmatpush2.bf16.msra.mxu0 %v4234
        %5962 = vmatprep.subr.bf16.mxu0 %v4233
        %5963 = vmatpush2.bf16.msra.mxu0 %v4232
        %5964 = vmatprep.subr.bf16.mxu0 %v4231
        %5965 = vmatpush2.bf16.msra.mxu0 %v4230
        %5966 = vmatprep.subr.bf16.mxu0 %v4229
        %5967 = vmatpush2.bf16.msra.mxu0 %v4228
        %5968 = vmatprep.subr.bf16.mxu0 %v4227
        %5969 = vmatpush2.bf16.msra.mxu0 %v4226
        %5970 = vmatprep.subr.bf16.mxu0 %v4225
        %5971 = vmatpush2.bf16.msra.mxu0 %v4224
        %5972 = vmatprep.subr.bf16.mxu0 %v4223
        %5973 = vmatpush2.bf16.msra.mxu0 %v4222
        %5974 = vmatprep.mubr.bf16.mxu0 %v1219
        %5975 = vmatmul.mubr.bf16.gmra.mxu0 %v1205
        %v5976 = vpop.f32.mrf.mxu0
        %v5977 = vadd.f32 %v5936, %v5976
        %v5978 = vpop.f32.mrf.mxu0
        %v5979 = vadd.f32 %v5938, %v5978
        %v5980 = vpop.f32.mrf.mxu0
        %v5981 = vpop.f32.mrf.mxu0
        %5982 = vdwg.mxu0
        %5983 = vmatprep.subr.bf16.mxu0 %v4253
        %5984 = vmatpush1.bf16.msra.mxu0 %v4252
        %5985 = vmatprep.subr.bf16.mxu0 %v4251
        %5986 = vmatpush1.bf16.msra.mxu0 %v4250
        %5987 = vmatprep.subr.bf16.mxu0 %v4249
        %5988 = vmatpush1.bf16.msra.mxu0 %v4248
        %5989 = vmatprep.subr.bf16.mxu0 %v4247
        %5990 = vmatpush1.bf16.msra.mxu0 %v4246
        %5991 = vmatprep.subr.bf16.mxu0 %v4245
        %5992 = vmatpush1.bf16.msra.mxu0 %v4244
        %5993 = vmatprep.subr.bf16.mxu0 %v4243
        %5994 = vmatpush1.bf16.msra.mxu0 %v4242
        %5995 = vmatprep.subr.bf16.mxu0 %v4241
        %5996 = vmatpush1.bf16.msra.mxu0 %v4240
        %5997 = vmatprep.subr.bf16.mxu0 %v4239
        %5998 = vmatpush1.bf16.msra.mxu0 %v4238
        %5999 = vmatprep.subr.bf16.mxu0 %v4269
        %6000 = vmatpush2.bf16.msra.mxu0 %v4268
        %6001 = vmatprep.subr.bf16.mxu0 %v4267
        %6002 = vmatpush2.bf16.msra.mxu0 %v4266
        %6003 = vmatprep.subr.bf16.mxu0 %v4265
        %6004 = vmatpush2.bf16.msra.mxu0 %v4264
        %6005 = vmatprep.subr.bf16.mxu0 %v4263
        %6006 = vmatpush2.bf16.msra.mxu0 %v4262
        %6007 = vmatprep.subr.bf16.mxu0 %v4261
        %6008 = vmatpush2.bf16.msra.mxu0 %v4260
        %6009 = vmatprep.subr.bf16.mxu0 %v4259
        %6010 = vmatpush2.bf16.msra.mxu0 %v4258
        %6011 = vmatprep.subr.bf16.mxu0 %v4257
        %6012 = vmatpush2.bf16.msra.mxu0 %v4256
        %6013 = vmatprep.subr.bf16.mxu0 %v4255
        %6014 = vmatpush2.bf16.msra.mxu0 %v4254
        %6015 = vmatprep.mubr.bf16.mxu0 %v1229
        %6016 = vmatmul.mubr.bf16.gmra.mxu0 %v1227
        %v6017 = vpop.f32.mrf.mxu0
        %v6018 = vadd.f32 %v5977, %v6017
        %v6019 = vpop.f32.mrf.mxu0
        %v6020 = vadd.f32 %v5979, %v6019
        %v6021 = vpop.f32.mrf.mxu0
        %v6022 = vpop.f32.mrf.mxu0
        %6023 = vdwg.mxu0
        %6024 = vmatprep.subr.bf16.mxu0 %v4285
        %6025 = vmatpush1.bf16.msra.mxu0 %v4284
        %6026 = vmatprep.subr.bf16.mxu0 %v4283
        %6027 = vmatpush1.bf16.msra.mxu0 %v4282
        %6028 = vmatprep.subr.bf16.mxu0 %v4281
        %6029 = vmatpush1.bf16.msra.mxu0 %v4280
        %6030 = vmatprep.subr.bf16.mxu0 %v4279
        %6031 = vmatpush1.bf16.msra.mxu0 %v4278
        %6032 = vmatprep.subr.bf16.mxu0 %v4277
        %6033 = vmatpush1.bf16.msra.mxu0 %v4276
        %6034 = vmatprep.subr.bf16.mxu0 %v4275
        %6035 = vmatpush1.bf16.msra.mxu0 %v4274
        %6036 = vmatprep.subr.bf16.mxu0 %v4273
        %6037 = vmatpush1.bf16.msra.mxu0 %v4272
        %6038 = vmatprep.subr.bf16.mxu0 %v4271
        %6039 = vmatpush1.bf16.msra.mxu0 %v4270
        %6040 = vmatprep.subr.bf16.mxu0 %v4301
        %6041 = vmatpush2.bf16.msra.mxu0 %v4300
        %6042 = vmatprep.subr.bf16.mxu0 %v4299
        %6043 = vmatpush2.bf16.msra.mxu0 %v4298
        %6044 = vmatprep.subr.bf16.mxu0 %v4297
        %6045 = vmatpush2.bf16.msra.mxu0 %v4296
        %6046 = vmatprep.subr.bf16.mxu0 %v4295
        %6047 = vmatpush2.bf16.msra.mxu0 %v4294
        %6048 = vmatprep.subr.bf16.mxu0 %v4293
        %6049 = vmatpush2.bf16.msra.mxu0 %v4292
        %6050 = vmatprep.subr.bf16.mxu0 %v4291
        %6051 = vmatpush2.bf16.msra.mxu0 %v4290
        %6052 = vmatprep.subr.bf16.mxu0 %v4289
        %6053 = vmatpush2.bf16.msra.mxu0 %v4288
        %6054 = vmatprep.subr.bf16.mxu0 %v4287
        %6055 = vmatpush2.bf16.msra.mxu0 %v4286
        %6056 = vmatprep.mubr.bf16.mxu0 %v1226
        %6057 = vmatmul.mubr.bf16.gmra.mxu0 %v1212
        %v6058 = vpop.f32.mrf.mxu0
        %v6059 = vadd.f32 %v6018, %v6058
        %v6060 = vpop.f32.mrf.mxu0
        %v6061 = vadd.f32 %v6020, %v6060
        %v6062 = vpop.f32.mrf.mxu0
        %v6063 = vpop.f32.mrf.mxu0
        %6064 = vdwg.mxu0
        %6065 = vmatprep.subr.bf16.mxu0 %v4317
        %6066 = vmatpush1.bf16.msra.mxu0 %v4316
        %6067 = vmatprep.subr.bf16.mxu0 %v4315
        %6068 = vmatpush1.bf16.msra.mxu0 %v4314
        %6069 = vmatprep.subr.bf16.mxu0 %v4313
        %6070 = vmatpush1.bf16.msra.mxu0 %v4312
        %6071 = vmatprep.subr.bf16.mxu0 %v4311
        %6072 = vmatpush1.bf16.msra.mxu0 %v4310
        %6073 = vmatprep.subr.bf16.mxu0 %v4309
        %6074 = vmatpush1.bf16.msra.mxu0 %v4308
        %6075 = vmatprep.subr.bf16.mxu0 %v4307
        %6076 = vmatpush1.bf16.msra.mxu0 %v4306
        %6077 = vmatprep.subr.bf16.mxu0 %v4305
        %6078 = vmatpush1.bf16.msra.mxu0 %v4304
        %6079 = vmatprep.subr.bf16.mxu0 %v4303
        %6080 = vmatpush1.bf16.msra.mxu0 %v4302
        %6081 = vmatprep.subr.bf16.mxu0 %v4333
        %6082 = vmatpush2.bf16.msra.mxu0 %v4332
        %6083 = vmatprep.subr.bf16.mxu0 %v4331
        %6084 = vmatpush2.bf16.msra.mxu0 %v4330
        %6085 = vmatprep.subr.bf16.mxu0 %v4329
        %6086 = vmatpush2.bf16.msra.mxu0 %v4328
        %6087 = vmatprep.subr.bf16.mxu0 %v4327
        %6088 = vmatpush2.bf16.msra.mxu0 %v4326
        %6089 = vmatprep.subr.bf16.mxu0 %v4325
        %6090 = vmatpush2.bf16.msra.mxu0 %v4324
        %6091 = vmatprep.subr.bf16.mxu0 %v4323
        %6092 = vmatpush2.bf16.msra.mxu0 %v4322
        %6093 = vmatprep.subr.bf16.mxu0 %v4321
        %6094 = vmatpush2.bf16.msra.mxu0 %v4320
        %6095 = vmatprep.subr.bf16.mxu0 %v4319
        %6096 = vmatpush2.bf16.msra.mxu0 %v4318
        %6097 = vmatprep.mubr.bf16.mxu0 %v1230
        %6098 = vmatmul.mubr.bf16.gmra.mxu0 %v1228
        %v6099 = vpop.f32.mrf.mxu0
        %v6100 = vadd.f32 %v6059, %v6099
        %v6101 = vpop.f32.mrf.mxu0
        %v6102 = vadd.f32 %v6061, %v6101
        %v6103 = vpop.f32.mrf.mxu0
        %v6104 = vpop.f32.mrf.mxu0
        %6105 = vdwg.mxu0
        %6106 = vmatprep.subr.bf16.mxu0 %v4349
        %6107 = vmatpush1.bf16.msra.mxu0 %v4348
        %6108 = vmatprep.subr.bf16.mxu0 %v4347
        %6109 = vmatpush1.bf16.msra.mxu0 %v4346
        %6110 = vmatprep.subr.bf16.mxu0 %v4345
        %6111 = vmatpush1.bf16.msra.mxu0 %v4344
        %6112 = vmatprep.subr.bf16.mxu0 %v4343
        %6113 = vmatpush1.bf16.msra.mxu0 %v4342
        %6114 = vmatprep.subr.bf16.mxu0 %v4341
        %6115 = vmatpush1.bf16.msra.mxu0 %v4340
        %6116 = vmatprep.subr.bf16.mxu0 %v4339
        %6117 = vmatpush1.bf16.msra.mxu0 %v4338
        %6118 = vmatprep.subr.bf16.mxu0 %v4337
        %6119 = vmatpush1.bf16.msra.mxu0 %v4336
        %6120 = vmatprep.subr.bf16.mxu0 %v4335
        %6121 = vmatpush1.bf16.msra.mxu0 %v4334
        %6122 = vmatprep.subr.bf16.mxu0 %v4365
        %6123 = vmatpush2.bf16.msra.mxu0 %v4364
        %6124 = vmatprep.subr.bf16.mxu0 %v4363
        %6125 = vmatpush2.bf16.msra.mxu0 %v4362
        %6126 = vmatprep.subr.bf16.mxu0 %v4361
        %6127 = vmatpush2.bf16.msra.mxu0 %v4360
        %6128 = vmatprep.subr.bf16.mxu0 %v4359
        %6129 = vmatpush2.bf16.msra.mxu0 %v4358
        %6130 = vmatprep.subr.bf16.mxu0 %v4357
        %6131 = vmatpush2.bf16.msra.mxu0 %v4356
        %6132 = vmatprep.subr.bf16.mxu0 %v4355
        %6133 = vmatpush2.bf16.msra.mxu0 %v4354
        %6134 = vmatprep.subr.bf16.mxu0 %v4353
        %6135 = vmatpush2.bf16.msra.mxu0 %v4352
        %6136 = vmatprep.subr.bf16.mxu0 %v4351
        %6137 = vmatpush2.bf16.msra.mxu0 %v4350
        %6138 = vmatprep.mubr.bf16.mxu0 %v1268
        %6139 = vmatmul.mubr.bf16.gmra.mxu0 %v1254
        %v6140 = vpop.f32.mrf.mxu0
        %v6141 = vadd.f32 %v6100, %v6140
        %v6142 = vpop.f32.mrf.mxu0
        %v6143 = vadd.f32 %v6102, %v6142
        %v6144 = vpop.f32.mrf.mxu0
        %v6145 = vpop.f32.mrf.mxu0
        %6146 = vdwg.mxu0
        %6147 = vmatprep.subr.bf16.mxu0 %v4381
        %6148 = vmatpush1.bf16.msra.mxu0 %v4380
        %6149 = vmatprep.subr.bf16.mxu0 %v4379
        %6150 = vmatpush1.bf16.msra.mxu0 %v4378
        %6151 = vmatprep.subr.bf16.mxu0 %v4377
        %6152 = vmatpush1.bf16.msra.mxu0 %v4376
        %6153 = vmatprep.subr.bf16.mxu0 %v4375
        %6154 = vmatpush1.bf16.msra.mxu0 %v4374
        %6155 = vmatprep.subr.bf16.mxu0 %v4373
        %6156 = vmatpush1.bf16.msra.mxu0 %v4372
        %6157 = vmatprep.subr.bf16.mxu0 %v4371
        %6158 = vmatpush1.bf16.msra.mxu0 %v4370
        %6159 = vmatprep.subr.bf16.mxu0 %v4369
        %6160 = vmatpush1.bf16.msra.mxu0 %v4368
        %6161 = vmatprep.subr.bf16.mxu0 %v4367
        %6162 = vmatpush1.bf16.msra.mxu0 %v4366
        %6163 = vmatprep.subr.bf16.mxu0 %v4397
        %6164 = vmatpush2.bf16.msra.mxu0 %v4396
        %6165 = vmatprep.subr.bf16.mxu0 %v4395
        %6166 = vmatpush2.bf16.msra.mxu0 %v4394
        %6167 = vmatprep.subr.bf16.mxu0 %v4393
        %6168 = vmatpush2.bf16.msra.mxu0 %v4392
        %6169 = vmatprep.subr.bf16.mxu0 %v4391
        %6170 = vmatpush2.bf16.msra.mxu0 %v4390
        %6171 = vmatprep.subr.bf16.mxu0 %v4389
        %6172 = vmatpush2.bf16.msra.mxu0 %v4388
        %6173 = vmatprep.subr.bf16.mxu0 %v4387
        %6174 = vmatpush2.bf16.msra.mxu0 %v4386
        %6175 = vmatprep.subr.bf16.mxu0 %v4385
        %6176 = vmatpush2.bf16.msra.mxu0 %v4384
        %6177 = vmatprep.subr.bf16.mxu0 %v4383
        %6178 = vmatpush2.bf16.msra.mxu0 %v4382
        %6179 = vmatprep.mubr.bf16.mxu0 %v1278
        %6180 = vmatmul.mubr.bf16.gmra.mxu0 %v1276
        %v6181 = vpop.f32.mrf.mxu0
        %v6182 = vadd.f32 %v6141, %v6181
        %v6183 = vpop.f32.mrf.mxu0
        %v6184 = vadd.f32 %v6143, %v6183
        %v6185 = vpop.f32.mrf.mxu0
        %v6186 = vpop.f32.mrf.mxu0
        %6187 = vdwg.mxu0
        %6188 = vmatprep.subr.bf16.mxu0 %v4413
        %6189 = vmatpush1.bf16.msra.mxu0 %v4412
        %6190 = vmatprep.subr.bf16.mxu0 %v4411
        %6191 = vmatpush1.bf16.msra.mxu0 %v4410
        %6192 = vmatprep.subr.bf16.mxu0 %v4409
        %6193 = vmatpush1.bf16.msra.mxu0 %v4408
        %6194 = vmatprep.subr.bf16.mxu0 %v4407
        %6195 = vmatpush1.bf16.msra.mxu0 %v4406
        %6196 = vmatprep.subr.bf16.mxu0 %v4405
        %6197 = vmatpush1.bf16.msra.mxu0 %v4404
        %6198 = vmatprep.subr.bf16.mxu0 %v4403
        %6199 = vmatpush1.bf16.msra.mxu0 %v4402
        %6200 = vmatprep.subr.bf16.mxu0 %v4401
        %6201 = vmatpush1.bf16.msra.mxu0 %v4400
        %6202 = vmatprep.subr.bf16.mxu0 %v4399
        %6203 = vmatpush1.bf16.msra.mxu0 %v4398
        %6204 = vmatprep.subr.bf16.mxu0 %v4429
        %6205 = vmatpush2.bf16.msra.mxu0 %v4428
        %6206 = vmatprep.subr.bf16.mxu0 %v4427
        %6207 = vmatpush2.bf16.msra.mxu0 %v4426
        %6208 = vmatprep.subr.bf16.mxu0 %v4425
        %6209 = vmatpush2.bf16.msra.mxu0 %v4424
        %6210 = vmatprep.subr.bf16.mxu0 %v4423
        %6211 = vmatpush2.bf16.msra.mxu0 %v4422
        %6212 = vmatprep.subr.bf16.mxu0 %v4421
        %6213 = vmatpush2.bf16.msra.mxu0 %v4420
        %6214 = vmatprep.subr.bf16.mxu0 %v4419
        %6215 = vmatpush2.bf16.msra.mxu0 %v4418
        %6216 = vmatprep.subr.bf16.mxu0 %v4417
        %6217 = vmatpush2.bf16.msra.mxu0 %v4416
        %6218 = vmatprep.subr.bf16.mxu0 %v4415
        %6219 = vmatpush2.bf16.msra.mxu0 %v4414
        %6220 = vmatprep.mubr.bf16.mxu0 %v1275
        %6221 = vmatmul.mubr.bf16.gmra.mxu0 %v1261
        %v6222 = vpop.f32.mrf.mxu0
        %v6223 = vadd.f32 %v6182, %v6222
        %v6224 = vpop.f32.mrf.mxu0
        %v6225 = vadd.f32 %v6184, %v6224
        %v6226 = vpop.f32.mrf.mxu0
        %v6227 = vpop.f32.mrf.mxu0
        %6228 = vdwg.mxu0
        %6229 = vmatprep.subr.bf16.mxu0 %v4445
        %6230 = vmatpush1.bf16.msra.mxu0 %v4444
        %6231 = vmatprep.subr.bf16.mxu0 %v4443
        %6232 = vmatpush1.bf16.msra.mxu0 %v4442
        %6233 = vmatprep.subr.bf16.mxu0 %v4441
        %6234 = vmatpush1.bf16.msra.mxu0 %v4440
        %6235 = vmatprep.subr.bf16.mxu0 %v4439
        %6236 = vmatpush1.bf16.msra.mxu0 %v4438
        %6237 = vmatprep.subr.bf16.mxu0 %v4437
        %6238 = vmatpush1.bf16.msra.mxu0 %v4436
        %6239 = vmatprep.subr.bf16.mxu0 %v4435
        %6240 = vmatpush1.bf16.msra.mxu0 %v4434
        %6241 = vmatprep.subr.bf16.mxu0 %v4433
        %6242 = vmatpush1.bf16.msra.mxu0 %v4432
        %6243 = vmatprep.subr.bf16.mxu0 %v4431
        %6244 = vmatpush1.bf16.msra.mxu0 %v4430
        %6245 = vmatprep.subr.bf16.mxu0 %v4461
        %6246 = vmatpush2.bf16.msra.mxu0 %v4460
        %6247 = vmatprep.subr.bf16.mxu0 %v4459
        %6248 = vmatpush2.bf16.msra.mxu0 %v4458
        %6249 = vmatprep.subr.bf16.mxu0 %v4457
        %6250 = vmatpush2.bf16.msra.mxu0 %v4456
        %6251 = vmatprep.subr.bf16.mxu0 %v4455
        %6252 = vmatpush2.bf16.msra.mxu0 %v4454
        %6253 = vmatprep.subr.bf16.mxu0 %v4453
        %6254 = vmatpush2.bf16.msra.mxu0 %v4452
        %6255 = vmatprep.subr.bf16.mxu0 %v4451
        %6256 = vmatpush2.bf16.msra.mxu0 %v4450
        %6257 = vmatprep.subr.bf16.mxu0 %v4449
        %6258 = vmatpush2.bf16.msra.mxu0 %v4448
        %6259 = vmatprep.subr.bf16.mxu0 %v4447
        %6260 = vmatpush2.bf16.msra.mxu0 %v4446
        %6261 = vmatprep.mubr.bf16.mxu0 %v1279
        %6262 = vmatmul.mubr.bf16.gmra.mxu0 %v1277
        %v6263 = vpop.f32.mrf.mxu0
        %v6264 = vadd.f32 %v6223, %v6263
        %v6265 = vpop.f32.mrf.mxu0
        %v6266 = vadd.f32 %v6225, %v6265
        %v6267 = vpop.f32.mrf.mxu0
        %v6268 = vpop.f32.mrf.mxu0
        %6269 = vdwg.mxu0
        %6270 = vmatprep.subr.bf16.mxu0 %v4477
        %6271 = vmatpush1.bf16.msra.mxu0 %v4476
        %6272 = vmatprep.subr.bf16.mxu0 %v4475
        %6273 = vmatpush1.bf16.msra.mxu0 %v4474
        %6274 = vmatprep.subr.bf16.mxu0 %v4473
        %6275 = vmatpush1.bf16.msra.mxu0 %v4472
        %6276 = vmatprep.subr.bf16.mxu0 %v4471
        %6277 = vmatpush1.bf16.msra.mxu0 %v4470
        %6278 = vmatprep.subr.bf16.mxu0 %v4469
        %6279 = vmatpush1.bf16.msra.mxu0 %v4468
        %6280 = vmatprep.subr.bf16.mxu0 %v4467
        %6281 = vmatpush1.bf16.msra.mxu0 %v4466
        %6282 = vmatprep.subr.bf16.mxu0 %v4465
        %6283 = vmatpush1.bf16.msra.mxu0 %v4464
        %6284 = vmatprep.subr.bf16.mxu0 %v4463
        %6285 = vmatpush1.bf16.msra.mxu0 %v4462
        %6286 = vmatprep.subr.bf16.mxu0 %v4493
        %6287 = vmatpush2.bf16.msra.mxu0 %v4492
        %6288 = vmatprep.subr.bf16.mxu0 %v4491
        %6289 = vmatpush2.bf16.msra.mxu0 %v4490
        %6290 = vmatprep.subr.bf16.mxu0 %v4489
        %6291 = vmatpush2.bf16.msra.mxu0 %v4488
        %6292 = vmatprep.subr.bf16.mxu0 %v4487
        %6293 = vmatpush2.bf16.msra.mxu0 %v4486
        %6294 = vmatprep.subr.bf16.mxu0 %v4485
        %6295 = vmatpush2.bf16.msra.mxu0 %v4484
        %6296 = vmatprep.subr.bf16.mxu0 %v4483
        %6297 = vmatpush2.bf16.msra.mxu0 %v4482
        %6298 = vmatprep.subr.bf16.mxu0 %v4481
        %6299 = vmatpush2.bf16.msra.mxu0 %v4480
        %6300 = vmatprep.subr.bf16.mxu0 %v4479
        %6301 = vmatpush2.bf16.msra.mxu0 %v4478
        %6302 = vmatprep.mubr.bf16.mxu0 %v1317
        %6303 = vmatmul.mubr.bf16.gmra.mxu0 %v1303
        %v6304 = vpop.f32.mrf.mxu0
        %v6305 = vadd.f32 %v6264, %v6304
        %v6306 = vpop.f32.mrf.mxu0
        %v6307 = vadd.f32 %v6266, %v6306
        %v6308 = vpop.f32.mrf.mxu0
        %v6309 = vpop.f32.mrf.mxu0
        %6310 = vdwg.mxu0
        %6311 = vmatprep.subr.bf16.mxu0 %v4509
        %6312 = vmatpush1.bf16.msra.mxu0 %v4508
        %6313 = vmatprep.subr.bf16.mxu0 %v4507
        %6314 = vmatpush1.bf16.msra.mxu0 %v4506
        %6315 = vmatprep.subr.bf16.mxu0 %v4505
        %6316 = vmatpush1.bf16.msra.mxu0 %v4504
        %6317 = vmatprep.subr.bf16.mxu0 %v4503
        %6318 = vmatpush1.bf16.msra.mxu0 %v4502
        %6319 = vmatprep.subr.bf16.mxu0 %v4501
        %6320 = vmatpush1.bf16.msra.mxu0 %v4500
        %6321 = vmatprep.subr.bf16.mxu0 %v4499
        %6322 = vmatpush1.bf16.msra.mxu0 %v4498
        %6323 = vmatprep.subr.bf16.mxu0 %v4497
        %6324 = vmatpush1.bf16.msra.mxu0 %v4496
        %6325 = vmatprep.subr.bf16.mxu0 %v4495
        %6326 = vmatpush1.bf16.msra.mxu0 %v4494
        %6327 = vmatprep.subr.bf16.mxu0 %v4525
        %6328 = vmatpush2.bf16.msra.mxu0 %v4524
        %6329 = vmatprep.subr.bf16.mxu0 %v4523
        %6330 = vmatpush2.bf16.msra.mxu0 %v4522
        %6331 = vmatprep.subr.bf16.mxu0 %v4521
        %6332 = vmatpush2.bf16.msra.mxu0 %v4520
        %6333 = vmatprep.subr.bf16.mxu0 %v4519
        %6334 = vmatpush2.bf16.msra.mxu0 %v4518
        %6335 = vmatprep.subr.bf16.mxu0 %v4517
        %6336 = vmatpush2.bf16.msra.mxu0 %v4516
        %6337 = vmatprep.subr.bf16.mxu0 %v4515
        %6338 = vmatpush2.bf16.msra.mxu0 %v4514
        %6339 = vmatprep.subr.bf16.mxu0 %v4513
        %6340 = vmatpush2.bf16.msra.mxu0 %v4512
        %6341 = vmatprep.subr.bf16.mxu0 %v4511
        %6342 = vmatpush2.bf16.msra.mxu0 %v4510
        %6343 = vmatprep.mubr.bf16.mxu0 %v1327
        %6344 = vmatmul.mubr.bf16.gmra.mxu0 %v1325
        %v6345 = vpop.f32.mrf.mxu0
        %v6346 = vadd.f32 %v6305, %v6345
        %v6347 = vpop.f32.mrf.mxu0
        %v6348 = vadd.f32 %v6307, %v6347
        %v6349 = vpop.f32.mrf.mxu0
        %v6350 = vpop.f32.mrf.mxu0
        %6351 = vdwg.mxu0
        %6352 = vmatprep.subr.bf16.mxu0 %v4541
        %6353 = vmatpush1.bf16.msra.mxu0 %v4540
        %6354 = vmatprep.subr.bf16.mxu0 %v4539
        %6355 = vmatpush1.bf16.msra.mxu0 %v4538
        %6356 = vmatprep.subr.bf16.mxu0 %v4537
        %6357 = vmatpush1.bf16.msra.mxu0 %v4536
        %6358 = vmatprep.subr.bf16.mxu0 %v4535
        %6359 = vmatpush1.bf16.msra.mxu0 %v4534
        %6360 = vmatprep.subr.bf16.mxu0 %v4533
        %6361 = vmatpush1.bf16.msra.mxu0 %v4532
        %6362 = vmatprep.subr.bf16.mxu0 %v4531
        %6363 = vmatpush1.bf16.msra.mxu0 %v4530
        %6364 = vmatprep.subr.bf16.mxu0 %v4529
        %6365 = vmatpush1.bf16.msra.mxu0 %v4528
        %6366 = vmatprep.subr.bf16.mxu0 %v4527
        %6367 = vmatpush1.bf16.msra.mxu0 %v4526
        %6368 = vmatprep.subr.bf16.mxu0 %v4557
        %6369 = vmatpush2.bf16.msra.mxu0 %v4556
        %6370 = vmatprep.subr.bf16.mxu0 %v4555
        %6371 = vmatpush2.bf16.msra.mxu0 %v4554
        %6372 = vmatprep.subr.bf16.mxu0 %v4553
        %6373 = vmatpush2.bf16.msra.mxu0 %v4552
        %6374 = vmatprep.subr.bf16.mxu0 %v4551
        %6375 = vmatpush2.bf16.msra.mxu0 %v4550
        %6376 = vmatprep.subr.bf16.mxu0 %v4549
        %6377 = vmatpush2.bf16.msra.mxu0 %v4548
        %6378 = vmatprep.subr.bf16.mxu0 %v4547
        %6379 = vmatpush2.bf16.msra.mxu0 %v4546
        %6380 = vmatprep.subr.bf16.mxu0 %v4545
        %6381 = vmatpush2.bf16.msra.mxu0 %v4544
        %6382 = vmatprep.subr.bf16.mxu0 %v4543
        %6383 = vmatpush2.bf16.msra.mxu0 %v4542
        %6384 = vmatprep.mubr.bf16.mxu0 %v1324
        %6385 = vmatmul.mubr.bf16.gmra.mxu0 %v1310
        %v6386 = vpop.f32.mrf.mxu0
        %v6387 = vadd.f32 %v6346, %v6386
        %v6388 = vpop.f32.mrf.mxu0
        %v6389 = vadd.f32 %v6348, %v6388
        %v6390 = vpop.f32.mrf.mxu0
        %v6391 = vpop.f32.mrf.mxu0
        %6392 = vdwg.mxu0
        %6393 = vmatprep.subr.bf16.mxu0 %v4573
        %6394 = vmatpush1.bf16.msra.mxu0 %v4572
        %6395 = vmatprep.subr.bf16.mxu0 %v4571
        %6396 = vmatpush1.bf16.msra.mxu0 %v4570
        %6397 = vmatprep.subr.bf16.mxu0 %v4569
        %6398 = vmatpush1.bf16.msra.mxu0 %v4568
        %6399 = vmatprep.subr.bf16.mxu0 %v4567
        %6400 = vmatpush1.bf16.msra.mxu0 %v4566
        %6401 = vmatprep.subr.bf16.mxu0 %v4565
        %6402 = vmatpush1.bf16.msra.mxu0 %v4564
        %6403 = vmatprep.subr.bf16.mxu0 %v4563
        %6404 = vmatpush1.bf16.msra.mxu0 %v4562
        %6405 = vmatprep.subr.bf16.mxu0 %v4561
        %6406 = vmatpush1.bf16.msra.mxu0 %v4560
        %6407 = vmatprep.subr.bf16.mxu0 %v4559
        %6408 = vmatpush1.bf16.msra.mxu0 %v4558
        %6409 = vmatprep.subr.bf16.mxu0 %v4589
        %6410 = vmatpush2.bf16.msra.mxu0 %v4588
        %6411 = vmatprep.subr.bf16.mxu0 %v4587
        %6412 = vmatpush2.bf16.msra.mxu0 %v4586
        %6413 = vmatprep.subr.bf16.mxu0 %v4585
        %6414 = vmatpush2.bf16.msra.mxu0 %v4584
        %6415 = vmatprep.subr.bf16.mxu0 %v4583
        %6416 = vmatpush2.bf16.msra.mxu0 %v4582
        %6417 = vmatprep.subr.bf16.mxu0 %v4581
        %6418 = vmatpush2.bf16.msra.mxu0 %v4580
        %6419 = vmatprep.subr.bf16.mxu0 %v4579
        %6420 = vmatpush2.bf16.msra.mxu0 %v4578
        %6421 = vmatprep.subr.bf16.mxu0 %v4577
        %6422 = vmatpush2.bf16.msra.mxu0 %v4576
        %6423 = vmatprep.subr.bf16.mxu0 %v4575
        %6424 = vmatpush2.bf16.msra.mxu0 %v4574
        %6425 = vmatprep.mubr.bf16.mxu0 %v1328
        %6426 = vmatmul.mubr.bf16.gmra.mxu0 %v1326
        %v6427 = vpop.f32.mrf.mxu0
        %v6428 = vadd.f32 %v6387, %v6427
        %v6429 = vpop.f32.mrf.mxu0
        %v6430 = vadd.f32 %v6389, %v6429
        %v6431 = vpop.f32.mrf.mxu0
        %v6432 = vpop.f32.mrf.mxu0
        %6433 = vdwg.mxu0
        %6434 = vmatprep.subr.bf16.mxu0 %v4605
        %6435 = vmatpush1.bf16.msra.mxu0 %v4604
        %6436 = vmatprep.subr.bf16.mxu0 %v4603
        %6437 = vmatpush1.bf16.msra.mxu0 %v4602
        %6438 = vmatprep.subr.bf16.mxu0 %v4601
        %6439 = vmatpush1.bf16.msra.mxu0 %v4600
        %6440 = vmatprep.subr.bf16.mxu0 %v4599
        %6441 = vmatpush1.bf16.msra.mxu0 %v4598
        %6442 = vmatprep.subr.bf16.mxu0 %v4597
        %6443 = vmatpush1.bf16.msra.mxu0 %v4596
        %6444 = vmatprep.subr.bf16.mxu0 %v4595
        %6445 = vmatpush1.bf16.msra.mxu0 %v4594
        %6446 = vmatprep.subr.bf16.mxu0 %v4593
        %6447 = vmatpush1.bf16.msra.mxu0 %v4592
        %6448 = vmatprep.subr.bf16.mxu0 %v4591
        %6449 = vmatpush1.bf16.msra.mxu0 %v4590
        %6450 = vmatprep.subr.bf16.mxu0 %v4621
        %6451 = vmatpush2.bf16.msra.mxu0 %v4620
        %6452 = vmatprep.subr.bf16.mxu0 %v4619
        %6453 = vmatpush2.bf16.msra.mxu0 %v4618
        %6454 = vmatprep.subr.bf16.mxu0 %v4617
        %6455 = vmatpush2.bf16.msra.mxu0 %v4616
        %6456 = vmatprep.subr.bf16.mxu0 %v4615
        %6457 = vmatpush2.bf16.msra.mxu0 %v4614
        %6458 = vmatprep.subr.bf16.mxu0 %v4613
        %6459 = vmatpush2.bf16.msra.mxu0 %v4612
        %6460 = vmatprep.subr.bf16.mxu0 %v4611
        %6461 = vmatpush2.bf16.msra.mxu0 %v4610
        %6462 = vmatprep.subr.bf16.mxu0 %v4609
        %6463 = vmatpush2.bf16.msra.mxu0 %v4608
        %6464 = vmatprep.subr.bf16.mxu0 %v4607
        %6465 = vmatpush2.bf16.msra.mxu0 %v4606
        %6466 = vmatprep.mubr.bf16.mxu0 %v1366
        %6467 = vmatmul.mubr.bf16.gmra.mxu0 %v1352
        %v6468 = vpop.f32.mrf.mxu0
        %v6469 = vadd.f32 %v6428, %v6468
        %v6470 = vpop.f32.mrf.mxu0
        %v6471 = vadd.f32 %v6430, %v6470
        %v6472 = vpop.f32.mrf.mxu0
        %v6473 = vpop.f32.mrf.mxu0
        %6474 = vdwg.mxu0
        %6475 = vmatprep.subr.bf16.mxu0 %v4637
        %6476 = vmatpush1.bf16.msra.mxu0 %v4636
        %6477 = vmatprep.subr.bf16.mxu0 %v4635
        %6478 = vmatpush1.bf16.msra.mxu0 %v4634
        %6479 = vmatprep.subr.bf16.mxu0 %v4633
        %6480 = vmatpush1.bf16.msra.mxu0 %v4632
        %6481 = vmatprep.subr.bf16.mxu0 %v4631
        %6482 = vmatpush1.bf16.msra.mxu0 %v4630
        %6483 = vmatprep.subr.bf16.mxu0 %v4629
        %6484 = vmatpush1.bf16.msra.mxu0 %v4628
        %6485 = vmatprep.subr.bf16.mxu0 %v4627
        %6486 = vmatpush1.bf16.msra.mxu0 %v4626
        %6487 = vmatprep.subr.bf16.mxu0 %v4625
        %6488 = vmatpush1.bf16.msra.mxu0 %v4624
        %6489 = vmatprep.subr.bf16.mxu0 %v4623
        %6490 = vmatpush1.bf16.msra.mxu0 %v4622
        %6491 = vmatprep.subr.bf16.mxu0 %v4653
        %6492 = vmatpush2.bf16.msra.mxu0 %v4652
        %6493 = vmatprep.subr.bf16.mxu0 %v4651
        %6494 = vmatpush2.bf16.msra.mxu0 %v4650
        %6495 = vmatprep.subr.bf16.mxu0 %v4649
        %6496 = vmatpush2.bf16.msra.mxu0 %v4648
        %6497 = vmatprep.subr.bf16.mxu0 %v4647
        %6498 = vmatpush2.bf16.msra.mxu0 %v4646
        %6499 = vmatprep.subr.bf16.mxu0 %v4645
        %6500 = vmatpush2.bf16.msra.mxu0 %v4644
        %6501 = vmatprep.subr.bf16.mxu0 %v4643
        %6502 = vmatpush2.bf16.msra.mxu0 %v4642
        %6503 = vmatprep.subr.bf16.mxu0 %v4641
        %6504 = vmatpush2.bf16.msra.mxu0 %v4640
        %6505 = vmatprep.subr.bf16.mxu0 %v4639
        %6506 = vmatpush2.bf16.msra.mxu0 %v4638
        %6507 = vmatprep.mubr.bf16.mxu0 %v1376
        %6508 = vmatmul.mubr.bf16.gmra.mxu0 %v1374
        %v6509 = vpop.f32.mrf.mxu0
        %v6510 = vadd.f32 %v6469, %v6509
        %v6511 = vpop.f32.mrf.mxu0
        %v6512 = vadd.f32 %v6471, %v6511
        %v6513 = vpop.f32.mrf.mxu0
        %v6514 = vpop.f32.mrf.mxu0
        %6515 = vdwg.mxu0
        %6516 = vmatprep.subr.bf16.mxu0 %v4669
        %6517 = vmatpush1.bf16.msra.mxu0 %v4668
        %6518 = vmatprep.subr.bf16.mxu0 %v4667
        %6519 = vmatpush1.bf16.msra.mxu0 %v4666
        %6520 = vmatprep.subr.bf16.mxu0 %v4665
        %6521 = vmatpush1.bf16.msra.mxu0 %v4664
        %6522 = vmatprep.subr.bf16.mxu0 %v4663
        %6523 = vmatpush1.bf16.msra.mxu0 %v4662
        %6524 = vmatprep.subr.bf16.mxu0 %v4661
        %6525 = vmatpush1.bf16.msra.mxu0 %v4660
        %6526 = vmatprep.subr.bf16.mxu0 %v4659
        %6527 = vmatpush1.bf16.msra.mxu0 %v4658
        %6528 = vmatprep.subr.bf16.mxu0 %v4657
        %6529 = vmatpush1.bf16.msra.mxu0 %v4656
        %6530 = vmatprep.subr.bf16.mxu0 %v4655
        %6531 = vmatpush1.bf16.msra.mxu0 %v4654
        %6532 = vmatprep.subr.bf16.mxu0 %v4685
        %6533 = vmatpush2.bf16.msra.mxu0 %v4684
        %6534 = vmatprep.subr.bf16.mxu0 %v4683
        %6535 = vmatpush2.bf16.msra.mxu0 %v4682
        %6536 = vmatprep.subr.bf16.mxu0 %v4681
        %6537 = vmatpush2.bf16.msra.mxu0 %v4680
        %6538 = vmatprep.subr.bf16.mxu0 %v4679
        %6539 = vmatpush2.bf16.msra.mxu0 %v4678
        %6540 = vmatprep.subr.bf16.mxu0 %v4677
        %6541 = vmatpush2.bf16.msra.mxu0 %v4676
        %6542 = vmatprep.subr.bf16.mxu0 %v4675
        %6543 = vmatpush2.bf16.msra.mxu0 %v4674
        %6544 = vmatprep.subr.bf16.mxu0 %v4673
        %6545 = vmatpush2.bf16.msra.mxu0 %v4672
        %6546 = vmatprep.subr.bf16.mxu0 %v4671
        %6547 = vmatpush2.bf16.msra.mxu0 %v4670
        %6548 = vmatprep.mubr.bf16.mxu0 %v1373
        %6549 = vmatmul.mubr.bf16.gmra.mxu0 %v1359
        %v6550 = vpop.f32.mrf.mxu0
        %v6551 = vadd.f32 %v6510, %v6550
        %v6552 = vpop.f32.mrf.mxu0
        %v6553 = vadd.f32 %v6512, %v6552
        %v6554 = vpop.f32.mrf.mxu0
        %v6555 = vpop.f32.mrf.mxu0
        %6556 = vdwg.mxu0
        %6557 = vmatprep.subr.bf16.mxu0 %v4701
        %6558 = vmatpush1.bf16.msra.mxu0 %v4700
        %6559 = vmatprep.subr.bf16.mxu0 %v4699
        %6560 = vmatpush1.bf16.msra.mxu0 %v4698
        %6561 = vmatprep.subr.bf16.mxu0 %v4697
        %6562 = vmatpush1.bf16.msra.mxu0 %v4696
        %6563 = vmatprep.subr.bf16.mxu0 %v4695
        %6564 = vmatpush1.bf16.msra.mxu0 %v4694
        %6565 = vmatprep.subr.bf16.mxu0 %v4693
        %6566 = vmatpush1.bf16.msra.mxu0 %v4692
        %6567 = vmatprep.subr.bf16.mxu0 %v4691
        %6568 = vmatpush1.bf16.msra.mxu0 %v4690
        %6569 = vmatprep.subr.bf16.mxu0 %v4689
        %6570 = vmatpush1.bf16.msra.mxu0 %v4688
        %6571 = vmatprep.subr.bf16.mxu0 %v4687
        %6572 = vmatpush1.bf16.msra.mxu0 %v4686
        %6573 = vmatprep.subr.bf16.mxu0 %v4717
        %6574 = vmatpush2.bf16.msra.mxu0 %v4716
        %6575 = vmatprep.subr.bf16.mxu0 %v4715
        %6576 = vmatpush2.bf16.msra.mxu0 %v4714
        %6577 = vmatprep.subr.bf16.mxu0 %v4713
        %6578 = vmatpush2.bf16.msra.mxu0 %v4712
        %6579 = vmatprep.subr.bf16.mxu0 %v4711
        %6580 = vmatpush2.bf16.msra.mxu0 %v4710
        %6581 = vmatprep.subr.bf16.mxu0 %v4709
        %6582 = vmatpush2.bf16.msra.mxu0 %v4708
        %6583 = vmatprep.subr.bf16.mxu0 %v4707
        %6584 = vmatpush2.bf16.msra.mxu0 %v4706
        %6585 = vmatprep.subr.bf16.mxu0 %v4705
        %6586 = vmatpush2.bf16.msra.mxu0 %v4704
        %6587 = vmatprep.subr.bf16.mxu0 %v4703
        %6588 = vmatpush2.bf16.msra.mxu0 %v4702
        %6589 = vmatprep.mubr.bf16.mxu0 %v1377
        %6590 = vmatmul.mubr.bf16.gmra.mxu0 %v1375
        %v6591 = vpop.f32.mrf.mxu0
        %v6592 = vadd.f32 %v6551, %v6591
        %v6593 = vpop.f32.mrf.mxu0
        %v6594 = vadd.f32 %v6553, %v6593
        %v6595 = vpop.f32.mrf.mxu0
        %v6596 = vpop.f32.mrf.mxu0
        %6597 = vdwg.mxu0
        %6598 = vmatprep.subr.bf16.mxu0 %v4733
        %6599 = vmatpush1.bf16.msra.mxu0 %v4732
        %6600 = vmatprep.subr.bf16.mxu0 %v4731
        %6601 = vmatpush1.bf16.msra.mxu0 %v4730
        %6602 = vmatprep.subr.bf16.mxu0 %v4729
        %6603 = vmatpush1.bf16.msra.mxu0 %v4728
        %6604 = vmatprep.subr.bf16.mxu0 %v4727
        %6605 = vmatpush1.bf16.msra.mxu0 %v4726
        %6606 = vmatprep.subr.bf16.mxu0 %v4725
        %6607 = vmatpush1.bf16.msra.mxu0 %v4724
        %6608 = vmatprep.subr.bf16.mxu0 %v4723
        %6609 = vmatpush1.bf16.msra.mxu0 %v4722
        %6610 = vmatprep.subr.bf16.mxu0 %v4721
        %6611 = vmatpush1.bf16.msra.mxu0 %v4720
        %6612 = vmatprep.subr.bf16.mxu0 %v4719
        %6613 = vmatpush1.bf16.msra.mxu0 %v4718
        %6614 = vmatprep.subr.bf16.mxu0 %v4749
        %6615 = vmatpush2.bf16.msra.mxu0 %v4748
        %6616 = vmatprep.subr.bf16.mxu0 %v4747
        %6617 = vmatpush2.bf16.msra.mxu0 %v4746
        %6618 = vmatprep.subr.bf16.mxu0 %v4745
        %6619 = vmatpush2.bf16.msra.mxu0 %v4744
        %6620 = vmatprep.subr.bf16.mxu0 %v4743
        %6621 = vmatpush2.bf16.msra.mxu0 %v4742
        %6622 = vmatprep.subr.bf16.mxu0 %v4741
        %6623 = vmatpush2.bf16.msra.mxu0 %v4740
        %6624 = vmatprep.subr.bf16.mxu0 %v4739
        %6625 = vmatpush2.bf16.msra.mxu0 %v4738
        %6626 = vmatprep.subr.bf16.mxu0 %v4737
        %6627 = vmatpush2.bf16.msra.mxu0 %v4736
        %6628 = vmatprep.subr.bf16.mxu0 %v4735
        %6629 = vmatpush2.bf16.msra.mxu0 %v4734
        %6630 = vmatprep.mubr.bf16.mxu0 %v1399
        %6631 = vmatmul.mubr.bf16.gmra.mxu0 %v1392
        %v6632 = vpop.f32.mrf.mxu0
        %v6633 = vadd.f32 %v6592, %v6632
        %v6634 = vpop.f32.mrf.mxu0
        %v6635 = vadd.f32 %v6594, %v6634
        %v6636 = vpop.f32.mrf.mxu0
        %v6637 = vpop.f32.mrf.mxu0
        %6638 = vdwg.mxu0
        %6639 = vmatprep.subr.bf16.mxu0 %v4765
        %6640 = vmatpush1.bf16.msra.mxu0 %v4764
        %6641 = vmatprep.subr.bf16.mxu0 %v4763
        %6642 = vmatpush1.bf16.msra.mxu0 %v4762
        %6643 = vmatprep.subr.bf16.mxu0 %v4761
        %6644 = vmatpush1.bf16.msra.mxu0 %v4760
        %6645 = vmatprep.subr.bf16.mxu0 %v4759
        %6646 = vmatpush1.bf16.msra.mxu0 %v4758
        %6647 = vmatprep.subr.bf16.mxu0 %v4757
        %6648 = vmatpush1.bf16.msra.mxu0 %v4756
        %6649 = vmatprep.subr.bf16.mxu0 %v4755
        %6650 = vmatpush1.bf16.msra.mxu0 %v4754
        %6651 = vmatprep.subr.bf16.mxu0 %v4753
        %6652 = vmatpush1.bf16.msra.mxu0 %v4752
        %6653 = vmatprep.subr.bf16.mxu0 %v4751
        %6654 = vmatpush1.bf16.msra.mxu0 %v4750
        %6655 = vmatprep.subr.bf16.mxu0 %v4781
        %6656 = vmatpush2.bf16.msra.mxu0 %v4780
        %6657 = vmatprep.subr.bf16.mxu0 %v4779
        %6658 = vmatpush2.bf16.msra.mxu0 %v4778
        %6659 = vmatprep.subr.bf16.mxu0 %v4777
        %6660 = vmatpush2.bf16.msra.mxu0 %v4776
        %6661 = vmatprep.subr.bf16.mxu0 %v4775
        %6662 = vmatpush2.bf16.msra.mxu0 %v4774
        %6663 = vmatprep.subr.bf16.mxu0 %v4773
        %6664 = vmatpush2.bf16.msra.mxu0 %v4772
        %6665 = vmatprep.subr.bf16.mxu0 %v4771
        %6666 = vmatpush2.bf16.msra.mxu0 %v4770
        %6667 = vmatprep.subr.bf16.mxu0 %v4769
        %6668 = vmatpush2.bf16.msra.mxu0 %v4768
        %6669 = vmatprep.subr.bf16.mxu0 %v4767
        %6670 = vmatpush2.bf16.msra.mxu0 %v4766
        %6671 = vmatprep.mubr.bf16.mxu0 %v1401
        %6672 = vmatmul.mubr.bf16.gmra.mxu0 %v1400
        %v6673 = vpop.f32.mrf.mxu0
        %v6674 = vadd.f32 %v6633, %v6673
        %v6675 = vpop.f32.mrf.mxu0
        %v6676 = vadd.f32 %v6635, %v6675
        %v6677 = vpop.f32.mrf.mxu0
        %v6678 = vpop.f32.mrf.mxu0
        %6679 = vdwg.mxu0
        %v6682 = vcombine.low %v6674, %v6676
        %v6684 = vunpack.c.l.s4 1983009808
        %v6685 = vunpack.c.0.s8 %v6684
        %v6686 = vlaneseq
        %v6687 = vshrl.u32 %v6686, 7
        %v6688 = vsub.s32 %v6685, %v6687
        %v6689 = vrot.slane %v6682, %v6688
        %v6691 = vadd.f32 %v234, %v6689
        %6692 = vst [vmem:[#allocation2] sm:$0xf] %v6691
        %p6693 = scmp.eq.s32.totalorder %s22, 12
        // Predicated region
        $region41: #{net_forward.8} parent=31 // pred_check
          %p6694 = pneg %p6693
        $region42: #{net_forward.8} parent=31 // pred_check_branch
          %6696 = sbr.rel (%p6694) target = $region44
        $region43: #{net_forward.8} parent=31 // pred_region
          %v6697 = vld [vmem:[#allocation2] sm:$0xf]
          %v6698 = vld [vmem:[%s221] sm:$0x3]
          %v6700 = vlaneseq
          %v6701 = vshrl.u32 %v6700, 7
          %v6702 = vsub.s32 0, %v6701
          %v6703 = vrot.slane %v6698, %v6702
          %v6704 = vlaneseq
          %v6705 = vshrl.u32 %v6704, 7
          %v6706 = vsub.s32 1, %v6705
          %v6707 = vrot.slane %v6698, %v6706
          %v6708 = vcombine.low %v6703, %v6707
          %v6710 = vunpack.c.l.s4 1983009808
          %v6711 = vunpack.c.0.s8 %v6710
          %v6712 = vlaneseq
          %v6713 = vshrl.u32 %v6712, 7
          %v6714 = vsub.s32 %v6711, %v6713
          %v6715 = vrot.slane %v6708, %v6714
          %v6717 = vadd.f32 %v6697, %v6715
          %v6718 = vmax.f32 %v6717, 0.0
          %v6721 = vunpack.c.l.s4 1983009808
          %v6722 = vunpack.c.0.s8 %v6721
          %v6723 = vlaneseq
          %v6724 = vshrl.u32 %v6723, 7
          %v6725 = vsub.s32 %v6722, %v6724
          %v6726 = vrot.slane %v6718, %v6725
          %v6727 = vcombine.high %v6726, %v6726
          %v6730 = vpack.c.bf16 %v6726, %v6726
          %v6731 = vpack.c.bf16 %v6727, %v6727
          %v6734 = vcombine.low %v6730, %v6731
          %v6736 = vunpack.c.l.s4 1966171168
          %v6737 = vunpack.c.0.s8 %v6736
          %v6738 = vlaneseq
          %v6739 = vshrl.u32 %v6738, 7
          %v6740 = vsub.s32 %v6737, %v6739
          %v6741 = vrot.slane %v6734, %v6740
          %v6743 = vunpack.c.l.s4 1966171168
          %v6744 = vunpack.c.0.s8 %v6743
          %v6745 = vlaneseq
          %v6746 = vshrl.u32 %v6745, 7
          %v6747 = vsub.s32 %v6744, %v6746
          %v6748 = vrot.slane %v6741, %v6747
          %6750 = vst [vmem:[%s226] sm:$0x3] %v6748
        $region44: #{net_forward.8} parent=31 // pred_fallthru
          _
        %s6751 = smul.u32 2, %s21
        %p6752 = scmp.lt.s32.totalorder %s6751, 3
        %s6753 = scalar_select %p6752, %s6751, 3
        %s6754 = scalar_lea.vmem %s3, %s6753
        // Predicated region
        $region45: #{net_forward.8} parent=31 // pred_check
          %p6755 = pneg %p122
        $region46: #{net_forward.8} parent=31 // pred_check_branch
          %6757 = sbr.rel (%p6755) target = $region48
        $region47: #{net_forward.8} parent=31 // pred_region
          %s6758 = smul.u32 2, %s21
        $region48: #{net_forward.8} parent=31 // pred_fallthru
          _
      $region32: #{net_forward.8} parent=5 // pred_fallthru
        _
      %p6759 = scmp.le.s32.totalorder 2, %s12
      // Predicated region
      $region49: #{net_forward.8} parent=5 // pred_check
        %p6760 = pneg %p6759
      $region50: #{net_forward.8} parent=5 // pred_check_branch
        %6762 = sbr.rel (%p6760) target = $region52
      $region51: #{net_forward.8} parent=5 // pred_region
        %s6763 = ssub.s32 %s12, 2
        // Predicated region
        $region53: #{net_forward.8} parent=51 // pred_check
          %p6764 = pneg %p128
        $region54: #{net_forward.8} parent=51 // pred_check_branch
          %6766 = sbr.rel (%p6764) target = $region56
        $region55: #{net_forward.8} parent=51 // pred_region
          %s6767 = smul.u32 2, %s23
          %p6768 = scmp.lt.s32.totalorder %s6767, 3
          %s6769 = scalar_select %p6768, %s6767, 3
          %s6770 = scalar_lea.vmem %s3, %s6769
        $region56: #{net_forward.8} parent=51 // pred_fallthru
          _
      $region52: #{net_forward.8} parent=5 // pred_fallthru
        _
    $region6: #{net_forward.8} parent=1 // loop_footer
      %s16 = sadd.s32 1, %s12
    $region7: #{net_forward.8} parent=1 // loop_footer_branch
      %11 = sbr.rel target = $region3
    $region8: #{net_forward.8} parent=1 // loop_exit
      _
    %6771 = vsyncpa [#allocation4], 1
    %s6772 = scalar_lea.sflag [#allocation4], 1
    %6773 = vsyncpa %s6772, 1

</llo_original>
